<compile_context>
chip_gen: v7x
topology: tpu7x:2x2x1
jax: 0.10.0
libtpu: 0.0.40
codegen_flags: <defaults>
</compile_context>

<pallas_src>
import functools
import math

import numpy as np
import jax
import jax.numpy as jnp
from jax import lax
from jax.experimental import pallas as pl
from jax.experimental.pallas import tpu as pltpu


# ----------------------------------------------------------------------------------
# Sorting-network construction (pure numpy ports of the torch module's builders).
# ----------------------------------------------------------------------------------
def odd_even_network(n):
    layers = n
    network = []
    shifted = False
    even = n % 2 == 0
    for _ in range(layers):
        if even:
            k = n // 2 + shifted
        else:
            k = n // 2 + 1
        split_a, split_b = np.zeros((k, n)), np.zeros((k, n))
        combine_min, combine_max = np.zeros((n, k)), np.zeros((n, k))
        count = 0
        for i in range(int(shifted), n - 1, 2):
            a, b = i, i + 1
            split_a[count, a], split_b[count, b] = 1, 1
            combine_min[a, count], combine_max[b, count] = 1, 1
            count += 1
        if even and shifted:
            a, b = 0, 0
            split_a[count, a], split_b[count, b] = 1, 1
            combine_min[a, count], combine_max[b, count] = 0.5, 0.5
            count += 1
            a, b = n - 1, n - 1
            split_a[count, a], split_b[count, b] = 1, 1
            combine_min[a, count], combine_max[b, count] = 0.5, 0.5
            count += 1
        elif not even:
            if shifted:
                a, b = 0, 0
            else:
                a, b = n - 1, n - 1
            split_a[count, a], split_b[count, b] = 1, 1
            combine_min[a, count], combine_max[b, count] = 0.5, 0.5
            count += 1
        assert count == k
        network.append((split_a, split_b, combine_min, combine_max))
        shifted = not shifted
    return network


def bitonic_network(n):
    IDENTITY_MAP_FACTOR = 0.5
    num_blocks = math.ceil(np.log2(n))
    assert n <= 2 ** num_blocks
    network = []
    for block_idx in range(num_blocks):
        for layer_idx in range(block_idx + 1):
            m = 2 ** (block_idx - layer_idx)
            split_a, split_b = (np.zeros((n, 2 ** num_blocks)), np.zeros((n, 2 ** num_blocks)))
            combine_min, combine_max = (np.zeros((2 ** num_blocks, n)), np.zeros((2 ** num_blocks, n)))
            count = 0
            for i in range(0, 2 ** num_blocks, 2 * m):
                for j in range(m):
                    ix = i + j
                    a, b = ix, ix + m
                    if a >= 2 ** num_blocks - n and b >= 2 ** num_blocks - n:
                        split_a[count, a], split_b[count, b] = 1, 1
                        if ix // 2 ** (block_idx + 1) % 2 == 1:
                            a, b = b, a
                        combine_min[a, count], combine_max[b, count] = 1, 1
                        count += 1
                    elif a < 2 ** num_blocks - n and b < 2 ** num_blocks - n:
                        pass
                    elif a >= 2 ** num_blocks - n and b < 2 ** num_blocks - n:
                        split_a[count, a], split_b[count, a] = 1, 1
                        combine_min[a, count], combine_max[a, count] = (IDENTITY_MAP_FACTOR, IDENTITY_MAP_FACTOR)
                        count += 1
                    elif a < 2 ** num_blocks - n and b >= 2 ** num_blocks - n:
                        split_a[count, b], split_b[count, b] = 1, 1
                        combine_min[b, count], combine_max[b, count] = (IDENTITY_MAP_FACTOR, IDENTITY_MAP_FACTOR)
                        count += 1
                    else:
                        assert False
            split_a = split_a[:count, 2 ** num_blocks - n:]
            split_b = split_b[:count, 2 ** num_blocks - n:]
            combine_min = combine_min[2 ** num_blocks - n:, :count]
            combine_max = combine_max[2 ** num_blocks - n:, :count]
            network.append((split_a, split_b, combine_min, combine_max))
    return network


def _stack_network(network):
    """Stack per-layer matrices along a leading layer axis, zero-padded to k_max."""
    L = len(network)
    n = network[0][0].shape[1]
    k_max = max(sa.shape[0] for sa, _, _, _ in network)
    SA = np.zeros((L, k_max, n), np.float32)
    SB = np.zeros((L, k_max, n), np.float32)
    CMIN = np.zeros((L, n, k_max), np.float32)
    CMAX = np.zeros((L, n, k_max), np.float32)
    for l, (sa, sb, cmin, cmax) in enumerate(network):
        k = sa.shape[0]
        SA[l, :k] = sa
        SB[l, :k] = sb
        CMIN[l, :, :k] = cmin
        CMAX[l, :, :k] = cmax
    return SA, SB, CMIN, CMAX


def _prep_constants(network):
    """Host-side prep: pre-transpose, fuse, lane-pad k to a multiple of 128.

    Returns AB (L, 2, n, k_pad) = [SA^T, SB^T] and CD (L, 2, k_pad, n) =
    [CMAX^T, (CMIN - CMAX)^T].  Zero padding is exact: padded compare columns give
    a=b=0 -> alpha=0.5 -> x_min=0, and their combine rows are all-zero anyway.
    """
    SA, SB, CMIN, CMAX = _stack_network(network)
    L, k_max, n = SA.shape
    k_pad = max(128, ((k_max + 127) // 128) * 128)
    AB = np.zeros((L, 2, n, k_pad), np.float32)
    AB[:, 0, :, :k_max] = SA.transpose(0, 2, 1)
    AB[:, 1, :, :k_max] = SB.transpose(0, 2, 1)
    CD = np.zeros((L, 2, k_pad, n), np.float32)
    CD[:, 0, :k_max, :] = CMAX.transpose(0, 2, 1)
    CD[:, 1, :k_max, :] = (CMIN - CMAX).transpose(0, 2, 1)
    return AB, CD, k_pad


def _choose_layer_unroll(L, n, k_pad):
    """Largest divisor of L (<= 8) whose per-step constants block stays ~4 MiB."""
    per_layer_bytes = 4 * 4 * n * k_pad  # AB + CD, f32
    cap = max(1, (4 << 20) // per_layer_bytes)
    u = min(cap, 8, L)
    while L % u:
        u -= 1
    return max(u, 1)


def _choose_batch_tile(B, n, k_pad):
    """Largest divisor of B whose live X-sized working set stays ~14 MiB (fits v7x)."""
    per_batch_bytes = 4 * (2 * n * n + 3 * n * k_pad)  # X old/new + aX/bX/w_min, f32
    tb = max(1, min(B, (14 << 20) // max(per_batch_bytes, 1)))
    while B % tb:
        tb -= 1
    return max(tb, 1)


# ----------------------------------------------------------------------------------
# In-kernel float32 arctan (Cephes atanf-style).  Divisions are replaced by EUP
# approximate reciprocals refined with one Newton step (near full f32 precision).
# ----------------------------------------------------------------------------------
def _recip(x):
    r = pl.reciprocal(x, approx=True)
    return r * (2.0 - x * r)


def _atan_f32(x):
    sign = jnp.where(x < 0.0, -1.0, 1.0)
    ax = jnp.abs(x)
    big = ax > 2.414213562373095     # tan(3*pi/8)
    mid = ax > 0.4142135623730951    # tan(pi/8)
    y0 = jnp.where(big, math.pi / 2, jnp.where(mid, math.pi / 4, 0.0))
    inv_ax = _recip(ax + 1e-30)      # eps keeps unselected lanes finite
    inv_ap1 = _recip(ax + 1.0)
    xr = jnp.where(big, -inv_ax, jnp.where(mid, (ax - 1.0) * inv_ap1, ax))
    z = xr * xr
    p = ((((8.05374449538e-2 * z - 1.38776856032e-1) * z + 1.99777106478e-1) * z
          - 3.33329491539e-1) * z * xr + xr)
    return sign * (y0 + p)


# ----------------------------------------------------------------------------------
# Pallas kernel: one grid step == one batch tile x U sorting-network layers.
# ----------------------------------------------------------------------------------
def _diffsort_kernel(x_in_ref, ab_ref, cd_ref, x_out_ref, perm_out_ref,
                     *, steepness, n, k_pad, tb, u):
    @pl.when(pl.program_id(1) == 0)
    def _():
        # Initialize the carried state: x <- input vectors, X <- batched identity.
        x_out_ref[...] = x_in_ref[...]
        rows = lax.broadcasted_iota(jnp.int32, (n, n), 0)
        cols = lax.broadcasted_iota(jnp.int32, (n, n), 1)
        eye = (rows == cols).astype(jnp.float32)
        perm_out_ref[...] = jnp.broadcast_to(eye[None], (tb, n, n))

    x = x_out_ref[...]                                # (tb, n)     f32
    Xf = perm_out_ref[...].reshape(tb * n, n)         # (tb*n, n)   f32

    inv_pi = 1.0 / math.pi
    for j in range(u):                                # static unroll over U layers
        sa_t = ab_ref[j, 0]                           # (n, k_pad)   = split_a^T
        sb_t = ab_ref[j, 1]                           # (n, k_pad)   = split_b^T
        cmax_t = cd_ref[j, 0]                         # (k_pad, n)   = combine_max^T
        d_t = cd_ref[j, 1]                            # (k_pad, n)   = (cmin - cmax)^T

        # ---- x path -------------------------------------------------------------
        a = jnp.dot(x, sa_t, preferred_element_type=jnp.float32)    # (tb, k_pad)
        b = jnp.dot(x, sb_t, preferred_element_type=jnp.float32)    # (tb, k_pad)
        # distribution == 'cauchy':  alpha = atan(steepness * (b - a)) / pi + 0.5
        alpha = _atan_f32(steepness * (b - a)) * inv_pi + 0.5
        x_min = alpha * a + (1.0 - alpha) * b
        # x_new = x_min @ (CMIN-CMAX)^T + (a+b) @ CMAX^T   (since x_max = a+b - x_min)
        x = (jnp.dot(x_min, d_t, preferred_element_type=jnp.float32)
             + jnp.dot(a + b, cmax_t, preferred_element_type=jnp.float32))

        # ---- X (permutation matrix) path: flattened 2-D MXU matmuls --------------
        aX = jnp.dot(Xf, sa_t, preferred_element_type=jnp.float32)  # (tb*n, k_pad)
        bX = jnp.dot(Xf, sb_t, preferred_element_type=jnp.float32)  # (tb*n, k_pad)
        am = alpha[:, None, :]                                      # (tb, 1, k_pad)
        w_min = (am * aX.reshape(tb, n, k_pad)
                 + (1.0 - am) * bX.reshape(tb, n, k_pad)).reshape(tb * n, k_pad)
        # X_new = w_min @ (CMIN-CMAX)^T + (aX+bX) @ CMAX^T  (w_max = aX+bX - w_min)
        Xf = (jnp.dot(w_min, d_t, preferred_element_type=jnp.float32)
              + jnp.dot(aX + bX, cmax_t, preferred_element_type=jnp.float32))

    x_out_ref[...] = x
    perm_out_ref[...] = Xf.reshape(tb, n, n)


def diffsort_pallas(vectors, AB, CD, steepness, k_pad, layer_unroll):
    B, n = vectors.shape
    L = AB.shape[0]
    U = layer_unroll
    TB = _choose_batch_tile(B, n, k_pad)
    x32 = vectors.astype(jnp.float32)

    kernel = functools.partial(_diffsort_kernel, steepness=float(steepness),
                               n=n, k_pad=k_pad, tb=TB, u=U)
    sorted32, perm32 = pl.pallas_call(
        kernel,
        out_shape=(jax.ShapeDtypeStruct((B, n), jnp.float32),
                   jax.ShapeDtypeStruct((B, n, n), jnp.float32)),
        grid_spec=pltpu.PrefetchScalarGridSpec(
            num_scalar_prefetch=0,
            grid=(B // TB, L // U),
            in_specs=[
                pl.BlockSpec((TB, n), lambda i, lb: (i, 0)),
                pl.BlockSpec((U, 2, n, k_pad), lambda i, lb: (lb, 0, 0, 0)),
                pl.BlockSpec((U, 2, k_pad, n), lambda i, lb: (lb, 0, 0, 0)),
            ],
            out_specs=[
                pl.BlockSpec((TB, n), lambda i, lb: (i, 0)),
                pl.BlockSpec((TB, n, n), lambda i, lb: (i, 0, 0)),
            ],
        ),
        compiler_params=pltpu.CompilerParams(
            dimension_semantics=("parallel", "arbitrary"),
            vmem_limit_bytes=64 * 1024 * 1024,
        ),
    )(x32, AB, CD)
    return sorted32.astype(vectors.dtype), perm32.astype(vectors.dtype)


# ----------------------------------------------------------------------------------
# Module wrapper (mirrors CustomDiffSortNet's constructor / forward).
# ----------------------------------------------------------------------------------
class CustomDiffSortNetPallas:
    def __init__(self, sorting_network_type, size, steepness=10.0, art_lambda=0.25,
                 interpolation_type=None, distribution='cauchy'):
        if sorting_network_type == 'odd_even':
            self.network = odd_even_network(size)
        elif sorting_network_type == 'bitonic':
            self.network = bitonic_network(size)
        else:
            raise NotImplementedError(f'Sorting network `{sorting_network_type}` unknown.')
        if interpolation_type is not None:
            distribution = interpolation_type
        if distribution != 'cauchy':
            raise NotImplementedError('only the default cauchy distribution is implemented')
        self.size = size
        self.steepness = steepness
        self.art_lambda = art_lambda
        AB, CD, k_pad = _prep_constants(self.network)
        self.k_pad = k_pad
        self.layer_unroll = _choose_layer_unroll(len(self.network), size, k_pad)
        self.AB = jnp.asarray(AB)
        self.CD = jnp.asarray(CD)

    def __call__(self, vectors):
        assert vectors.ndim == 2
        assert vectors.shape[1] == self.size
        return diffsort_pallas(vectors, self.AB, self.CD, self.steepness,
                               self.k_pad, self.layer_unroll)


# ----------------------------------------------------------------------------------
# Pure-JAX reference (original unpadded / untransposed math) for validation.
# ----------------------------------------------------------------------------------
def execute_sort_ref(network, vectors, steepness=10.0):
    x = jnp.asarray(vectors, jnp.float32)
    B, n = x.shape
    X = jnp.broadcast_to(jnp.eye(n, dtype=x.dtype), (B, n, n))
    for sa, sb, cmin, cmax in network:
        sa = jnp.asarray(sa, x.dtype)
        sb = jnp.asarray(sb, x.dtype)
        cmin = jnp.asarray(cmin, x.dtype)
        cmax = jnp.asarray(cmax, x.dtype)
        a = x @ sa.T
        b = x @ sb.T
        alpha = jnp.arctan(steepness * (b - a)) / math.pi + 0.5
        aX = X @ sa.T
        bX = X @ sb.T
        am = alpha[:, None, :]
        w_min = am * aX + (1 - am) * bX
        w_max = (1 - am) * aX + am * bX
        X = w_max @ cmax.T + w_min @ cmin.T
        x = (alpha * a + (1 - alpha) * b) @ cmin.T + ((1 - alpha) * a + alpha * b) @ cmax.T
    return x, X


if __name__ == "__main__":
    key = jax.random.PRNGKey(0)
    B, n = 2, 8
    vectors = jax.random.normal(key, (B, n), dtype=jnp.float32)

    for net_type in ('odd_even', 'bitonic'):
        model = CustomDiffSortNetPallas(net_type, n, steepness=10.0)
        sorted_out, perm = model(vectors)
        (sorted_out, perm) = jax.block_until_ready((sorted_out, perm))

        ref_sorted, ref_perm = execute_sort_ref(model.network, vectors, steepness=10.0)
        np.testing.assert_allclose(np.asarray(sorted_out), np.asarray(ref_sorted),
                                   atol=2e-4, rtol=2e-4)
        np.testing.assert_allclose(np.asarray(perm), np.asarray(ref_perm),
                                   atol=2e-4, rtol=2e-4)

    print("KERNEL_OK")
</pallas_src>

<mosaic_0001>
module attributes {stable_mosaic.version = 11 : i64} {
  func.func @_diffsort_kernel(%arg0: i32, %arg1: i32, %arg2: memref<2x8xf32, #tpu.memory_space<vmem>>, %arg3: memref<8x2x8x128xf32, #tpu.memory_space<vmem>>, %arg4: memref<8x2x128x8xf32, #tpu.memory_space<vmem>>, %arg5: memref<2x8xf32, #tpu.memory_space<vmem>>, %arg6: memref<2x8x8xf32, #tpu.memory_space<vmem>>) attributes {dimension_semantics = [#tpu.dimension_semantics<parallel>, #tpu.dimension_semantics<arbitrary>], iteration_bounds = array<i64: 1, 1>, scalar_prefetch = 0 : i64, scratch_operands = 0 : i64, tpu.core_type = #tpu.core_type<tc>, window_params = [{transform_indices = @transform_0, window_bounds = array<i64: 2, 8>}, {transform_indices = @transform_1, window_bounds = array<i64: 8, 2, 8, 128>}, {transform_indices = @transform_2, window_bounds = array<i64: 8, 2, 128, 8>}, {transform_indices = @transform_3, window_bounds = array<i64: 2, 8>}, {transform_indices = @transform_4, window_bounds = array<i64: 2, 8, 8>}]} {
    %c0_i32 = arith.constant 0 : i32
    %0 = arith.cmpi eq, %arg1, %c0_i32 : i32
    %1 = arith.extui %0 : i1 to i32
    %c0_i32_0 = arith.constant 0 : i32
    %2 = arith.cmpi ne, %1, %c0_i32_0 : i32
    scf.if %2 {
      %c0_378 = arith.constant 0 : index
      %c0_379 = arith.constant 0 : index
      %769 = vector.load %arg2[%c0_378, %c0_379] : memref<2x8xf32, #tpu.memory_space<vmem>>, vector<2x8xf32>
      %c0_380 = arith.constant 0 : index
      %c0_381 = arith.constant 0 : index
      %770 = vector.load %arg5[%c0_380, %c0_381] : memref<2x8xf32, #tpu.memory_space<vmem>>, vector<2x8xf32>
      tpu.vector_store %arg5[%c0_380, %c0_381], %769 {strides = array<i32>} : memref<2x8xf32, #tpu.memory_space<vmem>>, vector<2x8xf32>,
      %771 = tpu.iota {dimensions = array<i32: 0>} : vector<8x8xi32>
      %772 = tpu.iota {dimensions = array<i32: 1>} : vector<8x8xi32>
      %773 = arith.cmpi eq, %771, %772 : vector<8x8xi32>
      %774 = arith.extui %773 : vector<8x8xi1> to vector<8x8xi32>
      %775 = arith.sitofp %774 : vector<8x8xi32> to vector<8x8xf32>
      %776 = vector.shape_cast %775 : vector<8x8xf32> to vector<1x8x8xf32>
      %777 = vector.shape_cast %776 : vector<1x8x8xf32> to vector<1x8x8xf32>
      %778 = vector.broadcast %777 : vector<1x8x8xf32> to vector<2x8x8xf32>
      %c0_382 = arith.constant 0 : index
      %c0_383 = arith.constant 0 : index
      %c0_384 = arith.constant 0 : index
      %779 = vector.load %arg6[%c0_382, %c0_383, %c0_384] : memref<2x8x8xf32, #tpu.memory_space<vmem>>, vector<2x8x8xf32>
      tpu.vector_store %arg6[%c0_382, %c0_383, %c0_384], %778 {strides = array<i32>} : memref<2x8x8xf32, #tpu.memory_space<vmem>>, vector<2x8x8xf32>,
    } else {
    }
    %c0 = arith.constant 0 : index
    %c0_1 = arith.constant 0 : index
    %3 = vector.load %arg5[%c0, %c0_1] : memref<2x8xf32, #tpu.memory_space<vmem>>, vector<2x8xf32>
    %c0_2 = arith.constant 0 : index
    %c0_3 = arith.constant 0 : index
    %c0_4 = arith.constant 0 : index
    %4 = vector.load %arg6[%c0_2, %c0_3, %c0_4] : memref<2x8x8xf32, #tpu.memory_space<vmem>>, vector<2x8x8xf32>
    %5 = vector.shape_cast %4 : vector<2x8x8xf32> to vector<16x8xf32>
    %c0_5 = arith.constant 0 : index
    %c0_6 = arith.constant 0 : index
    %c0_7 = arith.constant 0 : index
    %c0_8 = arith.constant 0 : index
    %6 = vector.load %arg3[%c0_5, %c0_6, %c0_7, %c0_8] : memref<8x2x8x128xf32, #tpu.memory_space<vmem>>, vector<1x1x8x128xf32>
    %7 = vector.shape_cast %6 : vector<1x1x8x128xf32> to vector<8x128xf32>
    %c0_9 = arith.constant 0 : index
    %c1 = arith.constant 1 : index
    %c0_10 = arith.constant 0 : index
    %c0_11 = arith.constant 0 : index
    %8 = vector.load %arg3[%c0_9, %c1, %c0_10, %c0_11] : memref<8x2x8x128xf32, #tpu.memory_space<vmem>>, vector<1x1x8x128xf32>
    %9 = vector.shape_cast %8 : vector<1x1x8x128xf32> to vector<8x128xf32>
    %c0_12 = arith.constant 0 : index
    %c0_13 = arith.constant 0 : index
    %c0_14 = arith.constant 0 : index
    %c0_15 = arith.constant 0 : index
    %10 = vector.load %arg4[%c0_12, %c0_13, %c0_14, %c0_15] : memref<8x2x128x8xf32, #tpu.memory_space<vmem>>, vector<1x1x128x8xf32>
    %11 = vector.shape_cast %10 : vector<1x1x128x8xf32> to vector<128x8xf32>
    %c0_16 = arith.constant 0 : index
    %c1_17 = arith.constant 1 : index
    %c0_18 = arith.constant 0 : index
    %c0_19 = arith.constant 0 : index
    %12 = vector.load %arg4[%c0_16, %c1_17, %c0_18, %c0_19] : memref<8x2x128x8xf32, #tpu.memory_space<vmem>>, vector<1x1x128x8xf32>
    %13 = vector.shape_cast %12 : vector<1x1x128x8xf32> to vector<128x8xf32>
    %cst = arith.constant dense<0.000000e+00> : vector<2x128xf32>
    %14 = tpu.matmul %3, %7, %cst {dimension_numbers = #tpu.dot_dimension_numbers<[1], [0], [0], [1], [0, 0, 1, 1], [], []>} : vector<2x8xf32>, vector<8x128xf32>, vector<2x128xf32> -> vector<2x128xf32>
    %cst_20 = arith.constant dense<0.000000e+00> : vector<2x128xf32>
    %15 = tpu.matmul %3, %9, %cst_20 {dimension_numbers = #tpu.dot_dimension_numbers<[1], [0], [0], [1], [0, 0, 1, 1], [], []>} : vector<2x8xf32>, vector<8x128xf32>, vector<2x128xf32> -> vector<2x128xf32>
    %16 = arith.subf %15, %14 : vector<2x128xf32>
    %cst_21 = arith.constant 1.000000e+01 : f32
    %17 = vector.broadcast %cst_21 : f32 to vector<2x128xf32>
    %18 = arith.mulf %17, %16 : vector<2x128xf32>
    %cst_22 = arith.constant 0.000000e+00 : f32
    %19 = vector.broadcast %cst_22 : f32 to vector<2x128xf32>
    %20 = arith.cmpf olt, %18, %19 : vector<2x128xf32>
    %cst_23 = arith.constant -1.000000e+00 : f32
    %cst_24 = arith.constant 1.000000e+00 : f32
    %21 = vector.broadcast %cst_23 : f32 to vector<2x128xf32>
    %22 = vector.broadcast %cst_24 : f32 to vector<2x128xf32>
    %23 = arith.select %20, %21, %22 : vector<2x128xi1>, vector<2x128xf32>
    %24 = math.absf %18 : vector<2x128xf32>
    %cst_25 = arith.constant 2.41421366 : f32
    %25 = vector.broadcast %cst_25 : f32 to vector<2x128xf32>
    %26 = arith.cmpf ogt, %24, %25 : vector<2x128xf32>
    %cst_26 = arith.constant 0.414213568 : f32
    %27 = vector.broadcast %cst_26 : f32 to vector<2x128xf32>
    %28 = arith.cmpf ogt, %24, %27 : vector<2x128xf32>
    %cst_27 = arith.constant 0.785398185 : f32
    %cst_28 = arith.constant 0.000000e+00 : f32
    %29 = vector.broadcast %cst_27 : f32 to vector<2x128xf32>
    %30 = vector.broadcast %cst_28 : f32 to vector<2x128xf32>
    %31 = arith.select %28, %29, %30 : vector<2x128xi1>, vector<2x128xf32>
    %cst_29 = arith.constant 1.57079637 : f32
    %32 = vector.broadcast %cst_29 : f32 to vector<2x128xf32>
    %33 = arith.select %26, %32, %31 : vector<2x128xi1>, vector<2x128xf32>
    %cst_30 = arith.constant 1.000000e-30 : f32
    %34 = vector.broadcast %cst_30 : f32 to vector<2x128xf32>
    %35 = arith.addf %24, %34 : vector<2x128xf32>
    %36 = tpu.reciprocal %35 {approx = true} : vector<2x128xf32> -> vector<2x128xf32>
    %37 = arith.mulf %35, %36 : vector<2x128xf32>
    %cst_31 = arith.constant 2.000000e+00 : f32
    %38 = vector.broadcast %cst_31 : f32 to vector<2x128xf32>
    %39 = arith.subf %38, %37 : vector<2x128xf32>
    %40 = arith.mulf %36, %39 : vector<2x128xf32>
    %cst_32 = arith.constant 1.000000e+00 : f32
    %41 = vector.broadcast %cst_32 : f32 to vector<2x128xf32>
    %42 = arith.addf %24, %41 : vector<2x128xf32>
    %43 = tpu.reciprocal %42 {approx = true} : vector<2x128xf32> -> vector<2x128xf32>
    %44 = arith.mulf %42, %43 : vector<2x128xf32>
    %cst_33 = arith.constant 2.000000e+00 : f32
    %45 = vector.broadcast %cst_33 : f32 to vector<2x128xf32>
    %46 = arith.subf %45, %44 : vector<2x128xf32>
    %47 = arith.mulf %43, %46 : vector<2x128xf32>
    %cst_34 = arith.constant 0.000000e+00 : f32
    %48 = vector.broadcast %cst_34 : f32 to vector<2x128xf32>
    %49 = arith.subf %48, %40 : vector<2x128xf32>
    %cst_35 = arith.constant 1.000000e+00 : f32
    %50 = vector.broadcast %cst_35 : f32 to vector<2x128xf32>
    %51 = arith.subf %24, %50 : vector<2x128xf32>
    %52 = arith.mulf %51, %47 : vector<2x128xf32>
    %53 = arith.select %28, %52, %24 : vector<2x128xi1>, vector<2x128xf32>
    %54 = arith.select %26, %49, %53 : vector<2x128xi1>, vector<2x128xf32>
    %55 = arith.mulf %54, %54 : vector<2x128xf32>
    %cst_36 = arith.constant 0.0805374458 : f32
    %56 = vector.broadcast %cst_36 : f32 to vector<2x128xf32>
    %57 = arith.mulf %56, %55 : vector<2x128xf32>
    %cst_37 = arith.constant 0.138776854 : f32
    %58 = vector.broadcast %cst_37 : f32 to vector<2x128xf32>
    %59 = arith.subf %57, %58 : vector<2x128xf32>
    %60 = arith.mulf %59, %55 : vector<2x128xf32>
    %cst_38 = arith.constant 0.199777111 : f32
    %61 = vector.broadcast %cst_38 : f32 to vector<2x128xf32>
    %62 = arith.addf %60, %61 : vector<2x128xf32>
    %63 = arith.mulf %62, %55 : vector<2x128xf32>
    %cst_39 = arith.constant 0.333329499 : f32
    %64 = vector.broadcast %cst_39 : f32 to vector<2x128xf32>
    %65 = arith.subf %63, %64 : vector<2x128xf32>
    %66 = arith.mulf %65, %55 : vector<2x128xf32>
    %67 = arith.mulf %66, %54 : vector<2x128xf32>
    %68 = arith.addf %67, %54 : vector<2x128xf32>
    %69 = arith.addf %33, %68 : vector<2x128xf32>
    %70 = arith.mulf %23, %69 : vector<2x128xf32>
    %cst_40 = arith.constant 0.318309873 : f32
    %71 = vector.broadcast %cst_40 : f32 to vector<2x128xf32>
    %72 = arith.mulf %70, %71 : vector<2x128xf32>
    %cst_41 = arith.constant 5.000000e-01 : f32
    %73 = vector.broadcast %cst_41 : f32 to vector<2x128xf32>
    %74 = arith.addf %72, %73 : vector<2x128xf32>
    %75 = arith.mulf %74, %14 : vector<2x128xf32>
    %cst_42 = arith.constant 1.000000e+00 : f32
    %76 = vector.broadcast %cst_42 : f32 to vector<2x128xf32>
    %77 = arith.subf %76, %74 : vector<2x128xf32>
    %78 = arith.mulf %77, %15 : vector<2x128xf32>
    %79 = arith.addf %75, %78 : vector<2x128xf32>
    %cst_43 = arith.constant dense<0.000000e+00> : vector<2x8xf32>
    %80 = tpu.matmul %79, %13, %cst_43 {dimension_numbers = #tpu.dot_dimension_numbers<[1], [0], [0], [1], [0, 0, 1, 1], [], []>} : vector<2x128xf32>, vector<128x8xf32>, vector<2x8xf32> -> vector<2x8xf32>
    %81 = arith.addf %14, %15 : vector<2x128xf32>
    %cst_44 = arith.constant dense<0.000000e+00> : vector<2x8xf32>
    %82 = tpu.matmul %81, %11, %cst_44 {dimension_numbers = #tpu.dot_dimension_numbers<[1], [0], [0], [1], [0, 0, 1, 1], [], []>} : vector<2x128xf32>, vector<128x8xf32>, vector<2x8xf32> -> vector<2x8xf32>
    %83 = arith.addf %80, %82 : vector<2x8xf32>
    %cst_45 = arith.constant dense<0.000000e+00> : vector<16x128xf32>
    %84 = tpu.matmul %5, %7, %cst_45 {dimension_numbers = #tpu.dot_dimension_numbers<[1], [0], [0], [1], [0, 0, 1, 1], [], []>} : vector<16x8xf32>, vector<8x128xf32>, vector<16x128xf32> -> vector<16x128xf32>
    %cst_46 = arith.constant dense<0.000000e+00> : vector<16x128xf32>
    %85 = tpu.matmul %5, %9, %cst_46 {dimension_numbers = #tpu.dot_dimension_numbers<[1], [0], [0], [1], [0, 0, 1, 1], [], []>} : vector<16x8xf32>, vector<8x128xf32>, vector<16x128xf32> -> vector<16x128xf32>
    %86 = vector.shape_cast %74 : vector<2x128xf32> to vector<2x1x128xf32>
    %87 = vector.shape_cast %84 : vector<16x128xf32> to vector<2x8x128xf32>
    %88 = vector.broadcast %86 : vector<2x1x128xf32> to vector<2x8x128xf32>
    %89 = arith.mulf %88, %87 : vector<2x8x128xf32>
    %cst_47 = arith.constant 1.000000e+00 : f32
    %90 = vector.broadcast %cst_47 : f32 to vector<2x1x128xf32>
    %91 = arith.subf %90, %86 : vector<2x1x128xf32>
    %92 = vector.shape_cast %85 : vector<16x128xf32> to vector<2x8x128xf32>
    %93 = vector.broadcast %91 : vector<2x1x128xf32> to vector<2x8x128xf32>
    %94 = arith.mulf %93, %92 : vector<2x8x128xf32>
    %95 = arith.addf %89, %94 : vector<2x8x128xf32>
    %96 = vector.shape_cast %95 : vector<2x8x128xf32> to vector<16x128xf32>
    %cst_48 = arith.constant dense<0.000000e+00> : vector<16x8xf32>
    %97 = tpu.matmul %96, %13, %cst_48 {dimension_numbers = #tpu.dot_dimension_numbers<[1], [0], [0], [1], [0, 0, 1, 1], [], []>} : vector<16x128xf32>, vector<128x8xf32>, vector<16x8xf32> -> vector<16x8xf32>
    %98 = arith.addf %84, %85 : vector<16x128xf32>
    %cst_49 = arith.constant dense<0.000000e+00> : vector<16x8xf32>
    %99 = tpu.matmul %98, %11, %cst_49 {dimension_numbers = #tpu.dot_dimension_numbers<[1], [0], [0], [1], [0, 0, 1, 1], [], []>} : vector<16x128xf32>, vector<128x8xf32>, vector<16x8xf32> -> vector<16x8xf32>
    %100 = arith.addf %97, %99 : vector<16x8xf32>
    %c1_50 = arith.constant 1 : index
    %c0_51 = arith.constant 0 : index
    %c0_52 = arith.constant 0 : index
    %c0_53 = arith.constant 0 : index
    %101 = vector.load %arg3[%c1_50, %c0_51, %c0_52, %c0_53] : memref<8x2x8x128xf32, #tpu.memory_space<vmem>>, vector<1x1x8x128xf32>
    %102 = vector.shape_cast %101 : vector<1x1x8x128xf32> to vector<8x128xf32>
    %c1_54 = arith.constant 1 : index
    %c1_55 = arith.constant 1 : index
    %c0_56 = arith.constant 0 : index
    %c0_57 = arith.constant 0 : index
    %103 = vector.load %arg3[%c1_54, %c1_55, %c0_56, %c0_57] : memref<8x2x8x128xf32, #tpu.memory_space<vmem>>, vector<1x1x8x128xf32>
    %104 = vector.shape_cast %103 : vector<1x1x8x128xf32> to vector<8x128xf32>
    %c1_58 = arith.constant 1 : index
    %c0_59 = arith.constant 0 : index
    %c0_60 = arith.constant 0 : index
    %c0_61 = arith.constant 0 : index
    %105 = vector.load %arg4[%c1_58, %c0_59, %c0_60, %c0_61] : memref<8x2x128x8xf32, #tpu.memory_space<vmem>>, vector<1x1x128x8xf32>
    %106 = vector.shape_cast %105 : vector<1x1x128x8xf32> to vector<128x8xf32>
    %c1_62 = arith.constant 1 : index
    %c1_63 = arith.constant 1 : index
    %c0_64 = arith.constant 0 : index
    %c0_65 = arith.constant 0 : index
    %107 = vector.load %arg4[%c1_62, %c1_63, %c0_64, %c0_65] : memref<8x2x128x8xf32, #tpu.memory_space<vmem>>, vector<1x1x128x8xf32>
    %108 = vector.shape_cast %107 : vector<1x1x128x8xf32> to vector<128x8xf32>
    %cst_66 = arith.constant dense<0.000000e+00> : vector<2x128xf32>
    %109 = tpu.matmul %83, %102, %cst_66 {dimension_numbers = #tpu.dot_dimension_numbers<[1], [0], [0], [1], [0, 0, 1, 1], [], []>} : vector<2x8xf32>, vector<8x128xf32>, vector<2x128xf32> -> vector<2x128xf32>
    %cst_67 = arith.constant dense<0.000000e+00> : vector<2x128xf32>
    %110 = tpu.matmul %83, %104, %cst_67 {dimension_numbers = #tpu.dot_dimension_numbers<[1], [0], [0], [1], [0, 0, 1, 1], [], []>} : vector<2x8xf32>, vector<8x128xf32>, vector<2x128xf32> -> vector<2x128xf32>
    %111 = arith.subf %110, %109 : vector<2x128xf32>
    %cst_68 = arith.constant 1.000000e+01 : f32
    %112 = vector.broadcast %cst_68 : f32 to vector<2x128xf32>
    %113 = arith.mulf %112, %111 : vector<2x128xf32>
    %cst_69 = arith.constant 0.000000e+00 : f32
    %114 = vector.broadcast %cst_69 : f32 to vector<2x128xf32>
    %115 = arith.cmpf olt, %113, %114 : vector<2x128xf32>
    %cst_70 = arith.constant -1.000000e+00 : f32
    %cst_71 = arith.constant 1.000000e+00 : f32
    %116 = vector.broadcast %cst_70 : f32 to vector<2x128xf32>
    %117 = vector.broadcast %cst_71 : f32 to vector<2x128xf32>
    %118 = arith.select %115, %116, %117 : vector<2x128xi1>, vector<2x128xf32>
    %119 = math.absf %113 : vector<2x128xf32>
    %cst_72 = arith.constant 2.41421366 : f32
    %120 = vector.broadcast %cst_72 : f32 to vector<2x128xf32>
    %121 = arith.cmpf ogt, %119, %120 : vector<2x128xf32>
    %cst_73 = arith.constant 0.414213568 : f32
    %122 = vector.broadcast %cst_73 : f32 to vector<2x128xf32>
    %123 = arith.cmpf ogt, %119, %122 : vector<2x128xf32>
    %cst_74 = arith.constant 0.785398185 : f32
    %cst_75 = arith.constant 0.000000e+00 : f32
    %124 = vector.broadcast %cst_74 : f32 to vector<2x128xf32>
    %125 = vector.broadcast %cst_75 : f32 to vector<2x128xf32>
    %126 = arith.select %123, %124, %125 : vector<2x128xi1>, vector<2x128xf32>
    %cst_76 = arith.constant 1.57079637 : f32
    %127 = vector.broadcast %cst_76 : f32 to vector<2x128xf32>
    %128 = arith.select %121, %127, %126 : vector<2x128xi1>, vector<2x128xf32>
    %cst_77 = arith.constant 1.000000e-30 : f32
    %129 = vector.broadcast %cst_77 : f32 to vector<2x128xf32>
    %130 = arith.addf %119, %129 : vector<2x128xf32>
    %131 = tpu.reciprocal %130 {approx = true} : vector<2x128xf32> -> vector<2x128xf32>
    %132 = arith.mulf %130, %131 : vector<2x128xf32>
    %cst_78 = arith.constant 2.000000e+00 : f32
    %133 = vector.broadcast %cst_78 : f32 to vector<2x128xf32>
    %134 = arith.subf %133, %132 : vector<2x128xf32>
    %135 = arith.mulf %131, %134 : vector<2x128xf32>
    %cst_79 = arith.constant 1.000000e+00 : f32
    %136 = vector.broadcast %cst_79 : f32 to vector<2x128xf32>
    %137 = arith.addf %119, %136 : vector<2x128xf32>
    %138 = tpu.reciprocal %137 {approx = true} : vector<2x128xf32> -> vector<2x128xf32>
    %139 = arith.mulf %137, %138 : vector<2x128xf32>
    %cst_80 = arith.constant 2.000000e+00 : f32
    %140 = vector.broadcast %cst_80 : f32 to vector<2x128xf32>
    %141 = arith.subf %140, %139 : vector<2x128xf32>
    %142 = arith.mulf %138, %141 : vector<2x128xf32>
    %cst_81 = arith.constant 0.000000e+00 : f32
    %143 = vector.broadcast %cst_81 : f32 to vector<2x128xf32>
    %144 = arith.subf %143, %135 : vector<2x128xf32>
    %cst_82 = arith.constant 1.000000e+00 : f32
    %145 = vector.broadcast %cst_82 : f32 to vector<2x128xf32>
    %146 = arith.subf %119, %145 : vector<2x128xf32>
    %147 = arith.mulf %146, %142 : vector<2x128xf32>
    %148 = arith.select %123, %147, %119 : vector<2x128xi1>, vector<2x128xf32>
    %149 = arith.select %121, %144, %148 : vector<2x128xi1>, vector<2x128xf32>
    %150 = arith.mulf %149, %149 : vector<2x128xf32>
    %cst_83 = arith.constant 0.0805374458 : f32
    %151 = vector.broadcast %cst_83 : f32 to vector<2x128xf32>
    %152 = arith.mulf %151, %150 : vector<2x128xf32>
    %cst_84 = arith.constant 0.138776854 : f32
    %153 = vector.broadcast %cst_84 : f32 to vector<2x128xf32>
    %154 = arith.subf %152, %153 : vector<2x128xf32>
    %155 = arith.mulf %154, %150 : vector<2x128xf32>
    %cst_85 = arith.constant 0.199777111 : f32
    %156 = vector.broadcast %cst_85 : f32 to vector<2x128xf32>
    %157 = arith.addf %155, %156 : vector<2x128xf32>
    %158 = arith.mulf %157, %150 : vector<2x128xf32>
    %cst_86 = arith.constant 0.333329499 : f32
    %159 = vector.broadcast %cst_86 : f32 to vector<2x128xf32>
    %160 = arith.subf %158, %159 : vector<2x128xf32>
    %161 = arith.mulf %160, %150 : vector<2x128xf32>
    %162 = arith.mulf %161, %149 : vector<2x128xf32>
    %163 = arith.addf %162, %149 : vector<2x128xf32>
    %164 = arith.addf %128, %163 : vector<2x128xf32>
    %165 = arith.mulf %118, %164 : vector<2x128xf32>
    %cst_87 = arith.constant 0.318309873 : f32
    %166 = vector.broadcast %cst_87 : f32 to vector<2x128xf32>
    %167 = arith.mulf %165, %166 : vector<2x128xf32>
    %cst_88 = arith.constant 5.000000e-01 : f32
    %168 = vector.broadcast %cst_88 : f32 to vector<2x128xf32>
    %169 = arith.addf %167, %168 : vector<2x128xf32>
    %170 = arith.mulf %169, %109 : vector<2x128xf32>
    %cst_89 = arith.constant 1.000000e+00 : f32
    %171 = vector.broadcast %cst_89 : f32 to vector<2x128xf32>
    %172 = arith.subf %171, %169 : vector<2x128xf32>
    %173 = arith.mulf %172, %110 : vector<2x128xf32>
    %174 = arith.addf %170, %173 : vector<2x128xf32>
    %cst_90 = arith.constant dense<0.000000e+00> : vector<2x8xf32>
    %175 = tpu.matmul %174, %108, %cst_90 {dimension_numbers = #tpu.dot_dimension_numbers<[1], [0], [0], [1], [0, 0, 1, 1], [], []>} : vector<2x128xf32>, vector<128x8xf32>, vector<2x8xf32> -> vector<2x8xf32>
    %176 = arith.addf %109, %110 : vector<2x128xf32>
    %cst_91 = arith.constant dense<0.000000e+00> : vector<2x8xf32>
    %177 = tpu.matmul %176, %106, %cst_91 {dimension_numbers = #tpu.dot_dimension_numbers<[1], [0], [0], [1], [0, 0, 1, 1], [], []>} : vector<2x128xf32>, vector<128x8xf32>, vector<2x8xf32> -> vector<2x8xf32>
    %178 = arith.addf %175, %177 : vector<2x8xf32>
    %cst_92 = arith.constant dense<0.000000e+00> : vector<16x128xf32>
    %179 = tpu.matmul %100, %102, %cst_92 {dimension_numbers = #tpu.dot_dimension_numbers<[1], [0], [0], [1], [0, 0, 1, 1], [], []>} : vector<16x8xf32>, vector<8x128xf32>, vector<16x128xf32> -> vector<16x128xf32>
    %cst_93 = arith.constant dense<0.000000e+00> : vector<16x128xf32>
    %180 = tpu.matmul %100, %104, %cst_93 {dimension_numbers = #tpu.dot_dimension_numbers<[1], [0], [0], [1], [0, 0, 1, 1], [], []>} : vector<16x8xf32>, vector<8x128xf32>, vector<16x128xf32> -> vector<16x128xf32>
    %181 = vector.shape_cast %169 : vector<2x128xf32> to vector<2x1x128xf32>
    %182 = vector.shape_cast %179 : vector<16x128xf32> to vector<2x8x128xf32>
    %183 = vector.broadcast %181 : vector<2x1x128xf32> to vector<2x8x128xf32>
    %184 = arith.mulf %183, %182 : vector<2x8x128xf32>
    %cst_94 = arith.constant 1.000000e+00 : f32
    %185 = vector.broadcast %cst_94 : f32 to vector<2x1x128xf32>
    %186 = arith.subf %185, %181 : vector<2x1x128xf32>
    %187 = vector.shape_cast %180 : vector<16x128xf32> to vector<2x8x128xf32>
    %188 = vector.broadcast %186 : vector<2x1x128xf32> to vector<2x8x128xf32>
    %189 = arith.mulf %188, %187 : vector<2x8x128xf32>
    %190 = arith.addf %184, %189 : vector<2x8x128xf32>
    %191 = vector.shape_cast %190 : vector<2x8x128xf32> to vector<16x128xf32>
    %cst_95 = arith.constant dense<0.000000e+00> : vector<16x8xf32>
    %192 = tpu.matmul %191, %108, %cst_95 {dimension_numbers = #tpu.dot_dimension_numbers<[1], [0], [0], [1], [0, 0, 1, 1], [], []>} : vector<16x128xf32>, vector<128x8xf32>, vector<16x8xf32> -> vector<16x8xf32>
    %193 = arith.addf %179, %180 : vector<16x128xf32>
    %cst_96 = arith.constant dense<0.000000e+00> : vector<16x8xf32>
    %194 = tpu.matmul %193, %106, %cst_96 {dimension_numbers = #tpu.dot_dimension_numbers<[1], [0], [0], [1], [0, 0, 1, 1], [], []>} : vector<16x128xf32>, vector<128x8xf32>, vector<16x8xf32> -> vector<16x8xf32>
    %195 = arith.addf %192, %194 : vector<16x8xf32>
    %c2 = arith.constant 2 : index
    %c0_97 = arith.constant 0 : index
    %c0_98 = arith.constant 0 : index
    %c0_99 = arith.constant 0 : index
    %196 = vector.load %arg3[%c2, %c0_97, %c0_98, %c0_99] : memref<8x2x8x128xf32, #tpu.memory_space<vmem>>, vector<1x1x8x128xf32>
    %197 = vector.shape_cast %196 : vector<1x1x8x128xf32> to vector<8x128xf32>
    %c2_100 = arith.constant 2 : index
    %c1_101 = arith.constant 1 : index
    %c0_102 = arith.constant 0 : index
    %c0_103 = arith.constant 0 : index
    %198 = vector.load %arg3[%c2_100, %c1_101, %c0_102, %c0_103] : memref<8x2x8x128xf32, #tpu.memory_space<vmem>>, vector<1x1x8x128xf32>
    %199 = vector.shape_cast %198 : vector<1x1x8x128xf32> to vector<8x128xf32>
    %c2_104 = arith.constant 2 : index
    %c0_105 = arith.constant 0 : index
    %c0_106 = arith.constant 0 : index
    %c0_107 = arith.constant 0 : index
    %200 = vector.load %arg4[%c2_104, %c0_105, %c0_106, %c0_107] : memref<8x2x128x8xf32, #tpu.memory_space<vmem>>, vector<1x1x128x8xf32>
    %201 = vector.shape_cast %200 : vector<1x1x128x8xf32> to vector<128x8xf32>
    %c2_108 = arith.constant 2 : index
    %c1_109 = arith.constant 1 : index
    %c0_110 = arith.constant 0 : index
    %c0_111 = arith.constant 0 : index
    %202 = vector.load %arg4[%c2_108, %c1_109, %c0_110, %c0_111] : memref<8x2x128x8xf32, #tpu.memory_space<vmem>>, vector<1x1x128x8xf32>
    %203 = vector.shape_cast %202 : vector<1x1x128x8xf32> to vector<128x8xf32>
    %cst_112 = arith.constant dense<0.000000e+00> : vector<2x128xf32>
    %204 = tpu.matmul %178, %197, %cst_112 {dimension_numbers = #tpu.dot_dimension_numbers<[1], [0], [0], [1], [0, 0, 1, 1], [], []>} : vector<2x8xf32>, vector<8x128xf32>, vector<2x128xf32> -> vector<2x128xf32>
    %cst_113 = arith.constant dense<0.000000e+00> : vector<2x128xf32>
    %205 = tpu.matmul %178, %199, %cst_113 {dimension_numbers = #tpu.dot_dimension_numbers<[1], [0], [0], [1], [0, 0, 1, 1], [], []>} : vector<2x8xf32>, vector<8x128xf32>, vector<2x128xf32> -> vector<2x128xf32>
    %206 = arith.subf %205, %204 : vector<2x128xf32>
    %cst_114 = arith.constant 1.000000e+01 : f32
    %207 = vector.broadcast %cst_114 : f32 to vector<2x128xf32>
    %208 = arith.mulf %207, %206 : vector<2x128xf32>
    %cst_115 = arith.constant 0.000000e+00 : f32
    %209 = vector.broadcast %cst_115 : f32 to vector<2x128xf32>
    %210 = arith.cmpf olt, %208, %209 : vector<2x128xf32>
    %cst_116 = arith.constant -1.000000e+00 : f32
    %cst_117 = arith.constant 1.000000e+00 : f32
    %211 = vector.broadcast %cst_116 : f32 to vector<2x128xf32>
    %212 = vector.broadcast %cst_117 : f32 to vector<2x128xf32>
    %213 = arith.select %210, %211, %212 : vector<2x128xi1>, vector<2x128xf32>
    %214 = math.absf %208 : vector<2x128xf32>
    %cst_118 = arith.constant 2.41421366 : f32
    %215 = vector.broadcast %cst_118 : f32 to vector<2x128xf32>
    %216 = arith.cmpf ogt, %214, %215 : vector<2x128xf32>
    %cst_119 = arith.constant 0.414213568 : f32
    %217 = vector.broadcast %cst_119 : f32 to vector<2x128xf32>
    %218 = arith.cmpf ogt, %214, %217 : vector<2x128xf32>
    %cst_120 = arith.constant 0.785398185 : f32
    %cst_121 = arith.constant 0.000000e+00 : f32
    %219 = vector.broadcast %cst_120 : f32 to vector<2x128xf32>
    %220 = vector.broadcast %cst_121 : f32 to vector<2x128xf32>
    %221 = arith.select %218, %219, %220 : vector<2x128xi1>, vector<2x128xf32>
    %cst_122 = arith.constant 1.57079637 : f32
    %222 = vector.broadcast %cst_122 : f32 to vector<2x128xf32>
    %223 = arith.select %216, %222, %221 : vector<2x128xi1>, vector<2x128xf32>
    %cst_123 = arith.constant 1.000000e-30 : f32
    %224 = vector.broadcast %cst_123 : f32 to vector<2x128xf32>
    %225 = arith.addf %214, %224 : vector<2x128xf32>
    %226 = tpu.reciprocal %225 {approx = true} : vector<2x128xf32> -> vector<2x128xf32>
    %227 = arith.mulf %225, %226 : vector<2x128xf32>
    %cst_124 = arith.constant 2.000000e+00 : f32
    %228 = vector.broadcast %cst_124 : f32 to vector<2x128xf32>
    %229 = arith.subf %228, %227 : vector<2x128xf32>
    %230 = arith.mulf %226, %229 : vector<2x128xf32>
    %cst_125 = arith.constant 1.000000e+00 : f32
    %231 = vector.broadcast %cst_125 : f32 to vector<2x128xf32>
    %232 = arith.addf %214, %231 : vector<2x128xf32>
    %233 = tpu.reciprocal %232 {approx = true} : vector<2x128xf32> -> vector<2x128xf32>
    %234 = arith.mulf %232, %233 : vector<2x128xf32>
    %cst_126 = arith.constant 2.000000e+00 : f32
    %235 = vector.broadcast %cst_126 : f32 to vector<2x128xf32>
    %236 = arith.subf %235, %234 : vector<2x128xf32>
    %237 = arith.mulf %233, %236 : vector<2x128xf32>
    %cst_127 = arith.constant 0.000000e+00 : f32
    %238 = vector.broadcast %cst_127 : f32 to vector<2x128xf32>
    %239 = arith.subf %238, %230 : vector<2x128xf32>
    %cst_128 = arith.constant 1.000000e+00 : f32
    %240 = vector.broadcast %cst_128 : f32 to vector<2x128xf32>
    %241 = arith.subf %214, %240 : vector<2x128xf32>
    %242 = arith.mulf %241, %237 : vector<2x128xf32>
    %243 = arith.select %218, %242, %214 : vector<2x128xi1>, vector<2x128xf32>
    %244 = arith.select %216, %239, %243 : vector<2x128xi1>, vector<2x128xf32>
    %245 = arith.mulf %244, %244 : vector<2x128xf32>
    %cst_129 = arith.constant 0.0805374458 : f32
    %246 = vector.broadcast %cst_129 : f32 to vector<2x128xf32>
    %247 = arith.mulf %246, %245 : vector<2x128xf32>
    %cst_130 = arith.constant 0.138776854 : f32
    %248 = vector.broadcast %cst_130 : f32 to vector<2x128xf32>
    %249 = arith.subf %247, %248 : vector<2x128xf32>
    %250 = arith.mulf %249, %245 : vector<2x128xf32>
    %cst_131 = arith.constant 0.199777111 : f32
    %251 = vector.broadcast %cst_131 : f32 to vector<2x128xf32>
    %252 = arith.addf %250, %251 : vector<2x128xf32>
    %253 = arith.mulf %252, %245 : vector<2x128xf32>
    %cst_132 = arith.constant 0.333329499 : f32
    %254 = vector.broadcast %cst_132 : f32 to vector<2x128xf32>
    %255 = arith.subf %253, %254 : vector<2x128xf32>
    %256 = arith.mulf %255, %245 : vector<2x128xf32>
    %257 = arith.mulf %256, %244 : vector<2x128xf32>
    %258 = arith.addf %257, %244 : vector<2x128xf32>
    %259 = arith.addf %223, %258 : vector<2x128xf32>
    %260 = arith.mulf %213, %259 : vector<2x128xf32>
    %cst_133 = arith.constant 0.318309873 : f32
    %261 = vector.broadcast %cst_133 : f32 to vector<2x128xf32>
    %262 = arith.mulf %260, %261 : vector<2x128xf32>
    %cst_134 = arith.constant 5.000000e-01 : f32
    %263 = vector.broadcast %cst_134 : f32 to vector<2x128xf32>
    %264 = arith.addf %262, %263 : vector<2x128xf32>
    %265 = arith.mulf %264, %204 : vector<2x128xf32>
    %cst_135 = arith.constant 1.000000e+00 : f32
    %266 = vector.broadcast %cst_135 : f32 to vector<2x128xf32>
    %267 = arith.subf %266, %264 : vector<2x128xf32>
    %268 = arith.mulf %267, %205 : vector<2x128xf32>
    %269 = arith.addf %265, %268 : vector<2x128xf32>
    %cst_136 = arith.constant dense<0.000000e+00> : vector<2x8xf32>
    %270 = tpu.matmul %269, %203, %cst_136 {dimension_numbers = #tpu.dot_dimension_numbers<[1], [0], [0], [1], [0, 0, 1, 1], [], []>} : vector<2x128xf32>, vector<128x8xf32>, vector<2x8xf32> -> vector<2x8xf32>
    %271 = arith.addf %204, %205 : vector<2x128xf32>
    %cst_137 = arith.constant dense<0.000000e+00> : vector<2x8xf32>
    %272 = tpu.matmul %271, %201, %cst_137 {dimension_numbers = #tpu.dot_dimension_numbers<[1], [0], [0], [1], [0, 0, 1, 1], [], []>} : vector<2x128xf32>, vector<128x8xf32>, vector<2x8xf32> -> vector<2x8xf32>
    %273 = arith.addf %270, %272 : vector<2x8xf32>
    %cst_138 = arith.constant dense<0.000000e+00> : vector<16x128xf32>
    %274 = tpu.matmul %195, %197, %cst_138 {dimension_numbers = #tpu.dot_dimension_numbers<[1], [0], [0], [1], [0, 0, 1, 1], [], []>} : vector<16x8xf32>, vector<8x128xf32>, vector<16x128xf32> -> vector<16x128xf32>
    %cst_139 = arith.constant dense<0.000000e+00> : vector<16x128xf32>
    %275 = tpu.matmul %195, %199, %cst_139 {dimension_numbers = #tpu.dot_dimension_numbers<[1], [0], [0], [1], [0, 0, 1, 1], [], []>} : vector<16x8xf32>, vector<8x128xf32>, vector<16x128xf32> -> vector<16x128xf32>
    %276 = vector.shape_cast %264 : vector<2x128xf32> to vector<2x1x128xf32>
    %277 = vector.shape_cast %274 : vector<16x128xf32> to vector<2x8x128xf32>
    %278 = vector.broadcast %276 : vector<2x1x128xf32> to vector<2x8x128xf32>
    %279 = arith.mulf %278, %277 : vector<2x8x128xf32>
    %cst_140 = arith.constant 1.000000e+00 : f32
    %280 = vector.broadcast %cst_140 : f32 to vector<2x1x128xf32>
    %281 = arith.subf %280, %276 : vector<2x1x128xf32>
    %282 = vector.shape_cast %275 : vector<16x128xf32> to vector<2x8x128xf32>
    %283 = vector.broadcast %281 : vector<2x1x128xf32> to vector<2x8x128xf32>
    %284 = arith.mulf %283, %282 : vector<2x8x128xf32>
    %285 = arith.addf %279, %284 : vector<2x8x128xf32>
    %286 = vector.shape_cast %285 : vector<2x8x128xf32> to vector<16x128xf32>
    %cst_141 = arith.constant dense<0.000000e+00> : vector<16x8xf32>
    %287 = tpu.matmul %286, %203, %cst_141 {dimension_numbers = #tpu.dot_dimension_numbers<[1], [0], [0], [1], [0, 0, 1, 1], [], []>} : vector<16x128xf32>, vector<128x8xf32>, vector<16x8xf32> -> vector<16x8xf32>
    %288 = arith.addf %274, %275 : vector<16x128xf32>
    %cst_142 = arith.constant dense<0.000000e+00> : vector<16x8xf32>
    %289 = tpu.matmul %288, %201, %cst_142 {dimension_numbers = #tpu.dot_dimension_numbers<[1], [0], [0], [1], [0, 0, 1, 1], [], []>} : vector<16x128xf32>, vector<128x8xf32>, vector<16x8xf32> -> vector<16x8xf32>
    %290 = arith.addf %287, %289 : vector<16x8xf32>
    %c3 = arith.constant 3 : index
    %c0_143 = arith.constant 0 : index
    %c0_144 = arith.constant 0 : index
    %c0_145 = arith.constant 0 : index
    %291 = vector.load %arg3[%c3, %c0_143, %c0_144, %c0_145] : memref<8x2x8x128xf32, #tpu.memory_space<vmem>>, vector<1x1x8x128xf32>
    %292 = vector.shape_cast %291 : vector<1x1x8x128xf32> to vector<8x128xf32>
    %c3_146 = arith.constant 3 : index
    %c1_147 = arith.constant 1 : index
    %c0_148 = arith.constant 0 : index
    %c0_149 = arith.constant 0 : index
    %293 = vector.load %arg3[%c3_146, %c1_147, %c0_148, %c0_149] : memref<8x2x8x128xf32, #tpu.memory_space<vmem>>, vector<1x1x8x128xf32>
    %294 = vector.shape_cast %293 : vector<1x1x8x128xf32> to vector<8x128xf32>
    %c3_150 = arith.constant 3 : index
    %c0_151 = arith.constant 0 : index
    %c0_152 = arith.constant 0 : index
    %c0_153 = arith.constant 0 : index
    %295 = vector.load %arg4[%c3_150, %c0_151, %c0_152, %c0_153] : memref<8x2x128x8xf32, #tpu.memory_space<vmem>>, vector<1x1x128x8xf32>
    %296 = vector.shape_cast %295 : vector<1x1x128x8xf32> to vector<128x8xf32>
    %c3_154 = arith.constant 3 : index
    %c1_155 = arith.constant 1 : index
    %c0_156 = arith.constant 0 : index
    %c0_157 = arith.constant 0 : index
    %297 = vector.load %arg4[%c3_154, %c1_155, %c0_156, %c0_157] : memref<8x2x128x8xf32, #tpu.memory_space<vmem>>, vector<1x1x128x8xf32>
    %298 = vector.shape_cast %297 : vector<1x1x128x8xf32> to vector<128x8xf32>
    %cst_158 = arith.constant dense<0.000000e+00> : vector<2x128xf32>
    %299 = tpu.matmul %273, %292, %cst_158 {dimension_numbers = #tpu.dot_dimension_numbers<[1], [0], [0], [1], [0, 0, 1, 1], [], []>} : vector<2x8xf32>, vector<8x128xf32>, vector<2x128xf32> -> vector<2x128xf32>
    %cst_159 = arith.constant dense<0.000000e+00> : vector<2x128xf32>
    %300 = tpu.matmul %273, %294, %cst_159 {dimension_numbers = #tpu.dot_dimension_numbers<[1], [0], [0], [1], [0, 0, 1, 1], [], []>} : vector<2x8xf32>, vector<8x128xf32>, vector<2x128xf32> -> vector<2x128xf32>
    %301 = arith.subf %300, %299 : vector<2x128xf32>
    %cst_160 = arith.constant 1.000000e+01 : f32
    %302 = vector.broadcast %cst_160 : f32 to vector<2x128xf32>
    %303 = arith.mulf %302, %301 : vector<2x128xf32>
    %cst_161 = arith.constant 0.000000e+00 : f32
    %304 = vector.broadcast %cst_161 : f32 to vector<2x128xf32>
    %305 = arith.cmpf olt, %303, %304 : vector<2x128xf32>
    %cst_162 = arith.constant -1.000000e+00 : f32
    %cst_163 = arith.constant 1.000000e+00 : f32
    %306 = vector.broadcast %cst_162 : f32 to vector<2x128xf32>
    %307 = vector.broadcast %cst_163 : f32 to vector<2x128xf32>
    %308 = arith.select %305, %306, %307 : vector<2x128xi1>, vector<2x128xf32>
    %309 = math.absf %303 : vector<2x128xf32>
    %cst_164 = arith.constant 2.41421366 : f32
    %310 = vector.broadcast %cst_164 : f32 to vector<2x128xf32>
    %311 = arith.cmpf ogt, %309, %310 : vector<2x128xf32>
    %cst_165 = arith.constant 0.414213568 : f32
    %312 = vector.broadcast %cst_165 : f32 to vector<2x128xf32>
    %313 = arith.cmpf ogt, %309, %312 : vector<2x128xf32>
    %cst_166 = arith.constant 0.785398185 : f32
    %cst_167 = arith.constant 0.000000e+00 : f32
    %314 = vector.broadcast %cst_166 : f32 to vector<2x128xf32>
    %315 = vector.broadcast %cst_167 : f32 to vector<2x128xf32>
    %316 = arith.select %313, %314, %315 : vector<2x128xi1>, vector<2x128xf32>
    %cst_168 = arith.constant 1.57079637 : f32
    %317 = vector.broadcast %cst_168 : f32 to vector<2x128xf32>
    %318 = arith.select %311, %317, %316 : vector<2x128xi1>, vector<2x128xf32>
    %cst_169 = arith.constant 1.000000e-30 : f32
    %319 = vector.broadcast %cst_169 : f32 to vector<2x128xf32>
    %320 = arith.addf %309, %319 : vector<2x128xf32>
    %321 = tpu.reciprocal %320 {approx = true} : vector<2x128xf32> -> vector<2x128xf32>
    %322 = arith.mulf %320, %321 : vector<2x128xf32>
    %cst_170 = arith.constant 2.000000e+00 : f32
    %323 = vector.broadcast %cst_170 : f32 to vector<2x128xf32>
    %324 = arith.subf %323, %322 : vector<2x128xf32>
    %325 = arith.mulf %321, %324 : vector<2x128xf32>
    %cst_171 = arith.constant 1.000000e+00 : f32
    %326 = vector.broadcast %cst_171 : f32 to vector<2x128xf32>
    %327 = arith.addf %309, %326 : vector<2x128xf32>
    %328 = tpu.reciprocal %327 {approx = true} : vector<2x128xf32> -> vector<2x128xf32>
    %329 = arith.mulf %327, %328 : vector<2x128xf32>
    %cst_172 = arith.constant 2.000000e+00 : f32
    %330 = vector.broadcast %cst_172 : f32 to vector<2x128xf32>
    %331 = arith.subf %330, %329 : vector<2x128xf32>
    %332 = arith.mulf %328, %331 : vector<2x128xf32>
    %cst_173 = arith.constant 0.000000e+00 : f32
    %333 = vector.broadcast %cst_173 : f32 to vector<2x128xf32>
    %334 = arith.subf %333, %325 : vector<2x128xf32>
    %cst_174 = arith.constant 1.000000e+00 : f32
    %335 = vector.broadcast %cst_174 : f32 to vector<2x128xf32>
    %336 = arith.subf %309, %335 : vector<2x128xf32>
    %337 = arith.mulf %336, %332 : vector<2x128xf32>
    %338 = arith.select %313, %337, %309 : vector<2x128xi1>, vector<2x128xf32>
    %339 = arith.select %311, %334, %338 : vector<2x128xi1>, vector<2x128xf32>
    %340 = arith.mulf %339, %339 : vector<2x128xf32>
    %cst_175 = arith.constant 0.0805374458 : f32
    %341 = vector.broadcast %cst_175 : f32 to vector<2x128xf32>
    %342 = arith.mulf %341, %340 : vector<2x128xf32>
    %cst_176 = arith.constant 0.138776854 : f32
    %343 = vector.broadcast %cst_176 : f32 to vector<2x128xf32>
    %344 = arith.subf %342, %343 : vector<2x128xf32>
    %345 = arith.mulf %344, %340 : vector<2x128xf32>
    %cst_177 = arith.constant 0.199777111 : f32
    %346 = vector.broadcast %cst_177 : f32 to vector<2x128xf32>
    %347 = arith.addf %345, %346 : vector<2x128xf32>
    %348 = arith.mulf %347, %340 : vector<2x128xf32>
    %cst_178 = arith.constant 0.333329499 : f32
    %349 = vector.broadcast %cst_178 : f32 to vector<2x128xf32>
    %350 = arith.subf %348, %349 : vector<2x128xf32>
    %351 = arith.mulf %350, %340 : vector<2x128xf32>
    %352 = arith.mulf %351, %339 : vector<2x128xf32>
    %353 = arith.addf %352, %339 : vector<2x128xf32>
    %354 = arith.addf %318, %353 : vector<2x128xf32>
    %355 = arith.mulf %308, %354 : vector<2x128xf32>
    %cst_179 = arith.constant 0.318309873 : f32
    %356 = vector.broadcast %cst_179 : f32 to vector<2x128xf32>
    %357 = arith.mulf %355, %356 : vector<2x128xf32>
    %cst_180 = arith.constant 5.000000e-01 : f32
    %358 = vector.broadcast %cst_180 : f32 to vector<2x128xf32>
    %359 = arith.addf %357, %358 : vector<2x128xf32>
    %360 = arith.mulf %359, %299 : vector<2x128xf32>
    %cst_181 = arith.constant 1.000000e+00 : f32
    %361 = vector.broadcast %cst_181 : f32 to vector<2x128xf32>
    %362 = arith.subf %361, %359 : vector<2x128xf32>
    %363 = arith.mulf %362, %300 : vector<2x128xf32>
    %364 = arith.addf %360, %363 : vector<2x128xf32>
    %cst_182 = arith.constant dense<0.000000e+00> : vector<2x8xf32>
    %365 = tpu.matmul %364, %298, %cst_182 {dimension_numbers = #tpu.dot_dimension_numbers<[1], [0], [0], [1], [0, 0, 1, 1], [], []>} : vector<2x128xf32>, vector<128x8xf32>, vector<2x8xf32> -> vector<2x8xf32>
    %366 = arith.addf %299, %300 : vector<2x128xf32>
    %cst_183 = arith.constant dense<0.000000e+00> : vector<2x8xf32>
    %367 = tpu.matmul %366, %296, %cst_183 {dimension_numbers = #tpu.dot_dimension_numbers<[1], [0], [0], [1], [0, 0, 1, 1], [], []>} : vector<2x128xf32>, vector<128x8xf32>, vector<2x8xf32> -> vector<2x8xf32>
    %368 = arith.addf %365, %367 : vector<2x8xf32>
    %cst_184 = arith.constant dense<0.000000e+00> : vector<16x128xf32>
    %369 = tpu.matmul %290, %292, %cst_184 {dimension_numbers = #tpu.dot_dimension_numbers<[1], [0], [0], [1], [0, 0, 1, 1], [], []>} : vector<16x8xf32>, vector<8x128xf32>, vector<16x128xf32> -> vector<16x128xf32>
    %cst_185 = arith.constant dense<0.000000e+00> : vector<16x128xf32>
    %370 = tpu.matmul %290, %294, %cst_185 {dimension_numbers = #tpu.dot_dimension_numbers<[1], [0], [0], [1], [0, 0, 1, 1], [], []>} : vector<16x8xf32>, vector<8x128xf32>, vector<16x128xf32> -> vector<16x128xf32>
    %371 = vector.shape_cast %359 : vector<2x128xf32> to vector<2x1x128xf32>
    %372 = vector.shape_cast %369 : vector<16x128xf32> to vector<2x8x128xf32>
    %373 = vector.broadcast %371 : vector<2x1x128xf32> to vector<2x8x128xf32>
    %374 = arith.mulf %373, %372 : vector<2x8x128xf32>
    %cst_186 = arith.constant 1.000000e+00 : f32
    %375 = vector.broadcast %cst_186 : f32 to vector<2x1x128xf32>
    %376 = arith.subf %375, %371 : vector<2x1x128xf32>
    %377 = vector.shape_cast %370 : vector<16x128xf32> to vector<2x8x128xf32>
    %378 = vector.broadcast %376 : vector<2x1x128xf32> to vector<2x8x128xf32>
    %379 = arith.mulf %378, %377 : vector<2x8x128xf32>
    %380 = arith.addf %374, %379 : vector<2x8x128xf32>
    %381 = vector.shape_cast %380 : vector<2x8x128xf32> to vector<16x128xf32>
    %cst_187 = arith.constant dense<0.000000e+00> : vector<16x8xf32>
    %382 = tpu.matmul %381, %298, %cst_187 {dimension_numbers = #tpu.dot_dimension_numbers<[1], [0], [0], [1], [0, 0, 1, 1], [], []>} : vector<16x128xf32>, vector<128x8xf32>, vector<16x8xf32> -> vector<16x8xf32>
    %383 = arith.addf %369, %370 : vector<16x128xf32>
    %cst_188 = arith.constant dense<0.000000e+00> : vector<16x8xf32>
    %384 = tpu.matmul %383, %296, %cst_188 {dimension_numbers = #tpu.dot_dimension_numbers<[1], [0], [0], [1], [0, 0, 1, 1], [], []>} : vector<16x128xf32>, vector<128x8xf32>, vector<16x8xf32> -> vector<16x8xf32>
    %385 = arith.addf %382, %384 : vector<16x8xf32>
    %c4 = arith.constant 4 : index
    %c0_189 = arith.constant 0 : index
    %c0_190 = arith.constant 0 : index
    %c0_191 = arith.constant 0 : index
    %386 = vector.load %arg3[%c4, %c0_189, %c0_190, %c0_191] : memref<8x2x8x128xf32, #tpu.memory_space<vmem>>, vector<1x1x8x128xf32>
    %387 = vector.shape_cast %386 : vector<1x1x8x128xf32> to vector<8x128xf32>
    %c4_192 = arith.constant 4 : index
    %c1_193 = arith.constant 1 : index
    %c0_194 = arith.constant 0 : index
    %c0_195 = arith.constant 0 : index
    %388 = vector.load %arg3[%c4_192, %c1_193, %c0_194, %c0_195] : memref<8x2x8x128xf32, #tpu.memory_space<vmem>>, vector<1x1x8x128xf32>
    %389 = vector.shape_cast %388 : vector<1x1x8x128xf32> to vector<8x128xf32>
    %c4_196 = arith.constant 4 : index
    %c0_197 = arith.constant 0 : index
    %c0_198 = arith.constant 0 : index
    %c0_199 = arith.constant 0 : index
    %390 = vector.load %arg4[%c4_196, %c0_197, %c0_198, %c0_199] : memref<8x2x128x8xf32, #tpu.memory_space<vmem>>, vector<1x1x128x8xf32>
    %391 = vector.shape_cast %390 : vector<1x1x128x8xf32> to vector<128x8xf32>
    %c4_200 = arith.constant 4 : index
    %c1_201 = arith.constant 1 : index
    %c0_202 = arith.constant 0 : index
    %c0_203 = arith.constant 0 : index
    %392 = vector.load %arg4[%c4_200, %c1_201, %c0_202, %c0_203] : memref<8x2x128x8xf32, #tpu.memory_space<vmem>>, vector<1x1x128x8xf32>
    %393 = vector.shape_cast %392 : vector<1x1x128x8xf32> to vector<128x8xf32>
    %cst_204 = arith.constant dense<0.000000e+00> : vector<2x128xf32>
    %394 = tpu.matmul %368, %387, %cst_204 {dimension_numbers = #tpu.dot_dimension_numbers<[1], [0], [0], [1], [0, 0, 1, 1], [], []>} : vector<2x8xf32>, vector<8x128xf32>, vector<2x128xf32> -> vector<2x128xf32>
    %cst_205 = arith.constant dense<0.000000e+00> : vector<2x128xf32>
    %395 = tpu.matmul %368, %389, %cst_205 {dimension_numbers = #tpu.dot_dimension_numbers<[1], [0], [0], [1], [0, 0, 1, 1], [], []>} : vector<2x8xf32>, vector<8x128xf32>, vector<2x128xf32> -> vector<2x128xf32>
    %396 = arith.subf %395, %394 : vector<2x128xf32>
    %cst_206 = arith.constant 1.000000e+01 : f32
    %397 = vector.broadcast %cst_206 : f32 to vector<2x128xf32>
    %398 = arith.mulf %397, %396 : vector<2x128xf32>
    %cst_207 = arith.constant 0.000000e+00 : f32
    %399 = vector.broadcast %cst_207 : f32 to vector<2x128xf32>
    %400 = arith.cmpf olt, %398, %399 : vector<2x128xf32>
    %cst_208 = arith.constant -1.000000e+00 : f32
    %cst_209 = arith.constant 1.000000e+00 : f32
    %401 = vector.broadcast %cst_208 : f32 to vector<2x128xf32>
    %402 = vector.broadcast %cst_209 : f32 to vector<2x128xf32>
    %403 = arith.select %400, %401, %402 : vector<2x128xi1>, vector<2x128xf32>
    %404 = math.absf %398 : vector<2x128xf32>
    %cst_210 = arith.constant 2.41421366 : f32
    %405 = vector.broadcast %cst_210 : f32 to vector<2x128xf32>
    %406 = arith.cmpf ogt, %404, %405 : vector<2x128xf32>
    %cst_211 = arith.constant 0.414213568 : f32
    %407 = vector.broadcast %cst_211 : f32 to vector<2x128xf32>
    %408 = arith.cmpf ogt, %404, %407 : vector<2x128xf32>
    %cst_212 = arith.constant 0.785398185 : f32
    %cst_213 = arith.constant 0.000000e+00 : f32
    %409 = vector.broadcast %cst_212 : f32 to vector<2x128xf32>
    %410 = vector.broadcast %cst_213 : f32 to vector<2x128xf32>
    %411 = arith.select %408, %409, %410 : vector<2x128xi1>, vector<2x128xf32>
    %cst_214 = arith.constant 1.57079637 : f32
    %412 = vector.broadcast %cst_214 : f32 to vector<2x128xf32>
    %413 = arith.select %406, %412, %411 : vector<2x128xi1>, vector<2x128xf32>
    %cst_215 = arith.constant 1.000000e-30 : f32
    %414 = vector.broadcast %cst_215 : f32 to vector<2x128xf32>
    %415 = arith.addf %404, %414 : vector<2x128xf32>
    %416 = tpu.reciprocal %415 {approx = true} : vector<2x128xf32> -> vector<2x128xf32>
    %417 = arith.mulf %415, %416 : vector<2x128xf32>
    %cst_216 = arith.constant 2.000000e+00 : f32
    %418 = vector.broadcast %cst_216 : f32 to vector<2x128xf32>
    %419 = arith.subf %418, %417 : vector<2x128xf32>
    %420 = arith.mulf %416, %419 : vector<2x128xf32>
    %cst_217 = arith.constant 1.000000e+00 : f32
    %421 = vector.broadcast %cst_217 : f32 to vector<2x128xf32>
    %422 = arith.addf %404, %421 : vector<2x128xf32>
    %423 = tpu.reciprocal %422 {approx = true} : vector<2x128xf32> -> vector<2x128xf32>
    %424 = arith.mulf %422, %423 : vector<2x128xf32>
    %cst_218 = arith.constant 2.000000e+00 : f32
    %425 = vector.broadcast %cst_218 : f32 to vector<2x128xf32>
    %426 = arith.subf %425, %424 : vector<2x128xf32>
    %427 = arith.mulf %423, %426 : vector<2x128xf32>
    %cst_219 = arith.constant 0.000000e+00 : f32
    %428 = vector.broadcast %cst_219 : f32 to vector<2x128xf32>
    %429 = arith.subf %428, %420 : vector<2x128xf32>
    %cst_220 = arith.constant 1.000000e+00 : f32
    %430 = vector.broadcast %cst_220 : f32 to vector<2x128xf32>
    %431 = arith.subf %404, %430 : vector<2x128xf32>
    %432 = arith.mulf %431, %427 : vector<2x128xf32>
    %433 = arith.select %408, %432, %404 : vector<2x128xi1>, vector<2x128xf32>
    %434 = arith.select %406, %429, %433 : vector<2x128xi1>, vector<2x128xf32>
    %435 = arith.mulf %434, %434 : vector<2x128xf32>
    %cst_221 = arith.constant 0.0805374458 : f32
    %436 = vector.broadcast %cst_221 : f32 to vector<2x128xf32>
    %437 = arith.mulf %436, %435 : vector<2x128xf32>
    %cst_222 = arith.constant 0.138776854 : f32
    %438 = vector.broadcast %cst_222 : f32 to vector<2x128xf32>
    %439 = arith.subf %437, %438 : vector<2x128xf32>
    %440 = arith.mulf %439, %435 : vector<2x128xf32>
    %cst_223 = arith.constant 0.199777111 : f32
    %441 = vector.broadcast %cst_223 : f32 to vector<2x128xf32>
    %442 = arith.addf %440, %441 : vector<2x128xf32>
    %443 = arith.mulf %442, %435 : vector<2x128xf32>
    %cst_224 = arith.constant 0.333329499 : f32
    %444 = vector.broadcast %cst_224 : f32 to vector<2x128xf32>
    %445 = arith.subf %443, %444 : vector<2x128xf32>
    %446 = arith.mulf %445, %435 : vector<2x128xf32>
    %447 = arith.mulf %446, %434 : vector<2x128xf32>
    %448 = arith.addf %447, %434 : vector<2x128xf32>
    %449 = arith.addf %413, %448 : vector<2x128xf32>
    %450 = arith.mulf %403, %449 : vector<2x128xf32>
    %cst_225 = arith.constant 0.318309873 : f32
    %451 = vector.broadcast %cst_225 : f32 to vector<2x128xf32>
    %452 = arith.mulf %450, %451 : vector<2x128xf32>
    %cst_226 = arith.constant 5.000000e-01 : f32
    %453 = vector.broadcast %cst_226 : f32 to vector<2x128xf32>
    %454 = arith.addf %452, %453 : vector<2x128xf32>
    %455 = arith.mulf %454, %394 : vector<2x128xf32>
    %cst_227 = arith.constant 1.000000e+00 : f32
    %456 = vector.broadcast %cst_227 : f32 to vector<2x128xf32>
    %457 = arith.subf %456, %454 : vector<2x128xf32>
    %458 = arith.mulf %457, %395 : vector<2x128xf32>
    %459 = arith.addf %455, %458 : vector<2x128xf32>
    %cst_228 = arith.constant dense<0.000000e+00> : vector<2x8xf32>
    %460 = tpu.matmul %459, %393, %cst_228 {dimension_numbers = #tpu.dot_dimension_numbers<[1], [0], [0], [1], [0, 0, 1, 1], [], []>} : vector<2x128xf32>, vector<128x8xf32>, vector<2x8xf32> -> vector<2x8xf32>
    %461 = arith.addf %394, %395 : vector<2x128xf32>
    %cst_229 = arith.constant dense<0.000000e+00> : vector<2x8xf32>
    %462 = tpu.matmul %461, %391, %cst_229 {dimension_numbers = #tpu.dot_dimension_numbers<[1], [0], [0], [1], [0, 0, 1, 1], [], []>} : vector<2x128xf32>, vector<128x8xf32>, vector<2x8xf32> -> vector<2x8xf32>
    %463 = arith.addf %460, %462 : vector<2x8xf32>
    %cst_230 = arith.constant dense<0.000000e+00> : vector<16x128xf32>
    %464 = tpu.matmul %385, %387, %cst_230 {dimension_numbers = #tpu.dot_dimension_numbers<[1], [0], [0], [1], [0, 0, 1, 1], [], []>} : vector<16x8xf32>, vector<8x128xf32>, vector<16x128xf32> -> vector<16x128xf32>
    %cst_231 = arith.constant dense<0.000000e+00> : vector<16x128xf32>
    %465 = tpu.matmul %385, %389, %cst_231 {dimension_numbers = #tpu.dot_dimension_numbers<[1], [0], [0], [1], [0, 0, 1, 1], [], []>} : vector<16x8xf32>, vector<8x128xf32>, vector<16x128xf32> -> vector<16x128xf32>
    %466 = vector.shape_cast %454 : vector<2x128xf32> to vector<2x1x128xf32>
    %467 = vector.shape_cast %464 : vector<16x128xf32> to vector<2x8x128xf32>
    %468 = vector.broadcast %466 : vector<2x1x128xf32> to vector<2x8x128xf32>
    %469 = arith.mulf %468, %467 : vector<2x8x128xf32>
    %cst_232 = arith.constant 1.000000e+00 : f32
    %470 = vector.broadcast %cst_232 : f32 to vector<2x1x128xf32>
    %471 = arith.subf %470, %466 : vector<2x1x128xf32>
    %472 = vector.shape_cast %465 : vector<16x128xf32> to vector<2x8x128xf32>
    %473 = vector.broadcast %471 : vector<2x1x128xf32> to vector<2x8x128xf32>
    %474 = arith.mulf %473, %472 : vector<2x8x128xf32>
    %475 = arith.addf %469, %474 : vector<2x8x128xf32>
    %476 = vector.shape_cast %475 : vector<2x8x128xf32> to vector<16x128xf32>
    %cst_233 = arith.constant dense<0.000000e+00> : vector<16x8xf32>
    %477 = tpu.matmul %476, %393, %cst_233 {dimension_numbers = #tpu.dot_dimension_numbers<[1], [0], [0], [1], [0, 0, 1, 1], [], []>} : vector<16x128xf32>, vector<128x8xf32>, vector<16x8xf32> -> vector<16x8xf32>
    %478 = arith.addf %464, %465 : vector<16x128xf32>
    %cst_234 = arith.constant dense<0.000000e+00> : vector<16x8xf32>
    %479 = tpu.matmul %478, %391, %cst_234 {dimension_numbers = #tpu.dot_dimension_numbers<[1], [0], [0], [1], [0, 0, 1, 1], [], []>} : vector<16x128xf32>, vector<128x8xf32>, vector<16x8xf32> -> vector<16x8xf32>
    %480 = arith.addf %477, %479 : vector<16x8xf32>
    %c5 = arith.constant 5 : index
    %c0_235 = arith.constant 0 : index
    %c0_236 = arith.constant 0 : index
    %c0_237 = arith.constant 0 : index
    %481 = vector.load %arg3[%c5, %c0_235, %c0_236, %c0_237] : memref<8x2x8x128xf32, #tpu.memory_space<vmem>>, vector<1x1x8x128xf32>
    %482 = vector.shape_cast %481 : vector<1x1x8x128xf32> to vector<8x128xf32>
    %c5_238 = arith.constant 5 : index
    %c1_239 = arith.constant 1 : index
    %c0_240 = arith.constant 0 : index
    %c0_241 = arith.constant 0 : index
    %483 = vector.load %arg3[%c5_238, %c1_239, %c0_240, %c0_241] : memref<8x2x8x128xf32, #tpu.memory_space<vmem>>, vector<1x1x8x128xf32>
    %484 = vector.shape_cast %483 : vector<1x1x8x128xf32> to vector<8x128xf32>
    %c5_242 = arith.constant 5 : index
    %c0_243 = arith.constant 0 : index
    %c0_244 = arith.constant 0 : index
    %c0_245 = arith.constant 0 : index
    %485 = vector.load %arg4[%c5_242, %c0_243, %c0_244, %c0_245] : memref<8x2x128x8xf32, #tpu.memory_space<vmem>>, vector<1x1x128x8xf32>
    %486 = vector.shape_cast %485 : vector<1x1x128x8xf32> to vector<128x8xf32>
    %c5_246 = arith.constant 5 : index
    %c1_247 = arith.constant 1 : index
    %c0_248 = arith.constant 0 : index
    %c0_249 = arith.constant 0 : index
    %487 = vector.load %arg4[%c5_246, %c1_247, %c0_248, %c0_249] : memref<8x2x128x8xf32, #tpu.memory_space<vmem>>, vector<1x1x128x8xf32>
    %488 = vector.shape_cast %487 : vector<1x1x128x8xf32> to vector<128x8xf32>
    %cst_250 = arith.constant dense<0.000000e+00> : vector<2x128xf32>
    %489 = tpu.matmul %463, %482, %cst_250 {dimension_numbers = #tpu.dot_dimension_numbers<[1], [0], [0], [1], [0, 0, 1, 1], [], []>} : vector<2x8xf32>, vector<8x128xf32>, vector<2x128xf32> -> vector<2x128xf32>
    %cst_251 = arith.constant dense<0.000000e+00> : vector<2x128xf32>
    %490 = tpu.matmul %463, %484, %cst_251 {dimension_numbers = #tpu.dot_dimension_numbers<[1], [0], [0], [1], [0, 0, 1, 1], [], []>} : vector<2x8xf32>, vector<8x128xf32>, vector<2x128xf32> -> vector<2x128xf32>
    %491 = arith.subf %490, %489 : vector<2x128xf32>
    %cst_252 = arith.constant 1.000000e+01 : f32
    %492 = vector.broadcast %cst_252 : f32 to vector<2x128xf32>
    %493 = arith.mulf %492, %491 : vector<2x128xf32>
    %cst_253 = arith.constant 0.000000e+00 : f32
    %494 = vector.broadcast %cst_253 : f32 to vector<2x128xf32>
    %495 = arith.cmpf olt, %493, %494 : vector<2x128xf32>
    %cst_254 = arith.constant -1.000000e+00 : f32
    %cst_255 = arith.constant 1.000000e+00 : f32
    %496 = vector.broadcast %cst_254 : f32 to vector<2x128xf32>
    %497 = vector.broadcast %cst_255 : f32 to vector<2x128xf32>
    %498 = arith.select %495, %496, %497 : vector<2x128xi1>, vector<2x128xf32>
    %499 = math.absf %493 : vector<2x128xf32>
    %cst_256 = arith.constant 2.41421366 : f32
    %500 = vector.broadcast %cst_256 : f32 to vector<2x128xf32>
    %501 = arith.cmpf ogt, %499, %500 : vector<2x128xf32>
    %cst_257 = arith.constant 0.414213568 : f32
    %502 = vector.broadcast %cst_257 : f32 to vector<2x128xf32>
    %503 = arith.cmpf ogt, %499, %502 : vector<2x128xf32>
    %cst_258 = arith.constant 0.785398185 : f32
    %cst_259 = arith.constant 0.000000e+00 : f32
    %504 = vector.broadcast %cst_258 : f32 to vector<2x128xf32>
    %505 = vector.broadcast %cst_259 : f32 to vector<2x128xf32>
    %506 = arith.select %503, %504, %505 : vector<2x128xi1>, vector<2x128xf32>
    %cst_260 = arith.constant 1.57079637 : f32
    %507 = vector.broadcast %cst_260 : f32 to vector<2x128xf32>
    %508 = arith.select %501, %507, %506 : vector<2x128xi1>, vector<2x128xf32>
    %cst_261 = arith.constant 1.000000e-30 : f32
    %509 = vector.broadcast %cst_261 : f32 to vector<2x128xf32>
    %510 = arith.addf %499, %509 : vector<2x128xf32>
    %511 = tpu.reciprocal %510 {approx = true} : vector<2x128xf32> -> vector<2x128xf32>
    %512 = arith.mulf %510, %511 : vector<2x128xf32>
    %cst_262 = arith.constant 2.000000e+00 : f32
    %513 = vector.broadcast %cst_262 : f32 to vector<2x128xf32>
    %514 = arith.subf %513, %512 : vector<2x128xf32>
    %515 = arith.mulf %511, %514 : vector<2x128xf32>
    %cst_263 = arith.constant 1.000000e+00 : f32
    %516 = vector.broadcast %cst_263 : f32 to vector<2x128xf32>
    %517 = arith.addf %499, %516 : vector<2x128xf32>
    %518 = tpu.reciprocal %517 {approx = true} : vector<2x128xf32> -> vector<2x128xf32>
    %519 = arith.mulf %517, %518 : vector<2x128xf32>
    %cst_264 = arith.constant 2.000000e+00 : f32
    %520 = vector.broadcast %cst_264 : f32 to vector<2x128xf32>
    %521 = arith.subf %520, %519 : vector<2x128xf32>
    %522 = arith.mulf %518, %521 : vector<2x128xf32>
    %cst_265 = arith.constant 0.000000e+00 : f32
    %523 = vector.broadcast %cst_265 : f32 to vector<2x128xf32>
    %524 = arith.subf %523, %515 : vector<2x128xf32>
    %cst_266 = arith.constant 1.000000e+00 : f32
    %525 = vector.broadcast %cst_266 : f32 to vector<2x128xf32>
    %526 = arith.subf %499, %525 : vector<2x128xf32>
    %527 = arith.mulf %526, %522 : vector<2x128xf32>
    %528 = arith.select %503, %527, %499 : vector<2x128xi1>, vector<2x128xf32>
    %529 = arith.select %501, %524, %528 : vector<2x128xi1>, vector<2x128xf32>
    %530 = arith.mulf %529, %529 : vector<2x128xf32>
    %cst_267 = arith.constant 0.0805374458 : f32
    %531 = vector.broadcast %cst_267 : f32 to vector<2x128xf32>
    %532 = arith.mulf %531, %530 : vector<2x128xf32>
    %cst_268 = arith.constant 0.138776854 : f32
    %533 = vector.broadcast %cst_268 : f32 to vector<2x128xf32>
    %534 = arith.subf %532, %533 : vector<2x128xf32>
    %535 = arith.mulf %534, %530 : vector<2x128xf32>
    %cst_269 = arith.constant 0.199777111 : f32
    %536 = vector.broadcast %cst_269 : f32 to vector<2x128xf32>
    %537 = arith.addf %535, %536 : vector<2x128xf32>
    %538 = arith.mulf %537, %530 : vector<2x128xf32>
    %cst_270 = arith.constant 0.333329499 : f32
    %539 = vector.broadcast %cst_270 : f32 to vector<2x128xf32>
    %540 = arith.subf %538, %539 : vector<2x128xf32>
    %541 = arith.mulf %540, %530 : vector<2x128xf32>
    %542 = arith.mulf %541, %529 : vector<2x128xf32>
    %543 = arith.addf %542, %529 : vector<2x128xf32>
    %544 = arith.addf %508, %543 : vector<2x128xf32>
    %545 = arith.mulf %498, %544 : vector<2x128xf32>
    %cst_271 = arith.constant 0.318309873 : f32
    %546 = vector.broadcast %cst_271 : f32 to vector<2x128xf32>
    %547 = arith.mulf %545, %546 : vector<2x128xf32>
    %cst_272 = arith.constant 5.000000e-01 : f32
    %548 = vector.broadcast %cst_272 : f32 to vector<2x128xf32>
    %549 = arith.addf %547, %548 : vector<2x128xf32>
    %550 = arith.mulf %549, %489 : vector<2x128xf32>
    %cst_273 = arith.constant 1.000000e+00 : f32
    %551 = vector.broadcast %cst_273 : f32 to vector<2x128xf32>
    %552 = arith.subf %551, %549 : vector<2x128xf32>
    %553 = arith.mulf %552, %490 : vector<2x128xf32>
    %554 = arith.addf %550, %553 : vector<2x128xf32>
    %cst_274 = arith.constant dense<0.000000e+00> : vector<2x8xf32>
    %555 = tpu.matmul %554, %488, %cst_274 {dimension_numbers = #tpu.dot_dimension_numbers<[1], [0], [0], [1], [0, 0, 1, 1], [], []>} : vector<2x128xf32>, vector<128x8xf32>, vector<2x8xf32> -> vector<2x8xf32>
    %556 = arith.addf %489, %490 : vector<2x128xf32>
    %cst_275 = arith.constant dense<0.000000e+00> : vector<2x8xf32>
    %557 = tpu.matmul %556, %486, %cst_275 {dimension_numbers = #tpu.dot_dimension_numbers<[1], [0], [0], [1], [0, 0, 1, 1], [], []>} : vector<2x128xf32>, vector<128x8xf32>, vector<2x8xf32> -> vector<2x8xf32>
    %558 = arith.addf %555, %557 : vector<2x8xf32>
    %cst_276 = arith.constant dense<0.000000e+00> : vector<16x128xf32>
    %559 = tpu.matmul %480, %482, %cst_276 {dimension_numbers = #tpu.dot_dimension_numbers<[1], [0], [0], [1], [0, 0, 1, 1], [], []>} : vector<16x8xf32>, vector<8x128xf32>, vector<16x128xf32> -> vector<16x128xf32>
    %cst_277 = arith.constant dense<0.000000e+00> : vector<16x128xf32>
    %560 = tpu.matmul %480, %484, %cst_277 {dimension_numbers = #tpu.dot_dimension_numbers<[1], [0], [0], [1], [0, 0, 1, 1], [], []>} : vector<16x8xf32>, vector<8x128xf32>, vector<16x128xf32> -> vector<16x128xf32>
    %561 = vector.shape_cast %549 : vector<2x128xf32> to vector<2x1x128xf32>
    %562 = vector.shape_cast %559 : vector<16x128xf32> to vector<2x8x128xf32>
    %563 = vector.broadcast %561 : vector<2x1x128xf32> to vector<2x8x128xf32>
    %564 = arith.mulf %563, %562 : vector<2x8x128xf32>
    %cst_278 = arith.constant 1.000000e+00 : f32
    %565 = vector.broadcast %cst_278 : f32 to vector<2x1x128xf32>
    %566 = arith.subf %565, %561 : vector<2x1x128xf32>
    %567 = vector.shape_cast %560 : vector<16x128xf32> to vector<2x8x128xf32>
    %568 = vector.broadcast %566 : vector<2x1x128xf32> to vector<2x8x128xf32>
    %569 = arith.mulf %568, %567 : vector<2x8x128xf32>
    %570 = arith.addf %564, %569 : vector<2x8x128xf32>
    %571 = vector.shape_cast %570 : vector<2x8x128xf32> to vector<16x128xf32>
    %cst_279 = arith.constant dense<0.000000e+00> : vector<16x8xf32>
    %572 = tpu.matmul %571, %488, %cst_279 {dimension_numbers = #tpu.dot_dimension_numbers<[1], [0], [0], [1], [0, 0, 1, 1], [], []>} : vector<16x128xf32>, vector<128x8xf32>, vector<16x8xf32> -> vector<16x8xf32>
    %573 = arith.addf %559, %560 : vector<16x128xf32>
    %cst_280 = arith.constant dense<0.000000e+00> : vector<16x8xf32>
    %574 = tpu.matmul %573, %486, %cst_280 {dimension_numbers = #tpu.dot_dimension_numbers<[1], [0], [0], [1], [0, 0, 1, 1], [], []>} : vector<16x128xf32>, vector<128x8xf32>, vector<16x8xf32> -> vector<16x8xf32>
    %575 = arith.addf %572, %574 : vector<16x8xf32>
    %c6 = arith.constant 6 : index
    %c0_281 = arith.constant 0 : index
    %c0_282 = arith.constant 0 : index
    %c0_283 = arith.constant 0 : index
    %576 = vector.load %arg3[%c6, %c0_281, %c0_282, %c0_283] : memref<8x2x8x128xf32, #tpu.memory_space<vmem>>, vector<1x1x8x128xf32>
    %577 = vector.shape_cast %576 : vector<1x1x8x128xf32> to vector<8x128xf32>
    %c6_284 = arith.constant 6 : index
    %c1_285 = arith.constant 1 : index
    %c0_286 = arith.constant 0 : index
    %c0_287 = arith.constant 0 : index
    %578 = vector.load %arg3[%c6_284, %c1_285, %c0_286, %c0_287] : memref<8x2x8x128xf32, #tpu.memory_space<vmem>>, vector<1x1x8x128xf32>
    %579 = vector.shape_cast %578 : vector<1x1x8x128xf32> to vector<8x128xf32>
    %c6_288 = arith.constant 6 : index
    %c0_289 = arith.constant 0 : index
    %c0_290 = arith.constant 0 : index
    %c0_291 = arith.constant 0 : index
    %580 = vector.load %arg4[%c6_288, %c0_289, %c0_290, %c0_291] : memref<8x2x128x8xf32, #tpu.memory_space<vmem>>, vector<1x1x128x8xf32>
    %581 = vector.shape_cast %580 : vector<1x1x128x8xf32> to vector<128x8xf32>
    %c6_292 = arith.constant 6 : index
    %c1_293 = arith.constant 1 : index
    %c0_294 = arith.constant 0 : index
    %c0_295 = arith.constant 0 : index
    %582 = vector.load %arg4[%c6_292, %c1_293, %c0_294, %c0_295] : memref<8x2x128x8xf32, #tpu.memory_space<vmem>>, vector<1x1x128x8xf32>
    %583 = vector.shape_cast %582 : vector<1x1x128x8xf32> to vector<128x8xf32>
    %cst_296 = arith.constant dense<0.000000e+00> : vector<2x128xf32>
    %584 = tpu.matmul %558, %577, %cst_296 {dimension_numbers = #tpu.dot_dimension_numbers<[1], [0], [0], [1], [0, 0, 1, 1], [], []>} : vector<2x8xf32>, vector<8x128xf32>, vector<2x128xf32> -> vector<2x128xf32>
    %cst_297 = arith.constant dense<0.000000e+00> : vector<2x128xf32>
    %585 = tpu.matmul %558, %579, %cst_297 {dimension_numbers = #tpu.dot_dimension_numbers<[1], [0], [0], [1], [0, 0, 1, 1], [], []>} : vector<2x8xf32>, vector<8x128xf32>, vector<2x128xf32> -> vector<2x128xf32>
    %586 = arith.subf %585, %584 : vector<2x128xf32>
    %cst_298 = arith.constant 1.000000e+01 : f32
    %587 = vector.broadcast %cst_298 : f32 to vector<2x128xf32>
    %588 = arith.mulf %587, %586 : vector<2x128xf32>
    %cst_299 = arith.constant 0.000000e+00 : f32
    %589 = vector.broadcast %cst_299 : f32 to vector<2x128xf32>
    %590 = arith.cmpf olt, %588, %589 : vector<2x128xf32>
    %cst_300 = arith.constant -1.000000e+00 : f32
    %cst_301 = arith.constant 1.000000e+00 : f32
    %591 = vector.broadcast %cst_300 : f32 to vector<2x128xf32>
    %592 = vector.broadcast %cst_301 : f32 to vector<2x128xf32>
    %593 = arith.select %590, %591, %592 : vector<2x128xi1>, vector<2x128xf32>
    %594 = math.absf %588 : vector<2x128xf32>
    %cst_302 = arith.constant 2.41421366 : f32
    %595 = vector.broadcast %cst_302 : f32 to vector<2x128xf32>
    %596 = arith.cmpf ogt, %594, %595 : vector<2x128xf32>
    %cst_303 = arith.constant 0.414213568 : f32
    %597 = vector.broadcast %cst_303 : f32 to vector<2x128xf32>
    %598 = arith.cmpf ogt, %594, %597 : vector<2x128xf32>
    %cst_304 = arith.constant 0.785398185 : f32
    %cst_305 = arith.constant 0.000000e+00 : f32
    %599 = vector.broadcast %cst_304 : f32 to vector<2x128xf32>
    %600 = vector.broadcast %cst_305 : f32 to vector<2x128xf32>
    %601 = arith.select %598, %599, %600 : vector<2x128xi1>, vector<2x128xf32>
    %cst_306 = arith.constant 1.57079637 : f32
    %602 = vector.broadcast %cst_306 : f32 to vector<2x128xf32>
    %603 = arith.select %596, %602, %601 : vector<2x128xi1>, vector<2x128xf32>
    %cst_307 = arith.constant 1.000000e-30 : f32
    %604 = vector.broadcast %cst_307 : f32 to vector<2x128xf32>
    %605 = arith.addf %594, %604 : vector<2x128xf32>
    %606 = tpu.reciprocal %605 {approx = true} : vector<2x128xf32> -> vector<2x128xf32>
    %607 = arith.mulf %605, %606 : vector<2x128xf32>
    %cst_308 = arith.constant 2.000000e+00 : f32
    %608 = vector.broadcast %cst_308 : f32 to vector<2x128xf32>
    %609 = arith.subf %608, %607 : vector<2x128xf32>
    %610 = arith.mulf %606, %609 : vector<2x128xf32>
    %cst_309 = arith.constant 1.000000e+00 : f32
    %611 = vector.broadcast %cst_309 : f32 to vector<2x128xf32>
    %612 = arith.addf %594, %611 : vector<2x128xf32>
    %613 = tpu.reciprocal %612 {approx = true} : vector<2x128xf32> -> vector<2x128xf32>
    %614 = arith.mulf %612, %613 : vector<2x128xf32>
    %cst_310 = arith.constant 2.000000e+00 : f32
    %615 = vector.broadcast %cst_310 : f32 to vector<2x128xf32>
    %616 = arith.subf %615, %614 : vector<2x128xf32>
    %617 = arith.mulf %613, %616 : vector<2x128xf32>
    %cst_311 = arith.constant 0.000000e+00 : f32
    %618 = vector.broadcast %cst_311 : f32 to vector<2x128xf32>
    %619 = arith.subf %618, %610 : vector<2x128xf32>
    %cst_312 = arith.constant 1.000000e+00 : f32
    %620 = vector.broadcast %cst_312 : f32 to vector<2x128xf32>
    %621 = arith.subf %594, %620 : vector<2x128xf32>
    %622 = arith.mulf %621, %617 : vector<2x128xf32>
    %623 = arith.select %598, %622, %594 : vector<2x128xi1>, vector<2x128xf32>
    %624 = arith.select %596, %619, %623 : vector<2x128xi1>, vector<2x128xf32>
    %625 = arith.mulf %624, %624 : vector<2x128xf32>
    %cst_313 = arith.constant 0.0805374458 : f32
    %626 = vector.broadcast %cst_313 : f32 to vector<2x128xf32>
    %627 = arith.mulf %626, %625 : vector<2x128xf32>
    %cst_314 = arith.constant 0.138776854 : f32
    %628 = vector.broadcast %cst_314 : f32 to vector<2x128xf32>
    %629 = arith.subf %627, %628 : vector<2x128xf32>
    %630 = arith.mulf %629, %625 : vector<2x128xf32>
    %cst_315 = arith.constant 0.199777111 : f32
    %631 = vector.broadcast %cst_315 : f32 to vector<2x128xf32>
    %632 = arith.addf %630, %631 : vector<2x128xf32>
    %633 = arith.mulf %632, %625 : vector<2x128xf32>
    %cst_316 = arith.constant 0.333329499 : f32
    %634 = vector.broadcast %cst_316 : f32 to vector<2x128xf32>
    %635 = arith.subf %633, %634 : vector<2x128xf32>
    %636 = arith.mulf %635, %625 : vector<2x128xf32>
    %637 = arith.mulf %636, %624 : vector<2x128xf32>
    %638 = arith.addf %637, %624 : vector<2x128xf32>
    %639 = arith.addf %603, %638 : vector<2x128xf32>
    %640 = arith.mulf %593, %639 : vector<2x128xf32>
    %cst_317 = arith.constant 0.318309873 : f32
    %641 = vector.broadcast %cst_317 : f32 to vector<2x128xf32>
    %642 = arith.mulf %640, %641 : vector<2x128xf32>
    %cst_318 = arith.constant 5.000000e-01 : f32
    %643 = vector.broadcast %cst_318 : f32 to vector<2x128xf32>
    %644 = arith.addf %642, %643 : vector<2x128xf32>
    %645 = arith.mulf %644, %584 : vector<2x128xf32>
    %cst_319 = arith.constant 1.000000e+00 : f32
    %646 = vector.broadcast %cst_319 : f32 to vector<2x128xf32>
    %647 = arith.subf %646, %644 : vector<2x128xf32>
    %648 = arith.mulf %647, %585 : vector<2x128xf32>
    %649 = arith.addf %645, %648 : vector<2x128xf32>
    %cst_320 = arith.constant dense<0.000000e+00> : vector<2x8xf32>
    %650 = tpu.matmul %649, %583, %cst_320 {dimension_numbers = #tpu.dot_dimension_numbers<[1], [0], [0], [1], [0, 0, 1, 1], [], []>} : vector<2x128xf32>, vector<128x8xf32>, vector<2x8xf32> -> vector<2x8xf32>
    %651 = arith.addf %584, %585 : vector<2x128xf32>
    %cst_321 = arith.constant dense<0.000000e+00> : vector<2x8xf32>
    %652 = tpu.matmul %651, %581, %cst_321 {dimension_numbers = #tpu.dot_dimension_numbers<[1], [0], [0], [1], [0, 0, 1, 1], [], []>} : vector<2x128xf32>, vector<128x8xf32>, vector<2x8xf32> -> vector<2x8xf32>
    %653 = arith.addf %650, %652 : vector<2x8xf32>
    %cst_322 = arith.constant dense<0.000000e+00> : vector<16x128xf32>
    %654 = tpu.matmul %575, %577, %cst_322 {dimension_numbers = #tpu.dot_dimension_numbers<[1], [0], [0], [1], [0, 0, 1, 1], [], []>} : vector<16x8xf32>, vector<8x128xf32>, vector<16x128xf32> -> vector<16x128xf32>
    %cst_323 = arith.constant dense<0.000000e+00> : vector<16x128xf32>
    %655 = tpu.matmul %575, %579, %cst_323 {dimension_numbers = #tpu.dot_dimension_numbers<[1], [0], [0], [1], [0, 0, 1, 1], [], []>} : vector<16x8xf32>, vector<8x128xf32>, vector<16x128xf32> -> vector<16x128xf32>
    %656 = vector.shape_cast %644 : vector<2x128xf32> to vector<2x1x128xf32>
    %657 = vector.shape_cast %654 : vector<16x128xf32> to vector<2x8x128xf32>
    %658 = vector.broadcast %656 : vector<2x1x128xf32> to vector<2x8x128xf32>
    %659 = arith.mulf %658, %657 : vector<2x8x128xf32>
    %cst_324 = arith.constant 1.000000e+00 : f32
    %660 = vector.broadcast %cst_324 : f32 to vector<2x1x128xf32>
    %661 = arith.subf %660, %656 : vector<2x1x128xf32>
    %662 = vector.shape_cast %655 : vector<16x128xf32> to vector<2x8x128xf32>
    %663 = vector.broadcast %661 : vector<2x1x128xf32> to vector<2x8x128xf32>
    %664 = arith.mulf %663, %662 : vector<2x8x128xf32>
    %665 = arith.addf %659, %664 : vector<2x8x128xf32>
    %666 = vector.shape_cast %665 : vector<2x8x128xf32> to vector<16x128xf32>
    %cst_325 = arith.constant dense<0.000000e+00> : vector<16x8xf32>
    %667 = tpu.matmul %666, %583, %cst_325 {dimension_numbers = #tpu.dot_dimension_numbers<[1], [0], [0], [1], [0, 0, 1, 1], [], []>} : vector<16x128xf32>, vector<128x8xf32>, vector<16x8xf32> -> vector<16x8xf32>
    %668 = arith.addf %654, %655 : vector<16x128xf32>
    %cst_326 = arith.constant dense<0.000000e+00> : vector<16x8xf32>
    %669 = tpu.matmul %668, %581, %cst_326 {dimension_numbers = #tpu.dot_dimension_numbers<[1], [0], [0], [1], [0, 0, 1, 1], [], []>} : vector<16x128xf32>, vector<128x8xf32>, vector<16x8xf32> -> vector<16x8xf32>
    %670 = arith.addf %667, %669 : vector<16x8xf32>
    %c7 = arith.constant 7 : index
    %c0_327 = arith.constant 0 : index
    %c0_328 = arith.constant 0 : index
    %c0_329 = arith.constant 0 : index
    %671 = vector.load %arg3[%c7, %c0_327, %c0_328, %c0_329] : memref<8x2x8x128xf32, #tpu.memory_space<vmem>>, vector<1x1x8x128xf32>
    %672 = vector.shape_cast %671 : vector<1x1x8x128xf32> to vector<8x128xf32>
    %c7_330 = arith.constant 7 : index
    %c1_331 = arith.constant 1 : index
    %c0_332 = arith.constant 0 : index
    %c0_333 = arith.constant 0 : index
    %673 = vector.load %arg3[%c7_330, %c1_331, %c0_332, %c0_333] : memref<8x2x8x128xf32, #tpu.memory_space<vmem>>, vector<1x1x8x128xf32>
    %674 = vector.shape_cast %673 : vector<1x1x8x128xf32> to vector<8x128xf32>
    %c7_334 = arith.constant 7 : index
    %c0_335 = arith.constant 0 : index
    %c0_336 = arith.constant 0 : index
    %c0_337 = arith.constant 0 : index
    %675 = vector.load %arg4[%c7_334, %c0_335, %c0_336, %c0_337] : memref<8x2x128x8xf32, #tpu.memory_space<vmem>>, vector<1x1x128x8xf32>
    %676 = vector.shape_cast %675 : vector<1x1x128x8xf32> to vector<128x8xf32>
    %c7_338 = arith.constant 7 : index
    %c1_339 = arith.constant 1 : index
    %c0_340 = arith.constant 0 : index
    %c0_341 = arith.constant 0 : index
    %677 = vector.load %arg4[%c7_338, %c1_339, %c0_340, %c0_341] : memref<8x2x128x8xf32, #tpu.memory_space<vmem>>, vector<1x1x128x8xf32>
    %678 = vector.shape_cast %677 : vector<1x1x128x8xf32> to vector<128x8xf32>
    %cst_342 = arith.constant dense<0.000000e+00> : vector<2x128xf32>
    %679 = tpu.matmul %653, %672, %cst_342 {dimension_numbers = #tpu.dot_dimension_numbers<[1], [0], [0], [1], [0, 0, 1, 1], [], []>} : vector<2x8xf32>, vector<8x128xf32>, vector<2x128xf32> -> vector<2x128xf32>
    %cst_343 = arith.constant dense<0.000000e+00> : vector<2x128xf32>
    %680 = tpu.matmul %653, %674, %cst_343 {dimension_numbers = #tpu.dot_dimension_numbers<[1], [0], [0], [1], [0, 0, 1, 1], [], []>} : vector<2x8xf32>, vector<8x128xf32>, vector<2x128xf32> -> vector<2x128xf32>
    %681 = arith.subf %680, %679 : vector<2x128xf32>
    %cst_344 = arith.constant 1.000000e+01 : f32
    %682 = vector.broadcast %cst_344 : f32 to vector<2x128xf32>
    %683 = arith.mulf %682, %681 : vector<2x128xf32>
    %cst_345 = arith.constant 0.000000e+00 : f32
    %684 = vector.broadcast %cst_345 : f32 to vector<2x128xf32>
    %685 = arith.cmpf olt, %683, %684 : vector<2x128xf32>
    %cst_346 = arith.constant -1.000000e+00 : f32
    %cst_347 = arith.constant 1.000000e+00 : f32
    %686 = vector.broadcast %cst_346 : f32 to vector<2x128xf32>
    %687 = vector.broadcast %cst_347 : f32 to vector<2x128xf32>
    %688 = arith.select %685, %686, %687 : vector<2x128xi1>, vector<2x128xf32>
    %689 = math.absf %683 : vector<2x128xf32>
    %cst_348 = arith.constant 2.41421366 : f32
    %690 = vector.broadcast %cst_348 : f32 to vector<2x128xf32>
    %691 = arith.cmpf ogt, %689, %690 : vector<2x128xf32>
    %cst_349 = arith.constant 0.414213568 : f32
    %692 = vector.broadcast %cst_349 : f32 to vector<2x128xf32>
    %693 = arith.cmpf ogt, %689, %692 : vector<2x128xf32>
    %cst_350 = arith.constant 0.785398185 : f32
    %cst_351 = arith.constant 0.000000e+00 : f32
    %694 = vector.broadcast %cst_350 : f32 to vector<2x128xf32>
    %695 = vector.broadcast %cst_351 : f32 to vector<2x128xf32>
    %696 = arith.select %693, %694, %695 : vector<2x128xi1>, vector<2x128xf32>
    %cst_352 = arith.constant 1.57079637 : f32
    %697 = vector.broadcast %cst_352 : f32 to vector<2x128xf32>
    %698 = arith.select %691, %697, %696 : vector<2x128xi1>, vector<2x128xf32>
    %cst_353 = arith.constant 1.000000e-30 : f32
    %699 = vector.broadcast %cst_353 : f32 to vector<2x128xf32>
    %700 = arith.addf %689, %699 : vector<2x128xf32>
    %701 = tpu.reciprocal %700 {approx = true} : vector<2x128xf32> -> vector<2x128xf32>
    %702 = arith.mulf %700, %701 : vector<2x128xf32>
    %cst_354 = arith.constant 2.000000e+00 : f32
    %703 = vector.broadcast %cst_354 : f32 to vector<2x128xf32>
    %704 = arith.subf %703, %702 : vector<2x128xf32>
    %705 = arith.mulf %701, %704 : vector<2x128xf32>
    %cst_355 = arith.constant 1.000000e+00 : f32
    %706 = vector.broadcast %cst_355 : f32 to vector<2x128xf32>
    %707 = arith.addf %689, %706 : vector<2x128xf32>
    %708 = tpu.reciprocal %707 {approx = true} : vector<2x128xf32> -> vector<2x128xf32>
    %709 = arith.mulf %707, %708 : vector<2x128xf32>
    %cst_356 = arith.constant 2.000000e+00 : f32
    %710 = vector.broadcast %cst_356 : f32 to vector<2x128xf32>
    %711 = arith.subf %710, %709 : vector<2x128xf32>
    %712 = arith.mulf %708, %711 : vector<2x128xf32>
    %cst_357 = arith.constant 0.000000e+00 : f32
    %713 = vector.broadcast %cst_357 : f32 to vector<2x128xf32>
    %714 = arith.subf %713, %705 : vector<2x128xf32>
    %cst_358 = arith.constant 1.000000e+00 : f32
    %715 = vector.broadcast %cst_358 : f32 to vector<2x128xf32>
    %716 = arith.subf %689, %715 : vector<2x128xf32>
    %717 = arith.mulf %716, %712 : vector<2x128xf32>
    %718 = arith.select %693, %717, %689 : vector<2x128xi1>, vector<2x128xf32>
    %719 = arith.select %691, %714, %718 : vector<2x128xi1>, vector<2x128xf32>
    %720 = arith.mulf %719, %719 : vector<2x128xf32>
    %cst_359 = arith.constant 0.0805374458 : f32
    %721 = vector.broadcast %cst_359 : f32 to vector<2x128xf32>
    %722 = arith.mulf %721, %720 : vector<2x128xf32>
    %cst_360 = arith.constant 0.138776854 : f32
    %723 = vector.broadcast %cst_360 : f32 to vector<2x128xf32>
    %724 = arith.subf %722, %723 : vector<2x128xf32>
    %725 = arith.mulf %724, %720 : vector<2x128xf32>
    %cst_361 = arith.constant 0.199777111 : f32
    %726 = vector.broadcast %cst_361 : f32 to vector<2x128xf32>
    %727 = arith.addf %725, %726 : vector<2x128xf32>
    %728 = arith.mulf %727, %720 : vector<2x128xf32>
    %cst_362 = arith.constant 0.333329499 : f32
    %729 = vector.broadcast %cst_362 : f32 to vector<2x128xf32>
    %730 = arith.subf %728, %729 : vector<2x128xf32>
    %731 = arith.mulf %730, %720 : vector<2x128xf32>
    %732 = arith.mulf %731, %719 : vector<2x128xf32>
    %733 = arith.addf %732, %719 : vector<2x128xf32>
    %734 = arith.addf %698, %733 : vector<2x128xf32>
    %735 = arith.mulf %688, %734 : vector<2x128xf32>
    %cst_363 = arith.constant 0.318309873 : f32
    %736 = vector.broadcast %cst_363 : f32 to vector<2x128xf32>
    %737 = arith.mulf %735, %736 : vector<2x128xf32>
    %cst_364 = arith.constant 5.000000e-01 : f32
    %738 = vector.broadcast %cst_364 : f32 to vector<2x128xf32>
    %739 = arith.addf %737, %738 : vector<2x128xf32>
    %740 = arith.mulf %739, %679 : vector<2x128xf32>
    %cst_365 = arith.constant 1.000000e+00 : f32
    %741 = vector.broadcast %cst_365 : f32 to vector<2x128xf32>
    %742 = arith.subf %741, %739 : vector<2x128xf32>
    %743 = arith.mulf %742, %680 : vector<2x128xf32>
    %744 = arith.addf %740, %743 : vector<2x128xf32>
    %cst_366 = arith.constant dense<0.000000e+00> : vector<2x8xf32>
    %745 = tpu.matmul %744, %678, %cst_366 {dimension_numbers = #tpu.dot_dimension_numbers<[1], [0], [0], [1], [0, 0, 1, 1], [], []>} : vector<2x128xf32>, vector<128x8xf32>, vector<2x8xf32> -> vector<2x8xf32>
    %746 = arith.addf %679, %680 : vector<2x128xf32>
    %cst_367 = arith.constant dense<0.000000e+00> : vector<2x8xf32>
    %747 = tpu.matmul %746, %676, %cst_367 {dimension_numbers = #tpu.dot_dimension_numbers<[1], [0], [0], [1], [0, 0, 1, 1], [], []>} : vector<2x128xf32>, vector<128x8xf32>, vector<2x8xf32> -> vector<2x8xf32>
    %748 = arith.addf %745, %747 : vector<2x8xf32>
    %cst_368 = arith.constant dense<0.000000e+00> : vector<16x128xf32>
    %749 = tpu.matmul %670, %672, %cst_368 {dimension_numbers = #tpu.dot_dimension_numbers<[1], [0], [0], [1], [0, 0, 1, 1], [], []>} : vector<16x8xf32>, vector<8x128xf32>, vector<16x128xf32> -> vector<16x128xf32>
    %cst_369 = arith.constant dense<0.000000e+00> : vector<16x128xf32>
    %750 = tpu.matmul %670, %674, %cst_369 {dimension_numbers = #tpu.dot_dimension_numbers<[1], [0], [0], [1], [0, 0, 1, 1], [], []>} : vector<16x8xf32>, vector<8x128xf32>, vector<16x128xf32> -> vector<16x128xf32>
    %751 = vector.shape_cast %739 : vector<2x128xf32> to vector<2x1x128xf32>
    %752 = vector.shape_cast %749 : vector<16x128xf32> to vector<2x8x128xf32>
    %753 = vector.broadcast %751 : vector<2x1x128xf32> to vector<2x8x128xf32>
    %754 = arith.mulf %753, %752 : vector<2x8x128xf32>
    %cst_370 = arith.constant 1.000000e+00 : f32
    %755 = vector.broadcast %cst_370 : f32 to vector<2x1x128xf32>
    %756 = arith.subf %755, %751 : vector<2x1x128xf32>
    %757 = vector.shape_cast %750 : vector<16x128xf32> to vector<2x8x128xf32>
    %758 = vector.broadcast %756 : vector<2x1x128xf32> to vector<2x8x128xf32>
    %759 = arith.mulf %758, %757 : vector<2x8x128xf32>
    %760 = arith.addf %754, %759 : vector<2x8x128xf32>
    %761 = vector.shape_cast %760 : vector<2x8x128xf32> to vector<16x128xf32>
    %cst_371 = arith.constant dense<0.000000e+00> : vector<16x8xf32>
    %762 = tpu.matmul %761, %678, %cst_371 {dimension_numbers = #tpu.dot_dimension_numbers<[1], [0], [0], [1], [0, 0, 1, 1], [], []>} : vector<16x128xf32>, vector<128x8xf32>, vector<16x8xf32> -> vector<16x8xf32>
    %763 = arith.addf %749, %750 : vector<16x128xf32>
    %cst_372 = arith.constant dense<0.000000e+00> : vector<16x8xf32>
    %764 = tpu.matmul %763, %676, %cst_372 {dimension_numbers = #tpu.dot_dimension_numbers<[1], [0], [0], [1], [0, 0, 1, 1], [], []>} : vector<16x128xf32>, vector<128x8xf32>, vector<16x8xf32> -> vector<16x8xf32>
    %765 = arith.addf %762, %764 : vector<16x8xf32>
    %c0_373 = arith.constant 0 : index
    %c0_374 = arith.constant 0 : index
    %766 = vector.load %arg5[%c0_373, %c0_374] : memref<2x8xf32, #tpu.memory_space<vmem>>, vector<2x8xf32>
    tpu.vector_store %arg5[%c0_373, %c0_374], %748 {strides = array<i32>} : memref<2x8xf32, #tpu.memory_space<vmem>>, vector<2x8xf32>,
    %767 = vector.shape_cast %765 : vector<16x8xf32> to vector<2x8x8xf32>
    %c0_375 = arith.constant 0 : index
    %c0_376 = arith.constant 0 : index
    %c0_377 = arith.constant 0 : index
    %768 = vector.load %arg6[%c0_375, %c0_376, %c0_377] : memref<2x8x8xf32, #tpu.memory_space<vmem>>, vector<2x8x8xf32>
    tpu.vector_store %arg6[%c0_375, %c0_376, %c0_377], %767 {strides = array<i32>} : memref<2x8x8xf32, #tpu.memory_space<vmem>>, vector<2x8x8xf32>,
    return
  }
  func.func @transform_0(%arg0: i32, %arg1: i32) -> (i32, i32) {
    %c0_i32 = arith.constant 0 : i32
    %c0_i32_0 = arith.constant 0 : i32
    return %arg0, %c0_i32 : i32, i32
  }
  func.func @transform_1(%arg0: i32, %arg1: i32) -> (i32, i32, i32, i32) {
    %c0_i32 = arith.constant 0 : i32
    %c0_i32_0 = arith.constant 0 : i32
    %c0_i32_1 = arith.constant 0 : i32
    %c0_i32_2 = arith.constant 0 : i32
    return %arg1, %c0_i32, %c0_i32_0, %c0_i32_1 : i32, i32, i32, i32
  }
  func.func @transform_2(%arg0: i32, %arg1: i32) -> (i32, i32, i32, i32) {
    %c0_i32 = arith.constant 0 : i32
    %c0_i32_0 = arith.constant 0 : i32
    %c0_i32_1 = arith.constant 0 : i32
    %c0_i32_2 = arith.constant 0 : i32
    return %arg1, %c0_i32, %c0_i32_0, %c0_i32_1 : i32, i32, i32, i32
  }
  func.func @transform_3(%arg0: i32, %arg1: i32) -> (i32, i32) {
    %c0_i32 = arith.constant 0 : i32
    %c0_i32_0 = arith.constant 0 : i32
    return %arg0, %c0_i32 : i32, i32
  }
  func.func @transform_4(%arg0: i32, %arg1: i32) -> (i32, i32, i32) {
    %c0_i32 = arith.constant 0 : i32
    %c0_i32_0 = arith.constant 0 : i32
    %c0_i32_1 = arith.constant 0 : i32
    return %arg0, %c0_i32, %c0_i32_0 : i32, i32, i32
  }
}

</mosaic_0001>

<llo_original>
// kernel: tpu_custom_call.1
$region0: #{tpu_custom_call.1}
  #allocation0 [shape = 'u32[]', space=smem, size = 0x4, offset = 0x4, fixed_abs, tag = 'smem constant byte address 0x4 - core index']
  #allocation1 [shape = 'u32[144,128]{1,0:T(1,128)}', space=vmem, size = 0x12000, scoped, tag = 'internal scratch']
  %s0 = inlined_call_operand.hbm [shape: f32[2,8], index: 0, kind: input, shape index: {}]
  %s1 = inlined_call_operand.hbm [shape: f32[8,2,8,128], index: 1, kind: input, shape index: {}]
  %s2 = inlined_call_operand.hbm [shape: f32[8,2,128,8], index: 2, kind: input, shape index: {}]
  %s3 = inlined_call_operand.hbm [shape: f32[2,8], index: 3, kind: output, shape index: {0}]
  %s4 = inlined_call_operand.hbm [shape: f32[2,8,8], index: 4, kind: output, shape index: {1}]
  %5 = xla_tuple %s3, %s4
  %s6 = sld [smem:[#allocation0]]
  $region46: #{tpu_custom_call.1} parent=0
    _
  %s8 = ssub.s32 1, %s6
  %s9 = scalar_select 0, %s8, %s6
  $region1: #{tpu_custom_call.1} parent=0
    #allocation2 [shape = 'u8[1024]{0}', space=vmem, size = 0x400, scoped, tag = 'input window, operand 0, single buffered']
    #allocation3 [shape = 's32[1]{0}', space=sflag, size = 0x4, scoped, tag = 'scoped memory for tpu_custom_call.1']
    #allocation4 [shape = 's32[1]{0}', space=sflag, size = 0x4, scoped, tag = 'scoped memory for tpu_custom_call.1']
    #allocation5 [shape = 'u8[65536]{0}', space=vmem, size = 0x10000, scoped, tag = 'input window, operand 1, single buffered']
    #allocation6 [shape = 's32[1]{0}', space=sflag, size = 0x4, scoped, tag = 'scoped memory for tpu_custom_call.1']
    #allocation7 [shape = 'u8[1048576]{0}', space=vmem, size = 0x100000, scoped, tag = 'input window, operand 2, single buffered']
    #allocation8 [shape = 'u8[1024]{0}', space=vmem, size = 0x400, scoped, tag = 'output window, operand 0, single buffered']
    #allocation9 [shape = 'u8[8192]{0}', space=vmem, size = 0x2000, scoped, tag = 'output window, operand 1, single buffered']
    #allocation10 [shape = 's32[1]{0}', space=sflag, size = 0x4, scoped, tag = 'scoped memory for tpu_custom_call.1']
    %10 = vsyncpa [#allocation3], 0
    %11 = vsyncpa [#allocation6], 0
    %12 = vsyncpa [#allocation4], 0
    %13 = vsyncpa [#allocation10], 0
    // Predicated region
    $region2: #{tpu_custom_call.1} parent=1 // pred_check
      _
    $region3: #{tpu_custom_call.1} parent=1 // pred_check_branch
      %15 = sbr.rel (0) target = $region5
    $region4: #{tpu_custom_call.1} parent=1 // pred_region
      %s17 = ssub.s32 32, 32
      %18 = vsyncadd [#allocation3], %s17
      %s20 = sshll.u32 [#allocation2], 4
      %s21 = int_to_ptr.vmem [resolvable:$true] %s20
      %23 = dma.hbm_to_vmem [thread:$0]  %s0, 32, %s21, [#allocation3]
    $region5: #{tpu_custom_call.1} parent=1 // pred_fallthru
      _
    // Predicated region
    $region6: #{tpu_custom_call.1} parent=1 // pred_check
      _
    $region7: #{tpu_custom_call.1} parent=1 // pred_check_branch
      %25 = sbr.rel (0) target = $region9
    $region8: #{tpu_custom_call.1} parent=1 // pred_region
      %s27 = ssub.s32 2048, 2048
      %28 = vsyncadd [#allocation6], %s27
      %s29 = sshll.u32 [#allocation5], 4
      %s30 = int_to_ptr.vmem [resolvable:$true] %s29
      %35 = dma.hbm_to_vmem [thread:$0]  %s1, 2048, %s30, [#allocation6], 128, 128, 8
    $region9: #{tpu_custom_call.1} parent=1 // pred_fallthru
      _
    // Predicated region
    $region10: #{tpu_custom_call.1} parent=1 // pred_check
      _
    $region11: #{tpu_custom_call.1} parent=1 // pred_check_branch
      %37 = sbr.rel (0) target = $region13
    $region12: #{tpu_custom_call.1} parent=1 // pred_region
      %s39 = ssub.s32 32768, 32768
      %40 = vsyncadd [#allocation6], %s39
      %s41 = sshll.u32 [#allocation7], 4
      %s42 = int_to_ptr.vmem [resolvable:$true] %s41
      %47 = dma.hbm_to_vmem [thread:$0]  %s2, 32768, %s42, [#allocation6], 128, 128, 8
    $region13: #{tpu_custom_call.1} parent=1 // pred_fallthru
      _
    // Predicated region
    $region14: #{tpu_custom_call.1} parent=1 // pred_check
      _
    $region15: #{tpu_custom_call.1} parent=1 // pred_check_branch
      %49 = sbr.rel (0) target = $region17
    $region16: #{tpu_custom_call.1} parent=1 // pred_region
      %50 = dma.done [#allocation3], 32
    $region17: #{tpu_custom_call.1} parent=1 // pred_fallthru
      _
    // Predicated region
    $region18: #{tpu_custom_call.1} parent=1 // pred_check
      _
    $region19: #{tpu_custom_call.1} parent=1 // pred_check_branch
      %52 = sbr.rel (0) target = $region21
    $region20: #{tpu_custom_call.1} parent=1 // pred_region
      %53 = dma.done [#allocation6], 2048
    $region21: #{tpu_custom_call.1} parent=1 // pred_fallthru
      _
    // Predicated region
    $region22: #{tpu_custom_call.1} parent=1 // pred_check
      _
    $region23: #{tpu_custom_call.1} parent=1 // pred_check_branch
      %55 = sbr.rel (0) target = $region25
    $region24: #{tpu_custom_call.1} parent=1 // pred_region
      %56 = dma.done [#allocation6], 32768
    $region25: #{tpu_custom_call.1} parent=1 // pred_fallthru
      _
    %p57 = scmp.eq.s32.totalorder 0, 0
    // Predicated region
    $region26: #{tpu_custom_call.1} parent=1 // pred_check
      %p58 = pneg %p57
    $region27: #{tpu_custom_call.1} parent=1 // pred_check_branch
      %60 = sbr.rel (%p58) target = $region29
    $region28: #{tpu_custom_call.1} parent=1 // pred_region
      %v61 = vld [vmem:[#allocation2] sm:$0x3]
      %vm62 = vcmask 58368
      %63 = vst.msk [vmem:[#allocation8] sm:$0x3] %vm62, %v61
      %v64 = vlaneseq
      %v65 = vshrl.u32 %v64, 7
      %v66 = vlaneseq
      %v67 = vand.u32 %v66, 127
      %vm68 = vcmp.eq.s32.totalorder %v65, %v67
      %v69 = vsel %vm68, 1, 0
      %v70 = vcvt.s32.f32 %v69
      %vm71 = vcmask 64512
      %72 = vst.msk [vmem:[#allocation9] sm:$0xff] %vm71, %v70
      %73 = vst.msk [vmem:[#allocation9 + $0x8] sm:$0xff] %vm71, %v70
    $region29: #{tpu_custom_call.1} parent=1 // pred_fallthru
      _
    %v74 = vld [vmem:[#allocation8] sm:$0x3]
    %v75 = vld [vmem:[#allocation9] sm:$0xff]
    %v76 = vld [vmem:[#allocation9 + $0x8] sm:$0xff]
    %v77 = vld [vmem:[#allocation5] sm:$0xff]
    %s78 = scalar_lea.vmem [#allocation5], 8
    %v79 = vld [vmem:[%s78] sm:$0xff]
    %v80 = vld [vmem:[#allocation7] sm:$0xff]
    %v81 = vld [vmem:[#allocation7 + $0x8] sm:$0xff]
    %v82 = vld [vmem:[#allocation7 + $0x10] sm:$0xff]
    %v83 = vld [vmem:[#allocation7 + $0x18] sm:$0xff]
    %v84 = vld [vmem:[#allocation7 + $0x20] sm:$0xff]
    %v85 = vld [vmem:[#allocation7 + $0x28] sm:$0xff]
    %v86 = vld [vmem:[#allocation7 + $0x30] sm:$0xff]
    %v87 = vld [vmem:[#allocation7 + $0x38] sm:$0xff]
    %v88 = vld [vmem:[#allocation7 + $0x40] sm:$0xff]
    %v89 = vld [vmem:[#allocation7 + $0x48] sm:$0xff]
    %v90 = vld [vmem:[#allocation7 + $0x50] sm:$0xff]
    %v91 = vld [vmem:[#allocation7 + $0x58] sm:$0xff]
    %v92 = vld [vmem:[#allocation7 + $0x60] sm:$0xff]
    %v93 = vld [vmem:[#allocation7 + $0x68] sm:$0xff]
    %v94 = vld [vmem:[#allocation7 + $0x70] sm:$0xff]
    %v95 = vld [vmem:[#allocation7 + $0x78] sm:$0xff]
    %s96 = scalar_lea.vmem [#allocation7], 128
    %v97 = vld [vmem:[%s96] sm:$0xff]
    %v98 = vld [vmem:[%s96 + $0x8] sm:$0xff]
    %v99 = vld [vmem:[%s96 + $0x10] sm:$0xff]
    %v100 = vld [vmem:[%s96 + $0x18] sm:$0xff]
    %v101 = vld [vmem:[%s96 + $0x20] sm:$0xff]
    %v102 = vld [vmem:[%s96 + $0x28] sm:$0xff]
    %v103 = vld [vmem:[%s96 + $0x30] sm:$0xff]
    %v104 = vld [vmem:[%s96 + $0x38] sm:$0xff]
    %v105 = vld [vmem:[%s96 + $0x40] sm:$0xff]
    %v106 = vld [vmem:[%s96 + $0x48] sm:$0xff]
    %v107 = vld [vmem:[%s96 + $0x50] sm:$0xff]
    %v108 = vld [vmem:[%s96 + $0x58] sm:$0xff]
    %v109 = vld [vmem:[%s96 + $0x60] sm:$0xff]
    %v110 = vld [vmem:[%s96 + $0x68] sm:$0xff]
    %v111 = vld [vmem:[%s96 + $0x70] sm:$0xff]
    %v112 = vld [vmem:[%s96 + $0x78] sm:$0xff]
    %vm113 = vcmask 64512
    %v115 = vsel %vm113, %v74, 0
    %117 = vmatprep.subr.mxu0 0.0
    %118 = vmatpush1.msra.mxu0 %v77
    %119 = vmatprep.subr.mxu0 0.0
    %120 = vmatpush1.msra.mxu0 0.0
    %121 = vmatprep.subr.mxu0 0.0
    %122 = vmatpush1.msra.mxu0 0.0
    %123 = vmatprep.subr.mxu0 0.0
    %124 = vmatpush1.msra.mxu0 0.0
    %125 = vmatprep.subr.mxu0 0.0
    %126 = vmatpush1.msra.mxu0 0.0
    %127 = vmatprep.subr.mxu0 0.0
    %128 = vmatpush1.msra.mxu0 0.0
    %129 = vmatprep.subr.mxu0 0.0
    %130 = vmatpush1.msra.mxu0 0.0
    %131 = vmatprep.subr.mxu0 0.0
    %132 = vmatpush1.msra.mxu0 0.0
    %133 = vmatprep.subr.mxu0 0.0
    %134 = vmatpush1.msra.mxu0 0.0
    %135 = vmatprep.subr.mxu0 0.0
    %136 = vmatpush1.msra.mxu0 0.0
    %137 = vmatprep.subr.mxu0 0.0
    %138 = vmatpush1.msra.mxu0 0.0
    %139 = vmatprep.subr.mxu0 0.0
    %140 = vmatpush1.msra.mxu0 0.0
    %141 = vmatprep.subr.mxu0 0.0
    %142 = vmatpush1.msra.mxu0 0.0
    %143 = vmatprep.subr.mxu0 0.0
    %144 = vmatpush1.msra.mxu0 0.0
    %145 = vmatprep.subr.mxu0 0.0
    %146 = vmatpush1.msra.mxu0 0.0
    %147 = vmatprep.subr.mxu0 0.0
    %148 = vmatpush1.msra.mxu0 0.0
    %149 = vmatprep.subr.mxu0 0.0
    %150 = vmatpush1.msra.mxu0 0.0
    %151 = vmatprep.subr.mxu0 0.0
    %152 = vmatpush1.msra.mxu0 0.0
    %153 = vmatprep.subr.mxu0 0.0
    %154 = vmatpush1.msra.mxu0 0.0
    %155 = vmatprep.subr.mxu0 0.0
    %156 = vmatpush1.msra.mxu0 0.0
    %157 = vmatprep.subr.mxu0 0.0
    %158 = vmatpush1.msra.mxu0 0.0
    %159 = vmatprep.subr.mxu0 0.0
    %160 = vmatpush1.msra.mxu0 0.0
    %161 = vmatprep.subr.mxu0 0.0
    %162 = vmatpush1.msra.mxu0 0.0
    %163 = vmatprep.subr.mxu0 0.0
    %164 = vmatpush1.msra.mxu0 0.0
    %165 = vmatprep.subr.mxu0 0.0
    %166 = vmatpush1.msra.mxu0 0.0
    %167 = vmatprep.subr.mxu0 0.0
    %168 = vmatpush1.msra.mxu0 0.0
    %169 = vmatprep.subr.mxu0 0.0
    %170 = vmatpush1.msra.mxu0 0.0
    %171 = vmatprep.subr.mxu0 0.0
    %172 = vmatpush1.msra.mxu0 0.0
    %173 = vmatprep.subr.mxu0 0.0
    %174 = vmatpush1.msra.mxu0 0.0
    %175 = vmatprep.subr.mxu0 0.0
    %176 = vmatpush1.msra.mxu0 0.0
    %177 = vmatprep.subr.mxu0 0.0
    %178 = vmatpush1.msra.mxu0 0.0
    %179 = vmatprep.subr.mxu0 0.0
    %180 = vmatpush1.msra.mxu0 0.0
    %181 = vmatprep.mubr.f32.mxu0 0.0
    %182 = vmatmul.mubr.f32.gmra.mrb[0].mxu0 %v115
    %v183 = vpop.f32.mrb[0].mxu0
    %v184 = vadd.f32 0.0, %v183
    %v185 = vpop.f32.mrb[0].mxu0
    %186 = vdwg.mxu0
    %187 = vmatprep.subr.mxu0 0.0
    %188 = vmatpush1.msra.mxu0 %v79
    %189 = vmatprep.subr.mxu0 0.0
    %190 = vmatpush1.msra.mxu0 0.0
    %191 = vmatprep.subr.mxu0 0.0
    %192 = vmatpush1.msra.mxu0 0.0
    %193 = vmatprep.subr.mxu0 0.0
    %194 = vmatpush1.msra.mxu0 0.0
    %195 = vmatprep.subr.mxu0 0.0
    %196 = vmatpush1.msra.mxu0 0.0
    %197 = vmatprep.subr.mxu0 0.0
    %198 = vmatpush1.msra.mxu0 0.0
    %199 = vmatprep.subr.mxu0 0.0
    %200 = vmatpush1.msra.mxu0 0.0
    %201 = vmatprep.subr.mxu0 0.0
    %202 = vmatpush1.msra.mxu0 0.0
    %203 = vmatprep.subr.mxu0 0.0
    %204 = vmatpush1.msra.mxu0 0.0
    %205 = vmatprep.subr.mxu0 0.0
    %206 = vmatpush1.msra.mxu0 0.0
    %207 = vmatprep.subr.mxu0 0.0
    %208 = vmatpush1.msra.mxu0 0.0
    %209 = vmatprep.subr.mxu0 0.0
    %210 = vmatpush1.msra.mxu0 0.0
    %211 = vmatprep.subr.mxu0 0.0
    %212 = vmatpush1.msra.mxu0 0.0
    %213 = vmatprep.subr.mxu0 0.0
    %214 = vmatpush1.msra.mxu0 0.0
    %215 = vmatprep.subr.mxu0 0.0
    %216 = vmatpush1.msra.mxu0 0.0
    %217 = vmatprep.subr.mxu0 0.0
    %218 = vmatpush1.msra.mxu0 0.0
    %219 = vmatprep.subr.mxu0 0.0
    %220 = vmatpush1.msra.mxu0 0.0
    %221 = vmatprep.subr.mxu0 0.0
    %222 = vmatpush1.msra.mxu0 0.0
    %223 = vmatprep.subr.mxu0 0.0
    %224 = vmatpush1.msra.mxu0 0.0
    %225 = vmatprep.subr.mxu0 0.0
    %226 = vmatpush1.msra.mxu0 0.0
    %227 = vmatprep.subr.mxu0 0.0
    %228 = vmatpush1.msra.mxu0 0.0
    %229 = vmatprep.subr.mxu0 0.0
    %230 = vmatpush1.msra.mxu0 0.0
    %231 = vmatprep.subr.mxu0 0.0
    %232 = vmatpush1.msra.mxu0 0.0
    %233 = vmatprep.subr.mxu0 0.0
    %234 = vmatpush1.msra.mxu0 0.0
    %235 = vmatprep.subr.mxu0 0.0
    %236 = vmatpush1.msra.mxu0 0.0
    %237 = vmatprep.subr.mxu0 0.0
    %238 = vmatpush1.msra.mxu0 0.0
    %239 = vmatprep.subr.mxu0 0.0
    %240 = vmatpush1.msra.mxu0 0.0
    %241 = vmatprep.subr.mxu0 0.0
    %242 = vmatpush1.msra.mxu0 0.0
    %243 = vmatprep.subr.mxu0 0.0
    %244 = vmatpush1.msra.mxu0 0.0
    %245 = vmatprep.subr.mxu0 0.0
    %246 = vmatpush1.msra.mxu0 0.0
    %247 = vmatprep.subr.mxu0 0.0
    %248 = vmatpush1.msra.mxu0 0.0
    %249 = vmatprep.subr.mxu0 0.0
    %250 = vmatpush1.msra.mxu0 0.0
    %251 = vmatprep.mubr.f32.mxu0 0.0
    %252 = vmatmul.mubr.f32.gmra.mrb[0].mxu0 %v115
    %v253 = vpop.f32.mrb[0].mxu0
    %v254 = vadd.f32 0.0, %v253
    %v255 = vpop.f32.mrb[0].mxu0
    %256 = vdwg.mxu0
    %v257 = vsub.f32 %v254, %v184
    %v258 = vmul.f32 %v257, 10.0
    %vm259 = vcmp.lt.f32.partialorder %v258, 0.0
    %v260 = vsel %vm259, -1.0, 1.0
    %v261 = vand.u32 2147483647, %v258
    %vm262 = vcmp.gt.f32.partialorder %v261, 2.4142137
    %vm263 = vcmp.gt.f32.partialorder %v261, 0.41421357
    %v264 = vsel %vm263, 0.7853982, 0.0
    %v265 = vsel %vm262, 1.5707964, %v264
    %v266 = vadd.f32 %v261, 1e-30
    %v267 = vrcp.pop %v266
    %v268 = vmul.f32 %v266, %v267
    %v269 = vsub.f32 2.0, %v268
    %v270 = vmul.f32 %v267, %v269
    %v271 = vadd.f32 %v261, 1.0
    %v272 = vrcp.pop %v271
    %v273 = vmul.f32 %v271, %v272
    %v274 = vsub.f32 2.0, %v273
    %v275 = vmul.f32 %v272, %v274
    %v276 = vsub.f32 0.0, %v270
    %v277 = vsub.f32 %v261, 1.0
    %v278 = vmul.f32 %v277, %v275
    %v279 = vsel %vm263, %v278, %v261
    %v280 = vsel %vm262, %v276, %v279
    %v281 = vmul.f32 %v280, %v280
    %v282 = vmul.f32 %v281, 0.080537446
    %v283 = vsub.f32 %v282, 0.13877685
    %v284 = vmul.f32 %v283, %v281
    %v285 = vadd.f32 %v284, 0.19977711
    %v286 = vmul.f32 %v285, %v281
    %v287 = vsub.f32 %v286, 0.3333295
    %v288 = vmul.f32 %v287, %v281
    %v289 = vmul.f32 %v288, %v280
    %v290 = vadd.f32 %v289, %v280
    %v291 = vadd.f32 %v265, %v290
    %v292 = vmul.f32 %v260, %v291
    %v293 = vmul.f32 %v292, 0.31830987
    %v294 = vadd.f32 %v293, 0.5
    %v295 = vmul.f32 %v294, %v184
    %v296 = vsub.f32 1.0, %v294
    %v297 = vmul.f32 %v296, %v254
    %v298 = vadd.f32 %v295, %v297
    %v299 = vadd.f32 %v184, %v254
    %300 = vmatprep.subr.mxu0 0.0
    %301 = vmatpush1.msra.mxu0 %v80
    %302 = vmatprep.subr.mxu0 0.0
    %303 = vmatpush1.msra.mxu0 %v81
    %304 = vmatprep.subr.mxu0 0.0
    %305 = vmatpush1.msra.mxu0 %v82
    %306 = vmatprep.subr.mxu0 0.0
    %307 = vmatpush1.msra.mxu0 %v83
    %308 = vmatprep.subr.mxu0 0.0
    %309 = vmatpush1.msra.mxu0 %v84
    %310 = vmatprep.subr.mxu0 0.0
    %311 = vmatpush1.msra.mxu0 %v85
    %312 = vmatprep.subr.mxu0 0.0
    %313 = vmatpush1.msra.mxu0 %v86
    %314 = vmatprep.subr.mxu0 0.0
    %315 = vmatpush1.msra.mxu0 %v87
    %316 = vmatprep.subr.mxu0 0.0
    %317 = vmatpush1.msra.mxu0 %v88
    %318 = vmatprep.subr.mxu0 0.0
    %319 = vmatpush1.msra.mxu0 %v89
    %320 = vmatprep.subr.mxu0 0.0
    %321 = vmatpush1.msra.mxu0 %v90
    %322 = vmatprep.subr.mxu0 0.0
    %323 = vmatpush1.msra.mxu0 %v91
    %324 = vmatprep.subr.mxu0 0.0
    %325 = vmatpush1.msra.mxu0 %v92
    %326 = vmatprep.subr.mxu0 0.0
    %327 = vmatpush1.msra.mxu0 %v93
    %328 = vmatprep.subr.mxu0 0.0
    %329 = vmatpush1.msra.mxu0 %v94
    %330 = vmatprep.subr.mxu0 0.0
    %331 = vmatpush1.msra.mxu0 %v95
    %332 = vmatprep.subr.mxu0 0.0
    %333 = vmatpush1.msra.mxu0 0.0
    %334 = vmatprep.subr.mxu0 0.0
    %335 = vmatpush1.msra.mxu0 0.0
    %336 = vmatprep.subr.mxu0 0.0
    %337 = vmatpush1.msra.mxu0 0.0
    %338 = vmatprep.subr.mxu0 0.0
    %339 = vmatpush1.msra.mxu0 0.0
    %340 = vmatprep.subr.mxu0 0.0
    %341 = vmatpush1.msra.mxu0 0.0
    %342 = vmatprep.subr.mxu0 0.0
    %343 = vmatpush1.msra.mxu0 0.0
    %344 = vmatprep.subr.mxu0 0.0
    %345 = vmatpush1.msra.mxu0 0.0
    %346 = vmatprep.subr.mxu0 0.0
    %347 = vmatpush1.msra.mxu0 0.0
    %348 = vmatprep.subr.mxu0 0.0
    %349 = vmatpush1.msra.mxu0 0.0
    %350 = vmatprep.subr.mxu0 0.0
    %351 = vmatpush1.msra.mxu0 0.0
    %352 = vmatprep.subr.mxu0 0.0
    %353 = vmatpush1.msra.mxu0 0.0
    %354 = vmatprep.subr.mxu0 0.0
    %355 = vmatpush1.msra.mxu0 0.0
    %356 = vmatprep.subr.mxu0 0.0
    %357 = vmatpush1.msra.mxu0 0.0
    %358 = vmatprep.subr.mxu0 0.0
    %359 = vmatpush1.msra.mxu0 0.0
    %360 = vmatprep.subr.mxu0 0.0
    %361 = vmatpush1.msra.mxu0 0.0
    %362 = vmatprep.subr.mxu0 0.0
    %363 = vmatpush1.msra.mxu0 0.0
    %364 = vmatprep.mubr.f32.mxu0 0.0
    %365 = vmatmul.mubr.f32.gmra.mrb[0].mxu0 %v299
    %v366 = vpop.f32.mrb[0].mxu0
    %v367 = vadd.f32 0.0, %v366
    %v368 = vpop.f32.mrb[0].mxu0
    %369 = vdwg.mxu0
    %370 = vmatprep.subr.mxu0 0.0
    %371 = vmatpush1.msra.mxu0 %v97
    %372 = vmatprep.subr.mxu0 0.0
    %373 = vmatpush1.msra.mxu0 %v98
    %374 = vmatprep.subr.mxu0 0.0
    %375 = vmatpush1.msra.mxu0 %v99
    %376 = vmatprep.subr.mxu0 0.0
    %377 = vmatpush1.msra.mxu0 %v100
    %378 = vmatprep.subr.mxu0 0.0
    %379 = vmatpush1.msra.mxu0 %v101
    %380 = vmatprep.subr.mxu0 0.0
    %381 = vmatpush1.msra.mxu0 %v102
    %382 = vmatprep.subr.mxu0 0.0
    %383 = vmatpush1.msra.mxu0 %v103
    %384 = vmatprep.subr.mxu0 0.0
    %385 = vmatpush1.msra.mxu0 %v104
    %386 = vmatprep.subr.mxu0 0.0
    %387 = vmatpush1.msra.mxu0 %v105
    %388 = vmatprep.subr.mxu0 0.0
    %389 = vmatpush1.msra.mxu0 %v106
    %390 = vmatprep.subr.mxu0 0.0
    %391 = vmatpush1.msra.mxu0 %v107
    %392 = vmatprep.subr.mxu0 0.0
    %393 = vmatpush1.msra.mxu0 %v108
    %394 = vmatprep.subr.mxu0 0.0
    %395 = vmatpush1.msra.mxu0 %v109
    %396 = vmatprep.subr.mxu0 0.0
    %397 = vmatpush1.msra.mxu0 %v110
    %398 = vmatprep.subr.mxu0 0.0
    %399 = vmatpush1.msra.mxu0 %v111
    %400 = vmatprep.subr.mxu0 0.0
    %401 = vmatpush1.msra.mxu0 %v112
    %402 = vmatprep.subr.mxu0 0.0
    %403 = vmatpush1.msra.mxu0 0.0
    %404 = vmatprep.subr.mxu0 0.0
    %405 = vmatpush1.msra.mxu0 0.0
    %406 = vmatprep.subr.mxu0 0.0
    %407 = vmatpush1.msra.mxu0 0.0
    %408 = vmatprep.subr.mxu0 0.0
    %409 = vmatpush1.msra.mxu0 0.0
    %410 = vmatprep.subr.mxu0 0.0
    %411 = vmatpush1.msra.mxu0 0.0
    %412 = vmatprep.subr.mxu0 0.0
    %413 = vmatpush1.msra.mxu0 0.0
    %414 = vmatprep.subr.mxu0 0.0
    %415 = vmatpush1.msra.mxu0 0.0
    %416 = vmatprep.subr.mxu0 0.0
    %417 = vmatpush1.msra.mxu0 0.0
    %418 = vmatprep.subr.mxu0 0.0
    %419 = vmatpush1.msra.mxu0 0.0
    %420 = vmatprep.subr.mxu0 0.0
    %421 = vmatpush1.msra.mxu0 0.0
    %422 = vmatprep.subr.mxu0 0.0
    %423 = vmatpush1.msra.mxu0 0.0
    %424 = vmatprep.subr.mxu0 0.0
    %425 = vmatpush1.msra.mxu0 0.0
    %426 = vmatprep.subr.mxu0 0.0
    %427 = vmatpush1.msra.mxu0 0.0
    %428 = vmatprep.subr.mxu0 0.0
    %429 = vmatpush1.msra.mxu0 0.0
    %430 = vmatprep.subr.mxu0 0.0
    %431 = vmatpush1.msra.mxu0 0.0
    %432 = vmatprep.subr.mxu0 0.0
    %433 = vmatpush1.msra.mxu0 0.0
    %434 = vmatprep.mubr.f32.mxu0 0.0
    %435 = vmatmul.mubr.f32.gmra.mrb[0].mxu0 %v298
    %v436 = vpop.f32.mrb[0].mxu0
    %v437 = vadd.f32 %v367, %v436
    %v438 = vpop.f32.mrb[0].mxu0
    %439 = vdwg.mxu0
    %v441 = vsel %vm113, %v75, 0
    %v444 = vsel %vm113, %v76, 0
    %446 = vmatprep.subr.mxu0 0.0
    %447 = vmatpush1.msra.mxu0 %v77
    %448 = vmatprep.subr.mxu0 0.0
    %449 = vmatpush1.msra.mxu0 0.0
    %450 = vmatprep.subr.mxu0 0.0
    %451 = vmatpush1.msra.mxu0 0.0
    %452 = vmatprep.subr.mxu0 0.0
    %453 = vmatpush1.msra.mxu0 0.0
    %454 = vmatprep.subr.mxu0 0.0
    %455 = vmatpush1.msra.mxu0 0.0
    %456 = vmatprep.subr.mxu0 0.0
    %457 = vmatpush1.msra.mxu0 0.0
    %458 = vmatprep.subr.mxu0 0.0
    %459 = vmatpush1.msra.mxu0 0.0
    %460 = vmatprep.subr.mxu0 0.0
    %461 = vmatpush1.msra.mxu0 0.0
    %462 = vmatprep.subr.mxu0 0.0
    %463 = vmatpush1.msra.mxu0 0.0
    %464 = vmatprep.subr.mxu0 0.0
    %465 = vmatpush1.msra.mxu0 0.0
    %466 = vmatprep.subr.mxu0 0.0
    %467 = vmatpush1.msra.mxu0 0.0
    %468 = vmatprep.subr.mxu0 0.0
    %469 = vmatpush1.msra.mxu0 0.0
    %470 = vmatprep.subr.mxu0 0.0
    %471 = vmatpush1.msra.mxu0 0.0
    %472 = vmatprep.subr.mxu0 0.0
    %473 = vmatpush1.msra.mxu0 0.0
    %474 = vmatprep.subr.mxu0 0.0
    %475 = vmatpush1.msra.mxu0 0.0
    %476 = vmatprep.subr.mxu0 0.0
    %477 = vmatpush1.msra.mxu0 0.0
    %478 = vmatprep.subr.mxu0 0.0
    %479 = vmatpush1.msra.mxu0 0.0
    %480 = vmatprep.subr.mxu0 0.0
    %481 = vmatpush1.msra.mxu0 0.0
    %482 = vmatprep.subr.mxu0 0.0
    %483 = vmatpush1.msra.mxu0 0.0
    %484 = vmatprep.subr.mxu0 0.0
    %485 = vmatpush1.msra.mxu0 0.0
    %486 = vmatprep.subr.mxu0 0.0
    %487 = vmatpush1.msra.mxu0 0.0
    %488 = vmatprep.subr.mxu0 0.0
    %489 = vmatpush1.msra.mxu0 0.0
    %490 = vmatprep.subr.mxu0 0.0
    %491 = vmatpush1.msra.mxu0 0.0
    %492 = vmatprep.subr.mxu0 0.0
    %493 = vmatpush1.msra.mxu0 0.0
    %494 = vmatprep.subr.mxu0 0.0
    %495 = vmatpush1.msra.mxu0 0.0
    %496 = vmatprep.subr.mxu0 0.0
    %497 = vmatpush1.msra.mxu0 0.0
    %498 = vmatprep.subr.mxu0 0.0
    %499 = vmatpush1.msra.mxu0 0.0
    %500 = vmatprep.subr.mxu0 0.0
    %501 = vmatpush1.msra.mxu0 0.0
    %502 = vmatprep.subr.mxu0 0.0
    %503 = vmatpush1.msra.mxu0 0.0
    %504 = vmatprep.subr.mxu0 0.0
    %505 = vmatpush1.msra.mxu0 0.0
    %506 = vmatprep.subr.mxu0 0.0
    %507 = vmatpush1.msra.mxu0 0.0
    %508 = vmatprep.subr.mxu0 0.0
    %509 = vmatpush1.msra.mxu0 0.0
    %510 = vmatprep.mubr.f32.mxu0 0.0
    %511 = vmatmul.mubr.f32.gmra.mrb[0].mxu0 %v441
    %v512 = vpop.f32.mrb[0].mxu0
    %v513 = vadd.f32 0.0, %v512
    %v514 = vpop.f32.mrb[0].mxu0
    %515 = vmatprep.mubr.f32.mxu0 0.0
    %516 = vmatmul.mubr.f32.gmra.mrb[0].mxu0 %v444
    %v517 = vpop.f32.mrb[0].mxu0
    %v518 = vadd.f32 0.0, %v517
    %v519 = vpop.f32.mrb[0].mxu0
    %520 = vdwg.mxu0
    %521 = vmatprep.subr.mxu0 0.0
    %522 = vmatpush1.msra.mxu0 %v79
    %523 = vmatprep.subr.mxu0 0.0
    %524 = vmatpush1.msra.mxu0 0.0
    %525 = vmatprep.subr.mxu0 0.0
    %526 = vmatpush1.msra.mxu0 0.0
    %527 = vmatprep.subr.mxu0 0.0
    %528 = vmatpush1.msra.mxu0 0.0
    %529 = vmatprep.subr.mxu0 0.0
    %530 = vmatpush1.msra.mxu0 0.0
    %531 = vmatprep.subr.mxu0 0.0
    %532 = vmatpush1.msra.mxu0 0.0
    %533 = vmatprep.subr.mxu0 0.0
    %534 = vmatpush1.msra.mxu0 0.0
    %535 = vmatprep.subr.mxu0 0.0
    %536 = vmatpush1.msra.mxu0 0.0
    %537 = vmatprep.subr.mxu0 0.0
    %538 = vmatpush1.msra.mxu0 0.0
    %539 = vmatprep.subr.mxu0 0.0
    %540 = vmatpush1.msra.mxu0 0.0
    %541 = vmatprep.subr.mxu0 0.0
    %542 = vmatpush1.msra.mxu0 0.0
    %543 = vmatprep.subr.mxu0 0.0
    %544 = vmatpush1.msra.mxu0 0.0
    %545 = vmatprep.subr.mxu0 0.0
    %546 = vmatpush1.msra.mxu0 0.0
    %547 = vmatprep.subr.mxu0 0.0
    %548 = vmatpush1.msra.mxu0 0.0
    %549 = vmatprep.subr.mxu0 0.0
    %550 = vmatpush1.msra.mxu0 0.0
    %551 = vmatprep.subr.mxu0 0.0
    %552 = vmatpush1.msra.mxu0 0.0
    %553 = vmatprep.subr.mxu0 0.0
    %554 = vmatpush1.msra.mxu0 0.0
    %555 = vmatprep.subr.mxu0 0.0
    %556 = vmatpush1.msra.mxu0 0.0
    %557 = vmatprep.subr.mxu0 0.0
    %558 = vmatpush1.msra.mxu0 0.0
    %559 = vmatprep.subr.mxu0 0.0
    %560 = vmatpush1.msra.mxu0 0.0
    %561 = vmatprep.subr.mxu0 0.0
    %562 = vmatpush1.msra.mxu0 0.0
    %563 = vmatprep.subr.mxu0 0.0
    %564 = vmatpush1.msra.mxu0 0.0
    %565 = vmatprep.subr.mxu0 0.0
    %566 = vmatpush1.msra.mxu0 0.0
    %567 = vmatprep.subr.mxu0 0.0
    %568 = vmatpush1.msra.mxu0 0.0
    %569 = vmatprep.subr.mxu0 0.0
    %570 = vmatpush1.msra.mxu0 0.0
    %571 = vmatprep.subr.mxu0 0.0
    %572 = vmatpush1.msra.mxu0 0.0
    %573 = vmatprep.subr.mxu0 0.0
    %574 = vmatpush1.msra.mxu0 0.0
    %575 = vmatprep.subr.mxu0 0.0
    %576 = vmatpush1.msra.mxu0 0.0
    %577 = vmatprep.subr.mxu0 0.0
    %578 = vmatpush1.msra.mxu0 0.0
    %579 = vmatprep.subr.mxu0 0.0
    %580 = vmatpush1.msra.mxu0 0.0
    %581 = vmatprep.subr.mxu0 0.0
    %582 = vmatpush1.msra.mxu0 0.0
    %583 = vmatprep.subr.mxu0 0.0
    %584 = vmatpush1.msra.mxu0 0.0
    %585 = vmatprep.mubr.f32.mxu0 0.0
    %586 = vmatmul.mubr.f32.gmra.mrb[0].mxu0 %v441
    %v587 = vpop.f32.mrb[0].mxu0
    %v588 = vadd.f32 0.0, %v587
    %v589 = vpop.f32.mrb[0].mxu0
    %590 = vmatprep.mubr.f32.mxu0 0.0
    %591 = vmatmul.mubr.f32.gmra.mrb[0].mxu0 %v444
    %v592 = vpop.f32.mrb[0].mxu0
    %v593 = vadd.f32 0.0, %v592
    %v594 = vpop.f32.mrb[0].mxu0
    %595 = vdwg.mxu0
    %v598 = vunpack.c.l.s4 1966171168
    %v599 = vunpack.c.0.s8 %v598
    %v600 = vlaneseq
    %v601 = vshrl.u32 %v600, 7
    %v602 = vsub.s32 %v599, %v601
    %v603 = vrot.slane %v294, %v602
    %v604 = vcombine.high %v603, %v603
    %v606 = vunpack.c.l.s4 1966171168
    %v607 = vunpack.c.0.s8 %v606
    %v608 = vlaneseq
    %v609 = vshrl.u32 %v608, 7
    %v610 = vsub.s32 %v607, %v609
    %v611 = vrot.slane %v603, %v610
    %v613 = vunpack.c.l.s4 1966171168
    %v614 = vunpack.c.0.s8 %v613
    %v615 = vlaneseq
    %v616 = vshrl.u32 %v615, 7
    %v617 = vsub.s32 %v614, %v616
    %v618 = vrot.slane %v604, %v617
    %v621 = vlaneseq
    %v622 = vshrl.u32 %v621, 7
    %v623 = vsub.s32 0, %v622
    %v624 = vrot.slane %v611, %v623
    %v625 = vlaneseq
    %v626 = vshrl.u32 %v625, 7
    %v627 = vsub.s32 0, %v626
    %v628 = vrot.slane %v618, %v627
    %v631 = vmul.f32 %v624, %v513
    %v632 = vmul.f32 %v628, %v518
    %v633 = vsub.f32 1.0, %v611
    %v634 = vsub.f32 1.0, %v618
    %v637 = vlaneseq
    %v638 = vshrl.u32 %v637, 7
    %v639 = vsub.s32 0, %v638
    %v640 = vrot.slane %v633, %v639
    %v641 = vlaneseq
    %v642 = vshrl.u32 %v641, 7
    %v643 = vsub.s32 0, %v642
    %v644 = vrot.slane %v634, %v643
    %v647 = vmul.f32 %v640, %v588
    %v648 = vmul.f32 %v644, %v593
    %v649 = vadd.f32 %v631, %v647
    %v650 = vadd.f32 %v632, %v648
    %v651 = vadd.f32 %v513, %v588
    %v652 = vadd.f32 %v518, %v593
    %653 = vmatprep.subr.mxu0 0.0
    %654 = vmatpush1.msra.mxu0 %v80
    %655 = vmatprep.subr.mxu0 0.0
    %656 = vmatpush1.msra.mxu0 %v81
    %657 = vmatprep.subr.mxu0 0.0
    %658 = vmatpush1.msra.mxu0 %v82
    %659 = vmatprep.subr.mxu0 0.0
    %660 = vmatpush1.msra.mxu0 %v83
    %661 = vmatprep.subr.mxu0 0.0
    %662 = vmatpush1.msra.mxu0 %v84
    %663 = vmatprep.subr.mxu0 0.0
    %664 = vmatpush1.msra.mxu0 %v85
    %665 = vmatprep.subr.mxu0 0.0
    %666 = vmatpush1.msra.mxu0 %v86
    %667 = vmatprep.subr.mxu0 0.0
    %668 = vmatpush1.msra.mxu0 %v87
    %669 = vmatprep.subr.mxu0 0.0
    %670 = vmatpush1.msra.mxu0 %v88
    %671 = vmatprep.subr.mxu0 0.0
    %672 = vmatpush1.msra.mxu0 %v89
    %673 = vmatprep.subr.mxu0 0.0
    %674 = vmatpush1.msra.mxu0 %v90
    %675 = vmatprep.subr.mxu0 0.0
    %676 = vmatpush1.msra.mxu0 %v91
    %677 = vmatprep.subr.mxu0 0.0
    %678 = vmatpush1.msra.mxu0 %v92
    %679 = vmatprep.subr.mxu0 0.0
    %680 = vmatpush1.msra.mxu0 %v93
    %681 = vmatprep.subr.mxu0 0.0
    %682 = vmatpush1.msra.mxu0 %v94
    %683 = vmatprep.subr.mxu0 0.0
    %684 = vmatpush1.msra.mxu0 %v95
    %685 = vmatprep.subr.mxu0 0.0
    %686 = vmatpush1.msra.mxu0 0.0
    %687 = vmatprep.subr.mxu0 0.0
    %688 = vmatpush1.msra.mxu0 0.0
    %689 = vmatprep.subr.mxu0 0.0
    %690 = vmatpush1.msra.mxu0 0.0
    %691 = vmatprep.subr.mxu0 0.0
    %692 = vmatpush1.msra.mxu0 0.0
    %693 = vmatprep.subr.mxu0 0.0
    %694 = vmatpush1.msra.mxu0 0.0
    %695 = vmatprep.subr.mxu0 0.0
    %696 = vmatpush1.msra.mxu0 0.0
    %697 = vmatprep.subr.mxu0 0.0
    %698 = vmatpush1.msra.mxu0 0.0
    %699 = vmatprep.subr.mxu0 0.0
    %700 = vmatpush1.msra.mxu0 0.0
    %701 = vmatprep.subr.mxu0 0.0
    %702 = vmatpush1.msra.mxu0 0.0
    %703 = vmatprep.subr.mxu0 0.0
    %704 = vmatpush1.msra.mxu0 0.0
    %705 = vmatprep.subr.mxu0 0.0
    %706 = vmatpush1.msra.mxu0 0.0
    %707 = vmatprep.subr.mxu0 0.0
    %708 = vmatpush1.msra.mxu0 0.0
    %709 = vmatprep.subr.mxu0 0.0
    %710 = vmatpush1.msra.mxu0 0.0
    %711 = vmatprep.subr.mxu0 0.0
    %712 = vmatpush1.msra.mxu0 0.0
    %713 = vmatprep.subr.mxu0 0.0
    %714 = vmatpush1.msra.mxu0 0.0
    %715 = vmatprep.subr.mxu0 0.0
    %716 = vmatpush1.msra.mxu0 0.0
    %717 = vmatprep.mubr.f32.mxu0 0.0
    %718 = vmatmul.mubr.f32.gmra.mrb[0].mxu0 %v651
    %v719 = vpop.f32.mrb[0].mxu0
    %v720 = vadd.f32 0.0, %v719
    %v721 = vpop.f32.mrb[0].mxu0
    %722 = vmatprep.mubr.f32.mxu0 0.0
    %723 = vmatmul.mubr.f32.gmra.mrb[0].mxu0 %v652
    %v724 = vpop.f32.mrb[0].mxu0
    %v725 = vadd.f32 0.0, %v724
    %v726 = vpop.f32.mrb[0].mxu0
    %727 = vdwg.mxu0
    %728 = vmatprep.subr.mxu0 0.0
    %729 = vmatpush1.msra.mxu0 %v97
    %730 = vmatprep.subr.mxu0 0.0
    %731 = vmatpush1.msra.mxu0 %v98
    %732 = vmatprep.subr.mxu0 0.0
    %733 = vmatpush1.msra.mxu0 %v99
    %734 = vmatprep.subr.mxu0 0.0
    %735 = vmatpush1.msra.mxu0 %v100
    %736 = vmatprep.subr.mxu0 0.0
    %737 = vmatpush1.msra.mxu0 %v101
    %738 = vmatprep.subr.mxu0 0.0
    %739 = vmatpush1.msra.mxu0 %v102
    %740 = vmatprep.subr.mxu0 0.0
    %741 = vmatpush1.msra.mxu0 %v103
    %742 = vmatprep.subr.mxu0 0.0
    %743 = vmatpush1.msra.mxu0 %v104
    %744 = vmatprep.subr.mxu0 0.0
    %745 = vmatpush1.msra.mxu0 %v105
    %746 = vmatprep.subr.mxu0 0.0
    %747 = vmatpush1.msra.mxu0 %v106
    %748 = vmatprep.subr.mxu0 0.0
    %749 = vmatpush1.msra.mxu0 %v107
    %750 = vmatprep.subr.mxu0 0.0
    %751 = vmatpush1.msra.mxu0 %v108
    %752 = vmatprep.subr.mxu0 0.0
    %753 = vmatpush1.msra.mxu0 %v109
    %754 = vmatprep.subr.mxu0 0.0
    %755 = vmatpush1.msra.mxu0 %v110
    %756 = vmatprep.subr.mxu0 0.0
    %757 = vmatpush1.msra.mxu0 %v111
    %758 = vmatprep.subr.mxu0 0.0
    %759 = vmatpush1.msra.mxu0 %v112
    %760 = vmatprep.subr.mxu0 0.0
    %761 = vmatpush1.msra.mxu0 0.0
    %762 = vmatprep.subr.mxu0 0.0
    %763 = vmatpush1.msra.mxu0 0.0
    %764 = vmatprep.subr.mxu0 0.0
    %765 = vmatpush1.msra.mxu0 0.0
    %766 = vmatprep.subr.mxu0 0.0
    %767 = vmatpush1.msra.mxu0 0.0
    %768 = vmatprep.subr.mxu0 0.0
    %769 = vmatpush1.msra.mxu0 0.0
    %770 = vmatprep.subr.mxu0 0.0
    %771 = vmatpush1.msra.mxu0 0.0
    %772 = vmatprep.subr.mxu0 0.0
    %773 = vmatpush1.msra.mxu0 0.0
    %774 = vmatprep.subr.mxu0 0.0
    %775 = vmatpush1.msra.mxu0 0.0
    %776 = vmatprep.subr.mxu0 0.0
    %777 = vmatpush1.msra.mxu0 0.0
    %778 = vmatprep.subr.mxu0 0.0
    %779 = vmatpush1.msra.mxu0 0.0
    %780 = vmatprep.subr.mxu0 0.0
    %781 = vmatpush1.msra.mxu0 0.0
    %782 = vmatprep.subr.mxu0 0.0
    %783 = vmatpush1.msra.mxu0 0.0
    %784 = vmatprep.subr.mxu0 0.0
    %785 = vmatpush1.msra.mxu0 0.0
    %786 = vmatprep.subr.mxu0 0.0
    %787 = vmatpush1.msra.mxu0 0.0
    %788 = vmatprep.subr.mxu0 0.0
    %789 = vmatpush1.msra.mxu0 0.0
    %790 = vmatprep.subr.mxu0 0.0
    %791 = vmatpush1.msra.mxu0 0.0
    %792 = vmatprep.mubr.f32.mxu0 0.0
    %793 = vmatmul.mubr.f32.gmra.mrb[0].mxu0 %v649
    %v794 = vpop.f32.mrb[0].mxu0
    %v795 = vadd.f32 %v720, %v794
    %v796 = vpop.f32.mrb[0].mxu0
    %797 = vmatprep.mubr.f32.mxu0 0.0
    %798 = vmatmul.mubr.f32.gmra.mrb[0].mxu0 %v650
    %v799 = vpop.f32.mrb[0].mxu0
    %v800 = vadd.f32 %v725, %v799
    %v801 = vpop.f32.mrb[0].mxu0
    %802 = vdwg.mxu0
    %s803 = scalar_lea.vmem [#allocation5], 16
    %v804 = vld [vmem:[%s803] sm:$0xff]
    %s805 = scalar_lea.vmem [#allocation5], 24
    %v806 = vld [vmem:[%s805] sm:$0xff]
    %s807 = scalar_lea.vmem [#allocation7], 256
    %v808 = vld [vmem:[%s807] sm:$0xff]
    %v809 = vld [vmem:[%s807 + $0x8] sm:$0xff]
    %v810 = vld [vmem:[%s807 + $0x10] sm:$0xff]
    %v811 = vld [vmem:[%s807 + $0x18] sm:$0xff]
    %v812 = vld [vmem:[%s807 + $0x20] sm:$0xff]
    %v813 = vld [vmem:[%s807 + $0x28] sm:$0xff]
    %v814 = vld [vmem:[%s807 + $0x30] sm:$0xff]
    %v815 = vld [vmem:[%s807 + $0x38] sm:$0xff]
    %v816 = vld [vmem:[%s807 + $0x40] sm:$0xff]
    %v817 = vld [vmem:[%s807 + $0x48] sm:$0xff]
    %v818 = vld [vmem:[%s807 + $0x50] sm:$0xff]
    %v819 = vld [vmem:[%s807 + $0x58] sm:$0xff]
    %v820 = vld [vmem:[%s807 + $0x60] sm:$0xff]
    %v821 = vld [vmem:[%s807 + $0x68] sm:$0xff]
    %v822 = vld [vmem:[%s807 + $0x70] sm:$0xff]
    %v823 = vld [vmem:[%s807 + $0x78] sm:$0xff]
    %s824 = scalar_lea.vmem [#allocation7], 384
    %v825 = vld [vmem:[%s824] sm:$0xff]
    %v826 = vld [vmem:[%s824 + $0x8] sm:$0xff]
    %v827 = vld [vmem:[%s824 + $0x10] sm:$0xff]
    %v828 = vld [vmem:[%s824 + $0x18] sm:$0xff]
    %v829 = vld [vmem:[%s824 + $0x20] sm:$0xff]
    %v830 = vld [vmem:[%s824 + $0x28] sm:$0xff]
    %v831 = vld [vmem:[%s824 + $0x30] sm:$0xff]
    %v832 = vld [vmem:[%s824 + $0x38] sm:$0xff]
    %v833 = vld [vmem:[%s824 + $0x40] sm:$0xff]
    %v834 = vld [vmem:[%s824 + $0x48] sm:$0xff]
    %v835 = vld [vmem:[%s824 + $0x50] sm:$0xff]
    %v836 = vld [vmem:[%s824 + $0x58] sm:$0xff]
    %v837 = vld [vmem:[%s824 + $0x60] sm:$0xff]
    %v838 = vld [vmem:[%s824 + $0x68] sm:$0xff]
    %v839 = vld [vmem:[%s824 + $0x70] sm:$0xff]
    %v840 = vld [vmem:[%s824 + $0x78] sm:$0xff]
    %v842 = vsel %vm113, %v437, 0
    %844 = vmatprep.subr.mxu0 0.0
    %845 = vmatpush1.msra.mxu0 %v804
    %846 = vmatprep.subr.mxu0 0.0
    %847 = vmatpush1.msra.mxu0 0.0
    %848 = vmatprep.subr.mxu0 0.0
    %849 = vmatpush1.msra.mxu0 0.0
    %850 = vmatprep.subr.mxu0 0.0
    %851 = vmatpush1.msra.mxu0 0.0
    %852 = vmatprep.subr.mxu0 0.0
    %853 = vmatpush1.msra.mxu0 0.0
    %854 = vmatprep.subr.mxu0 0.0
    %855 = vmatpush1.msra.mxu0 0.0
    %856 = vmatprep.subr.mxu0 0.0
    %857 = vmatpush1.msra.mxu0 0.0
    %858 = vmatprep.subr.mxu0 0.0
    %859 = vmatpush1.msra.mxu0 0.0
    %860 = vmatprep.subr.mxu0 0.0
    %861 = vmatpush1.msra.mxu0 0.0
    %862 = vmatprep.subr.mxu0 0.0
    %863 = vmatpush1.msra.mxu0 0.0
    %864 = vmatprep.subr.mxu0 0.0
    %865 = vmatpush1.msra.mxu0 0.0
    %866 = vmatprep.subr.mxu0 0.0
    %867 = vmatpush1.msra.mxu0 0.0
    %868 = vmatprep.subr.mxu0 0.0
    %869 = vmatpush1.msra.mxu0 0.0
    %870 = vmatprep.subr.mxu0 0.0
    %871 = vmatpush1.msra.mxu0 0.0
    %872 = vmatprep.subr.mxu0 0.0
    %873 = vmatpush1.msra.mxu0 0.0
    %874 = vmatprep.subr.mxu0 0.0
    %875 = vmatpush1.msra.mxu0 0.0
    %876 = vmatprep.subr.mxu0 0.0
    %877 = vmatpush1.msra.mxu0 0.0
    %878 = vmatprep.subr.mxu0 0.0
    %879 = vmatpush1.msra.mxu0 0.0
    %880 = vmatprep.subr.mxu0 0.0
    %881 = vmatpush1.msra.mxu0 0.0
    %882 = vmatprep.subr.mxu0 0.0
    %883 = vmatpush1.msra.mxu0 0.0
    %884 = vmatprep.subr.mxu0 0.0
    %885 = vmatpush1.msra.mxu0 0.0
    %886 = vmatprep.subr.mxu0 0.0
    %887 = vmatpush1.msra.mxu0 0.0
    %888 = vmatprep.subr.mxu0 0.0
    %889 = vmatpush1.msra.mxu0 0.0
    %890 = vmatprep.subr.mxu0 0.0
    %891 = vmatpush1.msra.mxu0 0.0
    %892 = vmatprep.subr.mxu0 0.0
    %893 = vmatpush1.msra.mxu0 0.0
    %894 = vmatprep.subr.mxu0 0.0
    %895 = vmatpush1.msra.mxu0 0.0
    %896 = vmatprep.subr.mxu0 0.0
    %897 = vmatpush1.msra.mxu0 0.0
    %898 = vmatprep.subr.mxu0 0.0
    %899 = vmatpush1.msra.mxu0 0.0
    %900 = vmatprep.subr.mxu0 0.0
    %901 = vmatpush1.msra.mxu0 0.0
    %902 = vmatprep.subr.mxu0 0.0
    %903 = vmatpush1.msra.mxu0 0.0
    %904 = vmatprep.subr.mxu0 0.0
    %905 = vmatpush1.msra.mxu0 0.0
    %906 = vmatprep.subr.mxu0 0.0
    %907 = vmatpush1.msra.mxu0 0.0
    %908 = vmatprep.mubr.f32.mxu0 0.0
    %909 = vmatmul.mubr.f32.gmra.mrb[0].mxu0 %v842
    %v910 = vpop.f32.mrb[0].mxu0
    %v911 = vadd.f32 0.0, %v910
    %v912 = vpop.f32.mrb[0].mxu0
    %913 = vdwg.mxu0
    %914 = vmatprep.subr.mxu0 0.0
    %915 = vmatpush1.msra.mxu0 %v806
    %916 = vmatprep.subr.mxu0 0.0
    %917 = vmatpush1.msra.mxu0 0.0
    %918 = vmatprep.subr.mxu0 0.0
    %919 = vmatpush1.msra.mxu0 0.0
    %920 = vmatprep.subr.mxu0 0.0
    %921 = vmatpush1.msra.mxu0 0.0
    %922 = vmatprep.subr.mxu0 0.0
    %923 = vmatpush1.msra.mxu0 0.0
    %924 = vmatprep.subr.mxu0 0.0
    %925 = vmatpush1.msra.mxu0 0.0
    %926 = vmatprep.subr.mxu0 0.0
    %927 = vmatpush1.msra.mxu0 0.0
    %928 = vmatprep.subr.mxu0 0.0
    %929 = vmatpush1.msra.mxu0 0.0
    %930 = vmatprep.subr.mxu0 0.0
    %931 = vmatpush1.msra.mxu0 0.0
    %932 = vmatprep.subr.mxu0 0.0
    %933 = vmatpush1.msra.mxu0 0.0
    %934 = vmatprep.subr.mxu0 0.0
    %935 = vmatpush1.msra.mxu0 0.0
    %936 = vmatprep.subr.mxu0 0.0
    %937 = vmatpush1.msra.mxu0 0.0
    %938 = vmatprep.subr.mxu0 0.0
    %939 = vmatpush1.msra.mxu0 0.0
    %940 = vmatprep.subr.mxu0 0.0
    %941 = vmatpush1.msra.mxu0 0.0
    %942 = vmatprep.subr.mxu0 0.0
    %943 = vmatpush1.msra.mxu0 0.0
    %944 = vmatprep.subr.mxu0 0.0
    %945 = vmatpush1.msra.mxu0 0.0
    %946 = vmatprep.subr.mxu0 0.0
    %947 = vmatpush1.msra.mxu0 0.0
    %948 = vmatprep.subr.mxu0 0.0
    %949 = vmatpush1.msra.mxu0 0.0
    %950 = vmatprep.subr.mxu0 0.0
    %951 = vmatpush1.msra.mxu0 0.0
    %952 = vmatprep.subr.mxu0 0.0
    %953 = vmatpush1.msra.mxu0 0.0
    %954 = vmatprep.subr.mxu0 0.0
    %955 = vmatpush1.msra.mxu0 0.0
    %956 = vmatprep.subr.mxu0 0.0
    %957 = vmatpush1.msra.mxu0 0.0
    %958 = vmatprep.subr.mxu0 0.0
    %959 = vmatpush1.msra.mxu0 0.0
    %960 = vmatprep.subr.mxu0 0.0
    %961 = vmatpush1.msra.mxu0 0.0
    %962 = vmatprep.subr.mxu0 0.0
    %963 = vmatpush1.msra.mxu0 0.0
    %964 = vmatprep.subr.mxu0 0.0
    %965 = vmatpush1.msra.mxu0 0.0
    %966 = vmatprep.subr.mxu0 0.0
    %967 = vmatpush1.msra.mxu0 0.0
    %968 = vmatprep.subr.mxu0 0.0
    %969 = vmatpush1.msra.mxu0 0.0
    %970 = vmatprep.subr.mxu0 0.0
    %971 = vmatpush1.msra.mxu0 0.0
    %972 = vmatprep.subr.mxu0 0.0
    %973 = vmatpush1.msra.mxu0 0.0
    %974 = vmatprep.subr.mxu0 0.0
    %975 = vmatpush1.msra.mxu0 0.0
    %976 = vmatprep.subr.mxu0 0.0
    %977 = vmatpush1.msra.mxu0 0.0
    %978 = vmatprep.mubr.f32.mxu0 0.0
    %979 = vmatmul.mubr.f32.gmra.mrb[0].mxu0 %v842
    %v980 = vpop.f32.mrb[0].mxu0
    %v981 = vadd.f32 0.0, %v980
    %v982 = vpop.f32.mrb[0].mxu0
    %983 = vdwg.mxu0
    %v984 = vsub.f32 %v981, %v911
    %v985 = vmul.f32 %v984, 10.0
    %vm986 = vcmp.lt.f32.partialorder %v985, 0.0
    %v987 = vsel %vm986, -1.0, 1.0
    %v988 = vand.u32 2147483647, %v985
    %vm989 = vcmp.gt.f32.partialorder %v988, 2.4142137
    %vm990 = vcmp.gt.f32.partialorder %v988, 0.41421357
    %v991 = vsel %vm990, 0.7853982, 0.0
    %v992 = vsel %vm989, 1.5707964, %v991
    %v993 = vadd.f32 %v988, 1e-30
    %v994 = vrcp.pop %v993
    %v995 = vmul.f32 %v993, %v994
    %v996 = vsub.f32 2.0, %v995
    %v997 = vmul.f32 %v994, %v996
    %v998 = vadd.f32 %v988, 1.0
    %v999 = vrcp.pop %v998
    %v1000 = vmul.f32 %v998, %v999
    %v1001 = vsub.f32 2.0, %v1000
    %v1002 = vmul.f32 %v999, %v1001
    %v1003 = vsub.f32 0.0, %v997
    %v1004 = vsub.f32 %v988, 1.0
    %v1005 = vmul.f32 %v1004, %v1002
    %v1006 = vsel %vm990, %v1005, %v988
    %v1007 = vsel %vm989, %v1003, %v1006
    %v1008 = vmul.f32 %v1007, %v1007
    %v1009 = vmul.f32 %v1008, 0.080537446
    %v1010 = vsub.f32 %v1009, 0.13877685
    %v1011 = vmul.f32 %v1010, %v1008
    %v1012 = vadd.f32 %v1011, 0.19977711
    %v1013 = vmul.f32 %v1012, %v1008
    %v1014 = vsub.f32 %v1013, 0.3333295
    %v1015 = vmul.f32 %v1014, %v1008
    %v1016 = vmul.f32 %v1015, %v1007
    %v1017 = vadd.f32 %v1016, %v1007
    %v1018 = vadd.f32 %v992, %v1017
    %v1019 = vmul.f32 %v987, %v1018
    %v1020 = vmul.f32 %v1019, 0.31830987
    %v1021 = vadd.f32 %v1020, 0.5
    %v1022 = vmul.f32 %v1021, %v911
    %v1023 = vsub.f32 1.0, %v1021
    %v1024 = vmul.f32 %v1023, %v981
    %v1025 = vadd.f32 %v1022, %v1024
    %v1026 = vadd.f32 %v911, %v981
    %1027 = vmatprep.subr.mxu0 0.0
    %1028 = vmatpush1.msra.mxu0 %v808
    %1029 = vmatprep.subr.mxu0 0.0
    %1030 = vmatpush1.msra.mxu0 %v809
    %1031 = vmatprep.subr.mxu0 0.0
    %1032 = vmatpush1.msra.mxu0 %v810
    %1033 = vmatprep.subr.mxu0 0.0
    %1034 = vmatpush1.msra.mxu0 %v811
    %1035 = vmatprep.subr.mxu0 0.0
    %1036 = vmatpush1.msra.mxu0 %v812
    %1037 = vmatprep.subr.mxu0 0.0
    %1038 = vmatpush1.msra.mxu0 %v813
    %1039 = vmatprep.subr.mxu0 0.0
    %1040 = vmatpush1.msra.mxu0 %v814
    %1041 = vmatprep.subr.mxu0 0.0
    %1042 = vmatpush1.msra.mxu0 %v815
    %1043 = vmatprep.subr.mxu0 0.0
    %1044 = vmatpush1.msra.mxu0 %v816
    %1045 = vmatprep.subr.mxu0 0.0
    %1046 = vmatpush1.msra.mxu0 %v817
    %1047 = vmatprep.subr.mxu0 0.0
    %1048 = vmatpush1.msra.mxu0 %v818
    %1049 = vmatprep.subr.mxu0 0.0
    %1050 = vmatpush1.msra.mxu0 %v819
    %1051 = vmatprep.subr.mxu0 0.0
    %1052 = vmatpush1.msra.mxu0 %v820
    %1053 = vmatprep.subr.mxu0 0.0
    %1054 = vmatpush1.msra.mxu0 %v821
    %1055 = vmatprep.subr.mxu0 0.0
    %1056 = vmatpush1.msra.mxu0 %v822
    %1057 = vmatprep.subr.mxu0 0.0
    %1058 = vmatpush1.msra.mxu0 %v823
    %1059 = vmatprep.subr.mxu0 0.0
    %1060 = vmatpush1.msra.mxu0 0.0
    %1061 = vmatprep.subr.mxu0 0.0
    %1062 = vmatpush1.msra.mxu0 0.0
    %1063 = vmatprep.subr.mxu0 0.0
    %1064 = vmatpush1.msra.mxu0 0.0
    %1065 = vmatprep.subr.mxu0 0.0
    %1066 = vmatpush1.msra.mxu0 0.0
    %1067 = vmatprep.subr.mxu0 0.0
    %1068 = vmatpush1.msra.mxu0 0.0
    %1069 = vmatprep.subr.mxu0 0.0
    %1070 = vmatpush1.msra.mxu0 0.0
    %1071 = vmatprep.subr.mxu0 0.0
    %1072 = vmatpush1.msra.mxu0 0.0
    %1073 = vmatprep.subr.mxu0 0.0
    %1074 = vmatpush1.msra.mxu0 0.0
    %1075 = vmatprep.subr.mxu0 0.0
    %1076 = vmatpush1.msra.mxu0 0.0
    %1077 = vmatprep.subr.mxu0 0.0
    %1078 = vmatpush1.msra.mxu0 0.0
    %1079 = vmatprep.subr.mxu0 0.0
    %1080 = vmatpush1.msra.mxu0 0.0
    %1081 = vmatprep.subr.mxu0 0.0
    %1082 = vmatpush1.msra.mxu0 0.0
    %1083 = vmatprep.subr.mxu0 0.0
    %1084 = vmatpush1.msra.mxu0 0.0
    %1085 = vmatprep.subr.mxu0 0.0
    %1086 = vmatpush1.msra.mxu0 0.0
    %1087 = vmatprep.subr.mxu0 0.0
    %1088 = vmatpush1.msra.mxu0 0.0
    %1089 = vmatprep.subr.mxu0 0.0
    %1090 = vmatpush1.msra.mxu0 0.0
    %1091 = vmatprep.mubr.f32.mxu0 0.0
    %1092 = vmatmul.mubr.f32.gmra.mrb[0].mxu0 %v1026
    %v1093 = vpop.f32.mrb[0].mxu0
    %v1094 = vadd.f32 0.0, %v1093
    %v1095 = vpop.f32.mrb[0].mxu0
    %1096 = vdwg.mxu0
    %1097 = vmatprep.subr.mxu0 0.0
    %1098 = vmatpush1.msra.mxu0 %v825
    %1099 = vmatprep.subr.mxu0 0.0
    %1100 = vmatpush1.msra.mxu0 %v826
    %1101 = vmatprep.subr.mxu0 0.0
    %1102 = vmatpush1.msra.mxu0 %v827
    %1103 = vmatprep.subr.mxu0 0.0
    %1104 = vmatpush1.msra.mxu0 %v828
    %1105 = vmatprep.subr.mxu0 0.0
    %1106 = vmatpush1.msra.mxu0 %v829
    %1107 = vmatprep.subr.mxu0 0.0
    %1108 = vmatpush1.msra.mxu0 %v830
    %1109 = vmatprep.subr.mxu0 0.0
    %1110 = vmatpush1.msra.mxu0 %v831
    %1111 = vmatprep.subr.mxu0 0.0
    %1112 = vmatpush1.msra.mxu0 %v832
    %1113 = vmatprep.subr.mxu0 0.0
    %1114 = vmatpush1.msra.mxu0 %v833
    %1115 = vmatprep.subr.mxu0 0.0
    %1116 = vmatpush1.msra.mxu0 %v834
    %1117 = vmatprep.subr.mxu0 0.0
    %1118 = vmatpush1.msra.mxu0 %v835
    %1119 = vmatprep.subr.mxu0 0.0
    %1120 = vmatpush1.msra.mxu0 %v836
    %1121 = vmatprep.subr.mxu0 0.0
    %1122 = vmatpush1.msra.mxu0 %v837
    %1123 = vmatprep.subr.mxu0 0.0
    %1124 = vmatpush1.msra.mxu0 %v838
    %1125 = vmatprep.subr.mxu0 0.0
    %1126 = vmatpush1.msra.mxu0 %v839
    %1127 = vmatprep.subr.mxu0 0.0
    %1128 = vmatpush1.msra.mxu0 %v840
    %1129 = vmatprep.subr.mxu0 0.0
    %1130 = vmatpush1.msra.mxu0 0.0
    %1131 = vmatprep.subr.mxu0 0.0
    %1132 = vmatpush1.msra.mxu0 0.0
    %1133 = vmatprep.subr.mxu0 0.0
    %1134 = vmatpush1.msra.mxu0 0.0
    %1135 = vmatprep.subr.mxu0 0.0
    %1136 = vmatpush1.msra.mxu0 0.0
    %1137 = vmatprep.subr.mxu0 0.0
    %1138 = vmatpush1.msra.mxu0 0.0
    %1139 = vmatprep.subr.mxu0 0.0
    %1140 = vmatpush1.msra.mxu0 0.0
    %1141 = vmatprep.subr.mxu0 0.0
    %1142 = vmatpush1.msra.mxu0 0.0
    %1143 = vmatprep.subr.mxu0 0.0
    %1144 = vmatpush1.msra.mxu0 0.0
    %1145 = vmatprep.subr.mxu0 0.0
    %1146 = vmatpush1.msra.mxu0 0.0
    %1147 = vmatprep.subr.mxu0 0.0
    %1148 = vmatpush1.msra.mxu0 0.0
    %1149 = vmatprep.subr.mxu0 0.0
    %1150 = vmatpush1.msra.mxu0 0.0
    %1151 = vmatprep.subr.mxu0 0.0
    %1152 = vmatpush1.msra.mxu0 0.0
    %1153 = vmatprep.subr.mxu0 0.0
    %1154 = vmatpush1.msra.mxu0 0.0
    %1155 = vmatprep.subr.mxu0 0.0
    %1156 = vmatpush1.msra.mxu0 0.0
    %1157 = vmatprep.subr.mxu0 0.0
    %1158 = vmatpush1.msra.mxu0 0.0
    %1159 = vmatprep.subr.mxu0 0.0
    %1160 = vmatpush1.msra.mxu0 0.0
    %1161 = vmatprep.mubr.f32.mxu0 0.0
    %1162 = vmatmul.mubr.f32.gmra.mrb[0].mxu0 %v1025
    %v1163 = vpop.f32.mrb[0].mxu0
    %v1164 = vadd.f32 %v1094, %v1163
    %v1165 = vpop.f32.mrb[0].mxu0
    %1166 = vdwg.mxu0
    %v1168 = vsel %vm113, %v795, 0
    %v1171 = vsel %vm113, %v800, 0
    %1173 = vmatprep.subr.mxu0 0.0
    %1174 = vmatpush1.msra.mxu0 %v804
    %1175 = vmatprep.subr.mxu0 0.0
    %1176 = vmatpush1.msra.mxu0 0.0
    %1177 = vmatprep.subr.mxu0 0.0
    %1178 = vmatpush1.msra.mxu0 0.0
    %1179 = vmatprep.subr.mxu0 0.0
    %1180 = vmatpush1.msra.mxu0 0.0
    %1181 = vmatprep.subr.mxu0 0.0
    %1182 = vmatpush1.msra.mxu0 0.0
    %1183 = vmatprep.subr.mxu0 0.0
    %1184 = vmatpush1.msra.mxu0 0.0
    %1185 = vmatprep.subr.mxu0 0.0
    %1186 = vmatpush1.msra.mxu0 0.0
    %1187 = vmatprep.subr.mxu0 0.0
    %1188 = vmatpush1.msra.mxu0 0.0
    %1189 = vmatprep.subr.mxu0 0.0
    %1190 = vmatpush1.msra.mxu0 0.0
    %1191 = vmatprep.subr.mxu0 0.0
    %1192 = vmatpush1.msra.mxu0 0.0
    %1193 = vmatprep.subr.mxu0 0.0
    %1194 = vmatpush1.msra.mxu0 0.0
    %1195 = vmatprep.subr.mxu0 0.0
    %1196 = vmatpush1.msra.mxu0 0.0
    %1197 = vmatprep.subr.mxu0 0.0
    %1198 = vmatpush1.msra.mxu0 0.0
    %1199 = vmatprep.subr.mxu0 0.0
    %1200 = vmatpush1.msra.mxu0 0.0
    %1201 = vmatprep.subr.mxu0 0.0
    %1202 = vmatpush1.msra.mxu0 0.0
    %1203 = vmatprep.subr.mxu0 0.0
    %1204 = vmatpush1.msra.mxu0 0.0
    %1205 = vmatprep.subr.mxu0 0.0
    %1206 = vmatpush1.msra.mxu0 0.0
    %1207 = vmatprep.subr.mxu0 0.0
    %1208 = vmatpush1.msra.mxu0 0.0
    %1209 = vmatprep.subr.mxu0 0.0
    %1210 = vmatpush1.msra.mxu0 0.0
    %1211 = vmatprep.subr.mxu0 0.0
    %1212 = vmatpush1.msra.mxu0 0.0
    %1213 = vmatprep.subr.mxu0 0.0
    %1214 = vmatpush1.msra.mxu0 0.0
    %1215 = vmatprep.subr.mxu0 0.0
    %1216 = vmatpush1.msra.mxu0 0.0
    %1217 = vmatprep.subr.mxu0 0.0
    %1218 = vmatpush1.msra.mxu0 0.0
    %1219 = vmatprep.subr.mxu0 0.0
    %1220 = vmatpush1.msra.mxu0 0.0
    %1221 = vmatprep.subr.mxu0 0.0
    %1222 = vmatpush1.msra.mxu0 0.0
    %1223 = vmatprep.subr.mxu0 0.0
    %1224 = vmatpush1.msra.mxu0 0.0
    %1225 = vmatprep.subr.mxu0 0.0
    %1226 = vmatpush1.msra.mxu0 0.0
    %1227 = vmatprep.subr.mxu0 0.0
    %1228 = vmatpush1.msra.mxu0 0.0
    %1229 = vmatprep.subr.mxu0 0.0
    %1230 = vmatpush1.msra.mxu0 0.0
    %1231 = vmatprep.subr.mxu0 0.0
    %1232 = vmatpush1.msra.mxu0 0.0
    %1233 = vmatprep.subr.mxu0 0.0
    %1234 = vmatpush1.msra.mxu0 0.0
    %1235 = vmatprep.subr.mxu0 0.0
    %1236 = vmatpush1.msra.mxu0 0.0
    %1237 = vmatprep.mubr.f32.mxu0 0.0
    %1238 = vmatmul.mubr.f32.gmra.mrb[0].mxu0 %v1168
    %v1239 = vpop.f32.mrb[0].mxu0
    %v1240 = vadd.f32 0.0, %v1239
    %v1241 = vpop.f32.mrb[0].mxu0
    %1242 = vmatprep.mubr.f32.mxu0 0.0
    %1243 = vmatmul.mubr.f32.gmra.mrb[0].mxu0 %v1171
    %v1244 = vpop.f32.mrb[0].mxu0
    %v1245 = vadd.f32 0.0, %v1244
    %v1246 = vpop.f32.mrb[0].mxu0
    %1247 = vdwg.mxu0
    %1248 = vmatprep.subr.mxu0 0.0
    %1249 = vmatpush1.msra.mxu0 %v806
    %1250 = vmatprep.subr.mxu0 0.0
    %1251 = vmatpush1.msra.mxu0 0.0
    %1252 = vmatprep.subr.mxu0 0.0
    %1253 = vmatpush1.msra.mxu0 0.0
    %1254 = vmatprep.subr.mxu0 0.0
    %1255 = vmatpush1.msra.mxu0 0.0
    %1256 = vmatprep.subr.mxu0 0.0
    %1257 = vmatpush1.msra.mxu0 0.0
    %1258 = vmatprep.subr.mxu0 0.0
    %1259 = vmatpush1.msra.mxu0 0.0
    %1260 = vmatprep.subr.mxu0 0.0
    %1261 = vmatpush1.msra.mxu0 0.0
    %1262 = vmatprep.subr.mxu0 0.0
    %1263 = vmatpush1.msra.mxu0 0.0
    %1264 = vmatprep.subr.mxu0 0.0
    %1265 = vmatpush1.msra.mxu0 0.0
    %1266 = vmatprep.subr.mxu0 0.0
    %1267 = vmatpush1.msra.mxu0 0.0
    %1268 = vmatprep.subr.mxu0 0.0
    %1269 = vmatpush1.msra.mxu0 0.0
    %1270 = vmatprep.subr.mxu0 0.0
    %1271 = vmatpush1.msra.mxu0 0.0
    %1272 = vmatprep.subr.mxu0 0.0
    %1273 = vmatpush1.msra.mxu0 0.0
    %1274 = vmatprep.subr.mxu0 0.0
    %1275 = vmatpush1.msra.mxu0 0.0
    %1276 = vmatprep.subr.mxu0 0.0
    %1277 = vmatpush1.msra.mxu0 0.0
    %1278 = vmatprep.subr.mxu0 0.0
    %1279 = vmatpush1.msra.mxu0 0.0
    %1280 = vmatprep.subr.mxu0 0.0
    %1281 = vmatpush1.msra.mxu0 0.0
    %1282 = vmatprep.subr.mxu0 0.0
    %1283 = vmatpush1.msra.mxu0 0.0
    %1284 = vmatprep.subr.mxu0 0.0
    %1285 = vmatpush1.msra.mxu0 0.0
    %1286 = vmatprep.subr.mxu0 0.0
    %1287 = vmatpush1.msra.mxu0 0.0
    %1288 = vmatprep.subr.mxu0 0.0
    %1289 = vmatpush1.msra.mxu0 0.0
    %1290 = vmatprep.subr.mxu0 0.0
    %1291 = vmatpush1.msra.mxu0 0.0
    %1292 = vmatprep.subr.mxu0 0.0
    %1293 = vmatpush1.msra.mxu0 0.0
    %1294 = vmatprep.subr.mxu0 0.0
    %1295 = vmatpush1.msra.mxu0 0.0
    %1296 = vmatprep.subr.mxu0 0.0
    %1297 = vmatpush1.msra.mxu0 0.0
    %1298 = vmatprep.subr.mxu0 0.0
    %1299 = vmatpush1.msra.mxu0 0.0
    %1300 = vmatprep.subr.mxu0 0.0
    %1301 = vmatpush1.msra.mxu0 0.0
    %1302 = vmatprep.subr.mxu0 0.0
    %1303 = vmatpush1.msra.mxu0 0.0
    %1304 = vmatprep.subr.mxu0 0.0
    %1305 = vmatpush1.msra.mxu0 0.0
    %1306 = vmatprep.subr.mxu0 0.0
    %1307 = vmatpush1.msra.mxu0 0.0
    %1308 = vmatprep.subr.mxu0 0.0
    %1309 = vmatpush1.msra.mxu0 0.0
    %1310 = vmatprep.subr.mxu0 0.0
    %1311 = vmatpush1.msra.mxu0 0.0
    %1312 = vmatprep.mubr.f32.mxu0 0.0
    %1313 = vmatmul.mubr.f32.gmra.mrb[0].mxu0 %v1168
    %v1314 = vpop.f32.mrb[0].mxu0
    %v1315 = vadd.f32 0.0, %v1314
    %v1316 = vpop.f32.mrb[0].mxu0
    %1317 = vmatprep.mubr.f32.mxu0 0.0
    %1318 = vmatmul.mubr.f32.gmra.mrb[0].mxu0 %v1171
    %v1319 = vpop.f32.mrb[0].mxu0
    %v1320 = vadd.f32 0.0, %v1319
    %v1321 = vpop.f32.mrb[0].mxu0
    %1322 = vdwg.mxu0
    %v1325 = vunpack.c.l.s4 1966171168
    %v1326 = vunpack.c.0.s8 %v1325
    %v1327 = vlaneseq
    %v1328 = vshrl.u32 %v1327, 7
    %v1329 = vsub.s32 %v1326, %v1328
    %v1330 = vrot.slane %v1021, %v1329
    %v1331 = vcombine.high %v1330, %v1330
    %v1333 = vunpack.c.l.s4 1966171168
    %v1334 = vunpack.c.0.s8 %v1333
    %v1335 = vlaneseq
    %v1336 = vshrl.u32 %v1335, 7
    %v1337 = vsub.s32 %v1334, %v1336
    %v1338 = vrot.slane %v1330, %v1337
    %v1340 = vunpack.c.l.s4 1966171168
    %v1341 = vunpack.c.0.s8 %v1340
    %v1342 = vlaneseq
    %v1343 = vshrl.u32 %v1342, 7
    %v1344 = vsub.s32 %v1341, %v1343
    %v1345 = vrot.slane %v1331, %v1344
    %v1348 = vlaneseq
    %v1349 = vshrl.u32 %v1348, 7
    %v1350 = vsub.s32 0, %v1349
    %v1351 = vrot.slane %v1338, %v1350
    %v1352 = vlaneseq
    %v1353 = vshrl.u32 %v1352, 7
    %v1354 = vsub.s32 0, %v1353
    %v1355 = vrot.slane %v1345, %v1354
    %v1358 = vmul.f32 %v1351, %v1240
    %v1359 = vmul.f32 %v1355, %v1245
    %v1360 = vsub.f32 1.0, %v1338
    %v1361 = vsub.f32 1.0, %v1345
    %v1364 = vlaneseq
    %v1365 = vshrl.u32 %v1364, 7
    %v1366 = vsub.s32 0, %v1365
    %v1367 = vrot.slane %v1360, %v1366
    %v1368 = vlaneseq
    %v1369 = vshrl.u32 %v1368, 7
    %v1370 = vsub.s32 0, %v1369
    %v1371 = vrot.slane %v1361, %v1370
    %v1374 = vmul.f32 %v1367, %v1315
    %v1375 = vmul.f32 %v1371, %v1320
    %v1376 = vadd.f32 %v1358, %v1374
    %v1377 = vadd.f32 %v1359, %v1375
    %v1378 = vadd.f32 %v1240, %v1315
    %v1379 = vadd.f32 %v1245, %v1320
    %1380 = vmatprep.subr.mxu0 0.0
    %1381 = vmatpush1.msra.mxu0 %v808
    %1382 = vmatprep.subr.mxu0 0.0
    %1383 = vmatpush1.msra.mxu0 %v809
    %1384 = vmatprep.subr.mxu0 0.0
    %1385 = vmatpush1.msra.mxu0 %v810
    %1386 = vmatprep.subr.mxu0 0.0
    %1387 = vmatpush1.msra.mxu0 %v811
    %1388 = vmatprep.subr.mxu0 0.0
    %1389 = vmatpush1.msra.mxu0 %v812
    %1390 = vmatprep.subr.mxu0 0.0
    %1391 = vmatpush1.msra.mxu0 %v813
    %1392 = vmatprep.subr.mxu0 0.0
    %1393 = vmatpush1.msra.mxu0 %v814
    %1394 = vmatprep.subr.mxu0 0.0
    %1395 = vmatpush1.msra.mxu0 %v815
    %1396 = vmatprep.subr.mxu0 0.0
    %1397 = vmatpush1.msra.mxu0 %v816
    %1398 = vmatprep.subr.mxu0 0.0
    %1399 = vmatpush1.msra.mxu0 %v817
    %1400 = vmatprep.subr.mxu0 0.0
    %1401 = vmatpush1.msra.mxu0 %v818
    %1402 = vmatprep.subr.mxu0 0.0
    %1403 = vmatpush1.msra.mxu0 %v819
    %1404 = vmatprep.subr.mxu0 0.0
    %1405 = vmatpush1.msra.mxu0 %v820
    %1406 = vmatprep.subr.mxu0 0.0
    %1407 = vmatpush1.msra.mxu0 %v821
    %1408 = vmatprep.subr.mxu0 0.0
    %1409 = vmatpush1.msra.mxu0 %v822
    %1410 = vmatprep.subr.mxu0 0.0
    %1411 = vmatpush1.msra.mxu0 %v823
    %1412 = vmatprep.subr.mxu0 0.0
    %1413 = vmatpush1.msra.mxu0 0.0
    %1414 = vmatprep.subr.mxu0 0.0
    %1415 = vmatpush1.msra.mxu0 0.0
    %1416 = vmatprep.subr.mxu0 0.0
    %1417 = vmatpush1.msra.mxu0 0.0
    %1418 = vmatprep.subr.mxu0 0.0
    %1419 = vmatpush1.msra.mxu0 0.0
    %1420 = vmatprep.subr.mxu0 0.0
    %1421 = vmatpush1.msra.mxu0 0.0
    %1422 = vmatprep.subr.mxu0 0.0
    %1423 = vmatpush1.msra.mxu0 0.0
    %1424 = vmatprep.subr.mxu0 0.0
    %1425 = vmatpush1.msra.mxu0 0.0
    %1426 = vmatprep.subr.mxu0 0.0
    %1427 = vmatpush1.msra.mxu0 0.0
    %1428 = vmatprep.subr.mxu0 0.0
    %1429 = vmatpush1.msra.mxu0 0.0
    %1430 = vmatprep.subr.mxu0 0.0
    %1431 = vmatpush1.msra.mxu0 0.0
    %1432 = vmatprep.subr.mxu0 0.0
    %1433 = vmatpush1.msra.mxu0 0.0
    %1434 = vmatprep.subr.mxu0 0.0
    %1435 = vmatpush1.msra.mxu0 0.0
    %1436 = vmatprep.subr.mxu0 0.0
    %1437 = vmatpush1.msra.mxu0 0.0
    %1438 = vmatprep.subr.mxu0 0.0
    %1439 = vmatpush1.msra.mxu0 0.0
    %1440 = vmatprep.subr.mxu0 0.0
    %1441 = vmatpush1.msra.mxu0 0.0
    %1442 = vmatprep.subr.mxu0 0.0
    %1443 = vmatpush1.msra.mxu0 0.0
    %1444 = vmatprep.mubr.f32.mxu0 0.0
    %1445 = vmatmul.mubr.f32.gmra.mrb[0].mxu0 %v1378
    %v1446 = vpop.f32.mrb[0].mxu0
    %v1447 = vadd.f32 0.0, %v1446
    %v1448 = vpop.f32.mrb[0].mxu0
    %1449 = vmatprep.mubr.f32.mxu0 0.0
    %1450 = vmatmul.mubr.f32.gmra.mrb[0].mxu0 %v1379
    %v1451 = vpop.f32.mrb[0].mxu0
    %v1452 = vadd.f32 0.0, %v1451
    %v1453 = vpop.f32.mrb[0].mxu0
    %1454 = vdwg.mxu0
    %1455 = vmatprep.subr.mxu0 0.0
    %1456 = vmatpush1.msra.mxu0 %v825
    %1457 = vmatprep.subr.mxu0 0.0
    %1458 = vmatpush1.msra.mxu0 %v826
    %1459 = vmatprep.subr.mxu0 0.0
    %1460 = vmatpush1.msra.mxu0 %v827
    %1461 = vmatprep.subr.mxu0 0.0
    %1462 = vmatpush1.msra.mxu0 %v828
    %1463 = vmatprep.subr.mxu0 0.0
    %1464 = vmatpush1.msra.mxu0 %v829
    %1465 = vmatprep.subr.mxu0 0.0
    %1466 = vmatpush1.msra.mxu0 %v830
    %1467 = vmatprep.subr.mxu0 0.0
    %1468 = vmatpush1.msra.mxu0 %v831
    %1469 = vmatprep.subr.mxu0 0.0
    %1470 = vmatpush1.msra.mxu0 %v832
    %1471 = vmatprep.subr.mxu0 0.0
    %1472 = vmatpush1.msra.mxu0 %v833
    %1473 = vmatprep.subr.mxu0 0.0
    %1474 = vmatpush1.msra.mxu0 %v834
    %1475 = vmatprep.subr.mxu0 0.0
    %1476 = vmatpush1.msra.mxu0 %v835
    %1477 = vmatprep.subr.mxu0 0.0
    %1478 = vmatpush1.msra.mxu0 %v836
    %1479 = vmatprep.subr.mxu0 0.0
    %1480 = vmatpush1.msra.mxu0 %v837
    %1481 = vmatprep.subr.mxu0 0.0
    %1482 = vmatpush1.msra.mxu0 %v838
    %1483 = vmatprep.subr.mxu0 0.0
    %1484 = vmatpush1.msra.mxu0 %v839
    %1485 = vmatprep.subr.mxu0 0.0
    %1486 = vmatpush1.msra.mxu0 %v840
    %1487 = vmatprep.subr.mxu0 0.0
    %1488 = vmatpush1.msra.mxu0 0.0
    %1489 = vmatprep.subr.mxu0 0.0
    %1490 = vmatpush1.msra.mxu0 0.0
    %1491 = vmatprep.subr.mxu0 0.0
    %1492 = vmatpush1.msra.mxu0 0.0
    %1493 = vmatprep.subr.mxu0 0.0
    %1494 = vmatpush1.msra.mxu0 0.0
    %1495 = vmatprep.subr.mxu0 0.0
    %1496 = vmatpush1.msra.mxu0 0.0
    %1497 = vmatprep.subr.mxu0 0.0
    %1498 = vmatpush1.msra.mxu0 0.0
    %1499 = vmatprep.subr.mxu0 0.0
    %1500 = vmatpush1.msra.mxu0 0.0
    %1501 = vmatprep.subr.mxu0 0.0
    %1502 = vmatpush1.msra.mxu0 0.0
    %1503 = vmatprep.subr.mxu0 0.0
    %1504 = vmatpush1.msra.mxu0 0.0
    %1505 = vmatprep.subr.mxu0 0.0
    %1506 = vmatpush1.msra.mxu0 0.0
    %1507 = vmatprep.subr.mxu0 0.0
    %1508 = vmatpush1.msra.mxu0 0.0
    %1509 = vmatprep.subr.mxu0 0.0
    %1510 = vmatpush1.msra.mxu0 0.0
    %1511 = vmatprep.subr.mxu0 0.0
    %1512 = vmatpush1.msra.mxu0 0.0
    %1513 = vmatprep.subr.mxu0 0.0
    %1514 = vmatpush1.msra.mxu0 0.0
    %1515 = vmatprep.subr.mxu0 0.0
    %1516 = vmatpush1.msra.mxu0 0.0
    %1517 = vmatprep.subr.mxu0 0.0
    %1518 = vmatpush1.msra.mxu0 0.0
    %1519 = vmatprep.mubr.f32.mxu0 0.0
    %1520 = vmatmul.mubr.f32.gmra.mrb[0].mxu0 %v1376
    %v1521 = vpop.f32.mrb[0].mxu0
    %v1522 = vadd.f32 %v1447, %v1521
    %v1523 = vpop.f32.mrb[0].mxu0
    %1524 = vmatprep.mubr.f32.mxu0 0.0
    %1525 = vmatmul.mubr.f32.gmra.mrb[0].mxu0 %v1377
    %v1526 = vpop.f32.mrb[0].mxu0
    %v1527 = vadd.f32 %v1452, %v1526
    %v1528 = vpop.f32.mrb[0].mxu0
    %1529 = vdwg.mxu0
    %s1530 = scalar_lea.vmem [#allocation5], 32
    %v1531 = vld [vmem:[%s1530] sm:$0xff]
    %s1532 = scalar_lea.vmem [#allocation5], 40
    %v1533 = vld [vmem:[%s1532] sm:$0xff]
    %s1534 = scalar_lea.vmem [#allocation7], 512
    %v1535 = vld [vmem:[%s1534] sm:$0xff]
    %v1536 = vld [vmem:[%s1534 + $0x8] sm:$0xff]
    %v1537 = vld [vmem:[%s1534 + $0x10] sm:$0xff]
    %v1538 = vld [vmem:[%s1534 + $0x18] sm:$0xff]
    %v1539 = vld [vmem:[%s1534 + $0x20] sm:$0xff]
    %v1540 = vld [vmem:[%s1534 + $0x28] sm:$0xff]
    %v1541 = vld [vmem:[%s1534 + $0x30] sm:$0xff]
    %v1542 = vld [vmem:[%s1534 + $0x38] sm:$0xff]
    %v1543 = vld [vmem:[%s1534 + $0x40] sm:$0xff]
    %v1544 = vld [vmem:[%s1534 + $0x48] sm:$0xff]
    %v1545 = vld [vmem:[%s1534 + $0x50] sm:$0xff]
    %v1546 = vld [vmem:[%s1534 + $0x58] sm:$0xff]
    %v1547 = vld [vmem:[%s1534 + $0x60] sm:$0xff]
    %v1548 = vld [vmem:[%s1534 + $0x68] sm:$0xff]
    %v1549 = vld [vmem:[%s1534 + $0x70] sm:$0xff]
    %v1550 = vld [vmem:[%s1534 + $0x78] sm:$0xff]
    %s1551 = scalar_lea.vmem [#allocation7], 640
    %v1552 = vld [vmem:[%s1551] sm:$0xff]
    %v1553 = vld [vmem:[%s1551 + $0x8] sm:$0xff]
    %v1554 = vld [vmem:[%s1551 + $0x10] sm:$0xff]
    %v1555 = vld [vmem:[%s1551 + $0x18] sm:$0xff]
    %v1556 = vld [vmem:[%s1551 + $0x20] sm:$0xff]
    %v1557 = vld [vmem:[%s1551 + $0x28] sm:$0xff]
    %v1558 = vld [vmem:[%s1551 + $0x30] sm:$0xff]
    %v1559 = vld [vmem:[%s1551 + $0x38] sm:$0xff]
    %v1560 = vld [vmem:[%s1551 + $0x40] sm:$0xff]
    %v1561 = vld [vmem:[%s1551 + $0x48] sm:$0xff]
    %v1562 = vld [vmem:[%s1551 + $0x50] sm:$0xff]
    %v1563 = vld [vmem:[%s1551 + $0x58] sm:$0xff]
    %v1564 = vld [vmem:[%s1551 + $0x60] sm:$0xff]
    %v1565 = vld [vmem:[%s1551 + $0x68] sm:$0xff]
    %v1566 = vld [vmem:[%s1551 + $0x70] sm:$0xff]
    %v1567 = vld [vmem:[%s1551 + $0x78] sm:$0xff]
    %v1569 = vsel %vm113, %v1164, 0
    %1571 = vmatprep.subr.mxu0 0.0
    %1572 = vmatpush1.msra.mxu0 %v1531
    %1573 = vmatprep.subr.mxu0 0.0
    %1574 = vmatpush1.msra.mxu0 0.0
    %1575 = vmatprep.subr.mxu0 0.0
    %1576 = vmatpush1.msra.mxu0 0.0
    %1577 = vmatprep.subr.mxu0 0.0
    %1578 = vmatpush1.msra.mxu0 0.0
    %1579 = vmatprep.subr.mxu0 0.0
    %1580 = vmatpush1.msra.mxu0 0.0
    %1581 = vmatprep.subr.mxu0 0.0
    %1582 = vmatpush1.msra.mxu0 0.0
    %1583 = vmatprep.subr.mxu0 0.0
    %1584 = vmatpush1.msra.mxu0 0.0
    %1585 = vmatprep.subr.mxu0 0.0
    %1586 = vmatpush1.msra.mxu0 0.0
    %1587 = vmatprep.subr.mxu0 0.0
    %1588 = vmatpush1.msra.mxu0 0.0
    %1589 = vmatprep.subr.mxu0 0.0
    %1590 = vmatpush1.msra.mxu0 0.0
    %1591 = vmatprep.subr.mxu0 0.0
    %1592 = vmatpush1.msra.mxu0 0.0
    %1593 = vmatprep.subr.mxu0 0.0
    %1594 = vmatpush1.msra.mxu0 0.0
    %1595 = vmatprep.subr.mxu0 0.0
    %1596 = vmatpush1.msra.mxu0 0.0
    %1597 = vmatprep.subr.mxu0 0.0
    %1598 = vmatpush1.msra.mxu0 0.0
    %1599 = vmatprep.subr.mxu0 0.0
    %1600 = vmatpush1.msra.mxu0 0.0
    %1601 = vmatprep.subr.mxu0 0.0
    %1602 = vmatpush1.msra.mxu0 0.0
    %1603 = vmatprep.subr.mxu0 0.0
    %1604 = vmatpush1.msra.mxu0 0.0
    %1605 = vmatprep.subr.mxu0 0.0
    %1606 = vmatpush1.msra.mxu0 0.0
    %1607 = vmatprep.subr.mxu0 0.0
    %1608 = vmatpush1.msra.mxu0 0.0
    %1609 = vmatprep.subr.mxu0 0.0
    %1610 = vmatpush1.msra.mxu0 0.0
    %1611 = vmatprep.subr.mxu0 0.0
    %1612 = vmatpush1.msra.mxu0 0.0
    %1613 = vmatprep.subr.mxu0 0.0
    %1614 = vmatpush1.msra.mxu0 0.0
    %1615 = vmatprep.subr.mxu0 0.0
    %1616 = vmatpush1.msra.mxu0 0.0
    %1617 = vmatprep.subr.mxu0 0.0
    %1618 = vmatpush1.msra.mxu0 0.0
    %1619 = vmatprep.subr.mxu0 0.0
    %1620 = vmatpush1.msra.mxu0 0.0
    %1621 = vmatprep.subr.mxu0 0.0
    %1622 = vmatpush1.msra.mxu0 0.0
    %1623 = vmatprep.subr.mxu0 0.0
    %1624 = vmatpush1.msra.mxu0 0.0
    %1625 = vmatprep.subr.mxu0 0.0
    %1626 = vmatpush1.msra.mxu0 0.0
    %1627 = vmatprep.subr.mxu0 0.0
    %1628 = vmatpush1.msra.mxu0 0.0
    %1629 = vmatprep.subr.mxu0 0.0
    %1630 = vmatpush1.msra.mxu0 0.0
    %1631 = vmatprep.subr.mxu0 0.0
    %1632 = vmatpush1.msra.mxu0 0.0
    %1633 = vmatprep.subr.mxu0 0.0
    %1634 = vmatpush1.msra.mxu0 0.0
    %1635 = vmatprep.mubr.f32.mxu0 0.0
    %1636 = vmatmul.mubr.f32.gmra.mrb[0].mxu0 %v1569
    %v1637 = vpop.f32.mrb[0].mxu0
    %v1638 = vadd.f32 0.0, %v1637
    %v1639 = vpop.f32.mrb[0].mxu0
    %1640 = vdwg.mxu0
    %1641 = vmatprep.subr.mxu0 0.0
    %1642 = vmatpush1.msra.mxu0 %v1533
    %1643 = vmatprep.subr.mxu0 0.0
    %1644 = vmatpush1.msra.mxu0 0.0
    %1645 = vmatprep.subr.mxu0 0.0
    %1646 = vmatpush1.msra.mxu0 0.0
    %1647 = vmatprep.subr.mxu0 0.0
    %1648 = vmatpush1.msra.mxu0 0.0
    %1649 = vmatprep.subr.mxu0 0.0
    %1650 = vmatpush1.msra.mxu0 0.0
    %1651 = vmatprep.subr.mxu0 0.0
    %1652 = vmatpush1.msra.mxu0 0.0
    %1653 = vmatprep.subr.mxu0 0.0
    %1654 = vmatpush1.msra.mxu0 0.0
    %1655 = vmatprep.subr.mxu0 0.0
    %1656 = vmatpush1.msra.mxu0 0.0
    %1657 = vmatprep.subr.mxu0 0.0
    %1658 = vmatpush1.msra.mxu0 0.0
    %1659 = vmatprep.subr.mxu0 0.0
    %1660 = vmatpush1.msra.mxu0 0.0
    %1661 = vmatprep.subr.mxu0 0.0
    %1662 = vmatpush1.msra.mxu0 0.0
    %1663 = vmatprep.subr.mxu0 0.0
    %1664 = vmatpush1.msra.mxu0 0.0
    %1665 = vmatprep.subr.mxu0 0.0
    %1666 = vmatpush1.msra.mxu0 0.0
    %1667 = vmatprep.subr.mxu0 0.0
    %1668 = vmatpush1.msra.mxu0 0.0
    %1669 = vmatprep.subr.mxu0 0.0
    %1670 = vmatpush1.msra.mxu0 0.0
    %1671 = vmatprep.subr.mxu0 0.0
    %1672 = vmatpush1.msra.mxu0 0.0
    %1673 = vmatprep.subr.mxu0 0.0
    %1674 = vmatpush1.msra.mxu0 0.0
    %1675 = vmatprep.subr.mxu0 0.0
    %1676 = vmatpush1.msra.mxu0 0.0
    %1677 = vmatprep.subr.mxu0 0.0
    %1678 = vmatpush1.msra.mxu0 0.0
    %1679 = vmatprep.subr.mxu0 0.0
    %1680 = vmatpush1.msra.mxu0 0.0
    %1681 = vmatprep.subr.mxu0 0.0
    %1682 = vmatpush1.msra.mxu0 0.0
    %1683 = vmatprep.subr.mxu0 0.0
    %1684 = vmatpush1.msra.mxu0 0.0
    %1685 = vmatprep.subr.mxu0 0.0
    %1686 = vmatpush1.msra.mxu0 0.0
    %1687 = vmatprep.subr.mxu0 0.0
    %1688 = vmatpush1.msra.mxu0 0.0
    %1689 = vmatprep.subr.mxu0 0.0
    %1690 = vmatpush1.msra.mxu0 0.0
    %1691 = vmatprep.subr.mxu0 0.0
    %1692 = vmatpush1.msra.mxu0 0.0
    %1693 = vmatprep.subr.mxu0 0.0
    %1694 = vmatpush1.msra.mxu0 0.0
    %1695 = vmatprep.subr.mxu0 0.0
    %1696 = vmatpush1.msra.mxu0 0.0
    %1697 = vmatprep.subr.mxu0 0.0
    %1698 = vmatpush1.msra.mxu0 0.0
    %1699 = vmatprep.subr.mxu0 0.0
    %1700 = vmatpush1.msra.mxu0 0.0
    %1701 = vmatprep.subr.mxu0 0.0
    %1702 = vmatpush1.msra.mxu0 0.0
    %1703 = vmatprep.subr.mxu0 0.0
    %1704 = vmatpush1.msra.mxu0 0.0
    %1705 = vmatprep.mubr.f32.mxu0 0.0
    %1706 = vmatmul.mubr.f32.gmra.mrb[0].mxu0 %v1569
    %v1707 = vpop.f32.mrb[0].mxu0
    %v1708 = vadd.f32 0.0, %v1707
    %v1709 = vpop.f32.mrb[0].mxu0
    %1710 = vdwg.mxu0
    %v1711 = vsub.f32 %v1708, %v1638
    %v1712 = vmul.f32 %v1711, 10.0
    %vm1713 = vcmp.lt.f32.partialorder %v1712, 0.0
    %v1714 = vsel %vm1713, -1.0, 1.0
    %v1715 = vand.u32 2147483647, %v1712
    %vm1716 = vcmp.gt.f32.partialorder %v1715, 2.4142137
    %vm1717 = vcmp.gt.f32.partialorder %v1715, 0.41421357
    %v1718 = vsel %vm1717, 0.7853982, 0.0
    %v1719 = vsel %vm1716, 1.5707964, %v1718
    %v1720 = vadd.f32 %v1715, 1e-30
    %v1721 = vrcp.pop %v1720
    %v1722 = vmul.f32 %v1720, %v1721
    %v1723 = vsub.f32 2.0, %v1722
    %v1724 = vmul.f32 %v1721, %v1723
    %v1725 = vadd.f32 %v1715, 1.0
    %v1726 = vrcp.pop %v1725
    %v1727 = vmul.f32 %v1725, %v1726
    %v1728 = vsub.f32 2.0, %v1727
    %v1729 = vmul.f32 %v1726, %v1728
    %v1730 = vsub.f32 0.0, %v1724
    %v1731 = vsub.f32 %v1715, 1.0
    %v1732 = vmul.f32 %v1731, %v1729
    %v1733 = vsel %vm1717, %v1732, %v1715
    %v1734 = vsel %vm1716, %v1730, %v1733
    %v1735 = vmul.f32 %v1734, %v1734
    %v1736 = vmul.f32 %v1735, 0.080537446
    %v1737 = vsub.f32 %v1736, 0.13877685
    %v1738 = vmul.f32 %v1737, %v1735
    %v1739 = vadd.f32 %v1738, 0.19977711
    %v1740 = vmul.f32 %v1739, %v1735
    %v1741 = vsub.f32 %v1740, 0.3333295
    %v1742 = vmul.f32 %v1741, %v1735
    %v1743 = vmul.f32 %v1742, %v1734
    %v1744 = vadd.f32 %v1743, %v1734
    %v1745 = vadd.f32 %v1719, %v1744
    %v1746 = vmul.f32 %v1714, %v1745
    %v1747 = vmul.f32 %v1746, 0.31830987
    %v1748 = vadd.f32 %v1747, 0.5
    %v1749 = vmul.f32 %v1748, %v1638
    %v1750 = vsub.f32 1.0, %v1748
    %v1751 = vmul.f32 %v1750, %v1708
    %v1752 = vadd.f32 %v1749, %v1751
    %v1753 = vadd.f32 %v1638, %v1708
    %1754 = vmatprep.subr.mxu0 0.0
    %1755 = vmatpush1.msra.mxu0 %v1535
    %1756 = vmatprep.subr.mxu0 0.0
    %1757 = vmatpush1.msra.mxu0 %v1536
    %1758 = vmatprep.subr.mxu0 0.0
    %1759 = vmatpush1.msra.mxu0 %v1537
    %1760 = vmatprep.subr.mxu0 0.0
    %1761 = vmatpush1.msra.mxu0 %v1538
    %1762 = vmatprep.subr.mxu0 0.0
    %1763 = vmatpush1.msra.mxu0 %v1539
    %1764 = vmatprep.subr.mxu0 0.0
    %1765 = vmatpush1.msra.mxu0 %v1540
    %1766 = vmatprep.subr.mxu0 0.0
    %1767 = vmatpush1.msra.mxu0 %v1541
    %1768 = vmatprep.subr.mxu0 0.0
    %1769 = vmatpush1.msra.mxu0 %v1542
    %1770 = vmatprep.subr.mxu0 0.0
    %1771 = vmatpush1.msra.mxu0 %v1543
    %1772 = vmatprep.subr.mxu0 0.0
    %1773 = vmatpush1.msra.mxu0 %v1544
    %1774 = vmatprep.subr.mxu0 0.0
    %1775 = vmatpush1.msra.mxu0 %v1545
    %1776 = vmatprep.subr.mxu0 0.0
    %1777 = vmatpush1.msra.mxu0 %v1546
    %1778 = vmatprep.subr.mxu0 0.0
    %1779 = vmatpush1.msra.mxu0 %v1547
    %1780 = vmatprep.subr.mxu0 0.0
    %1781 = vmatpush1.msra.mxu0 %v1548
    %1782 = vmatprep.subr.mxu0 0.0
    %1783 = vmatpush1.msra.mxu0 %v1549
    %1784 = vmatprep.subr.mxu0 0.0
    %1785 = vmatpush1.msra.mxu0 %v1550
    %1786 = vmatprep.subr.mxu0 0.0
    %1787 = vmatpush1.msra.mxu0 0.0
    %1788 = vmatprep.subr.mxu0 0.0
    %1789 = vmatpush1.msra.mxu0 0.0
    %1790 = vmatprep.subr.mxu0 0.0
    %1791 = vmatpush1.msra.mxu0 0.0
    %1792 = vmatprep.subr.mxu0 0.0
    %1793 = vmatpush1.msra.mxu0 0.0
    %1794 = vmatprep.subr.mxu0 0.0
    %1795 = vmatpush1.msra.mxu0 0.0
    %1796 = vmatprep.subr.mxu0 0.0
    %1797 = vmatpush1.msra.mxu0 0.0
    %1798 = vmatprep.subr.mxu0 0.0
    %1799 = vmatpush1.msra.mxu0 0.0
    %1800 = vmatprep.subr.mxu0 0.0
    %1801 = vmatpush1.msra.mxu0 0.0
    %1802 = vmatprep.subr.mxu0 0.0
    %1803 = vmatpush1.msra.mxu0 0.0
    %1804 = vmatprep.subr.mxu0 0.0
    %1805 = vmatpush1.msra.mxu0 0.0
    %1806 = vmatprep.subr.mxu0 0.0
    %1807 = vmatpush1.msra.mxu0 0.0
    %1808 = vmatprep.subr.mxu0 0.0
    %1809 = vmatpush1.msra.mxu0 0.0
    %1810 = vmatprep.subr.mxu0 0.0
    %1811 = vmatpush1.msra.mxu0 0.0
    %1812 = vmatprep.subr.mxu0 0.0
    %1813 = vmatpush1.msra.mxu0 0.0
    %1814 = vmatprep.subr.mxu0 0.0
    %1815 = vmatpush1.msra.mxu0 0.0
    %1816 = vmatprep.subr.mxu0 0.0
    %1817 = vmatpush1.msra.mxu0 0.0
    %1818 = vmatprep.mubr.f32.mxu0 0.0
    %1819 = vmatmul.mubr.f32.gmra.mrb[0].mxu0 %v1753
    %v1820 = vpop.f32.mrb[0].mxu0
    %v1821 = vadd.f32 0.0, %v1820
    %v1822 = vpop.f32.mrb[0].mxu0
    %1823 = vdwg.mxu0
    %1824 = vmatprep.subr.mxu0 0.0
    %1825 = vmatpush1.msra.mxu0 %v1552
    %1826 = vmatprep.subr.mxu0 0.0
    %1827 = vmatpush1.msra.mxu0 %v1553
    %1828 = vmatprep.subr.mxu0 0.0
    %1829 = vmatpush1.msra.mxu0 %v1554
    %1830 = vmatprep.subr.mxu0 0.0
    %1831 = vmatpush1.msra.mxu0 %v1555
    %1832 = vmatprep.subr.mxu0 0.0
    %1833 = vmatpush1.msra.mxu0 %v1556
    %1834 = vmatprep.subr.mxu0 0.0
    %1835 = vmatpush1.msra.mxu0 %v1557
    %1836 = vmatprep.subr.mxu0 0.0
    %1837 = vmatpush1.msra.mxu0 %v1558
    %1838 = vmatprep.subr.mxu0 0.0
    %1839 = vmatpush1.msra.mxu0 %v1559
    %1840 = vmatprep.subr.mxu0 0.0
    %1841 = vmatpush1.msra.mxu0 %v1560
    %1842 = vmatprep.subr.mxu0 0.0
    %1843 = vmatpush1.msra.mxu0 %v1561
    %1844 = vmatprep.subr.mxu0 0.0
    %1845 = vmatpush1.msra.mxu0 %v1562
    %1846 = vmatprep.subr.mxu0 0.0
    %1847 = vmatpush1.msra.mxu0 %v1563
    %1848 = vmatprep.subr.mxu0 0.0
    %1849 = vmatpush1.msra.mxu0 %v1564
    %1850 = vmatprep.subr.mxu0 0.0
    %1851 = vmatpush1.msra.mxu0 %v1565
    %1852 = vmatprep.subr.mxu0 0.0
    %1853 = vmatpush1.msra.mxu0 %v1566
    %1854 = vmatprep.subr.mxu0 0.0
    %1855 = vmatpush1.msra.mxu0 %v1567
    %1856 = vmatprep.subr.mxu0 0.0
    %1857 = vmatpush1.msra.mxu0 0.0
    %1858 = vmatprep.subr.mxu0 0.0
    %1859 = vmatpush1.msra.mxu0 0.0
    %1860 = vmatprep.subr.mxu0 0.0
    %1861 = vmatpush1.msra.mxu0 0.0
    %1862 = vmatprep.subr.mxu0 0.0
    %1863 = vmatpush1.msra.mxu0 0.0
    %1864 = vmatprep.subr.mxu0 0.0
    %1865 = vmatpush1.msra.mxu0 0.0
    %1866 = vmatprep.subr.mxu0 0.0
    %1867 = vmatpush1.msra.mxu0 0.0
    %1868 = vmatprep.subr.mxu0 0.0
    %1869 = vmatpush1.msra.mxu0 0.0
    %1870 = vmatprep.subr.mxu0 0.0
    %1871 = vmatpush1.msra.mxu0 0.0
    %1872 = vmatprep.subr.mxu0 0.0
    %1873 = vmatpush1.msra.mxu0 0.0
    %1874 = vmatprep.subr.mxu0 0.0
    %1875 = vmatpush1.msra.mxu0 0.0
    %1876 = vmatprep.subr.mxu0 0.0
    %1877 = vmatpush1.msra.mxu0 0.0
    %1878 = vmatprep.subr.mxu0 0.0
    %1879 = vmatpush1.msra.mxu0 0.0
    %1880 = vmatprep.subr.mxu0 0.0
    %1881 = vmatpush1.msra.mxu0 0.0
    %1882 = vmatprep.subr.mxu0 0.0
    %1883 = vmatpush1.msra.mxu0 0.0
    %1884 = vmatprep.subr.mxu0 0.0
    %1885 = vmatpush1.msra.mxu0 0.0
    %1886 = vmatprep.subr.mxu0 0.0
    %1887 = vmatpush1.msra.mxu0 0.0
    %1888 = vmatprep.mubr.f32.mxu0 0.0
    %1889 = vmatmul.mubr.f32.gmra.mrb[0].mxu0 %v1752
    %v1890 = vpop.f32.mrb[0].mxu0
    %v1891 = vadd.f32 %v1821, %v1890
    %v1892 = vpop.f32.mrb[0].mxu0
    %1893 = vdwg.mxu0
    %v1895 = vsel %vm113, %v1522, 0
    %v1898 = vsel %vm113, %v1527, 0
    %1900 = vmatprep.subr.mxu0 0.0
    %1901 = vmatpush1.msra.mxu0 %v1531
    %1902 = vmatprep.subr.mxu0 0.0
    %1903 = vmatpush1.msra.mxu0 0.0
    %1904 = vmatprep.subr.mxu0 0.0
    %1905 = vmatpush1.msra.mxu0 0.0
    %1906 = vmatprep.subr.mxu0 0.0
    %1907 = vmatpush1.msra.mxu0 0.0
    %1908 = vmatprep.subr.mxu0 0.0
    %1909 = vmatpush1.msra.mxu0 0.0
    %1910 = vmatprep.subr.mxu0 0.0
    %1911 = vmatpush1.msra.mxu0 0.0
    %1912 = vmatprep.subr.mxu0 0.0
    %1913 = vmatpush1.msra.mxu0 0.0
    %1914 = vmatprep.subr.mxu0 0.0
    %1915 = vmatpush1.msra.mxu0 0.0
    %1916 = vmatprep.subr.mxu0 0.0
    %1917 = vmatpush1.msra.mxu0 0.0
    %1918 = vmatprep.subr.mxu0 0.0
    %1919 = vmatpush1.msra.mxu0 0.0
    %1920 = vmatprep.subr.mxu0 0.0
    %1921 = vmatpush1.msra.mxu0 0.0
    %1922 = vmatprep.subr.mxu0 0.0
    %1923 = vmatpush1.msra.mxu0 0.0
    %1924 = vmatprep.subr.mxu0 0.0
    %1925 = vmatpush1.msra.mxu0 0.0
    %1926 = vmatprep.subr.mxu0 0.0
    %1927 = vmatpush1.msra.mxu0 0.0
    %1928 = vmatprep.subr.mxu0 0.0
    %1929 = vmatpush1.msra.mxu0 0.0
    %1930 = vmatprep.subr.mxu0 0.0
    %1931 = vmatpush1.msra.mxu0 0.0
    %1932 = vmatprep.subr.mxu0 0.0
    %1933 = vmatpush1.msra.mxu0 0.0
    %1934 = vmatprep.subr.mxu0 0.0
    %1935 = vmatpush1.msra.mxu0 0.0
    %1936 = vmatprep.subr.mxu0 0.0
    %1937 = vmatpush1.msra.mxu0 0.0
    %1938 = vmatprep.subr.mxu0 0.0
    %1939 = vmatpush1.msra.mxu0 0.0
    %1940 = vmatprep.subr.mxu0 0.0
    %1941 = vmatpush1.msra.mxu0 0.0
    %1942 = vmatprep.subr.mxu0 0.0
    %1943 = vmatpush1.msra.mxu0 0.0
    %1944 = vmatprep.subr.mxu0 0.0
    %1945 = vmatpush1.msra.mxu0 0.0
    %1946 = vmatprep.subr.mxu0 0.0
    %1947 = vmatpush1.msra.mxu0 0.0
    %1948 = vmatprep.subr.mxu0 0.0
    %1949 = vmatpush1.msra.mxu0 0.0
    %1950 = vmatprep.subr.mxu0 0.0
    %1951 = vmatpush1.msra.mxu0 0.0
    %1952 = vmatprep.subr.mxu0 0.0
    %1953 = vmatpush1.msra.mxu0 0.0
    %1954 = vmatprep.subr.mxu0 0.0
    %1955 = vmatpush1.msra.mxu0 0.0
    %1956 = vmatprep.subr.mxu0 0.0
    %1957 = vmatpush1.msra.mxu0 0.0
    %1958 = vmatprep.subr.mxu0 0.0
    %1959 = vmatpush1.msra.mxu0 0.0
    %1960 = vmatprep.subr.mxu0 0.0
    %1961 = vmatpush1.msra.mxu0 0.0
    %1962 = vmatprep.subr.mxu0 0.0
    %1963 = vmatpush1.msra.mxu0 0.0
    %1964 = vmatprep.mubr.f32.mxu0 0.0
    %1965 = vmatmul.mubr.f32.gmra.mrb[0].mxu0 %v1895
    %v1966 = vpop.f32.mrb[0].mxu0
    %v1967 = vadd.f32 0.0, %v1966
    %v1968 = vpop.f32.mrb[0].mxu0
    %1969 = vmatprep.mubr.f32.mxu0 0.0
    %1970 = vmatmul.mubr.f32.gmra.mrb[0].mxu0 %v1898
    %v1971 = vpop.f32.mrb[0].mxu0
    %v1972 = vadd.f32 0.0, %v1971
    %v1973 = vpop.f32.mrb[0].mxu0
    %1974 = vdwg.mxu0
    %1975 = vmatprep.subr.mxu0 0.0
    %1976 = vmatpush1.msra.mxu0 %v1533
    %1977 = vmatprep.subr.mxu0 0.0
    %1978 = vmatpush1.msra.mxu0 0.0
    %1979 = vmatprep.subr.mxu0 0.0
    %1980 = vmatpush1.msra.mxu0 0.0
    %1981 = vmatprep.subr.mxu0 0.0
    %1982 = vmatpush1.msra.mxu0 0.0
    %1983 = vmatprep.subr.mxu0 0.0
    %1984 = vmatpush1.msra.mxu0 0.0
    %1985 = vmatprep.subr.mxu0 0.0
    %1986 = vmatpush1.msra.mxu0 0.0
    %1987 = vmatprep.subr.mxu0 0.0
    %1988 = vmatpush1.msra.mxu0 0.0
    %1989 = vmatprep.subr.mxu0 0.0
    %1990 = vmatpush1.msra.mxu0 0.0
    %1991 = vmatprep.subr.mxu0 0.0
    %1992 = vmatpush1.msra.mxu0 0.0
    %1993 = vmatprep.subr.mxu0 0.0
    %1994 = vmatpush1.msra.mxu0 0.0
    %1995 = vmatprep.subr.mxu0 0.0
    %1996 = vmatpush1.msra.mxu0 0.0
    %1997 = vmatprep.subr.mxu0 0.0
    %1998 = vmatpush1.msra.mxu0 0.0
    %1999 = vmatprep.subr.mxu0 0.0
    %2000 = vmatpush1.msra.mxu0 0.0
    %2001 = vmatprep.subr.mxu0 0.0
    %2002 = vmatpush1.msra.mxu0 0.0
    %2003 = vmatprep.subr.mxu0 0.0
    %2004 = vmatpush1.msra.mxu0 0.0
    %2005 = vmatprep.subr.mxu0 0.0
    %2006 = vmatpush1.msra.mxu0 0.0
    %2007 = vmatprep.subr.mxu0 0.0
    %2008 = vmatpush1.msra.mxu0 0.0
    %2009 = vmatprep.subr.mxu0 0.0
    %2010 = vmatpush1.msra.mxu0 0.0
    %2011 = vmatprep.subr.mxu0 0.0
    %2012 = vmatpush1.msra.mxu0 0.0
    %2013 = vmatprep.subr.mxu0 0.0
    %2014 = vmatpush1.msra.mxu0 0.0
    %2015 = vmatprep.subr.mxu0 0.0
    %2016 = vmatpush1.msra.mxu0 0.0
    %2017 = vmatprep.subr.mxu0 0.0
    %2018 = vmatpush1.msra.mxu0 0.0
    %2019 = vmatprep.subr.mxu0 0.0
    %2020 = vmatpush1.msra.mxu0 0.0
    %2021 = vmatprep.subr.mxu0 0.0
    %2022 = vmatpush1.msra.mxu0 0.0
    %2023 = vmatprep.subr.mxu0 0.0
    %2024 = vmatpush1.msra.mxu0 0.0
    %2025 = vmatprep.subr.mxu0 0.0
    %2026 = vmatpush1.msra.mxu0 0.0
    %2027 = vmatprep.subr.mxu0 0.0
    %2028 = vmatpush1.msra.mxu0 0.0
    %2029 = vmatprep.subr.mxu0 0.0
    %2030 = vmatpush1.msra.mxu0 0.0
    %2031 = vmatprep.subr.mxu0 0.0
    %2032 = vmatpush1.msra.mxu0 0.0
    %2033 = vmatprep.subr.mxu0 0.0
    %2034 = vmatpush1.msra.mxu0 0.0
    %2035 = vmatprep.subr.mxu0 0.0
    %2036 = vmatpush1.msra.mxu0 0.0
    %2037 = vmatprep.subr.mxu0 0.0
    %2038 = vmatpush1.msra.mxu0 0.0
    %2039 = vmatprep.mubr.f32.mxu0 0.0
    %2040 = vmatmul.mubr.f32.gmra.mrb[0].mxu0 %v1895
    %v2041 = vpop.f32.mrb[0].mxu0
    %v2042 = vadd.f32 0.0, %v2041
    %v2043 = vpop.f32.mrb[0].mxu0
    %2044 = vmatprep.mubr.f32.mxu0 0.0
    %2045 = vmatmul.mubr.f32.gmra.mrb[0].mxu0 %v1898
    %v2046 = vpop.f32.mrb[0].mxu0
    %v2047 = vadd.f32 0.0, %v2046
    %v2048 = vpop.f32.mrb[0].mxu0
    %2049 = vdwg.mxu0
    %v2052 = vunpack.c.l.s4 1966171168
    %v2053 = vunpack.c.0.s8 %v2052
    %v2054 = vlaneseq
    %v2055 = vshrl.u32 %v2054, 7
    %v2056 = vsub.s32 %v2053, %v2055
    %v2057 = vrot.slane %v1748, %v2056
    %v2058 = vcombine.high %v2057, %v2057
    %v2060 = vunpack.c.l.s4 1966171168
    %v2061 = vunpack.c.0.s8 %v2060
    %v2062 = vlaneseq
    %v2063 = vshrl.u32 %v2062, 7
    %v2064 = vsub.s32 %v2061, %v2063
    %v2065 = vrot.slane %v2057, %v2064
    %v2067 = vunpack.c.l.s4 1966171168
    %v2068 = vunpack.c.0.s8 %v2067
    %v2069 = vlaneseq
    %v2070 = vshrl.u32 %v2069, 7
    %v2071 = vsub.s32 %v2068, %v2070
    %v2072 = vrot.slane %v2058, %v2071
    %v2075 = vlaneseq
    %v2076 = vshrl.u32 %v2075, 7
    %v2077 = vsub.s32 0, %v2076
    %v2078 = vrot.slane %v2065, %v2077
    %v2079 = vlaneseq
    %v2080 = vshrl.u32 %v2079, 7
    %v2081 = vsub.s32 0, %v2080
    %v2082 = vrot.slane %v2072, %v2081
    %v2085 = vmul.f32 %v2078, %v1967
    %v2086 = vmul.f32 %v2082, %v1972
    %v2087 = vsub.f32 1.0, %v2065
    %v2088 = vsub.f32 1.0, %v2072
    %v2091 = vlaneseq
    %v2092 = vshrl.u32 %v2091, 7
    %v2093 = vsub.s32 0, %v2092
    %v2094 = vrot.slane %v2087, %v2093
    %v2095 = vlaneseq
    %v2096 = vshrl.u32 %v2095, 7
    %v2097 = vsub.s32 0, %v2096
    %v2098 = vrot.slane %v2088, %v2097
    %v2101 = vmul.f32 %v2094, %v2042
    %v2102 = vmul.f32 %v2098, %v2047
    %v2103 = vadd.f32 %v2085, %v2101
    %v2104 = vadd.f32 %v2086, %v2102
    %v2105 = vadd.f32 %v1967, %v2042
    %v2106 = vadd.f32 %v1972, %v2047
    %2107 = vmatprep.subr.mxu0 0.0
    %2108 = vmatpush1.msra.mxu0 %v1535
    %2109 = vmatprep.subr.mxu0 0.0
    %2110 = vmatpush1.msra.mxu0 %v1536
    %2111 = vmatprep.subr.mxu0 0.0
    %2112 = vmatpush1.msra.mxu0 %v1537
    %2113 = vmatprep.subr.mxu0 0.0
    %2114 = vmatpush1.msra.mxu0 %v1538
    %2115 = vmatprep.subr.mxu0 0.0
    %2116 = vmatpush1.msra.mxu0 %v1539
    %2117 = vmatprep.subr.mxu0 0.0
    %2118 = vmatpush1.msra.mxu0 %v1540
    %2119 = vmatprep.subr.mxu0 0.0
    %2120 = vmatpush1.msra.mxu0 %v1541
    %2121 = vmatprep.subr.mxu0 0.0
    %2122 = vmatpush1.msra.mxu0 %v1542
    %2123 = vmatprep.subr.mxu0 0.0
    %2124 = vmatpush1.msra.mxu0 %v1543
    %2125 = vmatprep.subr.mxu0 0.0
    %2126 = vmatpush1.msra.mxu0 %v1544
    %2127 = vmatprep.subr.mxu0 0.0
    %2128 = vmatpush1.msra.mxu0 %v1545
    %2129 = vmatprep.subr.mxu0 0.0
    %2130 = vmatpush1.msra.mxu0 %v1546
    %2131 = vmatprep.subr.mxu0 0.0
    %2132 = vmatpush1.msra.mxu0 %v1547
    %2133 = vmatprep.subr.mxu0 0.0
    %2134 = vmatpush1.msra.mxu0 %v1548
    %2135 = vmatprep.subr.mxu0 0.0
    %2136 = vmatpush1.msra.mxu0 %v1549
    %2137 = vmatprep.subr.mxu0 0.0
    %2138 = vmatpush1.msra.mxu0 %v1550
    %2139 = vmatprep.subr.mxu0 0.0
    %2140 = vmatpush1.msra.mxu0 0.0
    %2141 = vmatprep.subr.mxu0 0.0
    %2142 = vmatpush1.msra.mxu0 0.0
    %2143 = vmatprep.subr.mxu0 0.0
    %2144 = vmatpush1.msra.mxu0 0.0
    %2145 = vmatprep.subr.mxu0 0.0
    %2146 = vmatpush1.msra.mxu0 0.0
    %2147 = vmatprep.subr.mxu0 0.0
    %2148 = vmatpush1.msra.mxu0 0.0
    %2149 = vmatprep.subr.mxu0 0.0
    %2150 = vmatpush1.msra.mxu0 0.0
    %2151 = vmatprep.subr.mxu0 0.0
    %2152 = vmatpush1.msra.mxu0 0.0
    %2153 = vmatprep.subr.mxu0 0.0
    %2154 = vmatpush1.msra.mxu0 0.0
    %2155 = vmatprep.subr.mxu0 0.0
    %2156 = vmatpush1.msra.mxu0 0.0
    %2157 = vmatprep.subr.mxu0 0.0
    %2158 = vmatpush1.msra.mxu0 0.0
    %2159 = vmatprep.subr.mxu0 0.0
    %2160 = vmatpush1.msra.mxu0 0.0
    %2161 = vmatprep.subr.mxu0 0.0
    %2162 = vmatpush1.msra.mxu0 0.0
    %2163 = vmatprep.subr.mxu0 0.0
    %2164 = vmatpush1.msra.mxu0 0.0
    %2165 = vmatprep.subr.mxu0 0.0
    %2166 = vmatpush1.msra.mxu0 0.0
    %2167 = vmatprep.subr.mxu0 0.0
    %2168 = vmatpush1.msra.mxu0 0.0
    %2169 = vmatprep.subr.mxu0 0.0
    %2170 = vmatpush1.msra.mxu0 0.0
    %2171 = vmatprep.mubr.f32.mxu0 0.0
    %2172 = vmatmul.mubr.f32.gmra.mrb[0].mxu0 %v2105
    %v2173 = vpop.f32.mrb[0].mxu0
    %v2174 = vadd.f32 0.0, %v2173
    %v2175 = vpop.f32.mrb[0].mxu0
    %2176 = vmatprep.mubr.f32.mxu0 0.0
    %2177 = vmatmul.mubr.f32.gmra.mrb[0].mxu0 %v2106
    %v2178 = vpop.f32.mrb[0].mxu0
    %v2179 = vadd.f32 0.0, %v2178
    %v2180 = vpop.f32.mrb[0].mxu0
    %2181 = vdwg.mxu0
    %2182 = vmatprep.subr.mxu0 0.0
    %2183 = vmatpush1.msra.mxu0 %v1552
    %2184 = vmatprep.subr.mxu0 0.0
    %2185 = vmatpush1.msra.mxu0 %v1553
    %2186 = vmatprep.subr.mxu0 0.0
    %2187 = vmatpush1.msra.mxu0 %v1554
    %2188 = vmatprep.subr.mxu0 0.0
    %2189 = vmatpush1.msra.mxu0 %v1555
    %2190 = vmatprep.subr.mxu0 0.0
    %2191 = vmatpush1.msra.mxu0 %v1556
    %2192 = vmatprep.subr.mxu0 0.0
    %2193 = vmatpush1.msra.mxu0 %v1557
    %2194 = vmatprep.subr.mxu0 0.0
    %2195 = vmatpush1.msra.mxu0 %v1558
    %2196 = vmatprep.subr.mxu0 0.0
    %2197 = vmatpush1.msra.mxu0 %v1559
    %2198 = vmatprep.subr.mxu0 0.0
    %2199 = vmatpush1.msra.mxu0 %v1560
    %2200 = vmatprep.subr.mxu0 0.0
    %2201 = vmatpush1.msra.mxu0 %v1561
    %2202 = vmatprep.subr.mxu0 0.0
    %2203 = vmatpush1.msra.mxu0 %v1562
    %2204 = vmatprep.subr.mxu0 0.0
    %2205 = vmatpush1.msra.mxu0 %v1563
    %2206 = vmatprep.subr.mxu0 0.0
    %2207 = vmatpush1.msra.mxu0 %v1564
    %2208 = vmatprep.subr.mxu0 0.0
    %2209 = vmatpush1.msra.mxu0 %v1565
    %2210 = vmatprep.subr.mxu0 0.0
    %2211 = vmatpush1.msra.mxu0 %v1566
    %2212 = vmatprep.subr.mxu0 0.0
    %2213 = vmatpush1.msra.mxu0 %v1567
    %2214 = vmatprep.subr.mxu0 0.0
    %2215 = vmatpush1.msra.mxu0 0.0
    %2216 = vmatprep.subr.mxu0 0.0
    %2217 = vmatpush1.msra.mxu0 0.0
    %2218 = vmatprep.subr.mxu0 0.0
    %2219 = vmatpush1.msra.mxu0 0.0
    %2220 = vmatprep.subr.mxu0 0.0
    %2221 = vmatpush1.msra.mxu0 0.0
    %2222 = vmatprep.subr.mxu0 0.0
    %2223 = vmatpush1.msra.mxu0 0.0
    %2224 = vmatprep.subr.mxu0 0.0
    %2225 = vmatpush1.msra.mxu0 0.0
    %2226 = vmatprep.subr.mxu0 0.0
    %2227 = vmatpush1.msra.mxu0 0.0
    %2228 = vmatprep.subr.mxu0 0.0
    %2229 = vmatpush1.msra.mxu0 0.0
    %2230 = vmatprep.subr.mxu0 0.0
    %2231 = vmatpush1.msra.mxu0 0.0
    %2232 = vmatprep.subr.mxu0 0.0
    %2233 = vmatpush1.msra.mxu0 0.0
    %2234 = vmatprep.subr.mxu0 0.0
    %2235 = vmatpush1.msra.mxu0 0.0
    %2236 = vmatprep.subr.mxu0 0.0
    %2237 = vmatpush1.msra.mxu0 0.0
    %2238 = vmatprep.subr.mxu0 0.0
    %2239 = vmatpush1.msra.mxu0 0.0
    %2240 = vmatprep.subr.mxu0 0.0
    %2241 = vmatpush1.msra.mxu0 0.0
    %2242 = vmatprep.subr.mxu0 0.0
    %2243 = vmatpush1.msra.mxu0 0.0
    %2244 = vmatprep.subr.mxu0 0.0
    %2245 = vmatpush1.msra.mxu0 0.0
    %2246 = vmatprep.mubr.f32.mxu0 0.0
    %2247 = vmatmul.mubr.f32.gmra.mrb[0].mxu0 %v2103
    %v2248 = vpop.f32.mrb[0].mxu0
    %v2249 = vadd.f32 %v2174, %v2248
    %v2250 = vpop.f32.mrb[0].mxu0
    %2251 = vmatprep.mubr.f32.mxu0 0.0
    %2252 = vmatmul.mubr.f32.gmra.mrb[0].mxu0 %v2104
    %v2253 = vpop.f32.mrb[0].mxu0
    %v2254 = vadd.f32 %v2179, %v2253
    %v2255 = vpop.f32.mrb[0].mxu0
    %2256 = vdwg.mxu0
    %s2257 = scalar_lea.vmem [#allocation5], 48
    %v2258 = vld [vmem:[%s2257] sm:$0xff]
    %s2259 = scalar_lea.vmem [#allocation5], 56
    %v2260 = vld [vmem:[%s2259] sm:$0xff]
    %s2261 = scalar_lea.vmem [#allocation7], 768
    %v2262 = vld [vmem:[%s2261] sm:$0xff]
    %v2263 = vld [vmem:[%s2261 + $0x8] sm:$0xff]
    %v2264 = vld [vmem:[%s2261 + $0x10] sm:$0xff]
    %v2265 = vld [vmem:[%s2261 + $0x18] sm:$0xff]
    %v2266 = vld [vmem:[%s2261 + $0x20] sm:$0xff]
    %v2267 = vld [vmem:[%s2261 + $0x28] sm:$0xff]
    %v2268 = vld [vmem:[%s2261 + $0x30] sm:$0xff]
    %v2269 = vld [vmem:[%s2261 + $0x38] sm:$0xff]
    %v2270 = vld [vmem:[%s2261 + $0x40] sm:$0xff]
    %v2271 = vld [vmem:[%s2261 + $0x48] sm:$0xff]
    %v2272 = vld [vmem:[%s2261 + $0x50] sm:$0xff]
    %v2273 = vld [vmem:[%s2261 + $0x58] sm:$0xff]
    %v2274 = vld [vmem:[%s2261 + $0x60] sm:$0xff]
    %v2275 = vld [vmem:[%s2261 + $0x68] sm:$0xff]
    %v2276 = vld [vmem:[%s2261 + $0x70] sm:$0xff]
    %v2277 = vld [vmem:[%s2261 + $0x78] sm:$0xff]
    %s2278 = scalar_lea.vmem [#allocation7], 896
    %v2279 = vld [vmem:[%s2278] sm:$0xff]
    %v2280 = vld [vmem:[%s2278 + $0x8] sm:$0xff]
    %v2281 = vld [vmem:[%s2278 + $0x10] sm:$0xff]
    %v2282 = vld [vmem:[%s2278 + $0x18] sm:$0xff]
    %v2283 = vld [vmem:[%s2278 + $0x20] sm:$0xff]
    %v2284 = vld [vmem:[%s2278 + $0x28] sm:$0xff]
    %v2285 = vld [vmem:[%s2278 + $0x30] sm:$0xff]
    %v2286 = vld [vmem:[%s2278 + $0x38] sm:$0xff]
    %v2287 = vld [vmem:[%s2278 + $0x40] sm:$0xff]
    %v2288 = vld [vmem:[%s2278 + $0x48] sm:$0xff]
    %v2289 = vld [vmem:[%s2278 + $0x50] sm:$0xff]
    %v2290 = vld [vmem:[%s2278 + $0x58] sm:$0xff]
    %v2291 = vld [vmem:[%s2278 + $0x60] sm:$0xff]
    %v2292 = vld [vmem:[%s2278 + $0x68] sm:$0xff]
    %v2293 = vld [vmem:[%s2278 + $0x70] sm:$0xff]
    %v2294 = vld [vmem:[%s2278 + $0x78] sm:$0xff]
    %v2296 = vsel %vm113, %v1891, 0
    %2298 = vmatprep.subr.mxu0 0.0
    %2299 = vmatpush1.msra.mxu0 %v2258
    %2300 = vmatprep.subr.mxu0 0.0
    %2301 = vmatpush1.msra.mxu0 0.0
    %2302 = vmatprep.subr.mxu0 0.0
    %2303 = vmatpush1.msra.mxu0 0.0
    %2304 = vmatprep.subr.mxu0 0.0
    %2305 = vmatpush1.msra.mxu0 0.0
    %2306 = vmatprep.subr.mxu0 0.0
    %2307 = vmatpush1.msra.mxu0 0.0
    %2308 = vmatprep.subr.mxu0 0.0
    %2309 = vmatpush1.msra.mxu0 0.0
    %2310 = vmatprep.subr.mxu0 0.0
    %2311 = vmatpush1.msra.mxu0 0.0
    %2312 = vmatprep.subr.mxu0 0.0
    %2313 = vmatpush1.msra.mxu0 0.0
    %2314 = vmatprep.subr.mxu0 0.0
    %2315 = vmatpush1.msra.mxu0 0.0
    %2316 = vmatprep.subr.mxu0 0.0
    %2317 = vmatpush1.msra.mxu0 0.0
    %2318 = vmatprep.subr.mxu0 0.0
    %2319 = vmatpush1.msra.mxu0 0.0
    %2320 = vmatprep.subr.mxu0 0.0
    %2321 = vmatpush1.msra.mxu0 0.0
    %2322 = vmatprep.subr.mxu0 0.0
    %2323 = vmatpush1.msra.mxu0 0.0
    %2324 = vmatprep.subr.mxu0 0.0
    %2325 = vmatpush1.msra.mxu0 0.0
    %2326 = vmatprep.subr.mxu0 0.0
    %2327 = vmatpush1.msra.mxu0 0.0
    %2328 = vmatprep.subr.mxu0 0.0
    %2329 = vmatpush1.msra.mxu0 0.0
    %2330 = vmatprep.subr.mxu0 0.0
    %2331 = vmatpush1.msra.mxu0 0.0
    %2332 = vmatprep.subr.mxu0 0.0
    %2333 = vmatpush1.msra.mxu0 0.0
    %2334 = vmatprep.subr.mxu0 0.0
    %2335 = vmatpush1.msra.mxu0 0.0
    %2336 = vmatprep.subr.mxu0 0.0
    %2337 = vmatpush1.msra.mxu0 0.0
    %2338 = vmatprep.subr.mxu0 0.0
    %2339 = vmatpush1.msra.mxu0 0.0
    %2340 = vmatprep.subr.mxu0 0.0
    %2341 = vmatpush1.msra.mxu0 0.0
    %2342 = vmatprep.subr.mxu0 0.0
    %2343 = vmatpush1.msra.mxu0 0.0
    %2344 = vmatprep.subr.mxu0 0.0
    %2345 = vmatpush1.msra.mxu0 0.0
    %2346 = vmatprep.subr.mxu0 0.0
    %2347 = vmatpush1.msra.mxu0 0.0
    %2348 = vmatprep.subr.mxu0 0.0
    %2349 = vmatpush1.msra.mxu0 0.0
    %2350 = vmatprep.subr.mxu0 0.0
    %2351 = vmatpush1.msra.mxu0 0.0
    %2352 = vmatprep.subr.mxu0 0.0
    %2353 = vmatpush1.msra.mxu0 0.0
    %2354 = vmatprep.subr.mxu0 0.0
    %2355 = vmatpush1.msra.mxu0 0.0
    %2356 = vmatprep.subr.mxu0 0.0
    %2357 = vmatpush1.msra.mxu0 0.0
    %2358 = vmatprep.subr.mxu0 0.0
    %2359 = vmatpush1.msra.mxu0 0.0
    %2360 = vmatprep.subr.mxu0 0.0
    %2361 = vmatpush1.msra.mxu0 0.0
    %2362 = vmatprep.mubr.f32.mxu0 0.0
    %2363 = vmatmul.mubr.f32.gmra.mrb[0].mxu0 %v2296
    %v2364 = vpop.f32.mrb[0].mxu0
    %v2365 = vadd.f32 0.0, %v2364
    %v2366 = vpop.f32.mrb[0].mxu0
    %2367 = vdwg.mxu0
    %2368 = vmatprep.subr.mxu0 0.0
    %2369 = vmatpush1.msra.mxu0 %v2260
    %2370 = vmatprep.subr.mxu0 0.0
    %2371 = vmatpush1.msra.mxu0 0.0
    %2372 = vmatprep.subr.mxu0 0.0
    %2373 = vmatpush1.msra.mxu0 0.0
    %2374 = vmatprep.subr.mxu0 0.0
    %2375 = vmatpush1.msra.mxu0 0.0
    %2376 = vmatprep.subr.mxu0 0.0
    %2377 = vmatpush1.msra.mxu0 0.0
    %2378 = vmatprep.subr.mxu0 0.0
    %2379 = vmatpush1.msra.mxu0 0.0
    %2380 = vmatprep.subr.mxu0 0.0
    %2381 = vmatpush1.msra.mxu0 0.0
    %2382 = vmatprep.subr.mxu0 0.0
    %2383 = vmatpush1.msra.mxu0 0.0
    %2384 = vmatprep.subr.mxu0 0.0
    %2385 = vmatpush1.msra.mxu0 0.0
    %2386 = vmatprep.subr.mxu0 0.0
    %2387 = vmatpush1.msra.mxu0 0.0
    %2388 = vmatprep.subr.mxu0 0.0
    %2389 = vmatpush1.msra.mxu0 0.0
    %2390 = vmatprep.subr.mxu0 0.0
    %2391 = vmatpush1.msra.mxu0 0.0
    %2392 = vmatprep.subr.mxu0 0.0
    %2393 = vmatpush1.msra.mxu0 0.0
    %2394 = vmatprep.subr.mxu0 0.0
    %2395 = vmatpush1.msra.mxu0 0.0
    %2396 = vmatprep.subr.mxu0 0.0
    %2397 = vmatpush1.msra.mxu0 0.0
    %2398 = vmatprep.subr.mxu0 0.0
    %2399 = vmatpush1.msra.mxu0 0.0
    %2400 = vmatprep.subr.mxu0 0.0
    %2401 = vmatpush1.msra.mxu0 0.0
    %2402 = vmatprep.subr.mxu0 0.0
    %2403 = vmatpush1.msra.mxu0 0.0
    %2404 = vmatprep.subr.mxu0 0.0
    %2405 = vmatpush1.msra.mxu0 0.0
    %2406 = vmatprep.subr.mxu0 0.0
    %2407 = vmatpush1.msra.mxu0 0.0
    %2408 = vmatprep.subr.mxu0 0.0
    %2409 = vmatpush1.msra.mxu0 0.0
    %2410 = vmatprep.subr.mxu0 0.0
    %2411 = vmatpush1.msra.mxu0 0.0
    %2412 = vmatprep.subr.mxu0 0.0
    %2413 = vmatpush1.msra.mxu0 0.0
    %2414 = vmatprep.subr.mxu0 0.0
    %2415 = vmatpush1.msra.mxu0 0.0
    %2416 = vmatprep.subr.mxu0 0.0
    %2417 = vmatpush1.msra.mxu0 0.0
    %2418 = vmatprep.subr.mxu0 0.0
    %2419 = vmatpush1.msra.mxu0 0.0
    %2420 = vmatprep.subr.mxu0 0.0
    %2421 = vmatpush1.msra.mxu0 0.0
    %2422 = vmatprep.subr.mxu0 0.0
    %2423 = vmatpush1.msra.mxu0 0.0
    %2424 = vmatprep.subr.mxu0 0.0
    %2425 = vmatpush1.msra.mxu0 0.0
    %2426 = vmatprep.subr.mxu0 0.0
    %2427 = vmatpush1.msra.mxu0 0.0
    %2428 = vmatprep.subr.mxu0 0.0
    %2429 = vmatpush1.msra.mxu0 0.0
    %2430 = vmatprep.subr.mxu0 0.0
    %2431 = vmatpush1.msra.mxu0 0.0
    %2432 = vmatprep.mubr.f32.mxu0 0.0
    %2433 = vmatmul.mubr.f32.gmra.mrb[0].mxu0 %v2296
    %v2434 = vpop.f32.mrb[0].mxu0
    %v2435 = vadd.f32 0.0, %v2434
    %v2436 = vpop.f32.mrb[0].mxu0
    %2437 = vdwg.mxu0
    %v2438 = vsub.f32 %v2435, %v2365
    %v2439 = vmul.f32 %v2438, 10.0
    %vm2440 = vcmp.lt.f32.partialorder %v2439, 0.0
    %v2441 = vsel %vm2440, -1.0, 1.0
    %v2442 = vand.u32 2147483647, %v2439
    %vm2443 = vcmp.gt.f32.partialorder %v2442, 2.4142137
    %vm2444 = vcmp.gt.f32.partialorder %v2442, 0.41421357
    %v2445 = vsel %vm2444, 0.7853982, 0.0
    %v2446 = vsel %vm2443, 1.5707964, %v2445
    %v2447 = vadd.f32 %v2442, 1e-30
    %v2448 = vrcp.pop %v2447
    %v2449 = vmul.f32 %v2447, %v2448
    %v2450 = vsub.f32 2.0, %v2449
    %v2451 = vmul.f32 %v2448, %v2450
    %v2452 = vadd.f32 %v2442, 1.0
    %v2453 = vrcp.pop %v2452
    %v2454 = vmul.f32 %v2452, %v2453
    %v2455 = vsub.f32 2.0, %v2454
    %v2456 = vmul.f32 %v2453, %v2455
    %v2457 = vsub.f32 0.0, %v2451
    %v2458 = vsub.f32 %v2442, 1.0
    %v2459 = vmul.f32 %v2458, %v2456
    %v2460 = vsel %vm2444, %v2459, %v2442
    %v2461 = vsel %vm2443, %v2457, %v2460
    %v2462 = vmul.f32 %v2461, %v2461
    %v2463 = vmul.f32 %v2462, 0.080537446
    %v2464 = vsub.f32 %v2463, 0.13877685
    %v2465 = vmul.f32 %v2464, %v2462
    %v2466 = vadd.f32 %v2465, 0.19977711
    %v2467 = vmul.f32 %v2466, %v2462
    %v2468 = vsub.f32 %v2467, 0.3333295
    %v2469 = vmul.f32 %v2468, %v2462
    %v2470 = vmul.f32 %v2469, %v2461
    %v2471 = vadd.f32 %v2470, %v2461
    %v2472 = vadd.f32 %v2446, %v2471
    %v2473 = vmul.f32 %v2441, %v2472
    %v2474 = vmul.f32 %v2473, 0.31830987
    %v2475 = vadd.f32 %v2474, 0.5
    %v2476 = vmul.f32 %v2475, %v2365
    %v2477 = vsub.f32 1.0, %v2475
    %v2478 = vmul.f32 %v2477, %v2435
    %v2479 = vadd.f32 %v2476, %v2478
    %v2480 = vadd.f32 %v2365, %v2435
    %2481 = vmatprep.subr.mxu0 0.0
    %2482 = vmatpush1.msra.mxu0 %v2262
    %2483 = vmatprep.subr.mxu0 0.0
    %2484 = vmatpush1.msra.mxu0 %v2263
    %2485 = vmatprep.subr.mxu0 0.0
    %2486 = vmatpush1.msra.mxu0 %v2264
    %2487 = vmatprep.subr.mxu0 0.0
    %2488 = vmatpush1.msra.mxu0 %v2265
    %2489 = vmatprep.subr.mxu0 0.0
    %2490 = vmatpush1.msra.mxu0 %v2266
    %2491 = vmatprep.subr.mxu0 0.0
    %2492 = vmatpush1.msra.mxu0 %v2267
    %2493 = vmatprep.subr.mxu0 0.0
    %2494 = vmatpush1.msra.mxu0 %v2268
    %2495 = vmatprep.subr.mxu0 0.0
    %2496 = vmatpush1.msra.mxu0 %v2269
    %2497 = vmatprep.subr.mxu0 0.0
    %2498 = vmatpush1.msra.mxu0 %v2270
    %2499 = vmatprep.subr.mxu0 0.0
    %2500 = vmatpush1.msra.mxu0 %v2271
    %2501 = vmatprep.subr.mxu0 0.0
    %2502 = vmatpush1.msra.mxu0 %v2272
    %2503 = vmatprep.subr.mxu0 0.0
    %2504 = vmatpush1.msra.mxu0 %v2273
    %2505 = vmatprep.subr.mxu0 0.0
    %2506 = vmatpush1.msra.mxu0 %v2274
    %2507 = vmatprep.subr.mxu0 0.0
    %2508 = vmatpush1.msra.mxu0 %v2275
    %2509 = vmatprep.subr.mxu0 0.0
    %2510 = vmatpush1.msra.mxu0 %v2276
    %2511 = vmatprep.subr.mxu0 0.0
    %2512 = vmatpush1.msra.mxu0 %v2277
    %2513 = vmatprep.subr.mxu0 0.0
    %2514 = vmatpush1.msra.mxu0 0.0
    %2515 = vmatprep.subr.mxu0 0.0
    %2516 = vmatpush1.msra.mxu0 0.0
    %2517 = vmatprep.subr.mxu0 0.0
    %2518 = vmatpush1.msra.mxu0 0.0
    %2519 = vmatprep.subr.mxu0 0.0
    %2520 = vmatpush1.msra.mxu0 0.0
    %2521 = vmatprep.subr.mxu0 0.0
    %2522 = vmatpush1.msra.mxu0 0.0
    %2523 = vmatprep.subr.mxu0 0.0
    %2524 = vmatpush1.msra.mxu0 0.0
    %2525 = vmatprep.subr.mxu0 0.0
    %2526 = vmatpush1.msra.mxu0 0.0
    %2527 = vmatprep.subr.mxu0 0.0
    %2528 = vmatpush1.msra.mxu0 0.0
    %2529 = vmatprep.subr.mxu0 0.0
    %2530 = vmatpush1.msra.mxu0 0.0
    %2531 = vmatprep.subr.mxu0 0.0
    %2532 = vmatpush1.msra.mxu0 0.0
    %2533 = vmatprep.subr.mxu0 0.0
    %2534 = vmatpush1.msra.mxu0 0.0
    %2535 = vmatprep.subr.mxu0 0.0
    %2536 = vmatpush1.msra.mxu0 0.0
    %2537 = vmatprep.subr.mxu0 0.0
    %2538 = vmatpush1.msra.mxu0 0.0
    %2539 = vmatprep.subr.mxu0 0.0
    %2540 = vmatpush1.msra.mxu0 0.0
    %2541 = vmatprep.subr.mxu0 0.0
    %2542 = vmatpush1.msra.mxu0 0.0
    %2543 = vmatprep.subr.mxu0 0.0
    %2544 = vmatpush1.msra.mxu0 0.0
    %2545 = vmatprep.mubr.f32.mxu0 0.0
    %2546 = vmatmul.mubr.f32.gmra.mrb[0].mxu0 %v2480
    %v2547 = vpop.f32.mrb[0].mxu0
    %v2548 = vadd.f32 0.0, %v2547
    %v2549 = vpop.f32.mrb[0].mxu0
    %2550 = vdwg.mxu0
    %2551 = vmatprep.subr.mxu0 0.0
    %2552 = vmatpush1.msra.mxu0 %v2279
    %2553 = vmatprep.subr.mxu0 0.0
    %2554 = vmatpush1.msra.mxu0 %v2280
    %2555 = vmatprep.subr.mxu0 0.0
    %2556 = vmatpush1.msra.mxu0 %v2281
    %2557 = vmatprep.subr.mxu0 0.0
    %2558 = vmatpush1.msra.mxu0 %v2282
    %2559 = vmatprep.subr.mxu0 0.0
    %2560 = vmatpush1.msra.mxu0 %v2283
    %2561 = vmatprep.subr.mxu0 0.0
    %2562 = vmatpush1.msra.mxu0 %v2284
    %2563 = vmatprep.subr.mxu0 0.0
    %2564 = vmatpush1.msra.mxu0 %v2285
    %2565 = vmatprep.subr.mxu0 0.0
    %2566 = vmatpush1.msra.mxu0 %v2286
    %2567 = vmatprep.subr.mxu0 0.0
    %2568 = vmatpush1.msra.mxu0 %v2287
    %2569 = vmatprep.subr.mxu0 0.0
    %2570 = vmatpush1.msra.mxu0 %v2288
    %2571 = vmatprep.subr.mxu0 0.0
    %2572 = vmatpush1.msra.mxu0 %v2289
    %2573 = vmatprep.subr.mxu0 0.0
    %2574 = vmatpush1.msra.mxu0 %v2290
    %2575 = vmatprep.subr.mxu0 0.0
    %2576 = vmatpush1.msra.mxu0 %v2291
    %2577 = vmatprep.subr.mxu0 0.0
    %2578 = vmatpush1.msra.mxu0 %v2292
    %2579 = vmatprep.subr.mxu0 0.0
    %2580 = vmatpush1.msra.mxu0 %v2293
    %2581 = vmatprep.subr.mxu0 0.0
    %2582 = vmatpush1.msra.mxu0 %v2294
    %2583 = vmatprep.subr.mxu0 0.0
    %2584 = vmatpush1.msra.mxu0 0.0
    %2585 = vmatprep.subr.mxu0 0.0
    %2586 = vmatpush1.msra.mxu0 0.0
    %2587 = vmatprep.subr.mxu0 0.0
    %2588 = vmatpush1.msra.mxu0 0.0
    %2589 = vmatprep.subr.mxu0 0.0
    %2590 = vmatpush1.msra.mxu0 0.0
    %2591 = vmatprep.subr.mxu0 0.0
    %2592 = vmatpush1.msra.mxu0 0.0
    %2593 = vmatprep.subr.mxu0 0.0
    %2594 = vmatpush1.msra.mxu0 0.0
    %2595 = vmatprep.subr.mxu0 0.0
    %2596 = vmatpush1.msra.mxu0 0.0
    %2597 = vmatprep.subr.mxu0 0.0
    %2598 = vmatpush1.msra.mxu0 0.0
    %2599 = vmatprep.subr.mxu0 0.0
    %2600 = vmatpush1.msra.mxu0 0.0
    %2601 = vmatprep.subr.mxu0 0.0
    %2602 = vmatpush1.msra.mxu0 0.0
    %2603 = vmatprep.subr.mxu0 0.0
    %2604 = vmatpush1.msra.mxu0 0.0
    %2605 = vmatprep.subr.mxu0 0.0
    %2606 = vmatpush1.msra.mxu0 0.0
    %2607 = vmatprep.subr.mxu0 0.0
    %2608 = vmatpush1.msra.mxu0 0.0
    %2609 = vmatprep.subr.mxu0 0.0
    %2610 = vmatpush1.msra.mxu0 0.0
    %2611 = vmatprep.subr.mxu0 0.0
    %2612 = vmatpush1.msra.mxu0 0.0
    %2613 = vmatprep.subr.mxu0 0.0
    %2614 = vmatpush1.msra.mxu0 0.0
    %2615 = vmatprep.mubr.f32.mxu0 0.0
    %2616 = vmatmul.mubr.f32.gmra.mrb[0].mxu0 %v2479
    %v2617 = vpop.f32.mrb[0].mxu0
    %v2618 = vadd.f32 %v2548, %v2617
    %v2619 = vpop.f32.mrb[0].mxu0
    %2620 = vdwg.mxu0
    %v2622 = vsel %vm113, %v2249, 0
    %v2625 = vsel %vm113, %v2254, 0
    %2627 = vmatprep.subr.mxu0 0.0
    %2628 = vmatpush1.msra.mxu0 %v2258
    %2629 = vmatprep.subr.mxu0 0.0
    %2630 = vmatpush1.msra.mxu0 0.0
    %2631 = vmatprep.subr.mxu0 0.0
    %2632 = vmatpush1.msra.mxu0 0.0
    %2633 = vmatprep.subr.mxu0 0.0
    %2634 = vmatpush1.msra.mxu0 0.0
    %2635 = vmatprep.subr.mxu0 0.0
    %2636 = vmatpush1.msra.mxu0 0.0
    %2637 = vmatprep.subr.mxu0 0.0
    %2638 = vmatpush1.msra.mxu0 0.0
    %2639 = vmatprep.subr.mxu0 0.0
    %2640 = vmatpush1.msra.mxu0 0.0
    %2641 = vmatprep.subr.mxu0 0.0
    %2642 = vmatpush1.msra.mxu0 0.0
    %2643 = vmatprep.subr.mxu0 0.0
    %2644 = vmatpush1.msra.mxu0 0.0
    %2645 = vmatprep.subr.mxu0 0.0
    %2646 = vmatpush1.msra.mxu0 0.0
    %2647 = vmatprep.subr.mxu0 0.0
    %2648 = vmatpush1.msra.mxu0 0.0
    %2649 = vmatprep.subr.mxu0 0.0
    %2650 = vmatpush1.msra.mxu0 0.0
    %2651 = vmatprep.subr.mxu0 0.0
    %2652 = vmatpush1.msra.mxu0 0.0
    %2653 = vmatprep.subr.mxu0 0.0
    %2654 = vmatpush1.msra.mxu0 0.0
    %2655 = vmatprep.subr.mxu0 0.0
    %2656 = vmatpush1.msra.mxu0 0.0
    %2657 = vmatprep.subr.mxu0 0.0
    %2658 = vmatpush1.msra.mxu0 0.0
    %2659 = vmatprep.subr.mxu0 0.0
    %2660 = vmatpush1.msra.mxu0 0.0
    %2661 = vmatprep.subr.mxu0 0.0
    %2662 = vmatpush1.msra.mxu0 0.0
    %2663 = vmatprep.subr.mxu0 0.0
    %2664 = vmatpush1.msra.mxu0 0.0
    %2665 = vmatprep.subr.mxu0 0.0
    %2666 = vmatpush1.msra.mxu0 0.0
    %2667 = vmatprep.subr.mxu0 0.0
    %2668 = vmatpush1.msra.mxu0 0.0
    %2669 = vmatprep.subr.mxu0 0.0
    %2670 = vmatpush1.msra.mxu0 0.0
    %2671 = vmatprep.subr.mxu0 0.0
    %2672 = vmatpush1.msra.mxu0 0.0
    %2673 = vmatprep.subr.mxu0 0.0
    %2674 = vmatpush1.msra.mxu0 0.0
    %2675 = vmatprep.subr.mxu0 0.0
    %2676 = vmatpush1.msra.mxu0 0.0
    %2677 = vmatprep.subr.mxu0 0.0
    %2678 = vmatpush1.msra.mxu0 0.0
    %2679 = vmatprep.subr.mxu0 0.0
    %2680 = vmatpush1.msra.mxu0 0.0
    %2681 = vmatprep.subr.mxu0 0.0
    %2682 = vmatpush1.msra.mxu0 0.0
    %2683 = vmatprep.subr.mxu0 0.0
    %2684 = vmatpush1.msra.mxu0 0.0
    %2685 = vmatprep.subr.mxu0 0.0
    %2686 = vmatpush1.msra.mxu0 0.0
    %2687 = vmatprep.subr.mxu0 0.0
    %2688 = vmatpush1.msra.mxu0 0.0
    %2689 = vmatprep.subr.mxu0 0.0
    %2690 = vmatpush1.msra.mxu0 0.0
    %2691 = vmatprep.mubr.f32.mxu0 0.0
    %2692 = vmatmul.mubr.f32.gmra.mrb[0].mxu0 %v2622
    %v2693 = vpop.f32.mrb[0].mxu0
    %v2694 = vadd.f32 0.0, %v2693
    %v2695 = vpop.f32.mrb[0].mxu0
    %2696 = vmatprep.mubr.f32.mxu0 0.0
    %2697 = vmatmul.mubr.f32.gmra.mrb[0].mxu0 %v2625
    %v2698 = vpop.f32.mrb[0].mxu0
    %v2699 = vadd.f32 0.0, %v2698
    %v2700 = vpop.f32.mrb[0].mxu0
    %2701 = vdwg.mxu0
    %2702 = vmatprep.subr.mxu0 0.0
    %2703 = vmatpush1.msra.mxu0 %v2260
    %2704 = vmatprep.subr.mxu0 0.0
    %2705 = vmatpush1.msra.mxu0 0.0
    %2706 = vmatprep.subr.mxu0 0.0
    %2707 = vmatpush1.msra.mxu0 0.0
    %2708 = vmatprep.subr.mxu0 0.0
    %2709 = vmatpush1.msra.mxu0 0.0
    %2710 = vmatprep.subr.mxu0 0.0
    %2711 = vmatpush1.msra.mxu0 0.0
    %2712 = vmatprep.subr.mxu0 0.0
    %2713 = vmatpush1.msra.mxu0 0.0
    %2714 = vmatprep.subr.mxu0 0.0
    %2715 = vmatpush1.msra.mxu0 0.0
    %2716 = vmatprep.subr.mxu0 0.0
    %2717 = vmatpush1.msra.mxu0 0.0
    %2718 = vmatprep.subr.mxu0 0.0
    %2719 = vmatpush1.msra.mxu0 0.0
    %2720 = vmatprep.subr.mxu0 0.0
    %2721 = vmatpush1.msra.mxu0 0.0
    %2722 = vmatprep.subr.mxu0 0.0
    %2723 = vmatpush1.msra.mxu0 0.0
    %2724 = vmatprep.subr.mxu0 0.0
    %2725 = vmatpush1.msra.mxu0 0.0
    %2726 = vmatprep.subr.mxu0 0.0
    %2727 = vmatpush1.msra.mxu0 0.0
    %2728 = vmatprep.subr.mxu0 0.0
    %2729 = vmatpush1.msra.mxu0 0.0
    %2730 = vmatprep.subr.mxu0 0.0
    %2731 = vmatpush1.msra.mxu0 0.0
    %2732 = vmatprep.subr.mxu0 0.0
    %2733 = vmatpush1.msra.mxu0 0.0
    %2734 = vmatprep.subr.mxu0 0.0
    %2735 = vmatpush1.msra.mxu0 0.0
    %2736 = vmatprep.subr.mxu0 0.0
    %2737 = vmatpush1.msra.mxu0 0.0
    %2738 = vmatprep.subr.mxu0 0.0
    %2739 = vmatpush1.msra.mxu0 0.0
    %2740 = vmatprep.subr.mxu0 0.0
    %2741 = vmatpush1.msra.mxu0 0.0
    %2742 = vmatprep.subr.mxu0 0.0
    %2743 = vmatpush1.msra.mxu0 0.0
    %2744 = vmatprep.subr.mxu0 0.0
    %2745 = vmatpush1.msra.mxu0 0.0
    %2746 = vmatprep.subr.mxu0 0.0
    %2747 = vmatpush1.msra.mxu0 0.0
    %2748 = vmatprep.subr.mxu0 0.0
    %2749 = vmatpush1.msra.mxu0 0.0
    %2750 = vmatprep.subr.mxu0 0.0
    %2751 = vmatpush1.msra.mxu0 0.0
    %2752 = vmatprep.subr.mxu0 0.0
    %2753 = vmatpush1.msra.mxu0 0.0
    %2754 = vmatprep.subr.mxu0 0.0
    %2755 = vmatpush1.msra.mxu0 0.0
    %2756 = vmatprep.subr.mxu0 0.0
    %2757 = vmatpush1.msra.mxu0 0.0
    %2758 = vmatprep.subr.mxu0 0.0
    %2759 = vmatpush1.msra.mxu0 0.0
    %2760 = vmatprep.subr.mxu0 0.0
    %2761 = vmatpush1.msra.mxu0 0.0
    %2762 = vmatprep.subr.mxu0 0.0
    %2763 = vmatpush1.msra.mxu0 0.0
    %2764 = vmatprep.subr.mxu0 0.0
    %2765 = vmatpush1.msra.mxu0 0.0
    %2766 = vmatprep.mubr.f32.mxu0 0.0
    %2767 = vmatmul.mubr.f32.gmra.mrb[0].mxu0 %v2622
    %v2768 = vpop.f32.mrb[0].mxu0
    %v2769 = vadd.f32 0.0, %v2768
    %v2770 = vpop.f32.mrb[0].mxu0
    %2771 = vmatprep.mubr.f32.mxu0 0.0
    %2772 = vmatmul.mubr.f32.gmra.mrb[0].mxu0 %v2625
    %v2773 = vpop.f32.mrb[0].mxu0
    %v2774 = vadd.f32 0.0, %v2773
    %v2775 = vpop.f32.mrb[0].mxu0
    %2776 = vdwg.mxu0
    %v2779 = vunpack.c.l.s4 1966171168
    %v2780 = vunpack.c.0.s8 %v2779
    %v2781 = vlaneseq
    %v2782 = vshrl.u32 %v2781, 7
    %v2783 = vsub.s32 %v2780, %v2782
    %v2784 = vrot.slane %v2475, %v2783
    %v2785 = vcombine.high %v2784, %v2784
    %v2787 = vunpack.c.l.s4 1966171168
    %v2788 = vunpack.c.0.s8 %v2787
    %v2789 = vlaneseq
    %v2790 = vshrl.u32 %v2789, 7
    %v2791 = vsub.s32 %v2788, %v2790
    %v2792 = vrot.slane %v2784, %v2791
    %v2794 = vunpack.c.l.s4 1966171168
    %v2795 = vunpack.c.0.s8 %v2794
    %v2796 = vlaneseq
    %v2797 = vshrl.u32 %v2796, 7
    %v2798 = vsub.s32 %v2795, %v2797
    %v2799 = vrot.slane %v2785, %v2798
    %v2802 = vlaneseq
    %v2803 = vshrl.u32 %v2802, 7
    %v2804 = vsub.s32 0, %v2803
    %v2805 = vrot.slane %v2792, %v2804
    %v2806 = vlaneseq
    %v2807 = vshrl.u32 %v2806, 7
    %v2808 = vsub.s32 0, %v2807
    %v2809 = vrot.slane %v2799, %v2808
    %v2812 = vmul.f32 %v2805, %v2694
    %v2813 = vmul.f32 %v2809, %v2699
    %v2814 = vsub.f32 1.0, %v2792
    %v2815 = vsub.f32 1.0, %v2799
    %v2818 = vlaneseq
    %v2819 = vshrl.u32 %v2818, 7
    %v2820 = vsub.s32 0, %v2819
    %v2821 = vrot.slane %v2814, %v2820
    %v2822 = vlaneseq
    %v2823 = vshrl.u32 %v2822, 7
    %v2824 = vsub.s32 0, %v2823
    %v2825 = vrot.slane %v2815, %v2824
    %v2828 = vmul.f32 %v2821, %v2769
    %v2829 = vmul.f32 %v2825, %v2774
    %v2830 = vadd.f32 %v2812, %v2828
    %v2831 = vadd.f32 %v2813, %v2829
    %v2832 = vadd.f32 %v2694, %v2769
    %v2833 = vadd.f32 %v2699, %v2774
    %2834 = vmatprep.subr.mxu0 0.0
    %2835 = vmatpush1.msra.mxu0 %v2262
    %2836 = vmatprep.subr.mxu0 0.0
    %2837 = vmatpush1.msra.mxu0 %v2263
    %2838 = vmatprep.subr.mxu0 0.0
    %2839 = vmatpush1.msra.mxu0 %v2264
    %2840 = vmatprep.subr.mxu0 0.0
    %2841 = vmatpush1.msra.mxu0 %v2265
    %2842 = vmatprep.subr.mxu0 0.0
    %2843 = vmatpush1.msra.mxu0 %v2266
    %2844 = vmatprep.subr.mxu0 0.0
    %2845 = vmatpush1.msra.mxu0 %v2267
    %2846 = vmatprep.subr.mxu0 0.0
    %2847 = vmatpush1.msra.mxu0 %v2268
    %2848 = vmatprep.subr.mxu0 0.0
    %2849 = vmatpush1.msra.mxu0 %v2269
    %2850 = vmatprep.subr.mxu0 0.0
    %2851 = vmatpush1.msra.mxu0 %v2270
    %2852 = vmatprep.subr.mxu0 0.0
    %2853 = vmatpush1.msra.mxu0 %v2271
    %2854 = vmatprep.subr.mxu0 0.0
    %2855 = vmatpush1.msra.mxu0 %v2272
    %2856 = vmatprep.subr.mxu0 0.0
    %2857 = vmatpush1.msra.mxu0 %v2273
    %2858 = vmatprep.subr.mxu0 0.0
    %2859 = vmatpush1.msra.mxu0 %v2274
    %2860 = vmatprep.subr.mxu0 0.0
    %2861 = vmatpush1.msra.mxu0 %v2275
    %2862 = vmatprep.subr.mxu0 0.0
    %2863 = vmatpush1.msra.mxu0 %v2276
    %2864 = vmatprep.subr.mxu0 0.0
    %2865 = vmatpush1.msra.mxu0 %v2277
    %2866 = vmatprep.subr.mxu0 0.0
    %2867 = vmatpush1.msra.mxu0 0.0
    %2868 = vmatprep.subr.mxu0 0.0
    %2869 = vmatpush1.msra.mxu0 0.0
    %2870 = vmatprep.subr.mxu0 0.0
    %2871 = vmatpush1.msra.mxu0 0.0
    %2872 = vmatprep.subr.mxu0 0.0
    %2873 = vmatpush1.msra.mxu0 0.0
    %2874 = vmatprep.subr.mxu0 0.0
    %2875 = vmatpush1.msra.mxu0 0.0
    %2876 = vmatprep.subr.mxu0 0.0
    %2877 = vmatpush1.msra.mxu0 0.0
    %2878 = vmatprep.subr.mxu0 0.0
    %2879 = vmatpush1.msra.mxu0 0.0
    %2880 = vmatprep.subr.mxu0 0.0
    %2881 = vmatpush1.msra.mxu0 0.0
    %2882 = vmatprep.subr.mxu0 0.0
    %2883 = vmatpush1.msra.mxu0 0.0
    %2884 = vmatprep.subr.mxu0 0.0
    %2885 = vmatpush1.msra.mxu0 0.0
    %2886 = vmatprep.subr.mxu0 0.0
    %2887 = vmatpush1.msra.mxu0 0.0
    %2888 = vmatprep.subr.mxu0 0.0
    %2889 = vmatpush1.msra.mxu0 0.0
    %2890 = vmatprep.subr.mxu0 0.0
    %2891 = vmatpush1.msra.mxu0 0.0
    %2892 = vmatprep.subr.mxu0 0.0
    %2893 = vmatpush1.msra.mxu0 0.0
    %2894 = vmatprep.subr.mxu0 0.0
    %2895 = vmatpush1.msra.mxu0 0.0
    %2896 = vmatprep.subr.mxu0 0.0
    %2897 = vmatpush1.msra.mxu0 0.0
    %2898 = vmatprep.mubr.f32.mxu0 0.0
    %2899 = vmatmul.mubr.f32.gmra.mrb[0].mxu0 %v2832
    %v2900 = vpop.f32.mrb[0].mxu0
    %v2901 = vadd.f32 0.0, %v2900
    %v2902 = vpop.f32.mrb[0].mxu0
    %2903 = vmatprep.mubr.f32.mxu0 0.0
    %2904 = vmatmul.mubr.f32.gmra.mrb[0].mxu0 %v2833
    %v2905 = vpop.f32.mrb[0].mxu0
    %v2906 = vadd.f32 0.0, %v2905
    %v2907 = vpop.f32.mrb[0].mxu0
    %2908 = vdwg.mxu0
    %2909 = vmatprep.subr.mxu0 0.0
    %2910 = vmatpush1.msra.mxu0 %v2279
    %2911 = vmatprep.subr.mxu0 0.0
    %2912 = vmatpush1.msra.mxu0 %v2280
    %2913 = vmatprep.subr.mxu0 0.0
    %2914 = vmatpush1.msra.mxu0 %v2281
    %2915 = vmatprep.subr.mxu0 0.0
    %2916 = vmatpush1.msra.mxu0 %v2282
    %2917 = vmatprep.subr.mxu0 0.0
    %2918 = vmatpush1.msra.mxu0 %v2283
    %2919 = vmatprep.subr.mxu0 0.0
    %2920 = vmatpush1.msra.mxu0 %v2284
    %2921 = vmatprep.subr.mxu0 0.0
    %2922 = vmatpush1.msra.mxu0 %v2285
    %2923 = vmatprep.subr.mxu0 0.0
    %2924 = vmatpush1.msra.mxu0 %v2286
    %2925 = vmatprep.subr.mxu0 0.0
    %2926 = vmatpush1.msra.mxu0 %v2287
    %2927 = vmatprep.subr.mxu0 0.0
    %2928 = vmatpush1.msra.mxu0 %v2288
    %2929 = vmatprep.subr.mxu0 0.0
    %2930 = vmatpush1.msra.mxu0 %v2289
    %2931 = vmatprep.subr.mxu0 0.0
    %2932 = vmatpush1.msra.mxu0 %v2290
    %2933 = vmatprep.subr.mxu0 0.0
    %2934 = vmatpush1.msra.mxu0 %v2291
    %2935 = vmatprep.subr.mxu0 0.0
    %2936 = vmatpush1.msra.mxu0 %v2292
    %2937 = vmatprep.subr.mxu0 0.0
    %2938 = vmatpush1.msra.mxu0 %v2293
    %2939 = vmatprep.subr.mxu0 0.0
    %2940 = vmatpush1.msra.mxu0 %v2294
    %2941 = vmatprep.subr.mxu0 0.0
    %2942 = vmatpush1.msra.mxu0 0.0
    %2943 = vmatprep.subr.mxu0 0.0
    %2944 = vmatpush1.msra.mxu0 0.0
    %2945 = vmatprep.subr.mxu0 0.0
    %2946 = vmatpush1.msra.mxu0 0.0
    %2947 = vmatprep.subr.mxu0 0.0
    %2948 = vmatpush1.msra.mxu0 0.0
    %2949 = vmatprep.subr.mxu0 0.0
    %2950 = vmatpush1.msra.mxu0 0.0
    %2951 = vmatprep.subr.mxu0 0.0
    %2952 = vmatpush1.msra.mxu0 0.0
    %2953 = vmatprep.subr.mxu0 0.0
    %2954 = vmatpush1.msra.mxu0 0.0
    %2955 = vmatprep.subr.mxu0 0.0
    %2956 = vmatpush1.msra.mxu0 0.0
    %2957 = vmatprep.subr.mxu0 0.0
    %2958 = vmatpush1.msra.mxu0 0.0
    %2959 = vmatprep.subr.mxu0 0.0
    %2960 = vmatpush1.msra.mxu0 0.0
    %2961 = vmatprep.subr.mxu0 0.0
    %2962 = vmatpush1.msra.mxu0 0.0
    %2963 = vmatprep.subr.mxu0 0.0
    %2964 = vmatpush1.msra.mxu0 0.0
    %2965 = vmatprep.subr.mxu0 0.0
    %2966 = vmatpush1.msra.mxu0 0.0
    %2967 = vmatprep.subr.mxu0 0.0
    %2968 = vmatpush1.msra.mxu0 0.0
    %2969 = vmatprep.subr.mxu0 0.0
    %2970 = vmatpush1.msra.mxu0 0.0
    %2971 = vmatprep.subr.mxu0 0.0
    %2972 = vmatpush1.msra.mxu0 0.0
    %2973 = vmatprep.mubr.f32.mxu0 0.0
    %2974 = vmatmul.mubr.f32.gmra.mrb[0].mxu0 %v2830
    %v2975 = vpop.f32.mrb[0].mxu0
    %v2976 = vadd.f32 %v2901, %v2975
    %v2977 = vpop.f32.mrb[0].mxu0
    %2978 = vmatprep.mubr.f32.mxu0 0.0
    %2979 = vmatmul.mubr.f32.gmra.mrb[0].mxu0 %v2831
    %v2980 = vpop.f32.mrb[0].mxu0
    %v2981 = vadd.f32 %v2906, %v2980
    %v2982 = vpop.f32.mrb[0].mxu0
    %2983 = vdwg.mxu0
    %s2984 = scalar_lea.vmem [#allocation5], 64
    %v2985 = vld [vmem:[%s2984] sm:$0xff]
    %s2986 = scalar_lea.vmem [#allocation5], 72
    %v2987 = vld [vmem:[%s2986] sm:$0xff]
    %s2988 = scalar_lea.vmem [#allocation7], 1024
    %v2989 = vld [vmem:[%s2988] sm:$0xff]
    %v2990 = vld [vmem:[%s2988 + $0x8] sm:$0xff]
    %v2991 = vld [vmem:[%s2988 + $0x10] sm:$0xff]
    %v2992 = vld [vmem:[%s2988 + $0x18] sm:$0xff]
    %v2993 = vld [vmem:[%s2988 + $0x20] sm:$0xff]
    %v2994 = vld [vmem:[%s2988 + $0x28] sm:$0xff]
    %v2995 = vld [vmem:[%s2988 + $0x30] sm:$0xff]
    %v2996 = vld [vmem:[%s2988 + $0x38] sm:$0xff]
    %v2997 = vld [vmem:[%s2988 + $0x40] sm:$0xff]
    %v2998 = vld [vmem:[%s2988 + $0x48] sm:$0xff]
    %v2999 = vld [vmem:[%s2988 + $0x50] sm:$0xff]
    %v3000 = vld [vmem:[%s2988 + $0x58] sm:$0xff]
    %v3001 = vld [vmem:[%s2988 + $0x60] sm:$0xff]
    %v3002 = vld [vmem:[%s2988 + $0x68] sm:$0xff]
    %v3003 = vld [vmem:[%s2988 + $0x70] sm:$0xff]
    %v3004 = vld [vmem:[%s2988 + $0x78] sm:$0xff]
    %s3005 = scalar_lea.vmem [#allocation7], 1152
    %v3006 = vld [vmem:[%s3005] sm:$0xff]
    %v3007 = vld [vmem:[%s3005 + $0x8] sm:$0xff]
    %v3008 = vld [vmem:[%s3005 + $0x10] sm:$0xff]
    %v3009 = vld [vmem:[%s3005 + $0x18] sm:$0xff]
    %v3010 = vld [vmem:[%s3005 + $0x20] sm:$0xff]
    %v3011 = vld [vmem:[%s3005 + $0x28] sm:$0xff]
    %v3012 = vld [vmem:[%s3005 + $0x30] sm:$0xff]
    %v3013 = vld [vmem:[%s3005 + $0x38] sm:$0xff]
    %v3014 = vld [vmem:[%s3005 + $0x40] sm:$0xff]
    %v3015 = vld [vmem:[%s3005 + $0x48] sm:$0xff]
    %v3016 = vld [vmem:[%s3005 + $0x50] sm:$0xff]
    %v3017 = vld [vmem:[%s3005 + $0x58] sm:$0xff]
    %v3018 = vld [vmem:[%s3005 + $0x60] sm:$0xff]
    %v3019 = vld [vmem:[%s3005 + $0x68] sm:$0xff]
    %v3020 = vld [vmem:[%s3005 + $0x70] sm:$0xff]
    %v3021 = vld [vmem:[%s3005 + $0x78] sm:$0xff]
    %v3023 = vsel %vm113, %v2618, 0
    %3025 = vmatprep.subr.mxu0 0.0
    %3026 = vmatpush1.msra.mxu0 %v2985
    %3027 = vmatprep.subr.mxu0 0.0
    %3028 = vmatpush1.msra.mxu0 0.0
    %3029 = vmatprep.subr.mxu0 0.0
    %3030 = vmatpush1.msra.mxu0 0.0
    %3031 = vmatprep.subr.mxu0 0.0
    %3032 = vmatpush1.msra.mxu0 0.0
    %3033 = vmatprep.subr.mxu0 0.0
    %3034 = vmatpush1.msra.mxu0 0.0
    %3035 = vmatprep.subr.mxu0 0.0
    %3036 = vmatpush1.msra.mxu0 0.0
    %3037 = vmatprep.subr.mxu0 0.0
    %3038 = vmatpush1.msra.mxu0 0.0
    %3039 = vmatprep.subr.mxu0 0.0
    %3040 = vmatpush1.msra.mxu0 0.0
    %3041 = vmatprep.subr.mxu0 0.0
    %3042 = vmatpush1.msra.mxu0 0.0
    %3043 = vmatprep.subr.mxu0 0.0
    %3044 = vmatpush1.msra.mxu0 0.0
    %3045 = vmatprep.subr.mxu0 0.0
    %3046 = vmatpush1.msra.mxu0 0.0
    %3047 = vmatprep.subr.mxu0 0.0
    %3048 = vmatpush1.msra.mxu0 0.0
    %3049 = vmatprep.subr.mxu0 0.0
    %3050 = vmatpush1.msra.mxu0 0.0
    %3051 = vmatprep.subr.mxu0 0.0
    %3052 = vmatpush1.msra.mxu0 0.0
    %3053 = vmatprep.subr.mxu0 0.0
    %3054 = vmatpush1.msra.mxu0 0.0
    %3055 = vmatprep.subr.mxu0 0.0
    %3056 = vmatpush1.msra.mxu0 0.0
    %3057 = vmatprep.subr.mxu0 0.0
    %3058 = vmatpush1.msra.mxu0 0.0
    %3059 = vmatprep.subr.mxu0 0.0
    %3060 = vmatpush1.msra.mxu0 0.0
    %3061 = vmatprep.subr.mxu0 0.0
    %3062 = vmatpush1.msra.mxu0 0.0
    %3063 = vmatprep.subr.mxu0 0.0
    %3064 = vmatpush1.msra.mxu0 0.0
    %3065 = vmatprep.subr.mxu0 0.0
    %3066 = vmatpush1.msra.mxu0 0.0
    %3067 = vmatprep.subr.mxu0 0.0
    %3068 = vmatpush1.msra.mxu0 0.0
    %3069 = vmatprep.subr.mxu0 0.0
    %3070 = vmatpush1.msra.mxu0 0.0
    %3071 = vmatprep.subr.mxu0 0.0
    %3072 = vmatpush1.msra.mxu0 0.0
    %3073 = vmatprep.subr.mxu0 0.0
    %3074 = vmatpush1.msra.mxu0 0.0
    %3075 = vmatprep.subr.mxu0 0.0
    %3076 = vmatpush1.msra.mxu0 0.0
    %3077 = vmatprep.subr.mxu0 0.0
    %3078 = vmatpush1.msra.mxu0 0.0
    %3079 = vmatprep.subr.mxu0 0.0
    %3080 = vmatpush1.msra.mxu0 0.0
    %3081 = vmatprep.subr.mxu0 0.0
    %3082 = vmatpush1.msra.mxu0 0.0
    %3083 = vmatprep.subr.mxu0 0.0
    %3084 = vmatpush1.msra.mxu0 0.0
    %3085 = vmatprep.subr.mxu0 0.0
    %3086 = vmatpush1.msra.mxu0 0.0
    %3087 = vmatprep.subr.mxu0 0.0
    %3088 = vmatpush1.msra.mxu0 0.0
    %3089 = vmatprep.mubr.f32.mxu0 0.0
    %3090 = vmatmul.mubr.f32.gmra.mrb[0].mxu0 %v3023
    %v3091 = vpop.f32.mrb[0].mxu0
    %v3092 = vadd.f32 0.0, %v3091
    %v3093 = vpop.f32.mrb[0].mxu0
    %3094 = vdwg.mxu0
    %3095 = vmatprep.subr.mxu0 0.0
    %3096 = vmatpush1.msra.mxu0 %v2987
    %3097 = vmatprep.subr.mxu0 0.0
    %3098 = vmatpush1.msra.mxu0 0.0
    %3099 = vmatprep.subr.mxu0 0.0
    %3100 = vmatpush1.msra.mxu0 0.0
    %3101 = vmatprep.subr.mxu0 0.0
    %3102 = vmatpush1.msra.mxu0 0.0
    %3103 = vmatprep.subr.mxu0 0.0
    %3104 = vmatpush1.msra.mxu0 0.0
    %3105 = vmatprep.subr.mxu0 0.0
    %3106 = vmatpush1.msra.mxu0 0.0
    %3107 = vmatprep.subr.mxu0 0.0
    %3108 = vmatpush1.msra.mxu0 0.0
    %3109 = vmatprep.subr.mxu0 0.0
    %3110 = vmatpush1.msra.mxu0 0.0
    %3111 = vmatprep.subr.mxu0 0.0
    %3112 = vmatpush1.msra.mxu0 0.0
    %3113 = vmatprep.subr.mxu0 0.0
    %3114 = vmatpush1.msra.mxu0 0.0
    %3115 = vmatprep.subr.mxu0 0.0
    %3116 = vmatpush1.msra.mxu0 0.0
    %3117 = vmatprep.subr.mxu0 0.0
    %3118 = vmatpush1.msra.mxu0 0.0
    %3119 = vmatprep.subr.mxu0 0.0
    %3120 = vmatpush1.msra.mxu0 0.0
    %3121 = vmatprep.subr.mxu0 0.0
    %3122 = vmatpush1.msra.mxu0 0.0
    %3123 = vmatprep.subr.mxu0 0.0
    %3124 = vmatpush1.msra.mxu0 0.0
    %3125 = vmatprep.subr.mxu0 0.0
    %3126 = vmatpush1.msra.mxu0 0.0
    %3127 = vmatprep.subr.mxu0 0.0
    %3128 = vmatpush1.msra.mxu0 0.0
    %3129 = vmatprep.subr.mxu0 0.0
    %3130 = vmatpush1.msra.mxu0 0.0
    %3131 = vmatprep.subr.mxu0 0.0
    %3132 = vmatpush1.msra.mxu0 0.0
    %3133 = vmatprep.subr.mxu0 0.0
    %3134 = vmatpush1.msra.mxu0 0.0
    %3135 = vmatprep.subr.mxu0 0.0
    %3136 = vmatpush1.msra.mxu0 0.0
    %3137 = vmatprep.subr.mxu0 0.0
    %3138 = vmatpush1.msra.mxu0 0.0
    %3139 = vmatprep.subr.mxu0 0.0
    %3140 = vmatpush1.msra.mxu0 0.0
    %3141 = vmatprep.subr.mxu0 0.0
    %3142 = vmatpush1.msra.mxu0 0.0
    %3143 = vmatprep.subr.mxu0 0.0
    %3144 = vmatpush1.msra.mxu0 0.0
    %3145 = vmatprep.subr.mxu0 0.0
    %3146 = vmatpush1.msra.mxu0 0.0
    %3147 = vmatprep.subr.mxu0 0.0
    %3148 = vmatpush1.msra.mxu0 0.0
    %3149 = vmatprep.subr.mxu0 0.0
    %3150 = vmatpush1.msra.mxu0 0.0
    %3151 = vmatprep.subr.mxu0 0.0
    %3152 = vmatpush1.msra.mxu0 0.0
    %3153 = vmatprep.subr.mxu0 0.0
    %3154 = vmatpush1.msra.mxu0 0.0
    %3155 = vmatprep.subr.mxu0 0.0
    %3156 = vmatpush1.msra.mxu0 0.0
    %3157 = vmatprep.subr.mxu0 0.0
    %3158 = vmatpush1.msra.mxu0 0.0
    %3159 = vmatprep.mubr.f32.mxu0 0.0
    %3160 = vmatmul.mubr.f32.gmra.mrb[0].mxu0 %v3023
    %v3161 = vpop.f32.mrb[0].mxu0
    %v3162 = vadd.f32 0.0, %v3161
    %v3163 = vpop.f32.mrb[0].mxu0
    %3164 = vdwg.mxu0
    %v3165 = vsub.f32 %v3162, %v3092
    %v3166 = vmul.f32 %v3165, 10.0
    %vm3167 = vcmp.lt.f32.partialorder %v3166, 0.0
    %v3168 = vsel %vm3167, -1.0, 1.0
    %v3169 = vand.u32 2147483647, %v3166
    %vm3170 = vcmp.gt.f32.partialorder %v3169, 2.4142137
    %vm3171 = vcmp.gt.f32.partialorder %v3169, 0.41421357
    %v3172 = vsel %vm3171, 0.7853982, 0.0
    %v3173 = vsel %vm3170, 1.5707964, %v3172
    %v3174 = vadd.f32 %v3169, 1e-30
    %v3175 = vrcp.pop %v3174
    %v3176 = vmul.f32 %v3174, %v3175
    %v3177 = vsub.f32 2.0, %v3176
    %v3178 = vmul.f32 %v3175, %v3177
    %v3179 = vadd.f32 %v3169, 1.0
    %v3180 = vrcp.pop %v3179
    %v3181 = vmul.f32 %v3179, %v3180
    %v3182 = vsub.f32 2.0, %v3181
    %v3183 = vmul.f32 %v3180, %v3182
    %v3184 = vsub.f32 0.0, %v3178
    %v3185 = vsub.f32 %v3169, 1.0
    %v3186 = vmul.f32 %v3185, %v3183
    %v3187 = vsel %vm3171, %v3186, %v3169
    %v3188 = vsel %vm3170, %v3184, %v3187
    %v3189 = vmul.f32 %v3188, %v3188
    %v3190 = vmul.f32 %v3189, 0.080537446
    %v3191 = vsub.f32 %v3190, 0.13877685
    %v3192 = vmul.f32 %v3191, %v3189
    %v3193 = vadd.f32 %v3192, 0.19977711
    %v3194 = vmul.f32 %v3193, %v3189
    %v3195 = vsub.f32 %v3194, 0.3333295
    %v3196 = vmul.f32 %v3195, %v3189
    %v3197 = vmul.f32 %v3196, %v3188
    %v3198 = vadd.f32 %v3197, %v3188
    %v3199 = vadd.f32 %v3173, %v3198
    %v3200 = vmul.f32 %v3168, %v3199
    %v3201 = vmul.f32 %v3200, 0.31830987
    %v3202 = vadd.f32 %v3201, 0.5
    %v3203 = vmul.f32 %v3202, %v3092
    %v3204 = vsub.f32 1.0, %v3202
    %v3205 = vmul.f32 %v3204, %v3162
    %v3206 = vadd.f32 %v3203, %v3205
    %v3207 = vadd.f32 %v3092, %v3162
    %3208 = vmatprep.subr.mxu0 0.0
    %3209 = vmatpush1.msra.mxu0 %v2989
    %3210 = vmatprep.subr.mxu0 0.0
    %3211 = vmatpush1.msra.mxu0 %v2990
    %3212 = vmatprep.subr.mxu0 0.0
    %3213 = vmatpush1.msra.mxu0 %v2991
    %3214 = vmatprep.subr.mxu0 0.0
    %3215 = vmatpush1.msra.mxu0 %v2992
    %3216 = vmatprep.subr.mxu0 0.0
    %3217 = vmatpush1.msra.mxu0 %v2993
    %3218 = vmatprep.subr.mxu0 0.0
    %3219 = vmatpush1.msra.mxu0 %v2994
    %3220 = vmatprep.subr.mxu0 0.0
    %3221 = vmatpush1.msra.mxu0 %v2995
    %3222 = vmatprep.subr.mxu0 0.0
    %3223 = vmatpush1.msra.mxu0 %v2996
    %3224 = vmatprep.subr.mxu0 0.0
    %3225 = vmatpush1.msra.mxu0 %v2997
    %3226 = vmatprep.subr.mxu0 0.0
    %3227 = vmatpush1.msra.mxu0 %v2998
    %3228 = vmatprep.subr.mxu0 0.0
    %3229 = vmatpush1.msra.mxu0 %v2999
    %3230 = vmatprep.subr.mxu0 0.0
    %3231 = vmatpush1.msra.mxu0 %v3000
    %3232 = vmatprep.subr.mxu0 0.0
    %3233 = vmatpush1.msra.mxu0 %v3001
    %3234 = vmatprep.subr.mxu0 0.0
    %3235 = vmatpush1.msra.mxu0 %v3002
    %3236 = vmatprep.subr.mxu0 0.0
    %3237 = vmatpush1.msra.mxu0 %v3003
    %3238 = vmatprep.subr.mxu0 0.0
    %3239 = vmatpush1.msra.mxu0 %v3004
    %3240 = vmatprep.subr.mxu0 0.0
    %3241 = vmatpush1.msra.mxu0 0.0
    %3242 = vmatprep.subr.mxu0 0.0
    %3243 = vmatpush1.msra.mxu0 0.0
    %3244 = vmatprep.subr.mxu0 0.0
    %3245 = vmatpush1.msra.mxu0 0.0
    %3246 = vmatprep.subr.mxu0 0.0
    %3247 = vmatpush1.msra.mxu0 0.0
    %3248 = vmatprep.subr.mxu0 0.0
    %3249 = vmatpush1.msra.mxu0 0.0
    %3250 = vmatprep.subr.mxu0 0.0
    %3251 = vmatpush1.msra.mxu0 0.0
    %3252 = vmatprep.subr.mxu0 0.0
    %3253 = vmatpush1.msra.mxu0 0.0
    %3254 = vmatprep.subr.mxu0 0.0
    %3255 = vmatpush1.msra.mxu0 0.0
    %3256 = vmatprep.subr.mxu0 0.0
    %3257 = vmatpush1.msra.mxu0 0.0
    %3258 = vmatprep.subr.mxu0 0.0
    %3259 = vmatpush1.msra.mxu0 0.0
    %3260 = vmatprep.subr.mxu0 0.0
    %3261 = vmatpush1.msra.mxu0 0.0
    %3262 = vmatprep.subr.mxu0 0.0
    %3263 = vmatpush1.msra.mxu0 0.0
    %3264 = vmatprep.subr.mxu0 0.0
    %3265 = vmatpush1.msra.mxu0 0.0
    %3266 = vmatprep.subr.mxu0 0.0
    %3267 = vmatpush1.msra.mxu0 0.0
    %3268 = vmatprep.subr.mxu0 0.0
    %3269 = vmatpush1.msra.mxu0 0.0
    %3270 = vmatprep.subr.mxu0 0.0
    %3271 = vmatpush1.msra.mxu0 0.0
    %3272 = vmatprep.mubr.f32.mxu0 0.0
    %3273 = vmatmul.mubr.f32.gmra.mrb[0].mxu0 %v3207
    %v3274 = vpop.f32.mrb[0].mxu0
    %v3275 = vadd.f32 0.0, %v3274
    %v3276 = vpop.f32.mrb[0].mxu0
    %3277 = vdwg.mxu0
    %3278 = vmatprep.subr.mxu0 0.0
    %3279 = vmatpush1.msra.mxu0 %v3006
    %3280 = vmatprep.subr.mxu0 0.0
    %3281 = vmatpush1.msra.mxu0 %v3007
    %3282 = vmatprep.subr.mxu0 0.0
    %3283 = vmatpush1.msra.mxu0 %v3008
    %3284 = vmatprep.subr.mxu0 0.0
    %3285 = vmatpush1.msra.mxu0 %v3009
    %3286 = vmatprep.subr.mxu0 0.0
    %3287 = vmatpush1.msra.mxu0 %v3010
    %3288 = vmatprep.subr.mxu0 0.0
    %3289 = vmatpush1.msra.mxu0 %v3011
    %3290 = vmatprep.subr.mxu0 0.0
    %3291 = vmatpush1.msra.mxu0 %v3012
    %3292 = vmatprep.subr.mxu0 0.0
    %3293 = vmatpush1.msra.mxu0 %v3013
    %3294 = vmatprep.subr.mxu0 0.0
    %3295 = vmatpush1.msra.mxu0 %v3014
    %3296 = vmatprep.subr.mxu0 0.0
    %3297 = vmatpush1.msra.mxu0 %v3015
    %3298 = vmatprep.subr.mxu0 0.0
    %3299 = vmatpush1.msra.mxu0 %v3016
    %3300 = vmatprep.subr.mxu0 0.0
    %3301 = vmatpush1.msra.mxu0 %v3017
    %3302 = vmatprep.subr.mxu0 0.0
    %3303 = vmatpush1.msra.mxu0 %v3018
    %3304 = vmatprep.subr.mxu0 0.0
    %3305 = vmatpush1.msra.mxu0 %v3019
    %3306 = vmatprep.subr.mxu0 0.0
    %3307 = vmatpush1.msra.mxu0 %v3020
    %3308 = vmatprep.subr.mxu0 0.0
    %3309 = vmatpush1.msra.mxu0 %v3021
    %3310 = vmatprep.subr.mxu0 0.0
    %3311 = vmatpush1.msra.mxu0 0.0
    %3312 = vmatprep.subr.mxu0 0.0
    %3313 = vmatpush1.msra.mxu0 0.0
    %3314 = vmatprep.subr.mxu0 0.0
    %3315 = vmatpush1.msra.mxu0 0.0
    %3316 = vmatprep.subr.mxu0 0.0
    %3317 = vmatpush1.msra.mxu0 0.0
    %3318 = vmatprep.subr.mxu0 0.0
    %3319 = vmatpush1.msra.mxu0 0.0
    %3320 = vmatprep.subr.mxu0 0.0
    %3321 = vmatpush1.msra.mxu0 0.0
    %3322 = vmatprep.subr.mxu0 0.0
    %3323 = vmatpush1.msra.mxu0 0.0
    %3324 = vmatprep.subr.mxu0 0.0
    %3325 = vmatpush1.msra.mxu0 0.0
    %3326 = vmatprep.subr.mxu0 0.0
    %3327 = vmatpush1.msra.mxu0 0.0
    %3328 = vmatprep.subr.mxu0 0.0
    %3329 = vmatpush1.msra.mxu0 0.0
    %3330 = vmatprep.subr.mxu0 0.0
    %3331 = vmatpush1.msra.mxu0 0.0
    %3332 = vmatprep.subr.mxu0 0.0
    %3333 = vmatpush1.msra.mxu0 0.0
    %3334 = vmatprep.subr.mxu0 0.0
    %3335 = vmatpush1.msra.mxu0 0.0
    %3336 = vmatprep.subr.mxu0 0.0
    %3337 = vmatpush1.msra.mxu0 0.0
    %3338 = vmatprep.subr.mxu0 0.0
    %3339 = vmatpush1.msra.mxu0 0.0
    %3340 = vmatprep.subr.mxu0 0.0
    %3341 = vmatpush1.msra.mxu0 0.0
    %3342 = vmatprep.mubr.f32.mxu0 0.0
    %3343 = vmatmul.mubr.f32.gmra.mrb[0].mxu0 %v3206
    %v3344 = vpop.f32.mrb[0].mxu0
    %v3345 = vadd.f32 %v3275, %v3344
    %v3346 = vpop.f32.mrb[0].mxu0
    %3347 = vdwg.mxu0
    %v3349 = vsel %vm113, %v2976, 0
    %v3352 = vsel %vm113, %v2981, 0
    %3354 = vmatprep.subr.mxu0 0.0
    %3355 = vmatpush1.msra.mxu0 %v2985
    %3356 = vmatprep.subr.mxu0 0.0
    %3357 = vmatpush1.msra.mxu0 0.0
    %3358 = vmatprep.subr.mxu0 0.0
    %3359 = vmatpush1.msra.mxu0 0.0
    %3360 = vmatprep.subr.mxu0 0.0
    %3361 = vmatpush1.msra.mxu0 0.0
    %3362 = vmatprep.subr.mxu0 0.0
    %3363 = vmatpush1.msra.mxu0 0.0
    %3364 = vmatprep.subr.mxu0 0.0
    %3365 = vmatpush1.msra.mxu0 0.0
    %3366 = vmatprep.subr.mxu0 0.0
    %3367 = vmatpush1.msra.mxu0 0.0
    %3368 = vmatprep.subr.mxu0 0.0
    %3369 = vmatpush1.msra.mxu0 0.0
    %3370 = vmatprep.subr.mxu0 0.0
    %3371 = vmatpush1.msra.mxu0 0.0
    %3372 = vmatprep.subr.mxu0 0.0
    %3373 = vmatpush1.msra.mxu0 0.0
    %3374 = vmatprep.subr.mxu0 0.0
    %3375 = vmatpush1.msra.mxu0 0.0
    %3376 = vmatprep.subr.mxu0 0.0
    %3377 = vmatpush1.msra.mxu0 0.0
    %3378 = vmatprep.subr.mxu0 0.0
    %3379 = vmatpush1.msra.mxu0 0.0
    %3380 = vmatprep.subr.mxu0 0.0
    %3381 = vmatpush1.msra.mxu0 0.0
    %3382 = vmatprep.subr.mxu0 0.0
    %3383 = vmatpush1.msra.mxu0 0.0
    %3384 = vmatprep.subr.mxu0 0.0
    %3385 = vmatpush1.msra.mxu0 0.0
    %3386 = vmatprep.subr.mxu0 0.0
    %3387 = vmatpush1.msra.mxu0 0.0
    %3388 = vmatprep.subr.mxu0 0.0
    %3389 = vmatpush1.msra.mxu0 0.0
    %3390 = vmatprep.subr.mxu0 0.0
    %3391 = vmatpush1.msra.mxu0 0.0
    %3392 = vmatprep.subr.mxu0 0.0
    %3393 = vmatpush1.msra.mxu0 0.0
    %3394 = vmatprep.subr.mxu0 0.0
    %3395 = vmatpush1.msra.mxu0 0.0
    %3396 = vmatprep.subr.mxu0 0.0
    %3397 = vmatpush1.msra.mxu0 0.0
    %3398 = vmatprep.subr.mxu0 0.0
    %3399 = vmatpush1.msra.mxu0 0.0
    %3400 = vmatprep.subr.mxu0 0.0
    %3401 = vmatpush1.msra.mxu0 0.0
    %3402 = vmatprep.subr.mxu0 0.0
    %3403 = vmatpush1.msra.mxu0 0.0
    %3404 = vmatprep.subr.mxu0 0.0
    %3405 = vmatpush1.msra.mxu0 0.0
    %3406 = vmatprep.subr.mxu0 0.0
    %3407 = vmatpush1.msra.mxu0 0.0
    %3408 = vmatprep.subr.mxu0 0.0
    %3409 = vmatpush1.msra.mxu0 0.0
    %3410 = vmatprep.subr.mxu0 0.0
    %3411 = vmatpush1.msra.mxu0 0.0
    %3412 = vmatprep.subr.mxu0 0.0
    %3413 = vmatpush1.msra.mxu0 0.0
    %3414 = vmatprep.subr.mxu0 0.0
    %3415 = vmatpush1.msra.mxu0 0.0
    %3416 = vmatprep.subr.mxu0 0.0
    %3417 = vmatpush1.msra.mxu0 0.0
    %3418 = vmatprep.mubr.f32.mxu0 0.0
    %3419 = vmatmul.mubr.f32.gmra.mrb[0].mxu0 %v3349
    %v3420 = vpop.f32.mrb[0].mxu0
    %v3421 = vadd.f32 0.0, %v3420
    %v3422 = vpop.f32.mrb[0].mxu0
    %3423 = vmatprep.mubr.f32.mxu0 0.0
    %3424 = vmatmul.mubr.f32.gmra.mrb[0].mxu0 %v3352
    %v3425 = vpop.f32.mrb[0].mxu0
    %v3426 = vadd.f32 0.0, %v3425
    %v3427 = vpop.f32.mrb[0].mxu0
    %3428 = vdwg.mxu0
    %3429 = vmatprep.subr.mxu0 0.0
    %3430 = vmatpush1.msra.mxu0 %v2987
    %3431 = vmatprep.subr.mxu0 0.0
    %3432 = vmatpush1.msra.mxu0 0.0
    %3433 = vmatprep.subr.mxu0 0.0
    %3434 = vmatpush1.msra.mxu0 0.0
    %3435 = vmatprep.subr.mxu0 0.0
    %3436 = vmatpush1.msra.mxu0 0.0
    %3437 = vmatprep.subr.mxu0 0.0
    %3438 = vmatpush1.msra.mxu0 0.0
    %3439 = vmatprep.subr.mxu0 0.0
    %3440 = vmatpush1.msra.mxu0 0.0
    %3441 = vmatprep.subr.mxu0 0.0
    %3442 = vmatpush1.msra.mxu0 0.0
    %3443 = vmatprep.subr.mxu0 0.0
    %3444 = vmatpush1.msra.mxu0 0.0
    %3445 = vmatprep.subr.mxu0 0.0
    %3446 = vmatpush1.msra.mxu0 0.0
    %3447 = vmatprep.subr.mxu0 0.0
    %3448 = vmatpush1.msra.mxu0 0.0
    %3449 = vmatprep.subr.mxu0 0.0
    %3450 = vmatpush1.msra.mxu0 0.0
    %3451 = vmatprep.subr.mxu0 0.0
    %3452 = vmatpush1.msra.mxu0 0.0
    %3453 = vmatprep.subr.mxu0 0.0
    %3454 = vmatpush1.msra.mxu0 0.0
    %3455 = vmatprep.subr.mxu0 0.0
    %3456 = vmatpush1.msra.mxu0 0.0
    %3457 = vmatprep.subr.mxu0 0.0
    %3458 = vmatpush1.msra.mxu0 0.0
    %3459 = vmatprep.subr.mxu0 0.0
    %3460 = vmatpush1.msra.mxu0 0.0
    %3461 = vmatprep.subr.mxu0 0.0
    %3462 = vmatpush1.msra.mxu0 0.0
    %3463 = vmatprep.subr.mxu0 0.0
    %3464 = vmatpush1.msra.mxu0 0.0
    %3465 = vmatprep.subr.mxu0 0.0
    %3466 = vmatpush1.msra.mxu0 0.0
    %3467 = vmatprep.subr.mxu0 0.0
    %3468 = vmatpush1.msra.mxu0 0.0
    %3469 = vmatprep.subr.mxu0 0.0
    %3470 = vmatpush1.msra.mxu0 0.0
    %3471 = vmatprep.subr.mxu0 0.0
    %3472 = vmatpush1.msra.mxu0 0.0
    %3473 = vmatprep.subr.mxu0 0.0
    %3474 = vmatpush1.msra.mxu0 0.0
    %3475 = vmatprep.subr.mxu0 0.0
    %3476 = vmatpush1.msra.mxu0 0.0
    %3477 = vmatprep.subr.mxu0 0.0
    %3478 = vmatpush1.msra.mxu0 0.0
    %3479 = vmatprep.subr.mxu0 0.0
    %3480 = vmatpush1.msra.mxu0 0.0
    %3481 = vmatprep.subr.mxu0 0.0
    %3482 = vmatpush1.msra.mxu0 0.0
    %3483 = vmatprep.subr.mxu0 0.0
    %3484 = vmatpush1.msra.mxu0 0.0
    %3485 = vmatprep.subr.mxu0 0.0
    %3486 = vmatpush1.msra.mxu0 0.0
    %3487 = vmatprep.subr.mxu0 0.0
    %3488 = vmatpush1.msra.mxu0 0.0
    %3489 = vmatprep.subr.mxu0 0.0
    %3490 = vmatpush1.msra.mxu0 0.0
    %3491 = vmatprep.subr.mxu0 0.0
    %3492 = vmatpush1.msra.mxu0 0.0
    %3493 = vmatprep.mubr.f32.mxu0 0.0
    %3494 = vmatmul.mubr.f32.gmra.mrb[0].mxu0 %v3349
    %v3495 = vpop.f32.mrb[0].mxu0
    %v3496 = vadd.f32 0.0, %v3495
    %v3497 = vpop.f32.mrb[0].mxu0
    %3498 = vmatprep.mubr.f32.mxu0 0.0
    %3499 = vmatmul.mubr.f32.gmra.mrb[0].mxu0 %v3352
    %v3500 = vpop.f32.mrb[0].mxu0
    %v3501 = vadd.f32 0.0, %v3500
    %v3502 = vpop.f32.mrb[0].mxu0
    %3503 = vdwg.mxu0
    %v3506 = vunpack.c.l.s4 1966171168
    %v3507 = vunpack.c.0.s8 %v3506
    %v3508 = vlaneseq
    %v3509 = vshrl.u32 %v3508, 7
    %v3510 = vsub.s32 %v3507, %v3509
    %v3511 = vrot.slane %v3202, %v3510
    %v3512 = vcombine.high %v3511, %v3511
    %v3514 = vunpack.c.l.s4 1966171168
    %v3515 = vunpack.c.0.s8 %v3514
    %v3516 = vlaneseq
    %v3517 = vshrl.u32 %v3516, 7
    %v3518 = vsub.s32 %v3515, %v3517
    %v3519 = vrot.slane %v3511, %v3518
    %v3521 = vunpack.c.l.s4 1966171168
    %v3522 = vunpack.c.0.s8 %v3521
    %v3523 = vlaneseq
    %v3524 = vshrl.u32 %v3523, 7
    %v3525 = vsub.s32 %v3522, %v3524
    %v3526 = vrot.slane %v3512, %v3525
    %v3529 = vlaneseq
    %v3530 = vshrl.u32 %v3529, 7
    %v3531 = vsub.s32 0, %v3530
    %v3532 = vrot.slane %v3519, %v3531
    %v3533 = vlaneseq
    %v3534 = vshrl.u32 %v3533, 7
    %v3535 = vsub.s32 0, %v3534
    %v3536 = vrot.slane %v3526, %v3535
    %v3539 = vmul.f32 %v3532, %v3421
    %v3540 = vmul.f32 %v3536, %v3426
    %v3541 = vsub.f32 1.0, %v3519
    %v3542 = vsub.f32 1.0, %v3526
    %v3545 = vlaneseq
    %v3546 = vshrl.u32 %v3545, 7
    %v3547 = vsub.s32 0, %v3546
    %v3548 = vrot.slane %v3541, %v3547
    %v3549 = vlaneseq
    %v3550 = vshrl.u32 %v3549, 7
    %v3551 = vsub.s32 0, %v3550
    %v3552 = vrot.slane %v3542, %v3551
    %v3555 = vmul.f32 %v3548, %v3496
    %v3556 = vmul.f32 %v3552, %v3501
    %v3557 = vadd.f32 %v3539, %v3555
    %v3558 = vadd.f32 %v3540, %v3556
    %v3559 = vadd.f32 %v3421, %v3496
    %v3560 = vadd.f32 %v3426, %v3501
    %3561 = vmatprep.subr.mxu0 0.0
    %3562 = vmatpush1.msra.mxu0 %v2989
    %3563 = vmatprep.subr.mxu0 0.0
    %3564 = vmatpush1.msra.mxu0 %v2990
    %3565 = vmatprep.subr.mxu0 0.0
    %3566 = vmatpush1.msra.mxu0 %v2991
    %3567 = vmatprep.subr.mxu0 0.0
    %3568 = vmatpush1.msra.mxu0 %v2992
    %3569 = vmatprep.subr.mxu0 0.0
    %3570 = vmatpush1.msra.mxu0 %v2993
    %3571 = vmatprep.subr.mxu0 0.0
    %3572 = vmatpush1.msra.mxu0 %v2994
    %3573 = vmatprep.subr.mxu0 0.0
    %3574 = vmatpush1.msra.mxu0 %v2995
    %3575 = vmatprep.subr.mxu0 0.0
    %3576 = vmatpush1.msra.mxu0 %v2996
    %3577 = vmatprep.subr.mxu0 0.0
    %3578 = vmatpush1.msra.mxu0 %v2997
    %3579 = vmatprep.subr.mxu0 0.0
    %3580 = vmatpush1.msra.mxu0 %v2998
    %3581 = vmatprep.subr.mxu0 0.0
    %3582 = vmatpush1.msra.mxu0 %v2999
    %3583 = vmatprep.subr.mxu0 0.0
    %3584 = vmatpush1.msra.mxu0 %v3000
    %3585 = vmatprep.subr.mxu0 0.0
    %3586 = vmatpush1.msra.mxu0 %v3001
    %3587 = vmatprep.subr.mxu0 0.0
    %3588 = vmatpush1.msra.mxu0 %v3002
    %3589 = vmatprep.subr.mxu0 0.0
    %3590 = vmatpush1.msra.mxu0 %v3003
    %3591 = vmatprep.subr.mxu0 0.0
    %3592 = vmatpush1.msra.mxu0 %v3004
    %3593 = vmatprep.subr.mxu0 0.0
    %3594 = vmatpush1.msra.mxu0 0.0
    %3595 = vmatprep.subr.mxu0 0.0
    %3596 = vmatpush1.msra.mxu0 0.0
    %3597 = vmatprep.subr.mxu0 0.0
    %3598 = vmatpush1.msra.mxu0 0.0
    %3599 = vmatprep.subr.mxu0 0.0
    %3600 = vmatpush1.msra.mxu0 0.0
    %3601 = vmatprep.subr.mxu0 0.0
    %3602 = vmatpush1.msra.mxu0 0.0
    %3603 = vmatprep.subr.mxu0 0.0
    %3604 = vmatpush1.msra.mxu0 0.0
    %3605 = vmatprep.subr.mxu0 0.0
    %3606 = vmatpush1.msra.mxu0 0.0
    %3607 = vmatprep.subr.mxu0 0.0
    %3608 = vmatpush1.msra.mxu0 0.0
    %3609 = vmatprep.subr.mxu0 0.0
    %3610 = vmatpush1.msra.mxu0 0.0
    %3611 = vmatprep.subr.mxu0 0.0
    %3612 = vmatpush1.msra.mxu0 0.0
    %3613 = vmatprep.subr.mxu0 0.0
    %3614 = vmatpush1.msra.mxu0 0.0
    %3615 = vmatprep.subr.mxu0 0.0
    %3616 = vmatpush1.msra.mxu0 0.0
    %3617 = vmatprep.subr.mxu0 0.0
    %3618 = vmatpush1.msra.mxu0 0.0
    %3619 = vmatprep.subr.mxu0 0.0
    %3620 = vmatpush1.msra.mxu0 0.0
    %3621 = vmatprep.subr.mxu0 0.0
    %3622 = vmatpush1.msra.mxu0 0.0
    %3623 = vmatprep.subr.mxu0 0.0
    %3624 = vmatpush1.msra.mxu0 0.0
    %3625 = vmatprep.mubr.f32.mxu0 0.0
    %3626 = vmatmul.mubr.f32.gmra.mrb[0].mxu0 %v3559
    %v3627 = vpop.f32.mrb[0].mxu0
    %v3628 = vadd.f32 0.0, %v3627
    %v3629 = vpop.f32.mrb[0].mxu0
    %3630 = vmatprep.mubr.f32.mxu0 0.0
    %3631 = vmatmul.mubr.f32.gmra.mrb[0].mxu0 %v3560
    %v3632 = vpop.f32.mrb[0].mxu0
    %v3633 = vadd.f32 0.0, %v3632
    %v3634 = vpop.f32.mrb[0].mxu0
    %3635 = vdwg.mxu0
    %3636 = vmatprep.subr.mxu0 0.0
    %3637 = vmatpush1.msra.mxu0 %v3006
    %3638 = vmatprep.subr.mxu0 0.0
    %3639 = vmatpush1.msra.mxu0 %v3007
    %3640 = vmatprep.subr.mxu0 0.0
    %3641 = vmatpush1.msra.mxu0 %v3008
    %3642 = vmatprep.subr.mxu0 0.0
    %3643 = vmatpush1.msra.mxu0 %v3009
    %3644 = vmatprep.subr.mxu0 0.0
    %3645 = vmatpush1.msra.mxu0 %v3010
    %3646 = vmatprep.subr.mxu0 0.0
    %3647 = vmatpush1.msra.mxu0 %v3011
    %3648 = vmatprep.subr.mxu0 0.0
    %3649 = vmatpush1.msra.mxu0 %v3012
    %3650 = vmatprep.subr.mxu0 0.0
    %3651 = vmatpush1.msra.mxu0 %v3013
    %3652 = vmatprep.subr.mxu0 0.0
    %3653 = vmatpush1.msra.mxu0 %v3014
    %3654 = vmatprep.subr.mxu0 0.0
    %3655 = vmatpush1.msra.mxu0 %v3015
    %3656 = vmatprep.subr.mxu0 0.0
    %3657 = vmatpush1.msra.mxu0 %v3016
    %3658 = vmatprep.subr.mxu0 0.0
    %3659 = vmatpush1.msra.mxu0 %v3017
    %3660 = vmatprep.subr.mxu0 0.0
    %3661 = vmatpush1.msra.mxu0 %v3018
    %3662 = vmatprep.subr.mxu0 0.0
    %3663 = vmatpush1.msra.mxu0 %v3019
    %3664 = vmatprep.subr.mxu0 0.0
    %3665 = vmatpush1.msra.mxu0 %v3020
    %3666 = vmatprep.subr.mxu0 0.0
    %3667 = vmatpush1.msra.mxu0 %v3021
    %3668 = vmatprep.subr.mxu0 0.0
    %3669 = vmatpush1.msra.mxu0 0.0
    %3670 = vmatprep.subr.mxu0 0.0
    %3671 = vmatpush1.msra.mxu0 0.0
    %3672 = vmatprep.subr.mxu0 0.0
    %3673 = vmatpush1.msra.mxu0 0.0
    %3674 = vmatprep.subr.mxu0 0.0
    %3675 = vmatpush1.msra.mxu0 0.0
    %3676 = vmatprep.subr.mxu0 0.0
    %3677 = vmatpush1.msra.mxu0 0.0
    %3678 = vmatprep.subr.mxu0 0.0
    %3679 = vmatpush1.msra.mxu0 0.0
    %3680 = vmatprep.subr.mxu0 0.0
    %3681 = vmatpush1.msra.mxu0 0.0
    %3682 = vmatprep.subr.mxu0 0.0
    %3683 = vmatpush1.msra.mxu0 0.0
    %3684 = vmatprep.subr.mxu0 0.0
    %3685 = vmatpush1.msra.mxu0 0.0
    %3686 = vmatprep.subr.mxu0 0.0
    %3687 = vmatpush1.msra.mxu0 0.0
    %3688 = vmatprep.subr.mxu0 0.0
    %3689 = vmatpush1.msra.mxu0 0.0
    %3690 = vmatprep.subr.mxu0 0.0
    %3691 = vmatpush1.msra.mxu0 0.0
    %3692 = vmatprep.subr.mxu0 0.0
    %3693 = vmatpush1.msra.mxu0 0.0
    %3694 = vmatprep.subr.mxu0 0.0
    %3695 = vmatpush1.msra.mxu0 0.0
    %3696 = vmatprep.subr.mxu0 0.0
    %3697 = vmatpush1.msra.mxu0 0.0
    %3698 = vmatprep.subr.mxu0 0.0
    %3699 = vmatpush1.msra.mxu0 0.0
    %3700 = vmatprep.mubr.f32.mxu0 0.0
    %3701 = vmatmul.mubr.f32.gmra.mrb[0].mxu0 %v3557
    %v3702 = vpop.f32.mrb[0].mxu0
    %v3703 = vadd.f32 %v3628, %v3702
    %v3704 = vpop.f32.mrb[0].mxu0
    %3705 = vmatprep.mubr.f32.mxu0 0.0
    %3706 = vmatmul.mubr.f32.gmra.mrb[0].mxu0 %v3558
    %v3707 = vpop.f32.mrb[0].mxu0
    %v3708 = vadd.f32 %v3633, %v3707
    %v3709 = vpop.f32.mrb[0].mxu0
    %3710 = vdwg.mxu0
    %s3711 = scalar_lea.vmem [#allocation5], 80
    %v3712 = vld [vmem:[%s3711] sm:$0xff]
    %s3713 = scalar_lea.vmem [#allocation5], 88
    %v3714 = vld [vmem:[%s3713] sm:$0xff]
    %s3715 = scalar_lea.vmem [#allocation7], 1280
    %v3716 = vld [vmem:[%s3715] sm:$0xff]
    %v3717 = vld [vmem:[%s3715 + $0x8] sm:$0xff]
    %v3718 = vld [vmem:[%s3715 + $0x10] sm:$0xff]
    %v3719 = vld [vmem:[%s3715 + $0x18] sm:$0xff]
    %v3720 = vld [vmem:[%s3715 + $0x20] sm:$0xff]
    %v3721 = vld [vmem:[%s3715 + $0x28] sm:$0xff]
    %v3722 = vld [vmem:[%s3715 + $0x30] sm:$0xff]
    %v3723 = vld [vmem:[%s3715 + $0x38] sm:$0xff]
    %v3724 = vld [vmem:[%s3715 + $0x40] sm:$0xff]
    %v3725 = vld [vmem:[%s3715 + $0x48] sm:$0xff]
    %v3726 = vld [vmem:[%s3715 + $0x50] sm:$0xff]
    %v3727 = vld [vmem:[%s3715 + $0x58] sm:$0xff]
    %v3728 = vld [vmem:[%s3715 + $0x60] sm:$0xff]
    %v3729 = vld [vmem:[%s3715 + $0x68] sm:$0xff]
    %v3730 = vld [vmem:[%s3715 + $0x70] sm:$0xff]
    %v3731 = vld [vmem:[%s3715 + $0x78] sm:$0xff]
    %s3732 = scalar_lea.vmem [#allocation7], 1408
    %v3733 = vld [vmem:[%s3732] sm:$0xff]
    %v3734 = vld [vmem:[%s3732 + $0x8] sm:$0xff]
    %v3735 = vld [vmem:[%s3732 + $0x10] sm:$0xff]
    %v3736 = vld [vmem:[%s3732 + $0x18] sm:$0xff]
    %v3737 = vld [vmem:[%s3732 + $0x20] sm:$0xff]
    %v3738 = vld [vmem:[%s3732 + $0x28] sm:$0xff]
    %v3739 = vld [vmem:[%s3732 + $0x30] sm:$0xff]
    %v3740 = vld [vmem:[%s3732 + $0x38] sm:$0xff]
    %v3741 = vld [vmem:[%s3732 + $0x40] sm:$0xff]
    %v3742 = vld [vmem:[%s3732 + $0x48] sm:$0xff]
    %v3743 = vld [vmem:[%s3732 + $0x50] sm:$0xff]
    %v3744 = vld [vmem:[%s3732 + $0x58] sm:$0xff]
    %v3745 = vld [vmem:[%s3732 + $0x60] sm:$0xff]
    %v3746 = vld [vmem:[%s3732 + $0x68] sm:$0xff]
    %v3747 = vld [vmem:[%s3732 + $0x70] sm:$0xff]
    %v3748 = vld [vmem:[%s3732 + $0x78] sm:$0xff]
    %v3750 = vsel %vm113, %v3345, 0
    %3752 = vmatprep.subr.mxu0 0.0
    %3753 = vmatpush1.msra.mxu0 %v3712
    %3754 = vmatprep.subr.mxu0 0.0
    %3755 = vmatpush1.msra.mxu0 0.0
    %3756 = vmatprep.subr.mxu0 0.0
    %3757 = vmatpush1.msra.mxu0 0.0
    %3758 = vmatprep.subr.mxu0 0.0
    %3759 = vmatpush1.msra.mxu0 0.0
    %3760 = vmatprep.subr.mxu0 0.0
    %3761 = vmatpush1.msra.mxu0 0.0
    %3762 = vmatprep.subr.mxu0 0.0
    %3763 = vmatpush1.msra.mxu0 0.0
    %3764 = vmatprep.subr.mxu0 0.0
    %3765 = vmatpush1.msra.mxu0 0.0
    %3766 = vmatprep.subr.mxu0 0.0
    %3767 = vmatpush1.msra.mxu0 0.0
    %3768 = vmatprep.subr.mxu0 0.0
    %3769 = vmatpush1.msra.mxu0 0.0
    %3770 = vmatprep.subr.mxu0 0.0
    %3771 = vmatpush1.msra.mxu0 0.0
    %3772 = vmatprep.subr.mxu0 0.0
    %3773 = vmatpush1.msra.mxu0 0.0
    %3774 = vmatprep.subr.mxu0 0.0
    %3775 = vmatpush1.msra.mxu0 0.0
    %3776 = vmatprep.subr.mxu0 0.0
    %3777 = vmatpush1.msra.mxu0 0.0
    %3778 = vmatprep.subr.mxu0 0.0
    %3779 = vmatpush1.msra.mxu0 0.0
    %3780 = vmatprep.subr.mxu0 0.0
    %3781 = vmatpush1.msra.mxu0 0.0
    %3782 = vmatprep.subr.mxu0 0.0
    %3783 = vmatpush1.msra.mxu0 0.0
    %3784 = vmatprep.subr.mxu0 0.0
    %3785 = vmatpush1.msra.mxu0 0.0
    %3786 = vmatprep.subr.mxu0 0.0
    %3787 = vmatpush1.msra.mxu0 0.0
    %3788 = vmatprep.subr.mxu0 0.0
    %3789 = vmatpush1.msra.mxu0 0.0
    %3790 = vmatprep.subr.mxu0 0.0
    %3791 = vmatpush1.msra.mxu0 0.0
    %3792 = vmatprep.subr.mxu0 0.0
    %3793 = vmatpush1.msra.mxu0 0.0
    %3794 = vmatprep.subr.mxu0 0.0
    %3795 = vmatpush1.msra.mxu0 0.0
    %3796 = vmatprep.subr.mxu0 0.0
    %3797 = vmatpush1.msra.mxu0 0.0
    %3798 = vmatprep.subr.mxu0 0.0
    %3799 = vmatpush1.msra.mxu0 0.0
    %3800 = vmatprep.subr.mxu0 0.0
    %3801 = vmatpush1.msra.mxu0 0.0
    %3802 = vmatprep.subr.mxu0 0.0
    %3803 = vmatpush1.msra.mxu0 0.0
    %3804 = vmatprep.subr.mxu0 0.0
    %3805 = vmatpush1.msra.mxu0 0.0
    %3806 = vmatprep.subr.mxu0 0.0
    %3807 = vmatpush1.msra.mxu0 0.0
    %3808 = vmatprep.subr.mxu0 0.0
    %3809 = vmatpush1.msra.mxu0 0.0
    %3810 = vmatprep.subr.mxu0 0.0
    %3811 = vmatpush1.msra.mxu0 0.0
    %3812 = vmatprep.subr.mxu0 0.0
    %3813 = vmatpush1.msra.mxu0 0.0
    %3814 = vmatprep.subr.mxu0 0.0
    %3815 = vmatpush1.msra.mxu0 0.0
    %3816 = vmatprep.mubr.f32.mxu0 0.0
    %3817 = vmatmul.mubr.f32.gmra.mrb[0].mxu0 %v3750
    %v3818 = vpop.f32.mrb[0].mxu0
    %v3819 = vadd.f32 0.0, %v3818
    %v3820 = vpop.f32.mrb[0].mxu0
    %3821 = vdwg.mxu0
    %3822 = vmatprep.subr.mxu0 0.0
    %3823 = vmatpush1.msra.mxu0 %v3714
    %3824 = vmatprep.subr.mxu0 0.0
    %3825 = vmatpush1.msra.mxu0 0.0
    %3826 = vmatprep.subr.mxu0 0.0
    %3827 = vmatpush1.msra.mxu0 0.0
    %3828 = vmatprep.subr.mxu0 0.0
    %3829 = vmatpush1.msra.mxu0 0.0
    %3830 = vmatprep.subr.mxu0 0.0
    %3831 = vmatpush1.msra.mxu0 0.0
    %3832 = vmatprep.subr.mxu0 0.0
    %3833 = vmatpush1.msra.mxu0 0.0
    %3834 = vmatprep.subr.mxu0 0.0
    %3835 = vmatpush1.msra.mxu0 0.0
    %3836 = vmatprep.subr.mxu0 0.0
    %3837 = vmatpush1.msra.mxu0 0.0
    %3838 = vmatprep.subr.mxu0 0.0
    %3839 = vmatpush1.msra.mxu0 0.0
    %3840 = vmatprep.subr.mxu0 0.0
    %3841 = vmatpush1.msra.mxu0 0.0
    %3842 = vmatprep.subr.mxu0 0.0
    %3843 = vmatpush1.msra.mxu0 0.0
    %3844 = vmatprep.subr.mxu0 0.0
    %3845 = vmatpush1.msra.mxu0 0.0
    %3846 = vmatprep.subr.mxu0 0.0
    %3847 = vmatpush1.msra.mxu0 0.0
    %3848 = vmatprep.subr.mxu0 0.0
    %3849 = vmatpush1.msra.mxu0 0.0
    %3850 = vmatprep.subr.mxu0 0.0
    %3851 = vmatpush1.msra.mxu0 0.0
    %3852 = vmatprep.subr.mxu0 0.0
    %3853 = vmatpush1.msra.mxu0 0.0
    %3854 = vmatprep.subr.mxu0 0.0
    %3855 = vmatpush1.msra.mxu0 0.0
    %3856 = vmatprep.subr.mxu0 0.0
    %3857 = vmatpush1.msra.mxu0 0.0
    %3858 = vmatprep.subr.mxu0 0.0
    %3859 = vmatpush1.msra.mxu0 0.0
    %3860 = vmatprep.subr.mxu0 0.0
    %3861 = vmatpush1.msra.mxu0 0.0
    %3862 = vmatprep.subr.mxu0 0.0
    %3863 = vmatpush1.msra.mxu0 0.0
    %3864 = vmatprep.subr.mxu0 0.0
    %3865 = vmatpush1.msra.mxu0 0.0
    %3866 = vmatprep.subr.mxu0 0.0
    %3867 = vmatpush1.msra.mxu0 0.0
    %3868 = vmatprep.subr.mxu0 0.0
    %3869 = vmatpush1.msra.mxu0 0.0
    %3870 = vmatprep.subr.mxu0 0.0
    %3871 = vmatpush1.msra.mxu0 0.0
    %3872 = vmatprep.subr.mxu0 0.0
    %3873 = vmatpush1.msra.mxu0 0.0
    %3874 = vmatprep.subr.mxu0 0.0
    %3875 = vmatpush1.msra.mxu0 0.0
    %3876 = vmatprep.subr.mxu0 0.0
    %3877 = vmatpush1.msra.mxu0 0.0
    %3878 = vmatprep.subr.mxu0 0.0
    %3879 = vmatpush1.msra.mxu0 0.0
    %3880 = vmatprep.subr.mxu0 0.0
    %3881 = vmatpush1.msra.mxu0 0.0
    %3882 = vmatprep.subr.mxu0 0.0
    %3883 = vmatpush1.msra.mxu0 0.0
    %3884 = vmatprep.subr.mxu0 0.0
    %3885 = vmatpush1.msra.mxu0 0.0
    %3886 = vmatprep.mubr.f32.mxu0 0.0
    %3887 = vmatmul.mubr.f32.gmra.mrb[0].mxu0 %v3750
    %v3888 = vpop.f32.mrb[0].mxu0
    %v3889 = vadd.f32 0.0, %v3888
    %v3890 = vpop.f32.mrb[0].mxu0
    %3891 = vdwg.mxu0
    %v3892 = vsub.f32 %v3889, %v3819
    %v3893 = vmul.f32 %v3892, 10.0
    %vm3894 = vcmp.lt.f32.partialorder %v3893, 0.0
    %v3895 = vsel %vm3894, -1.0, 1.0
    %v3896 = vand.u32 2147483647, %v3893
    %vm3897 = vcmp.gt.f32.partialorder %v3896, 2.4142137
    %vm3898 = vcmp.gt.f32.partialorder %v3896, 0.41421357
    %v3899 = vsel %vm3898, 0.7853982, 0.0
    %v3900 = vsel %vm3897, 1.5707964, %v3899
    %v3901 = vadd.f32 %v3896, 1e-30
    %v3902 = vrcp.pop %v3901
    %v3903 = vmul.f32 %v3901, %v3902
    %v3904 = vsub.f32 2.0, %v3903
    %v3905 = vmul.f32 %v3902, %v3904
    %v3906 = vadd.f32 %v3896, 1.0
    %v3907 = vrcp.pop %v3906
    %v3908 = vmul.f32 %v3906, %v3907
    %v3909 = vsub.f32 2.0, %v3908
    %v3910 = vmul.f32 %v3907, %v3909
    %v3911 = vsub.f32 0.0, %v3905
    %v3912 = vsub.f32 %v3896, 1.0
    %v3913 = vmul.f32 %v3912, %v3910
    %v3914 = vsel %vm3898, %v3913, %v3896
    %v3915 = vsel %vm3897, %v3911, %v3914
    %v3916 = vmul.f32 %v3915, %v3915
    %v3917 = vmul.f32 %v3916, 0.080537446
    %v3918 = vsub.f32 %v3917, 0.13877685
    %v3919 = vmul.f32 %v3918, %v3916
    %v3920 = vadd.f32 %v3919, 0.19977711
    %v3921 = vmul.f32 %v3920, %v3916
    %v3922 = vsub.f32 %v3921, 0.3333295
    %v3923 = vmul.f32 %v3922, %v3916
    %v3924 = vmul.f32 %v3923, %v3915
    %v3925 = vadd.f32 %v3924, %v3915
    %v3926 = vadd.f32 %v3900, %v3925
    %v3927 = vmul.f32 %v3895, %v3926
    %v3928 = vmul.f32 %v3927, 0.31830987
    %v3929 = vadd.f32 %v3928, 0.5
    %v3930 = vmul.f32 %v3929, %v3819
    %v3931 = vsub.f32 1.0, %v3929
    %v3932 = vmul.f32 %v3931, %v3889
    %v3933 = vadd.f32 %v3930, %v3932
    %v3934 = vadd.f32 %v3819, %v3889
    %3935 = vmatprep.subr.mxu0 0.0
    %3936 = vmatpush1.msra.mxu0 %v3716
    %3937 = vmatprep.subr.mxu0 0.0
    %3938 = vmatpush1.msra.mxu0 %v3717
    %3939 = vmatprep.subr.mxu0 0.0
    %3940 = vmatpush1.msra.mxu0 %v3718
    %3941 = vmatprep.subr.mxu0 0.0
    %3942 = vmatpush1.msra.mxu0 %v3719
    %3943 = vmatprep.subr.mxu0 0.0
    %3944 = vmatpush1.msra.mxu0 %v3720
    %3945 = vmatprep.subr.mxu0 0.0
    %3946 = vmatpush1.msra.mxu0 %v3721
    %3947 = vmatprep.subr.mxu0 0.0
    %3948 = vmatpush1.msra.mxu0 %v3722
    %3949 = vmatprep.subr.mxu0 0.0
    %3950 = vmatpush1.msra.mxu0 %v3723
    %3951 = vmatprep.subr.mxu0 0.0
    %3952 = vmatpush1.msra.mxu0 %v3724
    %3953 = vmatprep.subr.mxu0 0.0
    %3954 = vmatpush1.msra.mxu0 %v3725
    %3955 = vmatprep.subr.mxu0 0.0
    %3956 = vmatpush1.msra.mxu0 %v3726
    %3957 = vmatprep.subr.mxu0 0.0
    %3958 = vmatpush1.msra.mxu0 %v3727
    %3959 = vmatprep.subr.mxu0 0.0
    %3960 = vmatpush1.msra.mxu0 %v3728
    %3961 = vmatprep.subr.mxu0 0.0
    %3962 = vmatpush1.msra.mxu0 %v3729
    %3963 = vmatprep.subr.mxu0 0.0
    %3964 = vmatpush1.msra.mxu0 %v3730
    %3965 = vmatprep.subr.mxu0 0.0
    %3966 = vmatpush1.msra.mxu0 %v3731
    %3967 = vmatprep.subr.mxu0 0.0
    %3968 = vmatpush1.msra.mxu0 0.0
    %3969 = vmatprep.subr.mxu0 0.0
    %3970 = vmatpush1.msra.mxu0 0.0
    %3971 = vmatprep.subr.mxu0 0.0
    %3972 = vmatpush1.msra.mxu0 0.0
    %3973 = vmatprep.subr.mxu0 0.0
    %3974 = vmatpush1.msra.mxu0 0.0
    %3975 = vmatprep.subr.mxu0 0.0
    %3976 = vmatpush1.msra.mxu0 0.0
    %3977 = vmatprep.subr.mxu0 0.0
    %3978 = vmatpush1.msra.mxu0 0.0
    %3979 = vmatprep.subr.mxu0 0.0
    %3980 = vmatpush1.msra.mxu0 0.0
    %3981 = vmatprep.subr.mxu0 0.0
    %3982 = vmatpush1.msra.mxu0 0.0
    %3983 = vmatprep.subr.mxu0 0.0
    %3984 = vmatpush1.msra.mxu0 0.0
    %3985 = vmatprep.subr.mxu0 0.0
    %3986 = vmatpush1.msra.mxu0 0.0
    %3987 = vmatprep.subr.mxu0 0.0
    %3988 = vmatpush1.msra.mxu0 0.0
    %3989 = vmatprep.subr.mxu0 0.0
    %3990 = vmatpush1.msra.mxu0 0.0
    %3991 = vmatprep.subr.mxu0 0.0
    %3992 = vmatpush1.msra.mxu0 0.0
    %3993 = vmatprep.subr.mxu0 0.0
    %3994 = vmatpush1.msra.mxu0 0.0
    %3995 = vmatprep.subr.mxu0 0.0
    %3996 = vmatpush1.msra.mxu0 0.0
    %3997 = vmatprep.subr.mxu0 0.0
    %3998 = vmatpush1.msra.mxu0 0.0
    %3999 = vmatprep.mubr.f32.mxu0 0.0
    %4000 = vmatmul.mubr.f32.gmra.mrb[0].mxu0 %v3934
    %v4001 = vpop.f32.mrb[0].mxu0
    %v4002 = vadd.f32 0.0, %v4001
    %v4003 = vpop.f32.mrb[0].mxu0
    %4004 = vdwg.mxu0
    %4005 = vmatprep.subr.mxu0 0.0
    %4006 = vmatpush1.msra.mxu0 %v3733
    %4007 = vmatprep.subr.mxu0 0.0
    %4008 = vmatpush1.msra.mxu0 %v3734
    %4009 = vmatprep.subr.mxu0 0.0
    %4010 = vmatpush1.msra.mxu0 %v3735
    %4011 = vmatprep.subr.mxu0 0.0
    %4012 = vmatpush1.msra.mxu0 %v3736
    %4013 = vmatprep.subr.mxu0 0.0
    %4014 = vmatpush1.msra.mxu0 %v3737
    %4015 = vmatprep.subr.mxu0 0.0
    %4016 = vmatpush1.msra.mxu0 %v3738
    %4017 = vmatprep.subr.mxu0 0.0
    %4018 = vmatpush1.msra.mxu0 %v3739
    %4019 = vmatprep.subr.mxu0 0.0
    %4020 = vmatpush1.msra.mxu0 %v3740
    %4021 = vmatprep.subr.mxu0 0.0
    %4022 = vmatpush1.msra.mxu0 %v3741
    %4023 = vmatprep.subr.mxu0 0.0
    %4024 = vmatpush1.msra.mxu0 %v3742
    %4025 = vmatprep.subr.mxu0 0.0
    %4026 = vmatpush1.msra.mxu0 %v3743
    %4027 = vmatprep.subr.mxu0 0.0
    %4028 = vmatpush1.msra.mxu0 %v3744
    %4029 = vmatprep.subr.mxu0 0.0
    %4030 = vmatpush1.msra.mxu0 %v3745
    %4031 = vmatprep.subr.mxu0 0.0
    %4032 = vmatpush1.msra.mxu0 %v3746
    %4033 = vmatprep.subr.mxu0 0.0
    %4034 = vmatpush1.msra.mxu0 %v3747
    %4035 = vmatprep.subr.mxu0 0.0
    %4036 = vmatpush1.msra.mxu0 %v3748
    %4037 = vmatprep.subr.mxu0 0.0
    %4038 = vmatpush1.msra.mxu0 0.0
    %4039 = vmatprep.subr.mxu0 0.0
    %4040 = vmatpush1.msra.mxu0 0.0
    %4041 = vmatprep.subr.mxu0 0.0
    %4042 = vmatpush1.msra.mxu0 0.0
    %4043 = vmatprep.subr.mxu0 0.0
    %4044 = vmatpush1.msra.mxu0 0.0
    %4045 = vmatprep.subr.mxu0 0.0
    %4046 = vmatpush1.msra.mxu0 0.0
    %4047 = vmatprep.subr.mxu0 0.0
    %4048 = vmatpush1.msra.mxu0 0.0
    %4049 = vmatprep.subr.mxu0 0.0
    %4050 = vmatpush1.msra.mxu0 0.0
    %4051 = vmatprep.subr.mxu0 0.0
    %4052 = vmatpush1.msra.mxu0 0.0
    %4053 = vmatprep.subr.mxu0 0.0
    %4054 = vmatpush1.msra.mxu0 0.0
    %4055 = vmatprep.subr.mxu0 0.0
    %4056 = vmatpush1.msra.mxu0 0.0
    %4057 = vmatprep.subr.mxu0 0.0
    %4058 = vmatpush1.msra.mxu0 0.0
    %4059 = vmatprep.subr.mxu0 0.0
    %4060 = vmatpush1.msra.mxu0 0.0
    %4061 = vmatprep.subr.mxu0 0.0
    %4062 = vmatpush1.msra.mxu0 0.0
    %4063 = vmatprep.subr.mxu0 0.0
    %4064 = vmatpush1.msra.mxu0 0.0
    %4065 = vmatprep.subr.mxu0 0.0
    %4066 = vmatpush1.msra.mxu0 0.0
    %4067 = vmatprep.subr.mxu0 0.0
    %4068 = vmatpush1.msra.mxu0 0.0
    %4069 = vmatprep.mubr.f32.mxu0 0.0
    %4070 = vmatmul.mubr.f32.gmra.mrb[0].mxu0 %v3933
    %v4071 = vpop.f32.mrb[0].mxu0
    %v4072 = vadd.f32 %v4002, %v4071
    %v4073 = vpop.f32.mrb[0].mxu0
    %4074 = vdwg.mxu0
    %v4076 = vsel %vm113, %v3703, 0
    %v4079 = vsel %vm113, %v3708, 0
    %4081 = vmatprep.subr.mxu0 0.0
    %4082 = vmatpush1.msra.mxu0 %v3712
    %4083 = vmatprep.subr.mxu0 0.0
    %4084 = vmatpush1.msra.mxu0 0.0
    %4085 = vmatprep.subr.mxu0 0.0
    %4086 = vmatpush1.msra.mxu0 0.0
    %4087 = vmatprep.subr.mxu0 0.0
    %4088 = vmatpush1.msra.mxu0 0.0
    %4089 = vmatprep.subr.mxu0 0.0
    %4090 = vmatpush1.msra.mxu0 0.0
    %4091 = vmatprep.subr.mxu0 0.0
    %4092 = vmatpush1.msra.mxu0 0.0
    %4093 = vmatprep.subr.mxu0 0.0
    %4094 = vmatpush1.msra.mxu0 0.0
    %4095 = vmatprep.subr.mxu0 0.0
    %4096 = vmatpush1.msra.mxu0 0.0
    %4097 = vmatprep.subr.mxu0 0.0
    %4098 = vmatpush1.msra.mxu0 0.0
    %4099 = vmatprep.subr.mxu0 0.0
    %4100 = vmatpush1.msra.mxu0 0.0
    %4101 = vmatprep.subr.mxu0 0.0
    %4102 = vmatpush1.msra.mxu0 0.0
    %4103 = vmatprep.subr.mxu0 0.0
    %4104 = vmatpush1.msra.mxu0 0.0
    %4105 = vmatprep.subr.mxu0 0.0
    %4106 = vmatpush1.msra.mxu0 0.0
    %4107 = vmatprep.subr.mxu0 0.0
    %4108 = vmatpush1.msra.mxu0 0.0
    %4109 = vmatprep.subr.mxu0 0.0
    %4110 = vmatpush1.msra.mxu0 0.0
    %4111 = vmatprep.subr.mxu0 0.0
    %4112 = vmatpush1.msra.mxu0 0.0
    %4113 = vmatprep.subr.mxu0 0.0
    %4114 = vmatpush1.msra.mxu0 0.0
    %4115 = vmatprep.subr.mxu0 0.0
    %4116 = vmatpush1.msra.mxu0 0.0
    %4117 = vmatprep.subr.mxu0 0.0
    %4118 = vmatpush1.msra.mxu0 0.0
    %4119 = vmatprep.subr.mxu0 0.0
    %4120 = vmatpush1.msra.mxu0 0.0
    %4121 = vmatprep.subr.mxu0 0.0
    %4122 = vmatpush1.msra.mxu0 0.0
    %4123 = vmatprep.subr.mxu0 0.0
    %4124 = vmatpush1.msra.mxu0 0.0
    %4125 = vmatprep.subr.mxu0 0.0
    %4126 = vmatpush1.msra.mxu0 0.0
    %4127 = vmatprep.subr.mxu0 0.0
    %4128 = vmatpush1.msra.mxu0 0.0
    %4129 = vmatprep.subr.mxu0 0.0
    %4130 = vmatpush1.msra.mxu0 0.0
    %4131 = vmatprep.subr.mxu0 0.0
    %4132 = vmatpush1.msra.mxu0 0.0
    %4133 = vmatprep.subr.mxu0 0.0
    %4134 = vmatpush1.msra.mxu0 0.0
    %4135 = vmatprep.subr.mxu0 0.0
    %4136 = vmatpush1.msra.mxu0 0.0
    %4137 = vmatprep.subr.mxu0 0.0
    %4138 = vmatpush1.msra.mxu0 0.0
    %4139 = vmatprep.subr.mxu0 0.0
    %4140 = vmatpush1.msra.mxu0 0.0
    %4141 = vmatprep.subr.mxu0 0.0
    %4142 = vmatpush1.msra.mxu0 0.0
    %4143 = vmatprep.subr.mxu0 0.0
    %4144 = vmatpush1.msra.mxu0 0.0
    %4145 = vmatprep.mubr.f32.mxu0 0.0
    %4146 = vmatmul.mubr.f32.gmra.mrb[0].mxu0 %v4076
    %v4147 = vpop.f32.mrb[0].mxu0
    %v4148 = vadd.f32 0.0, %v4147
    %v4149 = vpop.f32.mrb[0].mxu0
    %4150 = vmatprep.mubr.f32.mxu0 0.0
    %4151 = vmatmul.mubr.f32.gmra.mrb[0].mxu0 %v4079
    %v4152 = vpop.f32.mrb[0].mxu0
    %v4153 = vadd.f32 0.0, %v4152
    %v4154 = vpop.f32.mrb[0].mxu0
    %4155 = vdwg.mxu0
    %4156 = vmatprep.subr.mxu0 0.0
    %4157 = vmatpush1.msra.mxu0 %v3714
    %4158 = vmatprep.subr.mxu0 0.0
    %4159 = vmatpush1.msra.mxu0 0.0
    %4160 = vmatprep.subr.mxu0 0.0
    %4161 = vmatpush1.msra.mxu0 0.0
    %4162 = vmatprep.subr.mxu0 0.0
    %4163 = vmatpush1.msra.mxu0 0.0
    %4164 = vmatprep.subr.mxu0 0.0
    %4165 = vmatpush1.msra.mxu0 0.0
    %4166 = vmatprep.subr.mxu0 0.0
    %4167 = vmatpush1.msra.mxu0 0.0
    %4168 = vmatprep.subr.mxu0 0.0
    %4169 = vmatpush1.msra.mxu0 0.0
    %4170 = vmatprep.subr.mxu0 0.0
    %4171 = vmatpush1.msra.mxu0 0.0
    %4172 = vmatprep.subr.mxu0 0.0
    %4173 = vmatpush1.msra.mxu0 0.0
    %4174 = vmatprep.subr.mxu0 0.0
    %4175 = vmatpush1.msra.mxu0 0.0
    %4176 = vmatprep.subr.mxu0 0.0
    %4177 = vmatpush1.msra.mxu0 0.0
    %4178 = vmatprep.subr.mxu0 0.0
    %4179 = vmatpush1.msra.mxu0 0.0
    %4180 = vmatprep.subr.mxu0 0.0
    %4181 = vmatpush1.msra.mxu0 0.0
    %4182 = vmatprep.subr.mxu0 0.0
    %4183 = vmatpush1.msra.mxu0 0.0
    %4184 = vmatprep.subr.mxu0 0.0
    %4185 = vmatpush1.msra.mxu0 0.0
    %4186 = vmatprep.subr.mxu0 0.0
    %4187 = vmatpush1.msra.mxu0 0.0
    %4188 = vmatprep.subr.mxu0 0.0
    %4189 = vmatpush1.msra.mxu0 0.0
    %4190 = vmatprep.subr.mxu0 0.0
    %4191 = vmatpush1.msra.mxu0 0.0
    %4192 = vmatprep.subr.mxu0 0.0
    %4193 = vmatpush1.msra.mxu0 0.0
    %4194 = vmatprep.subr.mxu0 0.0
    %4195 = vmatpush1.msra.mxu0 0.0
    %4196 = vmatprep.subr.mxu0 0.0
    %4197 = vmatpush1.msra.mxu0 0.0
    %4198 = vmatprep.subr.mxu0 0.0
    %4199 = vmatpush1.msra.mxu0 0.0
    %4200 = vmatprep.subr.mxu0 0.0
    %4201 = vmatpush1.msra.mxu0 0.0
    %4202 = vmatprep.subr.mxu0 0.0
    %4203 = vmatpush1.msra.mxu0 0.0
    %4204 = vmatprep.subr.mxu0 0.0
    %4205 = vmatpush1.msra.mxu0 0.0
    %4206 = vmatprep.subr.mxu0 0.0
    %4207 = vmatpush1.msra.mxu0 0.0
    %4208 = vmatprep.subr.mxu0 0.0
    %4209 = vmatpush1.msra.mxu0 0.0
    %4210 = vmatprep.subr.mxu0 0.0
    %4211 = vmatpush1.msra.mxu0 0.0
    %4212 = vmatprep.subr.mxu0 0.0
    %4213 = vmatpush1.msra.mxu0 0.0
    %4214 = vmatprep.subr.mxu0 0.0
    %4215 = vmatpush1.msra.mxu0 0.0
    %4216 = vmatprep.subr.mxu0 0.0
    %4217 = vmatpush1.msra.mxu0 0.0
    %4218 = vmatprep.subr.mxu0 0.0
    %4219 = vmatpush1.msra.mxu0 0.0
    %4220 = vmatprep.mubr.f32.mxu0 0.0
    %4221 = vmatmul.mubr.f32.gmra.mrb[0].mxu0 %v4076
    %v4222 = vpop.f32.mrb[0].mxu0
    %v4223 = vadd.f32 0.0, %v4222
    %v4224 = vpop.f32.mrb[0].mxu0
    %4225 = vmatprep.mubr.f32.mxu0 0.0
    %4226 = vmatmul.mubr.f32.gmra.mrb[0].mxu0 %v4079
    %v4227 = vpop.f32.mrb[0].mxu0
    %v4228 = vadd.f32 0.0, %v4227
    %v4229 = vpop.f32.mrb[0].mxu0
    %4230 = vdwg.mxu0
    %v4233 = vunpack.c.l.s4 1966171168
    %v4234 = vunpack.c.0.s8 %v4233
    %v4235 = vlaneseq
    %v4236 = vshrl.u32 %v4235, 7
    %v4237 = vsub.s32 %v4234, %v4236
    %v4238 = vrot.slane %v3929, %v4237
    %v4239 = vcombine.high %v4238, %v4238
    %v4241 = vunpack.c.l.s4 1966171168
    %v4242 = vunpack.c.0.s8 %v4241
    %v4243 = vlaneseq
    %v4244 = vshrl.u32 %v4243, 7
    %v4245 = vsub.s32 %v4242, %v4244
    %v4246 = vrot.slane %v4238, %v4245
    %v4248 = vunpack.c.l.s4 1966171168
    %v4249 = vunpack.c.0.s8 %v4248
    %v4250 = vlaneseq
    %v4251 = vshrl.u32 %v4250, 7
    %v4252 = vsub.s32 %v4249, %v4251
    %v4253 = vrot.slane %v4239, %v4252
    %v4256 = vlaneseq
    %v4257 = vshrl.u32 %v4256, 7
    %v4258 = vsub.s32 0, %v4257
    %v4259 = vrot.slane %v4246, %v4258
    %v4260 = vlaneseq
    %v4261 = vshrl.u32 %v4260, 7
    %v4262 = vsub.s32 0, %v4261
    %v4263 = vrot.slane %v4253, %v4262
    %v4266 = vmul.f32 %v4259, %v4148
    %v4267 = vmul.f32 %v4263, %v4153
    %v4268 = vsub.f32 1.0, %v4246
    %v4269 = vsub.f32 1.0, %v4253
    %v4272 = vlaneseq
    %v4273 = vshrl.u32 %v4272, 7
    %v4274 = vsub.s32 0, %v4273
    %v4275 = vrot.slane %v4268, %v4274
    %v4276 = vlaneseq
    %v4277 = vshrl.u32 %v4276, 7
    %v4278 = vsub.s32 0, %v4277
    %v4279 = vrot.slane %v4269, %v4278
    %v4282 = vmul.f32 %v4275, %v4223
    %v4283 = vmul.f32 %v4279, %v4228
    %v4284 = vadd.f32 %v4266, %v4282
    %v4285 = vadd.f32 %v4267, %v4283
    %v4286 = vadd.f32 %v4148, %v4223
    %v4287 = vadd.f32 %v4153, %v4228
    %4288 = vmatprep.subr.mxu0 0.0
    %4289 = vmatpush1.msra.mxu0 %v3716
    %4290 = vmatprep.subr.mxu0 0.0
    %4291 = vmatpush1.msra.mxu0 %v3717
    %4292 = vmatprep.subr.mxu0 0.0
    %4293 = vmatpush1.msra.mxu0 %v3718
    %4294 = vmatprep.subr.mxu0 0.0
    %4295 = vmatpush1.msra.mxu0 %v3719
    %4296 = vmatprep.subr.mxu0 0.0
    %4297 = vmatpush1.msra.mxu0 %v3720
    %4298 = vmatprep.subr.mxu0 0.0
    %4299 = vmatpush1.msra.mxu0 %v3721
    %4300 = vmatprep.subr.mxu0 0.0
    %4301 = vmatpush1.msra.mxu0 %v3722
    %4302 = vmatprep.subr.mxu0 0.0
    %4303 = vmatpush1.msra.mxu0 %v3723
    %4304 = vmatprep.subr.mxu0 0.0
    %4305 = vmatpush1.msra.mxu0 %v3724
    %4306 = vmatprep.subr.mxu0 0.0
    %4307 = vmatpush1.msra.mxu0 %v3725
    %4308 = vmatprep.subr.mxu0 0.0
    %4309 = vmatpush1.msra.mxu0 %v3726
    %4310 = vmatprep.subr.mxu0 0.0
    %4311 = vmatpush1.msra.mxu0 %v3727
    %4312 = vmatprep.subr.mxu0 0.0
    %4313 = vmatpush1.msra.mxu0 %v3728
    %4314 = vmatprep.subr.mxu0 0.0
    %4315 = vmatpush1.msra.mxu0 %v3729
    %4316 = vmatprep.subr.mxu0 0.0
    %4317 = vmatpush1.msra.mxu0 %v3730
    %4318 = vmatprep.subr.mxu0 0.0
    %4319 = vmatpush1.msra.mxu0 %v3731
    %4320 = vmatprep.subr.mxu0 0.0
    %4321 = vmatpush1.msra.mxu0 0.0
    %4322 = vmatprep.subr.mxu0 0.0
    %4323 = vmatpush1.msra.mxu0 0.0
    %4324 = vmatprep.subr.mxu0 0.0
    %4325 = vmatpush1.msra.mxu0 0.0
    %4326 = vmatprep.subr.mxu0 0.0
    %4327 = vmatpush1.msra.mxu0 0.0
    %4328 = vmatprep.subr.mxu0 0.0
    %4329 = vmatpush1.msra.mxu0 0.0
    %4330 = vmatprep.subr.mxu0 0.0
    %4331 = vmatpush1.msra.mxu0 0.0
    %4332 = vmatprep.subr.mxu0 0.0
    %4333 = vmatpush1.msra.mxu0 0.0
    %4334 = vmatprep.subr.mxu0 0.0
    %4335 = vmatpush1.msra.mxu0 0.0
    %4336 = vmatprep.subr.mxu0 0.0
    %4337 = vmatpush1.msra.mxu0 0.0
    %4338 = vmatprep.subr.mxu0 0.0
    %4339 = vmatpush1.msra.mxu0 0.0
    %4340 = vmatprep.subr.mxu0 0.0
    %4341 = vmatpush1.msra.mxu0 0.0
    %4342 = vmatprep.subr.mxu0 0.0
    %4343 = vmatpush1.msra.mxu0 0.0
    %4344 = vmatprep.subr.mxu0 0.0
    %4345 = vmatpush1.msra.mxu0 0.0
    %4346 = vmatprep.subr.mxu0 0.0
    %4347 = vmatpush1.msra.mxu0 0.0
    %4348 = vmatprep.subr.mxu0 0.0
    %4349 = vmatpush1.msra.mxu0 0.0
    %4350 = vmatprep.subr.mxu0 0.0
    %4351 = vmatpush1.msra.mxu0 0.0
    %4352 = vmatprep.mubr.f32.mxu0 0.0
    %4353 = vmatmul.mubr.f32.gmra.mrb[0].mxu0 %v4286
    %v4354 = vpop.f32.mrb[0].mxu0
    %v4355 = vadd.f32 0.0, %v4354
    %v4356 = vpop.f32.mrb[0].mxu0
    %4357 = vmatprep.mubr.f32.mxu0 0.0
    %4358 = vmatmul.mubr.f32.gmra.mrb[0].mxu0 %v4287
    %v4359 = vpop.f32.mrb[0].mxu0
    %v4360 = vadd.f32 0.0, %v4359
    %v4361 = vpop.f32.mrb[0].mxu0
    %4362 = vdwg.mxu0
    %4363 = vmatprep.subr.mxu0 0.0
    %4364 = vmatpush1.msra.mxu0 %v3733
    %4365 = vmatprep.subr.mxu0 0.0
    %4366 = vmatpush1.msra.mxu0 %v3734
    %4367 = vmatprep.subr.mxu0 0.0
    %4368 = vmatpush1.msra.mxu0 %v3735
    %4369 = vmatprep.subr.mxu0 0.0
    %4370 = vmatpush1.msra.mxu0 %v3736
    %4371 = vmatprep.subr.mxu0 0.0
    %4372 = vmatpush1.msra.mxu0 %v3737
    %4373 = vmatprep.subr.mxu0 0.0
    %4374 = vmatpush1.msra.mxu0 %v3738
    %4375 = vmatprep.subr.mxu0 0.0
    %4376 = vmatpush1.msra.mxu0 %v3739
    %4377 = vmatprep.subr.mxu0 0.0
    %4378 = vmatpush1.msra.mxu0 %v3740
    %4379 = vmatprep.subr.mxu0 0.0
    %4380 = vmatpush1.msra.mxu0 %v3741
    %4381 = vmatprep.subr.mxu0 0.0
    %4382 = vmatpush1.msra.mxu0 %v3742
    %4383 = vmatprep.subr.mxu0 0.0
    %4384 = vmatpush1.msra.mxu0 %v3743
    %4385 = vmatprep.subr.mxu0 0.0
    %4386 = vmatpush1.msra.mxu0 %v3744
    %4387 = vmatprep.subr.mxu0 0.0
    %4388 = vmatpush1.msra.mxu0 %v3745
    %4389 = vmatprep.subr.mxu0 0.0
    %4390 = vmatpush1.msra.mxu0 %v3746
    %4391 = vmatprep.subr.mxu0 0.0
    %4392 = vmatpush1.msra.mxu0 %v3747
    %4393 = vmatprep.subr.mxu0 0.0
    %4394 = vmatpush1.msra.mxu0 %v3748
    %4395 = vmatprep.subr.mxu0 0.0
    %4396 = vmatpush1.msra.mxu0 0.0
    %4397 = vmatprep.subr.mxu0 0.0
    %4398 = vmatpush1.msra.mxu0 0.0
    %4399 = vmatprep.subr.mxu0 0.0
    %4400 = vmatpush1.msra.mxu0 0.0
    %4401 = vmatprep.subr.mxu0 0.0
    %4402 = vmatpush1.msra.mxu0 0.0
    %4403 = vmatprep.subr.mxu0 0.0
    %4404 = vmatpush1.msra.mxu0 0.0
    %4405 = vmatprep.subr.mxu0 0.0
    %4406 = vmatpush1.msra.mxu0 0.0
    %4407 = vmatprep.subr.mxu0 0.0
    %4408 = vmatpush1.msra.mxu0 0.0
    %4409 = vmatprep.subr.mxu0 0.0
    %4410 = vmatpush1.msra.mxu0 0.0
    %4411 = vmatprep.subr.mxu0 0.0
    %4412 = vmatpush1.msra.mxu0 0.0
    %4413 = vmatprep.subr.mxu0 0.0
    %4414 = vmatpush1.msra.mxu0 0.0
    %4415 = vmatprep.subr.mxu0 0.0
    %4416 = vmatpush1.msra.mxu0 0.0
    %4417 = vmatprep.subr.mxu0 0.0
    %4418 = vmatpush1.msra.mxu0 0.0
    %4419 = vmatprep.subr.mxu0 0.0
    %4420 = vmatpush1.msra.mxu0 0.0
    %4421 = vmatprep.subr.mxu0 0.0
    %4422 = vmatpush1.msra.mxu0 0.0
    %4423 = vmatprep.subr.mxu0 0.0
    %4424 = vmatpush1.msra.mxu0 0.0
    %4425 = vmatprep.subr.mxu0 0.0
    %4426 = vmatpush1.msra.mxu0 0.0
    %4427 = vmatprep.mubr.f32.mxu0 0.0
    %4428 = vmatmul.mubr.f32.gmra.mrb[0].mxu0 %v4284
    %v4429 = vpop.f32.mrb[0].mxu0
    %v4430 = vadd.f32 %v4355, %v4429
    %v4431 = vpop.f32.mrb[0].mxu0
    %4432 = vmatprep.mubr.f32.mxu0 0.0
    %4433 = vmatmul.mubr.f32.gmra.mrb[0].mxu0 %v4285
    %v4434 = vpop.f32.mrb[0].mxu0
    %v4435 = vadd.f32 %v4360, %v4434
    %v4436 = vpop.f32.mrb[0].mxu0
    %4437 = vdwg.mxu0
    %s4438 = scalar_lea.vmem [#allocation5], 96
    %v4439 = vld [vmem:[%s4438] sm:$0xff]
    %s4440 = scalar_lea.vmem [#allocation5], 104
    %v4441 = vld [vmem:[%s4440] sm:$0xff]
    %s4442 = scalar_lea.vmem [#allocation7], 1536
    %v4443 = vld [vmem:[%s4442] sm:$0xff]
    %v4444 = vld [vmem:[%s4442 + $0x8] sm:$0xff]
    %v4445 = vld [vmem:[%s4442 + $0x10] sm:$0xff]
    %v4446 = vld [vmem:[%s4442 + $0x18] sm:$0xff]
    %v4447 = vld [vmem:[%s4442 + $0x20] sm:$0xff]
    %v4448 = vld [vmem:[%s4442 + $0x28] sm:$0xff]
    %v4449 = vld [vmem:[%s4442 + $0x30] sm:$0xff]
    %v4450 = vld [vmem:[%s4442 + $0x38] sm:$0xff]
    %v4451 = vld [vmem:[%s4442 + $0x40] sm:$0xff]
    %v4452 = vld [vmem:[%s4442 + $0x48] sm:$0xff]
    %v4453 = vld [vmem:[%s4442 + $0x50] sm:$0xff]
    %v4454 = vld [vmem:[%s4442 + $0x58] sm:$0xff]
    %v4455 = vld [vmem:[%s4442 + $0x60] sm:$0xff]
    %v4456 = vld [vmem:[%s4442 + $0x68] sm:$0xff]
    %v4457 = vld [vmem:[%s4442 + $0x70] sm:$0xff]
    %v4458 = vld [vmem:[%s4442 + $0x78] sm:$0xff]
    %s4459 = scalar_lea.vmem [#allocation7], 1664
    %v4460 = vld [vmem:[%s4459] sm:$0xff]
    %v4461 = vld [vmem:[%s4459 + $0x8] sm:$0xff]
    %v4462 = vld [vmem:[%s4459 + $0x10] sm:$0xff]
    %v4463 = vld [vmem:[%s4459 + $0x18] sm:$0xff]
    %v4464 = vld [vmem:[%s4459 + $0x20] sm:$0xff]
    %v4465 = vld [vmem:[%s4459 + $0x28] sm:$0xff]
    %v4466 = vld [vmem:[%s4459 + $0x30] sm:$0xff]
    %v4467 = vld [vmem:[%s4459 + $0x38] sm:$0xff]
    %v4468 = vld [vmem:[%s4459 + $0x40] sm:$0xff]
    %v4469 = vld [vmem:[%s4459 + $0x48] sm:$0xff]
    %v4470 = vld [vmem:[%s4459 + $0x50] sm:$0xff]
    %v4471 = vld [vmem:[%s4459 + $0x58] sm:$0xff]
    %v4472 = vld [vmem:[%s4459 + $0x60] sm:$0xff]
    %v4473 = vld [vmem:[%s4459 + $0x68] sm:$0xff]
    %v4474 = vld [vmem:[%s4459 + $0x70] sm:$0xff]
    %v4475 = vld [vmem:[%s4459 + $0x78] sm:$0xff]
    %v4477 = vsel %vm113, %v4072, 0
    %4479 = vmatprep.subr.mxu0 0.0
    %4480 = vmatpush1.msra.mxu0 %v4439
    %4481 = vmatprep.subr.mxu0 0.0
    %4482 = vmatpush1.msra.mxu0 0.0
    %4483 = vmatprep.subr.mxu0 0.0
    %4484 = vmatpush1.msra.mxu0 0.0
    %4485 = vmatprep.subr.mxu0 0.0
    %4486 = vmatpush1.msra.mxu0 0.0
    %4487 = vmatprep.subr.mxu0 0.0
    %4488 = vmatpush1.msra.mxu0 0.0
    %4489 = vmatprep.subr.mxu0 0.0
    %4490 = vmatpush1.msra.mxu0 0.0
    %4491 = vmatprep.subr.mxu0 0.0
    %4492 = vmatpush1.msra.mxu0 0.0
    %4493 = vmatprep.subr.mxu0 0.0
    %4494 = vmatpush1.msra.mxu0 0.0
    %4495 = vmatprep.subr.mxu0 0.0
    %4496 = vmatpush1.msra.mxu0 0.0
    %4497 = vmatprep.subr.mxu0 0.0
    %4498 = vmatpush1.msra.mxu0 0.0
    %4499 = vmatprep.subr.mxu0 0.0
    %4500 = vmatpush1.msra.mxu0 0.0
    %4501 = vmatprep.subr.mxu0 0.0
    %4502 = vmatpush1.msra.mxu0 0.0
    %4503 = vmatprep.subr.mxu0 0.0
    %4504 = vmatpush1.msra.mxu0 0.0
    %4505 = vmatprep.subr.mxu0 0.0
    %4506 = vmatpush1.msra.mxu0 0.0
    %4507 = vmatprep.subr.mxu0 0.0
    %4508 = vmatpush1.msra.mxu0 0.0
    %4509 = vmatprep.subr.mxu0 0.0
    %4510 = vmatpush1.msra.mxu0 0.0
    %4511 = vmatprep.subr.mxu0 0.0
    %4512 = vmatpush1.msra.mxu0 0.0
    %4513 = vmatprep.subr.mxu0 0.0
    %4514 = vmatpush1.msra.mxu0 0.0
    %4515 = vmatprep.subr.mxu0 0.0
    %4516 = vmatpush1.msra.mxu0 0.0
    %4517 = vmatprep.subr.mxu0 0.0
    %4518 = vmatpush1.msra.mxu0 0.0
    %4519 = vmatprep.subr.mxu0 0.0
    %4520 = vmatpush1.msra.mxu0 0.0
    %4521 = vmatprep.subr.mxu0 0.0
    %4522 = vmatpush1.msra.mxu0 0.0
    %4523 = vmatprep.subr.mxu0 0.0
    %4524 = vmatpush1.msra.mxu0 0.0
    %4525 = vmatprep.subr.mxu0 0.0
    %4526 = vmatpush1.msra.mxu0 0.0
    %4527 = vmatprep.subr.mxu0 0.0
    %4528 = vmatpush1.msra.mxu0 0.0
    %4529 = vmatprep.subr.mxu0 0.0
    %4530 = vmatpush1.msra.mxu0 0.0
    %4531 = vmatprep.subr.mxu0 0.0
    %4532 = vmatpush1.msra.mxu0 0.0
    %4533 = vmatprep.subr.mxu0 0.0
    %4534 = vmatpush1.msra.mxu0 0.0
    %4535 = vmatprep.subr.mxu0 0.0
    %4536 = vmatpush1.msra.mxu0 0.0
    %4537 = vmatprep.subr.mxu0 0.0
    %4538 = vmatpush1.msra.mxu0 0.0
    %4539 = vmatprep.subr.mxu0 0.0
    %4540 = vmatpush1.msra.mxu0 0.0
    %4541 = vmatprep.subr.mxu0 0.0
    %4542 = vmatpush1.msra.mxu0 0.0
    %4543 = vmatprep.mubr.f32.mxu0 0.0
    %4544 = vmatmul.mubr.f32.gmra.mrb[0].mxu0 %v4477
    %v4545 = vpop.f32.mrb[0].mxu0
    %v4546 = vadd.f32 0.0, %v4545
    %v4547 = vpop.f32.mrb[0].mxu0
    %4548 = vdwg.mxu0
    %4549 = vmatprep.subr.mxu0 0.0
    %4550 = vmatpush1.msra.mxu0 %v4441
    %4551 = vmatprep.subr.mxu0 0.0
    %4552 = vmatpush1.msra.mxu0 0.0
    %4553 = vmatprep.subr.mxu0 0.0
    %4554 = vmatpush1.msra.mxu0 0.0
    %4555 = vmatprep.subr.mxu0 0.0
    %4556 = vmatpush1.msra.mxu0 0.0
    %4557 = vmatprep.subr.mxu0 0.0
    %4558 = vmatpush1.msra.mxu0 0.0
    %4559 = vmatprep.subr.mxu0 0.0
    %4560 = vmatpush1.msra.mxu0 0.0
    %4561 = vmatprep.subr.mxu0 0.0
    %4562 = vmatpush1.msra.mxu0 0.0
    %4563 = vmatprep.subr.mxu0 0.0
    %4564 = vmatpush1.msra.mxu0 0.0
    %4565 = vmatprep.subr.mxu0 0.0
    %4566 = vmatpush1.msra.mxu0 0.0
    %4567 = vmatprep.subr.mxu0 0.0
    %4568 = vmatpush1.msra.mxu0 0.0
    %4569 = vmatprep.subr.mxu0 0.0
    %4570 = vmatpush1.msra.mxu0 0.0
    %4571 = vmatprep.subr.mxu0 0.0
    %4572 = vmatpush1.msra.mxu0 0.0
    %4573 = vmatprep.subr.mxu0 0.0
    %4574 = vmatpush1.msra.mxu0 0.0
    %4575 = vmatprep.subr.mxu0 0.0
    %4576 = vmatpush1.msra.mxu0 0.0
    %4577 = vmatprep.subr.mxu0 0.0
    %4578 = vmatpush1.msra.mxu0 0.0
    %4579 = vmatprep.subr.mxu0 0.0
    %4580 = vmatpush1.msra.mxu0 0.0
    %4581 = vmatprep.subr.mxu0 0.0
    %4582 = vmatpush1.msra.mxu0 0.0
    %4583 = vmatprep.subr.mxu0 0.0
    %4584 = vmatpush1.msra.mxu0 0.0
    %4585 = vmatprep.subr.mxu0 0.0
    %4586 = vmatpush1.msra.mxu0 0.0
    %4587 = vmatprep.subr.mxu0 0.0
    %4588 = vmatpush1.msra.mxu0 0.0
    %4589 = vmatprep.subr.mxu0 0.0
    %4590 = vmatpush1.msra.mxu0 0.0
    %4591 = vmatprep.subr.mxu0 0.0
    %4592 = vmatpush1.msra.mxu0 0.0
    %4593 = vmatprep.subr.mxu0 0.0
    %4594 = vmatpush1.msra.mxu0 0.0
    %4595 = vmatprep.subr.mxu0 0.0
    %4596 = vmatpush1.msra.mxu0 0.0
    %4597 = vmatprep.subr.mxu0 0.0
    %4598 = vmatpush1.msra.mxu0 0.0
    %4599 = vmatprep.subr.mxu0 0.0
    %4600 = vmatpush1.msra.mxu0 0.0
    %4601 = vmatprep.subr.mxu0 0.0
    %4602 = vmatpush1.msra.mxu0 0.0
    %4603 = vmatprep.subr.mxu0 0.0
    %4604 = vmatpush1.msra.mxu0 0.0
    %4605 = vmatprep.subr.mxu0 0.0
    %4606 = vmatpush1.msra.mxu0 0.0
    %4607 = vmatprep.subr.mxu0 0.0
    %4608 = vmatpush1.msra.mxu0 0.0
    %4609 = vmatprep.subr.mxu0 0.0
    %4610 = vmatpush1.msra.mxu0 0.0
    %4611 = vmatprep.subr.mxu0 0.0
    %4612 = vmatpush1.msra.mxu0 0.0
    %4613 = vmatprep.mubr.f32.mxu0 0.0
    %4614 = vmatmul.mubr.f32.gmra.mrb[0].mxu0 %v4477
    %v4615 = vpop.f32.mrb[0].mxu0
    %v4616 = vadd.f32 0.0, %v4615
    %v4617 = vpop.f32.mrb[0].mxu0
    %4618 = vdwg.mxu0
    %v4619 = vsub.f32 %v4616, %v4546
    %v4620 = vmul.f32 %v4619, 10.0
    %vm4621 = vcmp.lt.f32.partialorder %v4620, 0.0
    %v4622 = vsel %vm4621, -1.0, 1.0
    %v4623 = vand.u32 2147483647, %v4620
    %vm4624 = vcmp.gt.f32.partialorder %v4623, 2.4142137
    %vm4625 = vcmp.gt.f32.partialorder %v4623, 0.41421357
    %v4626 = vsel %vm4625, 0.7853982, 0.0
    %v4627 = vsel %vm4624, 1.5707964, %v4626
    %v4628 = vadd.f32 %v4623, 1e-30
    %v4629 = vrcp.pop %v4628
    %v4630 = vmul.f32 %v4628, %v4629
    %v4631 = vsub.f32 2.0, %v4630
    %v4632 = vmul.f32 %v4629, %v4631
    %v4633 = vadd.f32 %v4623, 1.0
    %v4634 = vrcp.pop %v4633
    %v4635 = vmul.f32 %v4633, %v4634
    %v4636 = vsub.f32 2.0, %v4635
    %v4637 = vmul.f32 %v4634, %v4636
    %v4638 = vsub.f32 0.0, %v4632
    %v4639 = vsub.f32 %v4623, 1.0
    %v4640 = vmul.f32 %v4639, %v4637
    %v4641 = vsel %vm4625, %v4640, %v4623
    %v4642 = vsel %vm4624, %v4638, %v4641
    %v4643 = vmul.f32 %v4642, %v4642
    %v4644 = vmul.f32 %v4643, 0.080537446
    %v4645 = vsub.f32 %v4644, 0.13877685
    %v4646 = vmul.f32 %v4645, %v4643
    %v4647 = vadd.f32 %v4646, 0.19977711
    %v4648 = vmul.f32 %v4647, %v4643
    %v4649 = vsub.f32 %v4648, 0.3333295
    %v4650 = vmul.f32 %v4649, %v4643
    %v4651 = vmul.f32 %v4650, %v4642
    %v4652 = vadd.f32 %v4651, %v4642
    %v4653 = vadd.f32 %v4627, %v4652
    %v4654 = vmul.f32 %v4622, %v4653
    %v4655 = vmul.f32 %v4654, 0.31830987
    %v4656 = vadd.f32 %v4655, 0.5
    %v4657 = vmul.f32 %v4656, %v4546
    %v4658 = vsub.f32 1.0, %v4656
    %v4659 = vmul.f32 %v4658, %v4616
    %v4660 = vadd.f32 %v4657, %v4659
    %v4661 = vadd.f32 %v4546, %v4616
    %4662 = vmatprep.subr.mxu0 0.0
    %4663 = vmatpush1.msra.mxu0 %v4443
    %4664 = vmatprep.subr.mxu0 0.0
    %4665 = vmatpush1.msra.mxu0 %v4444
    %4666 = vmatprep.subr.mxu0 0.0
    %4667 = vmatpush1.msra.mxu0 %v4445
    %4668 = vmatprep.subr.mxu0 0.0
    %4669 = vmatpush1.msra.mxu0 %v4446
    %4670 = vmatprep.subr.mxu0 0.0
    %4671 = vmatpush1.msra.mxu0 %v4447
    %4672 = vmatprep.subr.mxu0 0.0
    %4673 = vmatpush1.msra.mxu0 %v4448
    %4674 = vmatprep.subr.mxu0 0.0
    %4675 = vmatpush1.msra.mxu0 %v4449
    %4676 = vmatprep.subr.mxu0 0.0
    %4677 = vmatpush1.msra.mxu0 %v4450
    %4678 = vmatprep.subr.mxu0 0.0
    %4679 = vmatpush1.msra.mxu0 %v4451
    %4680 = vmatprep.subr.mxu0 0.0
    %4681 = vmatpush1.msra.mxu0 %v4452
    %4682 = vmatprep.subr.mxu0 0.0
    %4683 = vmatpush1.msra.mxu0 %v4453
    %4684 = vmatprep.subr.mxu0 0.0
    %4685 = vmatpush1.msra.mxu0 %v4454
    %4686 = vmatprep.subr.mxu0 0.0
    %4687 = vmatpush1.msra.mxu0 %v4455
    %4688 = vmatprep.subr.mxu0 0.0
    %4689 = vmatpush1.msra.mxu0 %v4456
    %4690 = vmatprep.subr.mxu0 0.0
    %4691 = vmatpush1.msra.mxu0 %v4457
    %4692 = vmatprep.subr.mxu0 0.0
    %4693 = vmatpush1.msra.mxu0 %v4458
    %4694 = vmatprep.subr.mxu0 0.0
    %4695 = vmatpush1.msra.mxu0 0.0
    %4696 = vmatprep.subr.mxu0 0.0
    %4697 = vmatpush1.msra.mxu0 0.0
    %4698 = vmatprep.subr.mxu0 0.0
    %4699 = vmatpush1.msra.mxu0 0.0
    %4700 = vmatprep.subr.mxu0 0.0
    %4701 = vmatpush1.msra.mxu0 0.0
    %4702 = vmatprep.subr.mxu0 0.0
    %4703 = vmatpush1.msra.mxu0 0.0
    %4704 = vmatprep.subr.mxu0 0.0
    %4705 = vmatpush1.msra.mxu0 0.0
    %4706 = vmatprep.subr.mxu0 0.0
    %4707 = vmatpush1.msra.mxu0 0.0
    %4708 = vmatprep.subr.mxu0 0.0
    %4709 = vmatpush1.msra.mxu0 0.0
    %4710 = vmatprep.subr.mxu0 0.0
    %4711 = vmatpush1.msra.mxu0 0.0
    %4712 = vmatprep.subr.mxu0 0.0
    %4713 = vmatpush1.msra.mxu0 0.0
    %4714 = vmatprep.subr.mxu0 0.0
    %4715 = vmatpush1.msra.mxu0 0.0
    %4716 = vmatprep.subr.mxu0 0.0
    %4717 = vmatpush1.msra.mxu0 0.0
    %4718 = vmatprep.subr.mxu0 0.0
    %4719 = vmatpush1.msra.mxu0 0.0
    %4720 = vmatprep.subr.mxu0 0.0
    %4721 = vmatpush1.msra.mxu0 0.0
    %4722 = vmatprep.subr.mxu0 0.0
    %4723 = vmatpush1.msra.mxu0 0.0
    %4724 = vmatprep.subr.mxu0 0.0
    %4725 = vmatpush1.msra.mxu0 0.0
    %4726 = vmatprep.mubr.f32.mxu0 0.0
    %4727 = vmatmul.mubr.f32.gmra.mrb[0].mxu0 %v4661
    %v4728 = vpop.f32.mrb[0].mxu0
    %v4729 = vadd.f32 0.0, %v4728
    %v4730 = vpop.f32.mrb[0].mxu0
    %4731 = vdwg.mxu0
    %4732 = vmatprep.subr.mxu0 0.0
    %4733 = vmatpush1.msra.mxu0 %v4460
    %4734 = vmatprep.subr.mxu0 0.0
    %4735 = vmatpush1.msra.mxu0 %v4461
    %4736 = vmatprep.subr.mxu0 0.0
    %4737 = vmatpush1.msra.mxu0 %v4462
    %4738 = vmatprep.subr.mxu0 0.0
    %4739 = vmatpush1.msra.mxu0 %v4463
    %4740 = vmatprep.subr.mxu0 0.0
    %4741 = vmatpush1.msra.mxu0 %v4464
    %4742 = vmatprep.subr.mxu0 0.0
    %4743 = vmatpush1.msra.mxu0 %v4465
    %4744 = vmatprep.subr.mxu0 0.0
    %4745 = vmatpush1.msra.mxu0 %v4466
    %4746 = vmatprep.subr.mxu0 0.0
    %4747 = vmatpush1.msra.mxu0 %v4467
    %4748 = vmatprep.subr.mxu0 0.0
    %4749 = vmatpush1.msra.mxu0 %v4468
    %4750 = vmatprep.subr.mxu0 0.0
    %4751 = vmatpush1.msra.mxu0 %v4469
    %4752 = vmatprep.subr.mxu0 0.0
    %4753 = vmatpush1.msra.mxu0 %v4470
    %4754 = vmatprep.subr.mxu0 0.0
    %4755 = vmatpush1.msra.mxu0 %v4471
    %4756 = vmatprep.subr.mxu0 0.0
    %4757 = vmatpush1.msra.mxu0 %v4472
    %4758 = vmatprep.subr.mxu0 0.0
    %4759 = vmatpush1.msra.mxu0 %v4473
    %4760 = vmatprep.subr.mxu0 0.0
    %4761 = vmatpush1.msra.mxu0 %v4474
    %4762 = vmatprep.subr.mxu0 0.0
    %4763 = vmatpush1.msra.mxu0 %v4475
    %4764 = vmatprep.subr.mxu0 0.0
    %4765 = vmatpush1.msra.mxu0 0.0
    %4766 = vmatprep.subr.mxu0 0.0
    %4767 = vmatpush1.msra.mxu0 0.0
    %4768 = vmatprep.subr.mxu0 0.0
    %4769 = vmatpush1.msra.mxu0 0.0
    %4770 = vmatprep.subr.mxu0 0.0
    %4771 = vmatpush1.msra.mxu0 0.0
    %4772 = vmatprep.subr.mxu0 0.0
    %4773 = vmatpush1.msra.mxu0 0.0
    %4774 = vmatprep.subr.mxu0 0.0
    %4775 = vmatpush1.msra.mxu0 0.0
    %4776 = vmatprep.subr.mxu0 0.0
    %4777 = vmatpush1.msra.mxu0 0.0
    %4778 = vmatprep.subr.mxu0 0.0
    %4779 = vmatpush1.msra.mxu0 0.0
    %4780 = vmatprep.subr.mxu0 0.0
    %4781 = vmatpush1.msra.mxu0 0.0
    %4782 = vmatprep.subr.mxu0 0.0
    %4783 = vmatpush1.msra.mxu0 0.0
    %4784 = vmatprep.subr.mxu0 0.0
    %4785 = vmatpush1.msra.mxu0 0.0
    %4786 = vmatprep.subr.mxu0 0.0
    %4787 = vmatpush1.msra.mxu0 0.0
    %4788 = vmatprep.subr.mxu0 0.0
    %4789 = vmatpush1.msra.mxu0 0.0
    %4790 = vmatprep.subr.mxu0 0.0
    %4791 = vmatpush1.msra.mxu0 0.0
    %4792 = vmatprep.subr.mxu0 0.0
    %4793 = vmatpush1.msra.mxu0 0.0
    %4794 = vmatprep.subr.mxu0 0.0
    %4795 = vmatpush1.msra.mxu0 0.0
    %4796 = vmatprep.mubr.f32.mxu0 0.0
    %4797 = vmatmul.mubr.f32.gmra.mrb[0].mxu0 %v4660
    %v4798 = vpop.f32.mrb[0].mxu0
    %v4799 = vadd.f32 %v4729, %v4798
    %v4800 = vpop.f32.mrb[0].mxu0
    %4801 = vdwg.mxu0
    %v4803 = vsel %vm113, %v4430, 0
    %v4806 = vsel %vm113, %v4435, 0
    %4808 = vmatprep.subr.mxu0 0.0
    %4809 = vmatpush1.msra.mxu0 %v4439
    %4810 = vmatprep.subr.mxu0 0.0
    %4811 = vmatpush1.msra.mxu0 0.0
    %4812 = vmatprep.subr.mxu0 0.0
    %4813 = vmatpush1.msra.mxu0 0.0
    %4814 = vmatprep.subr.mxu0 0.0
    %4815 = vmatpush1.msra.mxu0 0.0
    %4816 = vmatprep.subr.mxu0 0.0
    %4817 = vmatpush1.msra.mxu0 0.0
    %4818 = vmatprep.subr.mxu0 0.0
    %4819 = vmatpush1.msra.mxu0 0.0
    %4820 = vmatprep.subr.mxu0 0.0
    %4821 = vmatpush1.msra.mxu0 0.0
    %4822 = vmatprep.subr.mxu0 0.0
    %4823 = vmatpush1.msra.mxu0 0.0
    %4824 = vmatprep.subr.mxu0 0.0
    %4825 = vmatpush1.msra.mxu0 0.0
    %4826 = vmatprep.subr.mxu0 0.0
    %4827 = vmatpush1.msra.mxu0 0.0
    %4828 = vmatprep.subr.mxu0 0.0
    %4829 = vmatpush1.msra.mxu0 0.0
    %4830 = vmatprep.subr.mxu0 0.0
    %4831 = vmatpush1.msra.mxu0 0.0
    %4832 = vmatprep.subr.mxu0 0.0
    %4833 = vmatpush1.msra.mxu0 0.0
    %4834 = vmatprep.subr.mxu0 0.0
    %4835 = vmatpush1.msra.mxu0 0.0
    %4836 = vmatprep.subr.mxu0 0.0
    %4837 = vmatpush1.msra.mxu0 0.0
    %4838 = vmatprep.subr.mxu0 0.0
    %4839 = vmatpush1.msra.mxu0 0.0
    %4840 = vmatprep.subr.mxu0 0.0
    %4841 = vmatpush1.msra.mxu0 0.0
    %4842 = vmatprep.subr.mxu0 0.0
    %4843 = vmatpush1.msra.mxu0 0.0
    %4844 = vmatprep.subr.mxu0 0.0
    %4845 = vmatpush1.msra.mxu0 0.0
    %4846 = vmatprep.subr.mxu0 0.0
    %4847 = vmatpush1.msra.mxu0 0.0
    %4848 = vmatprep.subr.mxu0 0.0
    %4849 = vmatpush1.msra.mxu0 0.0
    %4850 = vmatprep.subr.mxu0 0.0
    %4851 = vmatpush1.msra.mxu0 0.0
    %4852 = vmatprep.subr.mxu0 0.0
    %4853 = vmatpush1.msra.mxu0 0.0
    %4854 = vmatprep.subr.mxu0 0.0
    %4855 = vmatpush1.msra.mxu0 0.0
    %4856 = vmatprep.subr.mxu0 0.0
    %4857 = vmatpush1.msra.mxu0 0.0
    %4858 = vmatprep.subr.mxu0 0.0
    %4859 = vmatpush1.msra.mxu0 0.0
    %4860 = vmatprep.subr.mxu0 0.0
    %4861 = vmatpush1.msra.mxu0 0.0
    %4862 = vmatprep.subr.mxu0 0.0
    %4863 = vmatpush1.msra.mxu0 0.0
    %4864 = vmatprep.subr.mxu0 0.0
    %4865 = vmatpush1.msra.mxu0 0.0
    %4866 = vmatprep.subr.mxu0 0.0
    %4867 = vmatpush1.msra.mxu0 0.0
    %4868 = vmatprep.subr.mxu0 0.0
    %4869 = vmatpush1.msra.mxu0 0.0
    %4870 = vmatprep.subr.mxu0 0.0
    %4871 = vmatpush1.msra.mxu0 0.0
    %4872 = vmatprep.mubr.f32.mxu0 0.0
    %4873 = vmatmul.mubr.f32.gmra.mrb[0].mxu0 %v4803
    %v4874 = vpop.f32.mrb[0].mxu0
    %v4875 = vadd.f32 0.0, %v4874
    %v4876 = vpop.f32.mrb[0].mxu0
    %4877 = vmatprep.mubr.f32.mxu0 0.0
    %4878 = vmatmul.mubr.f32.gmra.mrb[0].mxu0 %v4806
    %v4879 = vpop.f32.mrb[0].mxu0
    %v4880 = vadd.f32 0.0, %v4879
    %v4881 = vpop.f32.mrb[0].mxu0
    %4882 = vdwg.mxu0
    %4883 = vmatprep.subr.mxu0 0.0
    %4884 = vmatpush1.msra.mxu0 %v4441
    %4885 = vmatprep.subr.mxu0 0.0
    %4886 = vmatpush1.msra.mxu0 0.0
    %4887 = vmatprep.subr.mxu0 0.0
    %4888 = vmatpush1.msra.mxu0 0.0
    %4889 = vmatprep.subr.mxu0 0.0
    %4890 = vmatpush1.msra.mxu0 0.0
    %4891 = vmatprep.subr.mxu0 0.0
    %4892 = vmatpush1.msra.mxu0 0.0
    %4893 = vmatprep.subr.mxu0 0.0
    %4894 = vmatpush1.msra.mxu0 0.0
    %4895 = vmatprep.subr.mxu0 0.0
    %4896 = vmatpush1.msra.mxu0 0.0
    %4897 = vmatprep.subr.mxu0 0.0
    %4898 = vmatpush1.msra.mxu0 0.0
    %4899 = vmatprep.subr.mxu0 0.0
    %4900 = vmatpush1.msra.mxu0 0.0
    %4901 = vmatprep.subr.mxu0 0.0
    %4902 = vmatpush1.msra.mxu0 0.0
    %4903 = vmatprep.subr.mxu0 0.0
    %4904 = vmatpush1.msra.mxu0 0.0
    %4905 = vmatprep.subr.mxu0 0.0
    %4906 = vmatpush1.msra.mxu0 0.0
    %4907 = vmatprep.subr.mxu0 0.0
    %4908 = vmatpush1.msra.mxu0 0.0
    %4909 = vmatprep.subr.mxu0 0.0
    %4910 = vmatpush1.msra.mxu0 0.0
    %4911 = vmatprep.subr.mxu0 0.0
    %4912 = vmatpush1.msra.mxu0 0.0
    %4913 = vmatprep.subr.mxu0 0.0
    %4914 = vmatpush1.msra.mxu0 0.0
    %4915 = vmatprep.subr.mxu0 0.0
    %4916 = vmatpush1.msra.mxu0 0.0
    %4917 = vmatprep.subr.mxu0 0.0
    %4918 = vmatpush1.msra.mxu0 0.0
    %4919 = vmatprep.subr.mxu0 0.0
    %4920 = vmatpush1.msra.mxu0 0.0
    %4921 = vmatprep.subr.mxu0 0.0
    %4922 = vmatpush1.msra.mxu0 0.0
    %4923 = vmatprep.subr.mxu0 0.0
    %4924 = vmatpush1.msra.mxu0 0.0
    %4925 = vmatprep.subr.mxu0 0.0
    %4926 = vmatpush1.msra.mxu0 0.0
    %4927 = vmatprep.subr.mxu0 0.0
    %4928 = vmatpush1.msra.mxu0 0.0
    %4929 = vmatprep.subr.mxu0 0.0
    %4930 = vmatpush1.msra.mxu0 0.0
    %4931 = vmatprep.subr.mxu0 0.0
    %4932 = vmatpush1.msra.mxu0 0.0
    %4933 = vmatprep.subr.mxu0 0.0
    %4934 = vmatpush1.msra.mxu0 0.0
    %4935 = vmatprep.subr.mxu0 0.0
    %4936 = vmatpush1.msra.mxu0 0.0
    %4937 = vmatprep.subr.mxu0 0.0
    %4938 = vmatpush1.msra.mxu0 0.0
    %4939 = vmatprep.subr.mxu0 0.0
    %4940 = vmatpush1.msra.mxu0 0.0
    %4941 = vmatprep.subr.mxu0 0.0
    %4942 = vmatpush1.msra.mxu0 0.0
    %4943 = vmatprep.subr.mxu0 0.0
    %4944 = vmatpush1.msra.mxu0 0.0
    %4945 = vmatprep.subr.mxu0 0.0
    %4946 = vmatpush1.msra.mxu0 0.0
    %4947 = vmatprep.mubr.f32.mxu0 0.0
    %4948 = vmatmul.mubr.f32.gmra.mrb[0].mxu0 %v4803
    %v4949 = vpop.f32.mrb[0].mxu0
    %v4950 = vadd.f32 0.0, %v4949
    %v4951 = vpop.f32.mrb[0].mxu0
    %4952 = vmatprep.mubr.f32.mxu0 0.0
    %4953 = vmatmul.mubr.f32.gmra.mrb[0].mxu0 %v4806
    %v4954 = vpop.f32.mrb[0].mxu0
    %v4955 = vadd.f32 0.0, %v4954
    %v4956 = vpop.f32.mrb[0].mxu0
    %4957 = vdwg.mxu0
    %v4960 = vunpack.c.l.s4 1966171168
    %v4961 = vunpack.c.0.s8 %v4960
    %v4962 = vlaneseq
    %v4963 = vshrl.u32 %v4962, 7
    %v4964 = vsub.s32 %v4961, %v4963
    %v4965 = vrot.slane %v4656, %v4964
    %v4966 = vcombine.high %v4965, %v4965
    %v4968 = vunpack.c.l.s4 1966171168
    %v4969 = vunpack.c.0.s8 %v4968
    %v4970 = vlaneseq
    %v4971 = vshrl.u32 %v4970, 7
    %v4972 = vsub.s32 %v4969, %v4971
    %v4973 = vrot.slane %v4965, %v4972
    %v4975 = vunpack.c.l.s4 1966171168
    %v4976 = vunpack.c.0.s8 %v4975
    %v4977 = vlaneseq
    %v4978 = vshrl.u32 %v4977, 7
    %v4979 = vsub.s32 %v4976, %v4978
    %v4980 = vrot.slane %v4966, %v4979
    %v4983 = vlaneseq
    %v4984 = vshrl.u32 %v4983, 7
    %v4985 = vsub.s32 0, %v4984
    %v4986 = vrot.slane %v4973, %v4985
    %v4987 = vlaneseq
    %v4988 = vshrl.u32 %v4987, 7
    %v4989 = vsub.s32 0, %v4988
    %v4990 = vrot.slane %v4980, %v4989
    %v4993 = vmul.f32 %v4986, %v4875
    %v4994 = vmul.f32 %v4990, %v4880
    %v4995 = vsub.f32 1.0, %v4973
    %v4996 = vsub.f32 1.0, %v4980
    %v4999 = vlaneseq
    %v5000 = vshrl.u32 %v4999, 7
    %v5001 = vsub.s32 0, %v5000
    %v5002 = vrot.slane %v4995, %v5001
    %v5003 = vlaneseq
    %v5004 = vshrl.u32 %v5003, 7
    %v5005 = vsub.s32 0, %v5004
    %v5006 = vrot.slane %v4996, %v5005
    %v5009 = vmul.f32 %v5002, %v4950
    %v5010 = vmul.f32 %v5006, %v4955
    %v5011 = vadd.f32 %v4993, %v5009
    %v5012 = vadd.f32 %v4994, %v5010
    %v5013 = vadd.f32 %v4875, %v4950
    %v5014 = vadd.f32 %v4880, %v4955
    %5015 = vmatprep.subr.mxu0 0.0
    %5016 = vmatpush1.msra.mxu0 %v4443
    %5017 = vmatprep.subr.mxu0 0.0
    %5018 = vmatpush1.msra.mxu0 %v4444
    %5019 = vmatprep.subr.mxu0 0.0
    %5020 = vmatpush1.msra.mxu0 %v4445
    %5021 = vmatprep.subr.mxu0 0.0
    %5022 = vmatpush1.msra.mxu0 %v4446
    %5023 = vmatprep.subr.mxu0 0.0
    %5024 = vmatpush1.msra.mxu0 %v4447
    %5025 = vmatprep.subr.mxu0 0.0
    %5026 = vmatpush1.msra.mxu0 %v4448
    %5027 = vmatprep.subr.mxu0 0.0
    %5028 = vmatpush1.msra.mxu0 %v4449
    %5029 = vmatprep.subr.mxu0 0.0
    %5030 = vmatpush1.msra.mxu0 %v4450
    %5031 = vmatprep.subr.mxu0 0.0
    %5032 = vmatpush1.msra.mxu0 %v4451
    %5033 = vmatprep.subr.mxu0 0.0
    %5034 = vmatpush1.msra.mxu0 %v4452
    %5035 = vmatprep.subr.mxu0 0.0
    %5036 = vmatpush1.msra.mxu0 %v4453
    %5037 = vmatprep.subr.mxu0 0.0
    %5038 = vmatpush1.msra.mxu0 %v4454
    %5039 = vmatprep.subr.mxu0 0.0
    %5040 = vmatpush1.msra.mxu0 %v4455
    %5041 = vmatprep.subr.mxu0 0.0
    %5042 = vmatpush1.msra.mxu0 %v4456
    %5043 = vmatprep.subr.mxu0 0.0
    %5044 = vmatpush1.msra.mxu0 %v4457
    %5045 = vmatprep.subr.mxu0 0.0
    %5046 = vmatpush1.msra.mxu0 %v4458
    %5047 = vmatprep.subr.mxu0 0.0
    %5048 = vmatpush1.msra.mxu0 0.0
    %5049 = vmatprep.subr.mxu0 0.0
    %5050 = vmatpush1.msra.mxu0 0.0
    %5051 = vmatprep.subr.mxu0 0.0
    %5052 = vmatpush1.msra.mxu0 0.0
    %5053 = vmatprep.subr.mxu0 0.0
    %5054 = vmatpush1.msra.mxu0 0.0
    %5055 = vmatprep.subr.mxu0 0.0
    %5056 = vmatpush1.msra.mxu0 0.0
    %5057 = vmatprep.subr.mxu0 0.0
    %5058 = vmatpush1.msra.mxu0 0.0
    %5059 = vmatprep.subr.mxu0 0.0
    %5060 = vmatpush1.msra.mxu0 0.0
    %5061 = vmatprep.subr.mxu0 0.0
    %5062 = vmatpush1.msra.mxu0 0.0
    %5063 = vmatprep.subr.mxu0 0.0
    %5064 = vmatpush1.msra.mxu0 0.0
    %5065 = vmatprep.subr.mxu0 0.0
    %5066 = vmatpush1.msra.mxu0 0.0
    %5067 = vmatprep.subr.mxu0 0.0
    %5068 = vmatpush1.msra.mxu0 0.0
    %5069 = vmatprep.subr.mxu0 0.0
    %5070 = vmatpush1.msra.mxu0 0.0
    %5071 = vmatprep.subr.mxu0 0.0
    %5072 = vmatpush1.msra.mxu0 0.0
    %5073 = vmatprep.subr.mxu0 0.0
    %5074 = vmatpush1.msra.mxu0 0.0
    %5075 = vmatprep.subr.mxu0 0.0
    %5076 = vmatpush1.msra.mxu0 0.0
    %5077 = vmatprep.subr.mxu0 0.0
    %5078 = vmatpush1.msra.mxu0 0.0
    %5079 = vmatprep.mubr.f32.mxu0 0.0
    %5080 = vmatmul.mubr.f32.gmra.mrb[0].mxu0 %v5013
    %v5081 = vpop.f32.mrb[0].mxu0
    %v5082 = vadd.f32 0.0, %v5081
    %v5083 = vpop.f32.mrb[0].mxu0
    %5084 = vmatprep.mubr.f32.mxu0 0.0
    %5085 = vmatmul.mubr.f32.gmra.mrb[0].mxu0 %v5014
    %v5086 = vpop.f32.mrb[0].mxu0
    %v5087 = vadd.f32 0.0, %v5086
    %v5088 = vpop.f32.mrb[0].mxu0
    %5089 = vdwg.mxu0
    %5090 = vmatprep.subr.mxu0 0.0
    %5091 = vmatpush1.msra.mxu0 %v4460
    %5092 = vmatprep.subr.mxu0 0.0
    %5093 = vmatpush1.msra.mxu0 %v4461
    %5094 = vmatprep.subr.mxu0 0.0
    %5095 = vmatpush1.msra.mxu0 %v4462
    %5096 = vmatprep.subr.mxu0 0.0
    %5097 = vmatpush1.msra.mxu0 %v4463
    %5098 = vmatprep.subr.mxu0 0.0
    %5099 = vmatpush1.msra.mxu0 %v4464
    %5100 = vmatprep.subr.mxu0 0.0
    %5101 = vmatpush1.msra.mxu0 %v4465
    %5102 = vmatprep.subr.mxu0 0.0
    %5103 = vmatpush1.msra.mxu0 %v4466
    %5104 = vmatprep.subr.mxu0 0.0
    %5105 = vmatpush1.msra.mxu0 %v4467
    %5106 = vmatprep.subr.mxu0 0.0
    %5107 = vmatpush1.msra.mxu0 %v4468
    %5108 = vmatprep.subr.mxu0 0.0
    %5109 = vmatpush1.msra.mxu0 %v4469
    %5110 = vmatprep.subr.mxu0 0.0
    %5111 = vmatpush1.msra.mxu0 %v4470
    %5112 = vmatprep.subr.mxu0 0.0
    %5113 = vmatpush1.msra.mxu0 %v4471
    %5114 = vmatprep.subr.mxu0 0.0
    %5115 = vmatpush1.msra.mxu0 %v4472
    %5116 = vmatprep.subr.mxu0 0.0
    %5117 = vmatpush1.msra.mxu0 %v4473
    %5118 = vmatprep.subr.mxu0 0.0
    %5119 = vmatpush1.msra.mxu0 %v4474
    %5120 = vmatprep.subr.mxu0 0.0
    %5121 = vmatpush1.msra.mxu0 %v4475
    %5122 = vmatprep.subr.mxu0 0.0
    %5123 = vmatpush1.msra.mxu0 0.0
    %5124 = vmatprep.subr.mxu0 0.0
    %5125 = vmatpush1.msra.mxu0 0.0
    %5126 = vmatprep.subr.mxu0 0.0
    %5127 = vmatpush1.msra.mxu0 0.0
    %5128 = vmatprep.subr.mxu0 0.0
    %5129 = vmatpush1.msra.mxu0 0.0
    %5130 = vmatprep.subr.mxu0 0.0
    %5131 = vmatpush1.msra.mxu0 0.0
    %5132 = vmatprep.subr.mxu0 0.0
    %5133 = vmatpush1.msra.mxu0 0.0
    %5134 = vmatprep.subr.mxu0 0.0
    %5135 = vmatpush1.msra.mxu0 0.0
    %5136 = vmatprep.subr.mxu0 0.0
    %5137 = vmatpush1.msra.mxu0 0.0
    %5138 = vmatprep.subr.mxu0 0.0
    %5139 = vmatpush1.msra.mxu0 0.0
    %5140 = vmatprep.subr.mxu0 0.0
    %5141 = vmatpush1.msra.mxu0 0.0
    %5142 = vmatprep.subr.mxu0 0.0
    %5143 = vmatpush1.msra.mxu0 0.0
    %5144 = vmatprep.subr.mxu0 0.0
    %5145 = vmatpush1.msra.mxu0 0.0
    %5146 = vmatprep.subr.mxu0 0.0
    %5147 = vmatpush1.msra.mxu0 0.0
    %5148 = vmatprep.subr.mxu0 0.0
    %5149 = vmatpush1.msra.mxu0 0.0
    %5150 = vmatprep.subr.mxu0 0.0
    %5151 = vmatpush1.msra.mxu0 0.0
    %5152 = vmatprep.subr.mxu0 0.0
    %5153 = vmatpush1.msra.mxu0 0.0
    %5154 = vmatprep.mubr.f32.mxu0 0.0
    %5155 = vmatmul.mubr.f32.gmra.mrb[0].mxu0 %v5011
    %v5156 = vpop.f32.mrb[0].mxu0
    %v5157 = vadd.f32 %v5082, %v5156
    %v5158 = vpop.f32.mrb[0].mxu0
    %5159 = vmatprep.mubr.f32.mxu0 0.0
    %5160 = vmatmul.mubr.f32.gmra.mrb[0].mxu0 %v5012
    %v5161 = vpop.f32.mrb[0].mxu0
    %v5162 = vadd.f32 %v5087, %v5161
    %v5163 = vpop.f32.mrb[0].mxu0
    %5164 = vdwg.mxu0
    %s5165 = scalar_lea.vmem [#allocation5], 112
    %v5166 = vld [vmem:[%s5165] sm:$0xff]
    %s5167 = scalar_lea.vmem [#allocation5], 120
    %v5168 = vld [vmem:[%s5167] sm:$0xff]
    %s5169 = scalar_lea.vmem [#allocation7], 1792
    %v5170 = vld [vmem:[%s5169] sm:$0xff]
    %v5171 = vld [vmem:[%s5169 + $0x8] sm:$0xff]
    %v5172 = vld [vmem:[%s5169 + $0x10] sm:$0xff]
    %v5173 = vld [vmem:[%s5169 + $0x18] sm:$0xff]
    %v5174 = vld [vmem:[%s5169 + $0x20] sm:$0xff]
    %v5175 = vld [vmem:[%s5169 + $0x28] sm:$0xff]
    %v5176 = vld [vmem:[%s5169 + $0x30] sm:$0xff]
    %v5177 = vld [vmem:[%s5169 + $0x38] sm:$0xff]
    %v5178 = vld [vmem:[%s5169 + $0x40] sm:$0xff]
    %v5179 = vld [vmem:[%s5169 + $0x48] sm:$0xff]
    %v5180 = vld [vmem:[%s5169 + $0x50] sm:$0xff]
    %v5181 = vld [vmem:[%s5169 + $0x58] sm:$0xff]
    %v5182 = vld [vmem:[%s5169 + $0x60] sm:$0xff]
    %v5183 = vld [vmem:[%s5169 + $0x68] sm:$0xff]
    %v5184 = vld [vmem:[%s5169 + $0x70] sm:$0xff]
    %v5185 = vld [vmem:[%s5169 + $0x78] sm:$0xff]
    %s5186 = scalar_lea.vmem [#allocation7], 1920
    %v5187 = vld [vmem:[%s5186] sm:$0xff]
    %v5188 = vld [vmem:[%s5186 + $0x8] sm:$0xff]
    %v5189 = vld [vmem:[%s5186 + $0x10] sm:$0xff]
    %v5190 = vld [vmem:[%s5186 + $0x18] sm:$0xff]
    %v5191 = vld [vmem:[%s5186 + $0x20] sm:$0xff]
    %v5192 = vld [vmem:[%s5186 + $0x28] sm:$0xff]
    %v5193 = vld [vmem:[%s5186 + $0x30] sm:$0xff]
    %v5194 = vld [vmem:[%s5186 + $0x38] sm:$0xff]
    %v5195 = vld [vmem:[%s5186 + $0x40] sm:$0xff]
    %v5196 = vld [vmem:[%s5186 + $0x48] sm:$0xff]
    %v5197 = vld [vmem:[%s5186 + $0x50] sm:$0xff]
    %v5198 = vld [vmem:[%s5186 + $0x58] sm:$0xff]
    %v5199 = vld [vmem:[%s5186 + $0x60] sm:$0xff]
    %v5200 = vld [vmem:[%s5186 + $0x68] sm:$0xff]
    %v5201 = vld [vmem:[%s5186 + $0x70] sm:$0xff]
    %v5202 = vld [vmem:[%s5186 + $0x78] sm:$0xff]
    %v5204 = vsel %vm113, %v4799, 0
    %5206 = vmatprep.subr.mxu0 0.0
    %5207 = vmatpush1.msra.mxu0 %v5166
    %5208 = vmatprep.subr.mxu0 0.0
    %5209 = vmatpush1.msra.mxu0 0.0
    %5210 = vmatprep.subr.mxu0 0.0
    %5211 = vmatpush1.msra.mxu0 0.0
    %5212 = vmatprep.subr.mxu0 0.0
    %5213 = vmatpush1.msra.mxu0 0.0
    %5214 = vmatprep.subr.mxu0 0.0
    %5215 = vmatpush1.msra.mxu0 0.0
    %5216 = vmatprep.subr.mxu0 0.0
    %5217 = vmatpush1.msra.mxu0 0.0
    %5218 = vmatprep.subr.mxu0 0.0
    %5219 = vmatpush1.msra.mxu0 0.0
    %5220 = vmatprep.subr.mxu0 0.0
    %5221 = vmatpush1.msra.mxu0 0.0
    %5222 = vmatprep.subr.mxu0 0.0
    %5223 = vmatpush1.msra.mxu0 0.0
    %5224 = vmatprep.subr.mxu0 0.0
    %5225 = vmatpush1.msra.mxu0 0.0
    %5226 = vmatprep.subr.mxu0 0.0
    %5227 = vmatpush1.msra.mxu0 0.0
    %5228 = vmatprep.subr.mxu0 0.0
    %5229 = vmatpush1.msra.mxu0 0.0
    %5230 = vmatprep.subr.mxu0 0.0
    %5231 = vmatpush1.msra.mxu0 0.0
    %5232 = vmatprep.subr.mxu0 0.0
    %5233 = vmatpush1.msra.mxu0 0.0
    %5234 = vmatprep.subr.mxu0 0.0
    %5235 = vmatpush1.msra.mxu0 0.0
    %5236 = vmatprep.subr.mxu0 0.0
    %5237 = vmatpush1.msra.mxu0 0.0
    %5238 = vmatprep.subr.mxu0 0.0
    %5239 = vmatpush1.msra.mxu0 0.0
    %5240 = vmatprep.subr.mxu0 0.0
    %5241 = vmatpush1.msra.mxu0 0.0
    %5242 = vmatprep.subr.mxu0 0.0
    %5243 = vmatpush1.msra.mxu0 0.0
    %5244 = vmatprep.subr.mxu0 0.0
    %5245 = vmatpush1.msra.mxu0 0.0
    %5246 = vmatprep.subr.mxu0 0.0
    %5247 = vmatpush1.msra.mxu0 0.0
    %5248 = vmatprep.subr.mxu0 0.0
    %5249 = vmatpush1.msra.mxu0 0.0
    %5250 = vmatprep.subr.mxu0 0.0
    %5251 = vmatpush1.msra.mxu0 0.0
    %5252 = vmatprep.subr.mxu0 0.0
    %5253 = vmatpush1.msra.mxu0 0.0
    %5254 = vmatprep.subr.mxu0 0.0
    %5255 = vmatpush1.msra.mxu0 0.0
    %5256 = vmatprep.subr.mxu0 0.0
    %5257 = vmatpush1.msra.mxu0 0.0
    %5258 = vmatprep.subr.mxu0 0.0
    %5259 = vmatpush1.msra.mxu0 0.0
    %5260 = vmatprep.subr.mxu0 0.0
    %5261 = vmatpush1.msra.mxu0 0.0
    %5262 = vmatprep.subr.mxu0 0.0
    %5263 = vmatpush1.msra.mxu0 0.0
    %5264 = vmatprep.subr.mxu0 0.0
    %5265 = vmatpush1.msra.mxu0 0.0
    %5266 = vmatprep.subr.mxu0 0.0
    %5267 = vmatpush1.msra.mxu0 0.0
    %5268 = vmatprep.subr.mxu0 0.0
    %5269 = vmatpush1.msra.mxu0 0.0
    %5270 = vmatprep.mubr.f32.mxu0 0.0
    %5271 = vmatmul.mubr.f32.gmra.mrb[0].mxu0 %v5204
    %v5272 = vpop.f32.mrb[0].mxu0
    %v5273 = vadd.f32 0.0, %v5272
    %v5274 = vpop.f32.mrb[0].mxu0
    %5275 = vdwg.mxu0
    %5276 = vmatprep.subr.mxu0 0.0
    %5277 = vmatpush1.msra.mxu0 %v5168
    %5278 = vmatprep.subr.mxu0 0.0
    %5279 = vmatpush1.msra.mxu0 0.0
    %5280 = vmatprep.subr.mxu0 0.0
    %5281 = vmatpush1.msra.mxu0 0.0
    %5282 = vmatprep.subr.mxu0 0.0
    %5283 = vmatpush1.msra.mxu0 0.0
    %5284 = vmatprep.subr.mxu0 0.0
    %5285 = vmatpush1.msra.mxu0 0.0
    %5286 = vmatprep.subr.mxu0 0.0
    %5287 = vmatpush1.msra.mxu0 0.0
    %5288 = vmatprep.subr.mxu0 0.0
    %5289 = vmatpush1.msra.mxu0 0.0
    %5290 = vmatprep.subr.mxu0 0.0
    %5291 = vmatpush1.msra.mxu0 0.0
    %5292 = vmatprep.subr.mxu0 0.0
    %5293 = vmatpush1.msra.mxu0 0.0
    %5294 = vmatprep.subr.mxu0 0.0
    %5295 = vmatpush1.msra.mxu0 0.0
    %5296 = vmatprep.subr.mxu0 0.0
    %5297 = vmatpush1.msra.mxu0 0.0
    %5298 = vmatprep.subr.mxu0 0.0
    %5299 = vmatpush1.msra.mxu0 0.0
    %5300 = vmatprep.subr.mxu0 0.0
    %5301 = vmatpush1.msra.mxu0 0.0
    %5302 = vmatprep.subr.mxu0 0.0
    %5303 = vmatpush1.msra.mxu0 0.0
    %5304 = vmatprep.subr.mxu0 0.0
    %5305 = vmatpush1.msra.mxu0 0.0
    %5306 = vmatprep.subr.mxu0 0.0
    %5307 = vmatpush1.msra.mxu0 0.0
    %5308 = vmatprep.subr.mxu0 0.0
    %5309 = vmatpush1.msra.mxu0 0.0
    %5310 = vmatprep.subr.mxu0 0.0
    %5311 = vmatpush1.msra.mxu0 0.0
    %5312 = vmatprep.subr.mxu0 0.0
    %5313 = vmatpush1.msra.mxu0 0.0
    %5314 = vmatprep.subr.mxu0 0.0
    %5315 = vmatpush1.msra.mxu0 0.0
    %5316 = vmatprep.subr.mxu0 0.0
    %5317 = vmatpush1.msra.mxu0 0.0
    %5318 = vmatprep.subr.mxu0 0.0
    %5319 = vmatpush1.msra.mxu0 0.0
    %5320 = vmatprep.subr.mxu0 0.0
    %5321 = vmatpush1.msra.mxu0 0.0
    %5322 = vmatprep.subr.mxu0 0.0
    %5323 = vmatpush1.msra.mxu0 0.0
    %5324 = vmatprep.subr.mxu0 0.0
    %5325 = vmatpush1.msra.mxu0 0.0
    %5326 = vmatprep.subr.mxu0 0.0
    %5327 = vmatpush1.msra.mxu0 0.0
    %5328 = vmatprep.subr.mxu0 0.0
    %5329 = vmatpush1.msra.mxu0 0.0
    %5330 = vmatprep.subr.mxu0 0.0
    %5331 = vmatpush1.msra.mxu0 0.0
    %5332 = vmatprep.subr.mxu0 0.0
    %5333 = vmatpush1.msra.mxu0 0.0
    %5334 = vmatprep.subr.mxu0 0.0
    %5335 = vmatpush1.msra.mxu0 0.0
    %5336 = vmatprep.subr.mxu0 0.0
    %5337 = vmatpush1.msra.mxu0 0.0
    %5338 = vmatprep.subr.mxu0 0.0
    %5339 = vmatpush1.msra.mxu0 0.0
    %5340 = vmatprep.mubr.f32.mxu0 0.0
    %5341 = vmatmul.mubr.f32.gmra.mrb[0].mxu0 %v5204
    %v5342 = vpop.f32.mrb[0].mxu0
    %v5343 = vadd.f32 0.0, %v5342
    %v5344 = vpop.f32.mrb[0].mxu0
    %5345 = vdwg.mxu0
    %v5346 = vsub.f32 %v5343, %v5273
    %v5347 = vmul.f32 %v5346, 10.0
    %vm5348 = vcmp.lt.f32.partialorder %v5347, 0.0
    %v5349 = vsel %vm5348, -1.0, 1.0
    %v5350 = vand.u32 2147483647, %v5347
    %vm5351 = vcmp.gt.f32.partialorder %v5350, 2.4142137
    %vm5352 = vcmp.gt.f32.partialorder %v5350, 0.41421357
    %v5353 = vsel %vm5352, 0.7853982, 0.0
    %v5354 = vsel %vm5351, 1.5707964, %v5353
    %v5355 = vadd.f32 %v5350, 1e-30
    %v5356 = vrcp.pop %v5355
    %v5357 = vmul.f32 %v5355, %v5356
    %v5358 = vsub.f32 2.0, %v5357
    %v5359 = vmul.f32 %v5356, %v5358
    %v5360 = vadd.f32 %v5350, 1.0
    %v5361 = vrcp.pop %v5360
    %v5362 = vmul.f32 %v5360, %v5361
    %v5363 = vsub.f32 2.0, %v5362
    %v5364 = vmul.f32 %v5361, %v5363
    %v5365 = vsub.f32 0.0, %v5359
    %v5366 = vsub.f32 %v5350, 1.0
    %v5367 = vmul.f32 %v5366, %v5364
    %v5368 = vsel %vm5352, %v5367, %v5350
    %v5369 = vsel %vm5351, %v5365, %v5368
    %v5370 = vmul.f32 %v5369, %v5369
    %v5371 = vmul.f32 %v5370, 0.080537446
    %v5372 = vsub.f32 %v5371, 0.13877685
    %v5373 = vmul.f32 %v5372, %v5370
    %v5374 = vadd.f32 %v5373, 0.19977711
    %v5375 = vmul.f32 %v5374, %v5370
    %v5376 = vsub.f32 %v5375, 0.3333295
    %v5377 = vmul.f32 %v5376, %v5370
    %v5378 = vmul.f32 %v5377, %v5369
    %v5379 = vadd.f32 %v5378, %v5369
    %v5380 = vadd.f32 %v5354, %v5379
    %v5381 = vmul.f32 %v5349, %v5380
    %v5382 = vmul.f32 %v5381, 0.31830987
    %v5383 = vadd.f32 %v5382, 0.5
    %v5384 = vmul.f32 %v5383, %v5273
    %v5385 = vsub.f32 1.0, %v5383
    %v5386 = vmul.f32 %v5385, %v5343
    %v5387 = vadd.f32 %v5384, %v5386
    %v5388 = vadd.f32 %v5273, %v5343
    %5389 = vmatprep.subr.mxu0 0.0
    %5390 = vmatpush1.msra.mxu0 %v5170
    %5391 = vmatprep.subr.mxu0 0.0
    %5392 = vmatpush1.msra.mxu0 %v5171
    %5393 = vmatprep.subr.mxu0 0.0
    %5394 = vmatpush1.msra.mxu0 %v5172
    %5395 = vmatprep.subr.mxu0 0.0
    %5396 = vmatpush1.msra.mxu0 %v5173
    %5397 = vmatprep.subr.mxu0 0.0
    %5398 = vmatpush1.msra.mxu0 %v5174
    %5399 = vmatprep.subr.mxu0 0.0
    %5400 = vmatpush1.msra.mxu0 %v5175
    %5401 = vmatprep.subr.mxu0 0.0
    %5402 = vmatpush1.msra.mxu0 %v5176
    %5403 = vmatprep.subr.mxu0 0.0
    %5404 = vmatpush1.msra.mxu0 %v5177
    %5405 = vmatprep.subr.mxu0 0.0
    %5406 = vmatpush1.msra.mxu0 %v5178
    %5407 = vmatprep.subr.mxu0 0.0
    %5408 = vmatpush1.msra.mxu0 %v5179
    %5409 = vmatprep.subr.mxu0 0.0
    %5410 = vmatpush1.msra.mxu0 %v5180
    %5411 = vmatprep.subr.mxu0 0.0
    %5412 = vmatpush1.msra.mxu0 %v5181
    %5413 = vmatprep.subr.mxu0 0.0
    %5414 = vmatpush1.msra.mxu0 %v5182
    %5415 = vmatprep.subr.mxu0 0.0
    %5416 = vmatpush1.msra.mxu0 %v5183
    %5417 = vmatprep.subr.mxu0 0.0
    %5418 = vmatpush1.msra.mxu0 %v5184
    %5419 = vmatprep.subr.mxu0 0.0
    %5420 = vmatpush1.msra.mxu0 %v5185
    %5421 = vmatprep.subr.mxu0 0.0
    %5422 = vmatpush1.msra.mxu0 0.0
    %5423 = vmatprep.subr.mxu0 0.0
    %5424 = vmatpush1.msra.mxu0 0.0
    %5425 = vmatprep.subr.mxu0 0.0
    %5426 = vmatpush1.msra.mxu0 0.0
    %5427 = vmatprep.subr.mxu0 0.0
    %5428 = vmatpush1.msra.mxu0 0.0
    %5429 = vmatprep.subr.mxu0 0.0
    %5430 = vmatpush1.msra.mxu0 0.0
    %5431 = vmatprep.subr.mxu0 0.0
    %5432 = vmatpush1.msra.mxu0 0.0
    %5433 = vmatprep.subr.mxu0 0.0
    %5434 = vmatpush1.msra.mxu0 0.0
    %5435 = vmatprep.subr.mxu0 0.0
    %5436 = vmatpush1.msra.mxu0 0.0
    %5437 = vmatprep.subr.mxu0 0.0
    %5438 = vmatpush1.msra.mxu0 0.0
    %5439 = vmatprep.subr.mxu0 0.0
    %5440 = vmatpush1.msra.mxu0 0.0
    %5441 = vmatprep.subr.mxu0 0.0
    %5442 = vmatpush1.msra.mxu0 0.0
    %5443 = vmatprep.subr.mxu0 0.0
    %5444 = vmatpush1.msra.mxu0 0.0
    %5445 = vmatprep.subr.mxu0 0.0
    %5446 = vmatpush1.msra.mxu0 0.0
    %5447 = vmatprep.subr.mxu0 0.0
    %5448 = vmatpush1.msra.mxu0 0.0
    %5449 = vmatprep.subr.mxu0 0.0
    %5450 = vmatpush1.msra.mxu0 0.0
    %5451 = vmatprep.subr.mxu0 0.0
    %5452 = vmatpush1.msra.mxu0 0.0
    %5453 = vmatprep.mubr.f32.mxu0 0.0
    %5454 = vmatmul.mubr.f32.gmra.mrb[0].mxu0 %v5388
    %v5455 = vpop.f32.mrb[0].mxu0
    %v5456 = vadd.f32 0.0, %v5455
    %v5457 = vpop.f32.mrb[0].mxu0
    %5458 = vdwg.mxu0
    %5459 = vmatprep.subr.mxu0 0.0
    %5460 = vmatpush1.msra.mxu0 %v5187
    %5461 = vmatprep.subr.mxu0 0.0
    %5462 = vmatpush1.msra.mxu0 %v5188
    %5463 = vmatprep.subr.mxu0 0.0
    %5464 = vmatpush1.msra.mxu0 %v5189
    %5465 = vmatprep.subr.mxu0 0.0
    %5466 = vmatpush1.msra.mxu0 %v5190
    %5467 = vmatprep.subr.mxu0 0.0
    %5468 = vmatpush1.msra.mxu0 %v5191
    %5469 = vmatprep.subr.mxu0 0.0
    %5470 = vmatpush1.msra.mxu0 %v5192
    %5471 = vmatprep.subr.mxu0 0.0
    %5472 = vmatpush1.msra.mxu0 %v5193
    %5473 = vmatprep.subr.mxu0 0.0
    %5474 = vmatpush1.msra.mxu0 %v5194
    %5475 = vmatprep.subr.mxu0 0.0
    %5476 = vmatpush1.msra.mxu0 %v5195
    %5477 = vmatprep.subr.mxu0 0.0
    %5478 = vmatpush1.msra.mxu0 %v5196
    %5479 = vmatprep.subr.mxu0 0.0
    %5480 = vmatpush1.msra.mxu0 %v5197
    %5481 = vmatprep.subr.mxu0 0.0
    %5482 = vmatpush1.msra.mxu0 %v5198
    %5483 = vmatprep.subr.mxu0 0.0
    %5484 = vmatpush1.msra.mxu0 %v5199
    %5485 = vmatprep.subr.mxu0 0.0
    %5486 = vmatpush1.msra.mxu0 %v5200
    %5487 = vmatprep.subr.mxu0 0.0
    %5488 = vmatpush1.msra.mxu0 %v5201
    %5489 = vmatprep.subr.mxu0 0.0
    %5490 = vmatpush1.msra.mxu0 %v5202
    %5491 = vmatprep.subr.mxu0 0.0
    %5492 = vmatpush1.msra.mxu0 0.0
    %5493 = vmatprep.subr.mxu0 0.0
    %5494 = vmatpush1.msra.mxu0 0.0
    %5495 = vmatprep.subr.mxu0 0.0
    %5496 = vmatpush1.msra.mxu0 0.0
    %5497 = vmatprep.subr.mxu0 0.0
    %5498 = vmatpush1.msra.mxu0 0.0
    %5499 = vmatprep.subr.mxu0 0.0
    %5500 = vmatpush1.msra.mxu0 0.0
    %5501 = vmatprep.subr.mxu0 0.0
    %5502 = vmatpush1.msra.mxu0 0.0
    %5503 = vmatprep.subr.mxu0 0.0
    %5504 = vmatpush1.msra.mxu0 0.0
    %5505 = vmatprep.subr.mxu0 0.0
    %5506 = vmatpush1.msra.mxu0 0.0
    %5507 = vmatprep.subr.mxu0 0.0
    %5508 = vmatpush1.msra.mxu0 0.0
    %5509 = vmatprep.subr.mxu0 0.0
    %5510 = vmatpush1.msra.mxu0 0.0
    %5511 = vmatprep.subr.mxu0 0.0
    %5512 = vmatpush1.msra.mxu0 0.0
    %5513 = vmatprep.subr.mxu0 0.0
    %5514 = vmatpush1.msra.mxu0 0.0
    %5515 = vmatprep.subr.mxu0 0.0
    %5516 = vmatpush1.msra.mxu0 0.0
    %5517 = vmatprep.subr.mxu0 0.0
    %5518 = vmatpush1.msra.mxu0 0.0
    %5519 = vmatprep.subr.mxu0 0.0
    %5520 = vmatpush1.msra.mxu0 0.0
    %5521 = vmatprep.subr.mxu0 0.0
    %5522 = vmatpush1.msra.mxu0 0.0
    %5523 = vmatprep.mubr.f32.mxu0 0.0
    %5524 = vmatmul.mubr.f32.gmra.mrb[0].mxu0 %v5387
    %v5525 = vpop.f32.mrb[0].mxu0
    %v5526 = vadd.f32 %v5456, %v5525
    %v5527 = vpop.f32.mrb[0].mxu0
    %5528 = vdwg.mxu0
    %v5530 = vsel %vm113, %v5157, 0
    %v5533 = vsel %vm113, %v5162, 0
    %5535 = vmatprep.subr.mxu0 0.0
    %5536 = vmatpush1.msra.mxu0 %v5166
    %5537 = vmatprep.subr.mxu0 0.0
    %5538 = vmatpush1.msra.mxu0 0.0
    %5539 = vmatprep.subr.mxu0 0.0
    %5540 = vmatpush1.msra.mxu0 0.0
    %5541 = vmatprep.subr.mxu0 0.0
    %5542 = vmatpush1.msra.mxu0 0.0
    %5543 = vmatprep.subr.mxu0 0.0
    %5544 = vmatpush1.msra.mxu0 0.0
    %5545 = vmatprep.subr.mxu0 0.0
    %5546 = vmatpush1.msra.mxu0 0.0
    %5547 = vmatprep.subr.mxu0 0.0
    %5548 = vmatpush1.msra.mxu0 0.0
    %5549 = vmatprep.subr.mxu0 0.0
    %5550 = vmatpush1.msra.mxu0 0.0
    %5551 = vmatprep.subr.mxu0 0.0
    %5552 = vmatpush1.msra.mxu0 0.0
    %5553 = vmatprep.subr.mxu0 0.0
    %5554 = vmatpush1.msra.mxu0 0.0
    %5555 = vmatprep.subr.mxu0 0.0
    %5556 = vmatpush1.msra.mxu0 0.0
    %5557 = vmatprep.subr.mxu0 0.0
    %5558 = vmatpush1.msra.mxu0 0.0
    %5559 = vmatprep.subr.mxu0 0.0
    %5560 = vmatpush1.msra.mxu0 0.0
    %5561 = vmatprep.subr.mxu0 0.0
    %5562 = vmatpush1.msra.mxu0 0.0
    %5563 = vmatprep.subr.mxu0 0.0
    %5564 = vmatpush1.msra.mxu0 0.0
    %5565 = vmatprep.subr.mxu0 0.0
    %5566 = vmatpush1.msra.mxu0 0.0
    %5567 = vmatprep.subr.mxu0 0.0
    %5568 = vmatpush1.msra.mxu0 0.0
    %5569 = vmatprep.subr.mxu0 0.0
    %5570 = vmatpush1.msra.mxu0 0.0
    %5571 = vmatprep.subr.mxu0 0.0
    %5572 = vmatpush1.msra.mxu0 0.0
    %5573 = vmatprep.subr.mxu0 0.0
    %5574 = vmatpush1.msra.mxu0 0.0
    %5575 = vmatprep.subr.mxu0 0.0
    %5576 = vmatpush1.msra.mxu0 0.0
    %5577 = vmatprep.subr.mxu0 0.0
    %5578 = vmatpush1.msra.mxu0 0.0
    %5579 = vmatprep.subr.mxu0 0.0
    %5580 = vmatpush1.msra.mxu0 0.0
    %5581 = vmatprep.subr.mxu0 0.0
    %5582 = vmatpush1.msra.mxu0 0.0
    %5583 = vmatprep.subr.mxu0 0.0
    %5584 = vmatpush1.msra.mxu0 0.0
    %5585 = vmatprep.subr.mxu0 0.0
    %5586 = vmatpush1.msra.mxu0 0.0
    %5587 = vmatprep.subr.mxu0 0.0
    %5588 = vmatpush1.msra.mxu0 0.0
    %5589 = vmatprep.subr.mxu0 0.0
    %5590 = vmatpush1.msra.mxu0 0.0
    %5591 = vmatprep.subr.mxu0 0.0
    %5592 = vmatpush1.msra.mxu0 0.0
    %5593 = vmatprep.subr.mxu0 0.0
    %5594 = vmatpush1.msra.mxu0 0.0
    %5595 = vmatprep.subr.mxu0 0.0
    %5596 = vmatpush1.msra.mxu0 0.0
    %5597 = vmatprep.subr.mxu0 0.0
    %5598 = vmatpush1.msra.mxu0 0.0
    %5599 = vmatprep.mubr.f32.mxu0 0.0
    %5600 = vmatmul.mubr.f32.gmra.mrb[0].mxu0 %v5530
    %v5601 = vpop.f32.mrb[0].mxu0
    %v5602 = vadd.f32 0.0, %v5601
    %v5603 = vpop.f32.mrb[0].mxu0
    %5604 = vmatprep.mubr.f32.mxu0 0.0
    %5605 = vmatmul.mubr.f32.gmra.mrb[0].mxu0 %v5533
    %v5606 = vpop.f32.mrb[0].mxu0
    %v5607 = vadd.f32 0.0, %v5606
    %v5608 = vpop.f32.mrb[0].mxu0
    %5609 = vdwg.mxu0
    %5610 = vmatprep.subr.mxu0 0.0
    %5611 = vmatpush1.msra.mxu0 %v5168
    %5612 = vmatprep.subr.mxu0 0.0
    %5613 = vmatpush1.msra.mxu0 0.0
    %5614 = vmatprep.subr.mxu0 0.0
    %5615 = vmatpush1.msra.mxu0 0.0
    %5616 = vmatprep.subr.mxu0 0.0
    %5617 = vmatpush1.msra.mxu0 0.0
    %5618 = vmatprep.subr.mxu0 0.0
    %5619 = vmatpush1.msra.mxu0 0.0
    %5620 = vmatprep.subr.mxu0 0.0
    %5621 = vmatpush1.msra.mxu0 0.0
    %5622 = vmatprep.subr.mxu0 0.0
    %5623 = vmatpush1.msra.mxu0 0.0
    %5624 = vmatprep.subr.mxu0 0.0
    %5625 = vmatpush1.msra.mxu0 0.0
    %5626 = vmatprep.subr.mxu0 0.0
    %5627 = vmatpush1.msra.mxu0 0.0
    %5628 = vmatprep.subr.mxu0 0.0
    %5629 = vmatpush1.msra.mxu0 0.0
    %5630 = vmatprep.subr.mxu0 0.0
    %5631 = vmatpush1.msra.mxu0 0.0
    %5632 = vmatprep.subr.mxu0 0.0
    %5633 = vmatpush1.msra.mxu0 0.0
    %5634 = vmatprep.subr.mxu0 0.0
    %5635 = vmatpush1.msra.mxu0 0.0
    %5636 = vmatprep.subr.mxu0 0.0
    %5637 = vmatpush1.msra.mxu0 0.0
    %5638 = vmatprep.subr.mxu0 0.0
    %5639 = vmatpush1.msra.mxu0 0.0
    %5640 = vmatprep.subr.mxu0 0.0
    %5641 = vmatpush1.msra.mxu0 0.0
    %5642 = vmatprep.subr.mxu0 0.0
    %5643 = vmatpush1.msra.mxu0 0.0
    %5644 = vmatprep.subr.mxu0 0.0
    %5645 = vmatpush1.msra.mxu0 0.0
    %5646 = vmatprep.subr.mxu0 0.0
    %5647 = vmatpush1.msra.mxu0 0.0
    %5648 = vmatprep.subr.mxu0 0.0
    %5649 = vmatpush1.msra.mxu0 0.0
    %5650 = vmatprep.subr.mxu0 0.0
    %5651 = vmatpush1.msra.mxu0 0.0
    %5652 = vmatprep.subr.mxu0 0.0
    %5653 = vmatpush1.msra.mxu0 0.0
    %5654 = vmatprep.subr.mxu0 0.0
    %5655 = vmatpush1.msra.mxu0 0.0
    %5656 = vmatprep.subr.mxu0 0.0
    %5657 = vmatpush1.msra.mxu0 0.0
    %5658 = vmatprep.subr.mxu0 0.0
    %5659 = vmatpush1.msra.mxu0 0.0
    %5660 = vmatprep.subr.mxu0 0.0
    %5661 = vmatpush1.msra.mxu0 0.0
    %5662 = vmatprep.subr.mxu0 0.0
    %5663 = vmatpush1.msra.mxu0 0.0
    %5664 = vmatprep.subr.mxu0 0.0
    %5665 = vmatpush1.msra.mxu0 0.0
    %5666 = vmatprep.subr.mxu0 0.0
    %5667 = vmatpush1.msra.mxu0 0.0
    %5668 = vmatprep.subr.mxu0 0.0
    %5669 = vmatpush1.msra.mxu0 0.0
    %5670 = vmatprep.subr.mxu0 0.0
    %5671 = vmatpush1.msra.mxu0 0.0
    %5672 = vmatprep.subr.mxu0 0.0
    %5673 = vmatpush1.msra.mxu0 0.0
    %5674 = vmatprep.mubr.f32.mxu0 0.0
    %5675 = vmatmul.mubr.f32.gmra.mrb[0].mxu0 %v5530
    %v5676 = vpop.f32.mrb[0].mxu0
    %v5677 = vadd.f32 0.0, %v5676
    %v5678 = vpop.f32.mrb[0].mxu0
    %5679 = vmatprep.mubr.f32.mxu0 0.0
    %5680 = vmatmul.mubr.f32.gmra.mrb[0].mxu0 %v5533
    %v5681 = vpop.f32.mrb[0].mxu0
    %v5682 = vadd.f32 0.0, %v5681
    %v5683 = vpop.f32.mrb[0].mxu0
    %5684 = vdwg.mxu0
    %v5687 = vunpack.c.l.s4 1966171168
    %v5688 = vunpack.c.0.s8 %v5687
    %v5689 = vlaneseq
    %v5690 = vshrl.u32 %v5689, 7
    %v5691 = vsub.s32 %v5688, %v5690
    %v5692 = vrot.slane %v5383, %v5691
    %v5693 = vcombine.high %v5692, %v5692
    %v5695 = vunpack.c.l.s4 1966171168
    %v5696 = vunpack.c.0.s8 %v5695
    %v5697 = vlaneseq
    %v5698 = vshrl.u32 %v5697, 7
    %v5699 = vsub.s32 %v5696, %v5698
    %v5700 = vrot.slane %v5692, %v5699
    %v5702 = vunpack.c.l.s4 1966171168
    %v5703 = vunpack.c.0.s8 %v5702
    %v5704 = vlaneseq
    %v5705 = vshrl.u32 %v5704, 7
    %v5706 = vsub.s32 %v5703, %v5705
    %v5707 = vrot.slane %v5693, %v5706
    %v5710 = vlaneseq
    %v5711 = vshrl.u32 %v5710, 7
    %v5712 = vsub.s32 0, %v5711
    %v5713 = vrot.slane %v5700, %v5712
    %v5714 = vlaneseq
    %v5715 = vshrl.u32 %v5714, 7
    %v5716 = vsub.s32 0, %v5715
    %v5717 = vrot.slane %v5707, %v5716
    %v5720 = vmul.f32 %v5713, %v5602
    %v5721 = vmul.f32 %v5717, %v5607
    %v5722 = vsub.f32 1.0, %v5700
    %v5723 = vsub.f32 1.0, %v5707
    %v5726 = vlaneseq
    %v5727 = vshrl.u32 %v5726, 7
    %v5728 = vsub.s32 0, %v5727
    %v5729 = vrot.slane %v5722, %v5728
    %v5730 = vlaneseq
    %v5731 = vshrl.u32 %v5730, 7
    %v5732 = vsub.s32 0, %v5731
    %v5733 = vrot.slane %v5723, %v5732
    %v5736 = vmul.f32 %v5729, %v5677
    %v5737 = vmul.f32 %v5733, %v5682
    %v5738 = vadd.f32 %v5720, %v5736
    %v5739 = vadd.f32 %v5721, %v5737
    %v5740 = vadd.f32 %v5602, %v5677
    %v5741 = vadd.f32 %v5607, %v5682
    %5742 = vmatprep.subr.mxu0 0.0
    %5743 = vmatpush1.msra.mxu0 %v5170
    %5744 = vmatprep.subr.mxu0 0.0
    %5745 = vmatpush1.msra.mxu0 %v5171
    %5746 = vmatprep.subr.mxu0 0.0
    %5747 = vmatpush1.msra.mxu0 %v5172
    %5748 = vmatprep.subr.mxu0 0.0
    %5749 = vmatpush1.msra.mxu0 %v5173
    %5750 = vmatprep.subr.mxu0 0.0
    %5751 = vmatpush1.msra.mxu0 %v5174
    %5752 = vmatprep.subr.mxu0 0.0
    %5753 = vmatpush1.msra.mxu0 %v5175
    %5754 = vmatprep.subr.mxu0 0.0
    %5755 = vmatpush1.msra.mxu0 %v5176
    %5756 = vmatprep.subr.mxu0 0.0
    %5757 = vmatpush1.msra.mxu0 %v5177
    %5758 = vmatprep.subr.mxu0 0.0
    %5759 = vmatpush1.msra.mxu0 %v5178
    %5760 = vmatprep.subr.mxu0 0.0
    %5761 = vmatpush1.msra.mxu0 %v5179
    %5762 = vmatprep.subr.mxu0 0.0
    %5763 = vmatpush1.msra.mxu0 %v5180
    %5764 = vmatprep.subr.mxu0 0.0
    %5765 = vmatpush1.msra.mxu0 %v5181
    %5766 = vmatprep.subr.mxu0 0.0
    %5767 = vmatpush1.msra.mxu0 %v5182
    %5768 = vmatprep.subr.mxu0 0.0
    %5769 = vmatpush1.msra.mxu0 %v5183
    %5770 = vmatprep.subr.mxu0 0.0
    %5771 = vmatpush1.msra.mxu0 %v5184
    %5772 = vmatprep.subr.mxu0 0.0
    %5773 = vmatpush1.msra.mxu0 %v5185
    %5774 = vmatprep.subr.mxu0 0.0
    %5775 = vmatpush1.msra.mxu0 0.0
    %5776 = vmatprep.subr.mxu0 0.0
    %5777 = vmatpush1.msra.mxu0 0.0
    %5778 = vmatprep.subr.mxu0 0.0
    %5779 = vmatpush1.msra.mxu0 0.0
    %5780 = vmatprep.subr.mxu0 0.0
    %5781 = vmatpush1.msra.mxu0 0.0
    %5782 = vmatprep.subr.mxu0 0.0
    %5783 = vmatpush1.msra.mxu0 0.0
    %5784 = vmatprep.subr.mxu0 0.0
    %5785 = vmatpush1.msra.mxu0 0.0
    %5786 = vmatprep.subr.mxu0 0.0
    %5787 = vmatpush1.msra.mxu0 0.0
    %5788 = vmatprep.subr.mxu0 0.0
    %5789 = vmatpush1.msra.mxu0 0.0
    %5790 = vmatprep.subr.mxu0 0.0
    %5791 = vmatpush1.msra.mxu0 0.0
    %5792 = vmatprep.subr.mxu0 0.0
    %5793 = vmatpush1.msra.mxu0 0.0
    %5794 = vmatprep.subr.mxu0 0.0
    %5795 = vmatpush1.msra.mxu0 0.0
    %5796 = vmatprep.subr.mxu0 0.0
    %5797 = vmatpush1.msra.mxu0 0.0
    %5798 = vmatprep.subr.mxu0 0.0
    %5799 = vmatpush1.msra.mxu0 0.0
    %5800 = vmatprep.subr.mxu0 0.0
    %5801 = vmatpush1.msra.mxu0 0.0
    %5802 = vmatprep.subr.mxu0 0.0
    %5803 = vmatpush1.msra.mxu0 0.0
    %5804 = vmatprep.subr.mxu0 0.0
    %5805 = vmatpush1.msra.mxu0 0.0
    %5806 = vmatprep.mubr.f32.mxu0 0.0
    %5807 = vmatmul.mubr.f32.gmra.mrb[0].mxu0 %v5740
    %v5808 = vpop.f32.mrb[0].mxu0
    %v5809 = vadd.f32 0.0, %v5808
    %v5810 = vpop.f32.mrb[0].mxu0
    %5811 = vmatprep.mubr.f32.mxu0 0.0
    %5812 = vmatmul.mubr.f32.gmra.mrb[0].mxu0 %v5741
    %v5813 = vpop.f32.mrb[0].mxu0
    %v5814 = vadd.f32 0.0, %v5813
    %v5815 = vpop.f32.mrb[0].mxu0
    %5816 = vdwg.mxu0
    %5817 = vmatprep.subr.mxu0 0.0
    %5818 = vmatpush1.msra.mxu0 %v5187
    %5819 = vmatprep.subr.mxu0 0.0
    %5820 = vmatpush1.msra.mxu0 %v5188
    %5821 = vmatprep.subr.mxu0 0.0
    %5822 = vmatpush1.msra.mxu0 %v5189
    %5823 = vmatprep.subr.mxu0 0.0
    %5824 = vmatpush1.msra.mxu0 %v5190
    %5825 = vmatprep.subr.mxu0 0.0
    %5826 = vmatpush1.msra.mxu0 %v5191
    %5827 = vmatprep.subr.mxu0 0.0
    %5828 = vmatpush1.msra.mxu0 %v5192
    %5829 = vmatprep.subr.mxu0 0.0
    %5830 = vmatpush1.msra.mxu0 %v5193
    %5831 = vmatprep.subr.mxu0 0.0
    %5832 = vmatpush1.msra.mxu0 %v5194
    %5833 = vmatprep.subr.mxu0 0.0
    %5834 = vmatpush1.msra.mxu0 %v5195
    %5835 = vmatprep.subr.mxu0 0.0
    %5836 = vmatpush1.msra.mxu0 %v5196
    %5837 = vmatprep.subr.mxu0 0.0
    %5838 = vmatpush1.msra.mxu0 %v5197
    %5839 = vmatprep.subr.mxu0 0.0
    %5840 = vmatpush1.msra.mxu0 %v5198
    %5841 = vmatprep.subr.mxu0 0.0
    %5842 = vmatpush1.msra.mxu0 %v5199
    %5843 = vmatprep.subr.mxu0 0.0
    %5844 = vmatpush1.msra.mxu0 %v5200
    %5845 = vmatprep.subr.mxu0 0.0
    %5846 = vmatpush1.msra.mxu0 %v5201
    %5847 = vmatprep.subr.mxu0 0.0
    %5848 = vmatpush1.msra.mxu0 %v5202
    %5849 = vmatprep.subr.mxu0 0.0
    %5850 = vmatpush1.msra.mxu0 0.0
    %5851 = vmatprep.subr.mxu0 0.0
    %5852 = vmatpush1.msra.mxu0 0.0
    %5853 = vmatprep.subr.mxu0 0.0
    %5854 = vmatpush1.msra.mxu0 0.0
    %5855 = vmatprep.subr.mxu0 0.0
    %5856 = vmatpush1.msra.mxu0 0.0
    %5857 = vmatprep.subr.mxu0 0.0
    %5858 = vmatpush1.msra.mxu0 0.0
    %5859 = vmatprep.subr.mxu0 0.0
    %5860 = vmatpush1.msra.mxu0 0.0
    %5861 = vmatprep.subr.mxu0 0.0
    %5862 = vmatpush1.msra.mxu0 0.0
    %5863 = vmatprep.subr.mxu0 0.0
    %5864 = vmatpush1.msra.mxu0 0.0
    %5865 = vmatprep.subr.mxu0 0.0
    %5866 = vmatpush1.msra.mxu0 0.0
    %5867 = vmatprep.subr.mxu0 0.0
    %5868 = vmatpush1.msra.mxu0 0.0
    %5869 = vmatprep.subr.mxu0 0.0
    %5870 = vmatpush1.msra.mxu0 0.0
    %5871 = vmatprep.subr.mxu0 0.0
    %5872 = vmatpush1.msra.mxu0 0.0
    %5873 = vmatprep.subr.mxu0 0.0
    %5874 = vmatpush1.msra.mxu0 0.0
    %5875 = vmatprep.subr.mxu0 0.0
    %5876 = vmatpush1.msra.mxu0 0.0
    %5877 = vmatprep.subr.mxu0 0.0
    %5878 = vmatpush1.msra.mxu0 0.0
    %5879 = vmatprep.subr.mxu0 0.0
    %5880 = vmatpush1.msra.mxu0 0.0
    %5881 = vmatprep.mubr.f32.mxu0 0.0
    %5882 = vmatmul.mubr.f32.gmra.mrb[0].mxu0 %v5738
    %v5883 = vpop.f32.mrb[0].mxu0
    %v5884 = vadd.f32 %v5809, %v5883
    %v5885 = vpop.f32.mrb[0].mxu0
    %5886 = vmatprep.mubr.f32.mxu0 0.0
    %5887 = vmatmul.mubr.f32.gmra.mrb[0].mxu0 %v5739
    %v5888 = vpop.f32.mrb[0].mxu0
    %v5889 = vadd.f32 %v5814, %v5888
    %v5890 = vpop.f32.mrb[0].mxu0
    %5891 = vdwg.mxu0
    %vm5892 = vcmask 58368
    %5893 = vst.msk [vmem:[#allocation8] sm:$0x3] %vm5892, %v5526
    %5894 = vst.msk [vmem:[#allocation9] sm:$0xff] %vm113, %v5884
    %5895 = vst.msk [vmem:[#allocation9 + $0x8] sm:$0xff] %vm113, %v5889
    // Predicated region
    $region30: #{tpu_custom_call.1} parent=1 // pred_check
      _
    $region31: #{tpu_custom_call.1} parent=1 // pred_check_branch
      %5897 = sbr.rel (0) target = $region33
    $region32: #{tpu_custom_call.1} parent=1 // pred_region
      %s5899 = ssub.s32 32, 32
      %5900 = vsyncadd [#allocation4], %s5899
      %s5902 = sshll.u32 [#allocation8], 4
      %s5903 = int_to_ptr.vmem [resolvable:$true] %s5902
      %5905 = dma.vmem_to_hbm [thread:$0]  %s5903, 32, %s3, [#allocation4]
    $region33: #{tpu_custom_call.1} parent=1 // pred_fallthru
      _
    // Predicated region
    $region34: #{tpu_custom_call.1} parent=1 // pred_check
      _
    $region35: #{tpu_custom_call.1} parent=1 // pred_check_branch
      %5907 = sbr.rel (0) target = $region37
    $region36: #{tpu_custom_call.1} parent=1 // pred_region
      %s5909 = ssub.s32 256, 256
      %5910 = vsyncadd [#allocation10], %s5909
      %s5911 = sshll.u32 [#allocation9], 4
      %s5912 = int_to_ptr.vmem [resolvable:$true] %s5911
      %5917 = dma.vmem_to_hbm [thread:$0]  %s5912, 256, %s4, [#allocation10], 128, 128, 8
    $region37: #{tpu_custom_call.1} parent=1 // pred_fallthru
      _
    // Predicated region
    $region38: #{tpu_custom_call.1} parent=1 // pred_check
      _
    $region39: #{tpu_custom_call.1} parent=1 // pred_check_branch
      %5919 = sbr.rel (0) target = $region41
    $region40: #{tpu_custom_call.1} parent=1 // pred_region
      %5920 = dma.done [#allocation4], 32
    $region41: #{tpu_custom_call.1} parent=1 // pred_fallthru
      _
    // Predicated region
    $region42: #{tpu_custom_call.1} parent=1 // pred_check
      _
    $region43: #{tpu_custom_call.1} parent=1 // pred_check_branch
      %5922 = sbr.rel (0) target = $region45
    $region44: #{tpu_custom_call.1} parent=1 // pred_region
      %5923 = dma.done [#allocation10], 256
    $region45: #{tpu_custom_call.1} parent=1 // pred_fallthru
      _
    %5924 = vsyncpa [#allocation3], 1
    %5925 = vsyncpa [#allocation6], 1
    %5926 = vsyncpa [#allocation4], 1
    %5927 = vsyncpa [#allocation10], 1

</llo_original>
